<compile_context>
chip_gen: v7x
topology: tpu7x:2x2x1
jax: 0.10.0
libtpu: 0.0.40
codegen_flags: <defaults>
</compile_context>

<pallas_src>
import math
from functools import partial

import numpy as np
import jax
import jax.numpy as jnp
from jax.experimental import pallas as pl
from jax.experimental.pallas import tpu as pltpu

# ----------------------------------------------------------------------------
# Model hyper-parameters (small, same structure as MASTER defaults).
# ----------------------------------------------------------------------------
B_SAMPLES = 2      # independent samples (e.g. dates) -> grid axis
N_STOCKS  = 8      # stocks per sample (PyTorch dim 0)
T_STEPS   = 8      # time steps       (PyTorch dim 1)
D_FEAT    = 16     # input features   (PyTorch d_feat)
D_MODEL   = 32     # model width      (PyTorch d_model)
T_NHEAD   = 4      # TAttention heads
S_NHEAD   = 2      # SAttention heads

# Row layout of the packed "vector" operand, shape (NUM_ROWS, D_MODEL), f32.
ROW_B_IN = 0
ROW_T_G1, ROW_T_B1, ROW_T_G2, ROW_T_B2, ROW_T_FB1, ROW_T_FB2 = 1, 2, 3, 4, 5, 6
ROW_S_G1, ROW_S_B1, ROW_S_G2, ROW_S_B2, ROW_S_FB1, ROW_S_FB2 = 7, 8, 9, 10, 11, 12
ROW_PE   = 13                        # T_STEPS rows of positional encoding
ROW_WOUT = ROW_PE + T_STEPS          # output head weight, stored transposed (1, D)
ROW_BOUT = ROW_WOUT + 1              # output head bias (scalar, stored in column 0)
NUM_ROWS = ROW_BOUT + 1

# Index layout of the fused-QKV stack (2, D, 3D) and square-weight stack (5, D, D).
WIDE_T, WIDE_S = 0, 1
SQ_T_W1, SQ_T_W2, SQ_S_W1, SQ_S_W2, SQ_TEMP = 0, 1, 2, 3, 4


# ----------------------------------------------------------------------------
# Shared math (used both inside the Pallas kernel and for the pure-JAX refs).
# ----------------------------------------------------------------------------
def _contract(expr, a, b, *, use_bf16):
    """MXU contraction.  Kernel mode: bf16 operands, f32 accumulation."""
    if use_bf16:
        return jnp.einsum(expr, a.astype(jnp.bfloat16), b.astype(jnp.bfloat16),
                          preferred_element_type=jnp.float32)
    return jnp.einsum(expr, a.astype(jnp.float32), b.astype(jnp.float32),
                      preferred_element_type=jnp.float32,
                      precision=jax.lax.Precision.HIGHEST)


def _linear(x, w, b=None, *, use_bf16):
    """x: (..., Din) @ w: (Din, Dout) [+ b: (1, Dout)] as a flattened 2-D matmul."""
    shp = x.shape
    y = _contract("md,df->mf", x.reshape(-1, shp[-1]), w, use_bf16=use_bf16)
    if b is not None:
        y = y + b
    return y.reshape(shp[:-1] + (w.shape[-1],))


def _layernorm(x, g, b, eps=1e-5):
    mu = jnp.mean(x, axis=-1, keepdims=True)
    var = jnp.mean((x - mu) ** 2, axis=-1, keepdims=True)
    return (x - mu) * jax.lax.rsqrt(var + eps) * g + b


def _softmax_last(x, *, approx_recip):
    m = jnp.max(x, axis=-1, keepdims=True)
    e = jnp.exp(x - m)
    s = jnp.sum(e, axis=-1, keepdims=True)
    if approx_recip:                           # kernel path: EUP reciprocal
        return e * pl.reciprocal(s, approx=True)
    return e / s


def _attention_block(x, wqkv, g1, b1, g2, b2, w1, fb1, w2, fb2, *,
                     nhead, attend_over_stocks, temperature,
                     use_bf16, approx_recip):
    """One TAttention / SAttention block (dropout = identity)."""
    N, T, D = x.shape
    dh = D // nhead
    xn = _layernorm(x, g1, b1)
    qkv = _linear(xn, wqkv, use_bf16=use_bf16)            # fused QKV: single matmul
    q, k, v = qkv[..., :D], qkv[..., D:2 * D], qkv[..., 2 * D:]
    if attend_over_stocks:                                # SAttention: batch over time
        q, k, v = (jnp.swapaxes(q, 0, 1),
                   jnp.swapaxes(k, 0, 1),
                   jnp.swapaxes(v, 0, 1))                 # (T, N, D)
    if temperature is not None:                           # fold 1/temperature into q once
        q = q * jnp.float32(1.0 / temperature)
    heads = []
    for i in range(nhead):                                # static; Mosaic-safe lane slices
        sl = slice(i * dh, (i + 1) * dh)
        qh, kh, vh = q[..., sl], k[..., sl], v[..., sl]
        s = _contract("bqd,bkd->bqk", qh, kh, use_bf16=use_bf16)
        a = _softmax_last(s, approx_recip=approx_recip)
        heads.append(_contract("bqk,bkd->bqd", a, vh, use_bf16=use_bf16))
    att = jnp.concatenate(heads, axis=-1)
    if attend_over_stocks:
        att = jnp.swapaxes(att, 0, 1)                     # single transpose back
    xt = _layernorm(xn + att, g2, b2)                     # residual uses normed x (torch)
    hid = jnp.maximum(_linear(xt, w1, fb1, use_bf16=use_bf16), 0.0)
    return xt + _linear(hid, w2, fb2, use_bf16=use_bf16)


def _temporal_attention(z, w, *, use_bf16, approx_recip):
    """z: (N, T, D) -> (N, D)."""
    h = _linear(z, w, use_bf16=use_bf16)                  # (N, T, D)
    query = h[:, -1:, :]                                  # (N, 1, D)
    lam = jnp.sum(h * query, axis=-1)                     # (N, T)
    lam = _softmax_last(lam, approx_recip=approx_recip)   # softmax over T
    return jnp.sum(lam[:, :, None] * z, axis=1)           # (N, D)


def master_forward_packed(x, w_in, wqkv, sq, vecs, *, t_nhead, s_nhead,
                          use_bf16, approx_recip):
    """Full MASTER forward for ONE sample.  x: (N, T, d_feat) -> (1, N)."""
    d_model = w_in.shape[1]

    def row(i):                                           # static (1, D) row slice
        return vecs[i:i + 1]

    h = _linear(x, w_in, row(ROW_B_IN), use_bf16=use_bf16)          # (N, T, D)
    h = h + vecs[ROW_PE:ROW_PE + T_STEPS][None, :, :]               # positional encoding
    # TAttention: attention over time, NO temperature (matches torch reference).
    h = _attention_block(h, wqkv[WIDE_T],
                         row(ROW_T_G1), row(ROW_T_B1), row(ROW_T_G2), row(ROW_T_B2),
                         sq[SQ_T_W1], row(ROW_T_FB1), sq[SQ_T_W2], row(ROW_T_FB2),
                         nhead=t_nhead, attend_over_stocks=False, temperature=None,
                         use_bf16=use_bf16, approx_recip=approx_recip)
    # SAttention: attention over stocks, temperature = sqrt(d_model / nhead).
    h = _attention_block(h, wqkv[WIDE_S],
                         row(ROW_S_G1), row(ROW_S_B1), row(ROW_S_G2), row(ROW_S_B2),
                         sq[SQ_S_W1], row(ROW_S_FB1), sq[SQ_S_W2], row(ROW_S_FB2),
                         nhead=s_nhead, attend_over_stocks=True,
                         temperature=math.sqrt(d_model / s_nhead),
                         use_bf16=use_bf16, approx_recip=approx_recip)
    z = _temporal_attention(h, sq[SQ_TEMP], use_bf16=use_bf16,
                            approx_recip=approx_recip)              # (N, D)
    # Output head, lane-major: (1, D) . (N, D)^T -> (1, N).
    scores = _contract("od,nd->on", row(ROW_WOUT), z, use_bf16=use_bf16)
    scores = scores + vecs[ROW_BOUT:ROW_BOUT + 1, 0:1]              # scalar bias
    return scores - jnp.mean(scores, axis=-1, keepdims=True)        # demean over stocks


# ----------------------------------------------------------------------------
# Pallas kernel + wrapper.
# ----------------------------------------------------------------------------
def master_kernel(x_ref, w_in_ref, wqkv_ref, sq_ref, vec_ref, out_ref, *,
                  t_nhead, s_nhead):
    out_ref[...] = master_forward_packed(
        x_ref[...], w_in_ref[...], wqkv_ref[...], sq_ref[...], vec_ref[...],
        t_nhead=t_nhead, s_nhead=s_nhead, use_bf16=True, approx_recip=True)


def run_master(x, packed, *, t_nhead=T_NHEAD, s_nhead=S_NHEAD):
    """x: (B, N, T, d_feat) float32 -> (B, N) per-sample demeaned scores."""
    w_in, wqkv, sq, vecs = packed
    B, N, T, F = x.shape
    D = w_in.shape[1]
    kernel = partial(master_kernel, t_nhead=t_nhead, s_nhead=s_nhead)
    out = pl.pallas_call(
        kernel,
        grid=(B,),
        in_specs=[
            pl.BlockSpec((None, N, T, F), lambda b: (b, 0, 0, 0)),   # per-sample x
            pl.BlockSpec((F, D), lambda b: (0, 0)),                  # packed params:
            pl.BlockSpec(wqkv.shape, lambda b: (0, 0, 0)),           #  same block every
            pl.BlockSpec(sq.shape, lambda b: (0, 0, 0)),             #  step -> fetched once
            pl.BlockSpec(vecs.shape, lambda b: (0, 0)),
        ],
        out_specs=pl.BlockSpec((None, 1, N), lambda b: (b, 0, 0)),   # lane-major scores
        out_shape=jax.ShapeDtypeStruct((B, 1, N), jnp.float32),
        compiler_params=pltpu.CompilerParams(
            dimension_semantics=("parallel",)),    # shard samples across TCs on v7x
    )(x, w_in, wqkv, sq, vecs)
    return out[:, 0, :]                                              # (B, N)


# ----------------------------------------------------------------------------
# Parameter construction / packing (packing runs once, outside the kernel).
# ----------------------------------------------------------------------------
def make_pe(T, d_model):
    position = np.arange(T, dtype=np.float32)[:, None]
    div_term = np.exp(np.arange(0, d_model, 2, dtype=np.float32)
                      * (-math.log(10000.0) / d_model))
    pe = np.zeros((T, d_model), dtype=np.float32)
    pe[:, 0::2] = np.sin(position * div_term)
    pe[:, 1::2] = np.cos(position * div_term)
    return jnp.asarray(pe)


def init_params(key, d_feat=D_FEAT, d_model=D_MODEL, T=T_STEPS):
    keys = iter(jax.random.split(key, 32))

    def nrm(shape, scale):
        return jax.random.normal(next(keys), shape, dtype=jnp.float32) * scale

    s = 1.0 / math.sqrt(d_model)
    p = {
        "w_in": nrm((d_feat, d_model), 1.0 / math.sqrt(d_feat)),
        "b_in": nrm((1, d_model), 0.01),
        "pe": make_pe(T, d_model),
    }
    for pref in ("t_", "s_"):
        p[pref + "wq"] = nrm((d_model, d_model), s)
        p[pref + "wk"] = nrm((d_model, d_model), s)
        p[pref + "wv"] = nrm((d_model, d_model), s)
        p[pref + "g1"] = 1.0 + nrm((1, d_model), 0.05)
        p[pref + "b1"] = nrm((1, d_model), 0.05)
        p[pref + "g2"] = 1.0 + nrm((1, d_model), 0.05)
        p[pref + "b2"] = nrm((1, d_model), 0.05)
        p[pref + "w1"] = nrm((d_model, d_model), s)
        p[pref + "fb1"] = nrm((1, d_model), 0.01)
        p[pref + "w2"] = nrm((d_model, d_model), s)
        p[pref + "fb2"] = nrm((1, d_model), 0.01)
    p["temp_w"] = nrm((d_model, d_model), s)
    p["w_out"] = nrm((d_model, 1), s)
    p["b_out"] = nrm((1, 1), 0.01)
    return p


def pack_params(p, *, matmul_dtype=jnp.bfloat16):
    """Pack the 25 parameter tensors into 4 stacked operands.

    Matmul weights (w_in / fused-QKV / square stack) are stored in `matmul_dtype`
    (bf16 for the kernel: halves their HBM traffic, no in-kernel weight cast).
    Row stack (biases / LN affines / PE / output head) stays f32.
    """
    d_model = p["w_in"].shape[1]
    w_in = p["w_in"].astype(matmul_dtype)
    wqkv = jnp.stack([
        jnp.concatenate([p["t_wq"], p["t_wk"], p["t_wv"]], axis=1),
        jnp.concatenate([p["s_wq"], p["s_wk"], p["s_wv"]], axis=1)],
        axis=0).astype(matmul_dtype)
    sq = jnp.stack([p["t_w1"], p["t_w2"], p["s_w1"], p["s_w2"], p["temp_w"]],
                   axis=0).astype(matmul_dtype)
    b_out_row = jnp.zeros((1, d_model), jnp.float32).at[0, 0].set(p["b_out"][0, 0])
    rows = [p["b_in"],
            p["t_g1"], p["t_b1"], p["t_g2"], p["t_b2"], p["t_fb1"], p["t_fb2"],
            p["s_g1"], p["s_b1"], p["s_g2"], p["s_b2"], p["s_fb1"], p["s_fb2"],
            p["pe"],
            p["w_out"].T,
            b_out_row]
    vecs = jnp.concatenate(rows, axis=0)
    assert vecs.shape == (NUM_ROWS, d_model), vecs.shape
    return w_in, wqkv, sq, vecs


# ----------------------------------------------------------------------------
# Demo + correctness checks.
# ----------------------------------------------------------------------------
if __name__ == "__main__":
    key = jax.random.PRNGKey(0)
    kx, kp = jax.random.split(key)
    x = jax.random.normal(kx, (B_SAMPLES, N_STOCKS, T_STEPS, D_FEAT),
                          dtype=jnp.float32)
    params = init_params(kp)
    packed_bf16 = pack_params(params, matmul_dtype=jnp.bfloat16)   # kernel operands
    packed_f32 = pack_params(params, matmul_dtype=jnp.float32)     # f32 reference

    out = run_master(x, packed_bf16)                    # (B, N)
    jax.block_until_ready(out)

    assert out.shape == (B_SAMPLES, N_STOCKS), out.shape
    assert bool(jnp.all(jnp.isfinite(out)))

    # Ref A: identical bf16-matmul math in plain JAX (validates the Pallas lowering).
    ref_bf16 = jnp.stack([
        master_forward_packed(x[b], *packed_bf16, t_nhead=T_NHEAD, s_nhead=S_NHEAD,
                              use_bf16=True, approx_recip=False)[0]
        for b in range(B_SAMPLES)])
    # Ref B: full-f32 HIGHEST-precision math (validates bf16/approx-recip fidelity).
    ref_f32 = jnp.stack([
        master_forward_packed(x[b], *packed_f32, t_nhead=T_NHEAD, s_nhead=S_NHEAD,
                              use_bf16=False, approx_recip=False)[0]
        for b in range(B_SAMPLES)])
    jax.block_until_ready((ref_bf16, ref_f32))

    np.testing.assert_allclose(np.asarray(out), np.asarray(ref_bf16),
                               rtol=2e-2, atol=2e-2)
    np.testing.assert_allclose(np.asarray(out), np.asarray(ref_f32),
                               rtol=5e-2, atol=5e-2)
    print("KERNEL_OK")
</pallas_src>

<mosaic_0001>
module attributes {stable_mosaic.version = 11 : i64} {
  func.func @master_kernel(%arg0: i32, %arg1: memref<1x8x8x16xf32, #tpu.memory_space<vmem>>, %arg2: memref<16x32xbf16, #tpu.memory_space<vmem>>, %arg3: memref<2x32x96xbf16, #tpu.memory_space<vmem>>, %arg4: memref<5x32x32xbf16, #tpu.memory_space<vmem>>, %arg5: memref<23x32xf32, #tpu.memory_space<vmem>>, %arg6: memref<1x1x8xf32, #tpu.memory_space<vmem>>) attributes {dimension_semantics = [#tpu.dimension_semantics<parallel>], iteration_bounds = array<i64: 2>, scalar_prefetch = 0 : i64, scratch_operands = 0 : i64, tpu.core_type = #tpu.core_type<tc>, window_params = [{transform_indices = @transform_0, window_bounds = array<i64: 1, 8, 8, 16>}, {pipeline_mode = #tpu.pipeline_mode<synchronous>, transform_indices = @transform_1, window_bounds = array<i64: 16, 32>}, {pipeline_mode = #tpu.pipeline_mode<synchronous>, transform_indices = @transform_2, window_bounds = array<i64: 2, 32, 96>}, {pipeline_mode = #tpu.pipeline_mode<synchronous>, transform_indices = @transform_3, window_bounds = array<i64: 5, 32, 32>}, {pipeline_mode = #tpu.pipeline_mode<synchronous>, transform_indices = @transform_4, window_bounds = array<i64: 23, 32>}, {transform_indices = @transform_5, window_bounds = array<i64: 1, 1, 8>}]} {
    %c0 = arith.constant 0 : index
    %c0_0 = arith.constant 0 : index
    %c0_1 = arith.constant 0 : index
    %c0_2 = arith.constant 0 : index
    %0 = vector.load %arg1[%c0, %c0_0, %c0_1, %c0_2] : memref<1x8x8x16xf32, #tpu.memory_space<vmem>>, vector<1x8x8x16xf32>
    %1 = vector.shape_cast %0 : vector<1x8x8x16xf32> to vector<8x8x16xf32>
    %c0_3 = arith.constant 0 : index
    %c0_4 = arith.constant 0 : index
    %2 = vector.load %arg2[%c0_3, %c0_4] : memref<16x32xbf16, #tpu.memory_space<vmem>>, vector<16x32xbf16>
    %c0_5 = arith.constant 0 : index
    %c0_6 = arith.constant 0 : index
    %c0_7 = arith.constant 0 : index
    %3 = vector.load %arg3[%c0_5, %c0_6, %c0_7] : memref<2x32x96xbf16, #tpu.memory_space<vmem>>, vector<2x32x96xbf16>
    %c0_8 = arith.constant 0 : index
    %c0_9 = arith.constant 0 : index
    %c0_10 = arith.constant 0 : index
    %4 = vector.load %arg4[%c0_8, %c0_9, %c0_10] : memref<5x32x32xbf16, #tpu.memory_space<vmem>>, vector<5x32x32xbf16>
    %c0_11 = arith.constant 0 : index
    %c0_12 = arith.constant 0 : index
    %5 = vector.load %arg5[%c0_11, %c0_12] : memref<23x32xf32, #tpu.memory_space<vmem>>, vector<23x32xf32>
    %6 = vector.extract_strided_slice %5 {offsets = [0, 0], sizes = [1, 32], strides = [1, 1]} : vector<23x32xf32> to vector<1x32xf32>
    %7 = vector.shape_cast %1 : vector<8x8x16xf32> to vector<64x16xf32>
    %8 = arith.truncf %7 : vector<64x16xf32> to vector<64x16xbf16>
    "tpu.trace_start"() <{level = 10 : i32, message = "md,df->mf"}> : () -> ()
    %cst = arith.constant dense<0.000000e+00> : vector<64x32xf32>
    %9 = tpu.matmul %8, %2, %cst {dimension_numbers = #tpu.dot_dimension_numbers<[1], [0], [0], [1], [0, 0, 1, 1], [], []>} : vector<64x16xbf16>, vector<16x32xbf16>, vector<64x32xf32> -> vector<64x32xf32>
    "tpu.trace_stop"() : () -> ()
    %10 = vector.broadcast %6 : vector<1x32xf32> to vector<64x32xf32>
    %11 = arith.addf %9, %10 : vector<64x32xf32>
    %12 = vector.shape_cast %11 : vector<64x32xf32> to vector<8x8x32xf32>
    %13 = vector.extract_strided_slice %5 {offsets = [13, 0], sizes = [8, 32], strides = [1, 1]} : vector<23x32xf32> to vector<8x32xf32>
    %14 = vector.shape_cast %13 : vector<8x32xf32> to vector<1x8x32xf32>
    %15 = vector.broadcast %14 : vector<1x8x32xf32> to vector<8x8x32xf32>
    %16 = arith.addf %12, %15 : vector<8x8x32xf32>
    %17 = vector.extract_strided_slice %3 {offsets = [0, 0, 0], sizes = [1, 32, 96], strides = [1, 1, 1]} : vector<2x32x96xbf16> to vector<1x32x96xbf16>
    %18 = vector.shape_cast %17 : vector<1x32x96xbf16> to vector<32x96xbf16>
    %19 = vector.extract_strided_slice %5 {offsets = [1, 0], sizes = [1, 32], strides = [1, 1]} : vector<23x32xf32> to vector<1x32xf32>
    %20 = vector.extract_strided_slice %5 {offsets = [2, 0], sizes = [1, 32], strides = [1, 1]} : vector<23x32xf32> to vector<1x32xf32>
    %21 = vector.extract_strided_slice %5 {offsets = [3, 0], sizes = [1, 32], strides = [1, 1]} : vector<23x32xf32> to vector<1x32xf32>
    %22 = vector.extract_strided_slice %5 {offsets = [4, 0], sizes = [1, 32], strides = [1, 1]} : vector<23x32xf32> to vector<1x32xf32>
    %23 = vector.extract_strided_slice %4 {offsets = [0, 0, 0], sizes = [1, 32, 32], strides = [1, 1, 1]} : vector<5x32x32xbf16> to vector<1x32x32xbf16>
    %24 = vector.shape_cast %23 : vector<1x32x32xbf16> to vector<32x32xbf16>
    %25 = vector.extract_strided_slice %5 {offsets = [5, 0], sizes = [1, 32], strides = [1, 1]} : vector<23x32xf32> to vector<1x32xf32>
    %26 = vector.extract_strided_slice %4 {offsets = [1, 0, 0], sizes = [1, 32, 32], strides = [1, 1, 1]} : vector<5x32x32xbf16> to vector<1x32x32xbf16>
    %27 = vector.shape_cast %26 : vector<1x32x32xbf16> to vector<32x32xbf16>
    %28 = vector.extract_strided_slice %5 {offsets = [6, 0], sizes = [1, 32], strides = [1, 1]} : vector<23x32xf32> to vector<1x32xf32>
    %cst_13 = arith.constant dense<0.000000e+00> : vector<8x8xf32>
    %29 = vector.multi_reduction <add>, %16, %cst_13 [2] : vector<8x8x32xf32> to vector<8x8xf32>
    %30 = vector.shape_cast %29 : vector<8x8xf32> to vector<8x8x1xf32>
    %cst_14 = arith.constant 3.200000e+01 : f32
    %31 = vector.broadcast %cst_14 : f32 to vector<8x8x1xf32>
    %32 = arith.divf %30, %31 : vector<8x8x1xf32>
    %33 = vector.broadcast %32 : vector<8x8x1xf32> to vector<8x8x32xf32>
    %34 = arith.subf %16, %33 : vector<8x8x32xf32>
    %35 = arith.mulf %34, %34 : vector<8x8x32xf32>
    %cst_15 = arith.constant dense<0.000000e+00> : vector<8x8xf32>
    %36 = vector.multi_reduction <add>, %35, %cst_15 [2] : vector<8x8x32xf32> to vector<8x8xf32>
    %37 = vector.shape_cast %36 : vector<8x8xf32> to vector<8x8x1xf32>
    %cst_16 = arith.constant 3.200000e+01 : f32
    %38 = vector.broadcast %cst_16 : f32 to vector<8x8x1xf32>
    %39 = arith.divf %37, %38 : vector<8x8x1xf32>
    %40 = vector.broadcast %32 : vector<8x8x1xf32> to vector<8x8x32xf32>
    %41 = arith.subf %16, %40 : vector<8x8x32xf32>
    %cst_17 = arith.constant 9.99999974E-6 : f32
    %42 = vector.broadcast %cst_17 : f32 to vector<8x8x1xf32>
    %43 = arith.addf %39, %42 : vector<8x8x1xf32>
    %44 = math.rsqrt %43 : vector<8x8x1xf32>
    %45 = vector.broadcast %44 : vector<8x8x1xf32> to vector<8x8x32xf32>
    %46 = arith.mulf %41, %45 : vector<8x8x32xf32>
    %47 = vector.shape_cast %19 : vector<1x32xf32> to vector<1x1x32xf32>
    %48 = vector.broadcast %47 : vector<1x1x32xf32> to vector<8x8x32xf32>
    %49 = arith.mulf %46, %48 : vector<8x8x32xf32>
    %50 = vector.shape_cast %20 : vector<1x32xf32> to vector<1x1x32xf32>
    %51 = vector.broadcast %50 : vector<1x1x32xf32> to vector<8x8x32xf32>
    %52 = arith.addf %49, %51 : vector<8x8x32xf32>
    %53 = vector.shape_cast %52 : vector<8x8x32xf32> to vector<64x32xf32>
    %54 = arith.truncf %53 : vector<64x32xf32> to vector<64x32xbf16>
    "tpu.trace_start"() <{level = 10 : i32, message = "md,df->mf"}> : () -> ()
    %cst_18 = arith.constant dense<0.000000e+00> : vector<64x96xf32>
    %55 = tpu.matmul %54, %18, %cst_18 {dimension_numbers = #tpu.dot_dimension_numbers<[1], [0], [0], [1], [0, 0, 1, 1], [], []>} : vector<64x32xbf16>, vector<32x96xbf16>, vector<64x96xf32> -> vector<64x96xf32>
    "tpu.trace_stop"() : () -> ()
    %56 = vector.shape_cast %55 : vector<64x96xf32> to vector<8x8x96xf32>
    %57 = vector.extract_strided_slice %56 {offsets = [0, 0, 0], sizes = [8, 8, 32], strides = [1, 1, 1]} : vector<8x8x96xf32> to vector<8x8x32xf32>
    %58 = vector.extract_strided_slice %56 {offsets = [0, 0, 32], sizes = [8, 8, 32], strides = [1, 1, 1]} : vector<8x8x96xf32> to vector<8x8x32xf32>
    %59 = vector.extract_strided_slice %56 {offsets = [0, 0, 64], sizes = [8, 8, 32], strides = [1, 1, 1]} : vector<8x8x96xf32> to vector<8x8x32xf32>
    %60 = vector.extract_strided_slice %57 {offsets = [0, 0, 0], sizes = [8, 8, 8], strides = [1, 1, 1]} : vector<8x8x32xf32> to vector<8x8x8xf32>
    %61 = vector.extract_strided_slice %58 {offsets = [0, 0, 0], sizes = [8, 8, 8], strides = [1, 1, 1]} : vector<8x8x32xf32> to vector<8x8x8xf32>
    %62 = vector.extract_strided_slice %59 {offsets = [0, 0, 0], sizes = [8, 8, 8], strides = [1, 1, 1]} : vector<8x8x32xf32> to vector<8x8x8xf32>
    %63 = arith.truncf %60 : vector<8x8x8xf32> to vector<8x8x8xbf16>
    %64 = arith.truncf %61 : vector<8x8x8xf32> to vector<8x8x8xbf16>
    "tpu.trace_start"() <{level = 10 : i32, message = "bqd,bkd->bqk"}> : () -> ()
    %cst_19 = arith.constant dense<0.000000e+00> : vector<8x8x8xf32>
    %65 = tpu.matmul %63, %64, %cst_19 {dimension_numbers = #tpu.dot_dimension_numbers<[2], [2], [1], [1], [0, 0, 0, 1, 1, 1], [0], [0]>} : vector<8x8x8xbf16>, vector<8x8x8xbf16>, vector<8x8x8xf32> -> vector<8x8x8xf32>
    "tpu.trace_stop"() : () -> ()
    %cst_20 = arith.constant dense<0xFF800000> : vector<8x8xf32>
    %66 = vector.multi_reduction <maximumf>, %65, %cst_20 [2] : vector<8x8x8xf32> to vector<8x8xf32>
    %67 = vector.shape_cast %66 : vector<8x8xf32> to vector<8x8x1xf32>
    %68 = vector.broadcast %67 : vector<8x8x1xf32> to vector<8x8x8xf32>
    %69 = arith.subf %65, %68 : vector<8x8x8xf32>
    %70 = math.exp %69 : vector<8x8x8xf32>
    %cst_21 = arith.constant dense<0.000000e+00> : vector<8x8xf32>
    %71 = vector.multi_reduction <add>, %70, %cst_21 [2] : vector<8x8x8xf32> to vector<8x8xf32>
    %72 = vector.shape_cast %71 : vector<8x8xf32> to vector<8x8x1xf32>
    %73 = tpu.reciprocal %72 {approx = true} : vector<8x8x1xf32> -> vector<8x8x1xf32>
    %74 = vector.broadcast %73 : vector<8x8x1xf32> to vector<8x8x8xf32>
    %75 = arith.mulf %70, %74 : vector<8x8x8xf32>
    %76 = arith.truncf %75 : vector<8x8x8xf32> to vector<8x8x8xbf16>
    %77 = arith.truncf %62 : vector<8x8x8xf32> to vector<8x8x8xbf16>
    "tpu.trace_start"() <{level = 10 : i32, message = "bqk,bkd->bqd"}> : () -> ()
    %cst_22 = arith.constant dense<0.000000e+00> : vector<8x8x8xf32>
    %78 = tpu.matmul %76, %77, %cst_22 {dimension_numbers = #tpu.dot_dimension_numbers<[2], [1], [1], [2], [0, 0, 0, 1, 1, 2], [0], [0]>} : vector<8x8x8xbf16>, vector<8x8x8xbf16>, vector<8x8x8xf32> -> vector<8x8x8xf32>
    "tpu.trace_stop"() : () -> ()
    %79 = vector.extract_strided_slice %57 {offsets = [0, 0, 8], sizes = [8, 8, 8], strides = [1, 1, 1]} : vector<8x8x32xf32> to vector<8x8x8xf32>
    %80 = vector.extract_strided_slice %58 {offsets = [0, 0, 8], sizes = [8, 8, 8], strides = [1, 1, 1]} : vector<8x8x32xf32> to vector<8x8x8xf32>
    %81 = vector.extract_strided_slice %59 {offsets = [0, 0, 8], sizes = [8, 8, 8], strides = [1, 1, 1]} : vector<8x8x32xf32> to vector<8x8x8xf32>
    %82 = arith.truncf %79 : vector<8x8x8xf32> to vector<8x8x8xbf16>
    %83 = arith.truncf %80 : vector<8x8x8xf32> to vector<8x8x8xbf16>
    "tpu.trace_start"() <{level = 10 : i32, message = "bqd,bkd->bqk"}> : () -> ()
    %cst_23 = arith.constant dense<0.000000e+00> : vector<8x8x8xf32>
    %84 = tpu.matmul %82, %83, %cst_23 {dimension_numbers = #tpu.dot_dimension_numbers<[2], [2], [1], [1], [0, 0, 0, 1, 1, 1], [0], [0]>} : vector<8x8x8xbf16>, vector<8x8x8xbf16>, vector<8x8x8xf32> -> vector<8x8x8xf32>
    "tpu.trace_stop"() : () -> ()
    %cst_24 = arith.constant dense<0xFF800000> : vector<8x8xf32>
    %85 = vector.multi_reduction <maximumf>, %84, %cst_24 [2] : vector<8x8x8xf32> to vector<8x8xf32>
    %86 = vector.shape_cast %85 : vector<8x8xf32> to vector<8x8x1xf32>
    %87 = vector.broadcast %86 : vector<8x8x1xf32> to vector<8x8x8xf32>
    %88 = arith.subf %84, %87 : vector<8x8x8xf32>
    %89 = math.exp %88 : vector<8x8x8xf32>
    %cst_25 = arith.constant dense<0.000000e+00> : vector<8x8xf32>
    %90 = vector.multi_reduction <add>, %89, %cst_25 [2] : vector<8x8x8xf32> to vector<8x8xf32>
    %91 = vector.shape_cast %90 : vector<8x8xf32> to vector<8x8x1xf32>
    %92 = tpu.reciprocal %91 {approx = true} : vector<8x8x1xf32> -> vector<8x8x1xf32>
    %93 = vector.broadcast %92 : vector<8x8x1xf32> to vector<8x8x8xf32>
    %94 = arith.mulf %89, %93 : vector<8x8x8xf32>
    %95 = arith.truncf %94 : vector<8x8x8xf32> to vector<8x8x8xbf16>
    %96 = arith.truncf %81 : vector<8x8x8xf32> to vector<8x8x8xbf16>
    "tpu.trace_start"() <{level = 10 : i32, message = "bqk,bkd->bqd"}> : () -> ()
    %cst_26 = arith.constant dense<0.000000e+00> : vector<8x8x8xf32>
    %97 = tpu.matmul %95, %96, %cst_26 {dimension_numbers = #tpu.dot_dimension_numbers<[2], [1], [1], [2], [0, 0, 0, 1, 1, 2], [0], [0]>} : vector<8x8x8xbf16>, vector<8x8x8xbf16>, vector<8x8x8xf32> -> vector<8x8x8xf32>
    "tpu.trace_stop"() : () -> ()
    %98 = vector.extract_strided_slice %57 {offsets = [0, 0, 16], sizes = [8, 8, 8], strides = [1, 1, 1]} : vector<8x8x32xf32> to vector<8x8x8xf32>
    %99 = vector.extract_strided_slice %58 {offsets = [0, 0, 16], sizes = [8, 8, 8], strides = [1, 1, 1]} : vector<8x8x32xf32> to vector<8x8x8xf32>
    %100 = vector.extract_strided_slice %59 {offsets = [0, 0, 16], sizes = [8, 8, 8], strides = [1, 1, 1]} : vector<8x8x32xf32> to vector<8x8x8xf32>
    %101 = arith.truncf %98 : vector<8x8x8xf32> to vector<8x8x8xbf16>
    %102 = arith.truncf %99 : vector<8x8x8xf32> to vector<8x8x8xbf16>
    "tpu.trace_start"() <{level = 10 : i32, message = "bqd,bkd->bqk"}> : () -> ()
    %cst_27 = arith.constant dense<0.000000e+00> : vector<8x8x8xf32>
    %103 = tpu.matmul %101, %102, %cst_27 {dimension_numbers = #tpu.dot_dimension_numbers<[2], [2], [1], [1], [0, 0, 0, 1, 1, 1], [0], [0]>} : vector<8x8x8xbf16>, vector<8x8x8xbf16>, vector<8x8x8xf32> -> vector<8x8x8xf32>
    "tpu.trace_stop"() : () -> ()
    %cst_28 = arith.constant dense<0xFF800000> : vector<8x8xf32>
    %104 = vector.multi_reduction <maximumf>, %103, %cst_28 [2] : vector<8x8x8xf32> to vector<8x8xf32>
    %105 = vector.shape_cast %104 : vector<8x8xf32> to vector<8x8x1xf32>
    %106 = vector.broadcast %105 : vector<8x8x1xf32> to vector<8x8x8xf32>
    %107 = arith.subf %103, %106 : vector<8x8x8xf32>
    %108 = math.exp %107 : vector<8x8x8xf32>
    %cst_29 = arith.constant dense<0.000000e+00> : vector<8x8xf32>
    %109 = vector.multi_reduction <add>, %108, %cst_29 [2] : vector<8x8x8xf32> to vector<8x8xf32>
    %110 = vector.shape_cast %109 : vector<8x8xf32> to vector<8x8x1xf32>
    %111 = tpu.reciprocal %110 {approx = true} : vector<8x8x1xf32> -> vector<8x8x1xf32>
    %112 = vector.broadcast %111 : vector<8x8x1xf32> to vector<8x8x8xf32>
    %113 = arith.mulf %108, %112 : vector<8x8x8xf32>
    %114 = arith.truncf %113 : vector<8x8x8xf32> to vector<8x8x8xbf16>
    %115 = arith.truncf %100 : vector<8x8x8xf32> to vector<8x8x8xbf16>
    "tpu.trace_start"() <{level = 10 : i32, message = "bqk,bkd->bqd"}> : () -> ()
    %cst_30 = arith.constant dense<0.000000e+00> : vector<8x8x8xf32>
    %116 = tpu.matmul %114, %115, %cst_30 {dimension_numbers = #tpu.dot_dimension_numbers<[2], [1], [1], [2], [0, 0, 0, 1, 1, 2], [0], [0]>} : vector<8x8x8xbf16>, vector<8x8x8xbf16>, vector<8x8x8xf32> -> vector<8x8x8xf32>
    "tpu.trace_stop"() : () -> ()
    %117 = vector.extract_strided_slice %57 {offsets = [0, 0, 24], sizes = [8, 8, 8], strides = [1, 1, 1]} : vector<8x8x32xf32> to vector<8x8x8xf32>
    %118 = vector.extract_strided_slice %58 {offsets = [0, 0, 24], sizes = [8, 8, 8], strides = [1, 1, 1]} : vector<8x8x32xf32> to vector<8x8x8xf32>
    %119 = vector.extract_strided_slice %59 {offsets = [0, 0, 24], sizes = [8, 8, 8], strides = [1, 1, 1]} : vector<8x8x32xf32> to vector<8x8x8xf32>
    %120 = arith.truncf %117 : vector<8x8x8xf32> to vector<8x8x8xbf16>
    %121 = arith.truncf %118 : vector<8x8x8xf32> to vector<8x8x8xbf16>
    "tpu.trace_start"() <{level = 10 : i32, message = "bqd,bkd->bqk"}> : () -> ()
    %cst_31 = arith.constant dense<0.000000e+00> : vector<8x8x8xf32>
    %122 = tpu.matmul %120, %121, %cst_31 {dimension_numbers = #tpu.dot_dimension_numbers<[2], [2], [1], [1], [0, 0, 0, 1, 1, 1], [0], [0]>} : vector<8x8x8xbf16>, vector<8x8x8xbf16>, vector<8x8x8xf32> -> vector<8x8x8xf32>
    "tpu.trace_stop"() : () -> ()
    %cst_32 = arith.constant dense<0xFF800000> : vector<8x8xf32>
    %123 = vector.multi_reduction <maximumf>, %122, %cst_32 [2] : vector<8x8x8xf32> to vector<8x8xf32>
    %124 = vector.shape_cast %123 : vector<8x8xf32> to vector<8x8x1xf32>
    %125 = vector.broadcast %124 : vector<8x8x1xf32> to vector<8x8x8xf32>
    %126 = arith.subf %122, %125 : vector<8x8x8xf32>
    %127 = math.exp %126 : vector<8x8x8xf32>
    %cst_33 = arith.constant dense<0.000000e+00> : vector<8x8xf32>
    %128 = vector.multi_reduction <add>, %127, %cst_33 [2] : vector<8x8x8xf32> to vector<8x8xf32>
    %129 = vector.shape_cast %128 : vector<8x8xf32> to vector<8x8x1xf32>
    %130 = tpu.reciprocal %129 {approx = true} : vector<8x8x1xf32> -> vector<8x8x1xf32>
    %131 = vector.broadcast %130 : vector<8x8x1xf32> to vector<8x8x8xf32>
    %132 = arith.mulf %127, %131 : vector<8x8x8xf32>
    %133 = arith.truncf %132 : vector<8x8x8xf32> to vector<8x8x8xbf16>
    %134 = arith.truncf %119 : vector<8x8x8xf32> to vector<8x8x8xbf16>
    "tpu.trace_start"() <{level = 10 : i32, message = "bqk,bkd->bqd"}> : () -> ()
    %cst_34 = arith.constant dense<0.000000e+00> : vector<8x8x8xf32>
    %135 = tpu.matmul %133, %134, %cst_34 {dimension_numbers = #tpu.dot_dimension_numbers<[2], [1], [1], [2], [0, 0, 0, 1, 1, 2], [0], [0]>} : vector<8x8x8xbf16>, vector<8x8x8xbf16>, vector<8x8x8xf32> -> vector<8x8x8xf32>
    "tpu.trace_stop"() : () -> ()
    %136 = tpu.concatenate %78, %97, %116, %135 in 2 : vector<8x8x8xf32>, vector<8x8x8xf32>, vector<8x8x8xf32>, vector<8x8x8xf32> -> vector<8x8x32xf32>
    %137 = arith.addf %52, %136 : vector<8x8x32xf32>
    %cst_35 = arith.constant dense<0.000000e+00> : vector<8x8xf32>
    %138 = vector.multi_reduction <add>, %137, %cst_35 [2] : vector<8x8x32xf32> to vector<8x8xf32>
    %139 = vector.shape_cast %138 : vector<8x8xf32> to vector<8x8x1xf32>
    %cst_36 = arith.constant 3.200000e+01 : f32
    %140 = vector.broadcast %cst_36 : f32 to vector<8x8x1xf32>
    %141 = arith.divf %139, %140 : vector<8x8x1xf32>
    %142 = vector.broadcast %141 : vector<8x8x1xf32> to vector<8x8x32xf32>
    %143 = arith.subf %137, %142 : vector<8x8x32xf32>
    %144 = arith.mulf %143, %143 : vector<8x8x32xf32>
    %cst_37 = arith.constant dense<0.000000e+00> : vector<8x8xf32>
    %145 = vector.multi_reduction <add>, %144, %cst_37 [2] : vector<8x8x32xf32> to vector<8x8xf32>
    %146 = vector.shape_cast %145 : vector<8x8xf32> to vector<8x8x1xf32>
    %cst_38 = arith.constant 3.200000e+01 : f32
    %147 = vector.broadcast %cst_38 : f32 to vector<8x8x1xf32>
    %148 = arith.divf %146, %147 : vector<8x8x1xf32>
    %149 = vector.broadcast %141 : vector<8x8x1xf32> to vector<8x8x32xf32>
    %150 = arith.subf %137, %149 : vector<8x8x32xf32>
    %cst_39 = arith.constant 9.99999974E-6 : f32
    %151 = vector.broadcast %cst_39 : f32 to vector<8x8x1xf32>
    %152 = arith.addf %148, %151 : vector<8x8x1xf32>
    %153 = math.rsqrt %152 : vector<8x8x1xf32>
    %154 = vector.broadcast %153 : vector<8x8x1xf32> to vector<8x8x32xf32>
    %155 = arith.mulf %150, %154 : vector<8x8x32xf32>
    %156 = vector.shape_cast %21 : vector<1x32xf32> to vector<1x1x32xf32>
    %157 = vector.broadcast %156 : vector<1x1x32xf32> to vector<8x8x32xf32>
    %158 = arith.mulf %155, %157 : vector<8x8x32xf32>
    %159 = vector.shape_cast %22 : vector<1x32xf32> to vector<1x1x32xf32>
    %160 = vector.broadcast %159 : vector<1x1x32xf32> to vector<8x8x32xf32>
    %161 = arith.addf %158, %160 : vector<8x8x32xf32>
    %162 = vector.shape_cast %161 : vector<8x8x32xf32> to vector<64x32xf32>
    %163 = arith.truncf %162 : vector<64x32xf32> to vector<64x32xbf16>
    "tpu.trace_start"() <{level = 10 : i32, message = "md,df->mf"}> : () -> ()
    %cst_40 = arith.constant dense<0.000000e+00> : vector<64x32xf32>
    %164 = tpu.matmul %163, %24, %cst_40 {dimension_numbers = #tpu.dot_dimension_numbers<[1], [0], [0], [1], [0, 0, 1, 1], [], []>} : vector<64x32xbf16>, vector<32x32xbf16>, vector<64x32xf32> -> vector<64x32xf32>
    "tpu.trace_stop"() : () -> ()
    %165 = vector.broadcast %25 : vector<1x32xf32> to vector<64x32xf32>
    %166 = arith.addf %164, %165 : vector<64x32xf32>
    %167 = vector.shape_cast %166 : vector<64x32xf32> to vector<8x8x32xf32>
    %cst_41 = arith.constant 0.000000e+00 : f32
    %168 = vector.broadcast %cst_41 : f32 to vector<8x8x32xf32>
    %169 = arith.maximumf %167, %168 : vector<8x8x32xf32>
    %170 = vector.shape_cast %169 : vector<8x8x32xf32> to vector<64x32xf32>
    %171 = arith.truncf %170 : vector<64x32xf32> to vector<64x32xbf16>
    "tpu.trace_start"() <{level = 10 : i32, message = "md,df->mf"}> : () -> ()
    %cst_42 = arith.constant dense<0.000000e+00> : vector<64x32xf32>
    %172 = tpu.matmul %171, %27, %cst_42 {dimension_numbers = #tpu.dot_dimension_numbers<[1], [0], [0], [1], [0, 0, 1, 1], [], []>} : vector<64x32xbf16>, vector<32x32xbf16>, vector<64x32xf32> -> vector<64x32xf32>
    "tpu.trace_stop"() : () -> ()
    %173 = vector.broadcast %28 : vector<1x32xf32> to vector<64x32xf32>
    %174 = arith.addf %172, %173 : vector<64x32xf32>
    %175 = vector.shape_cast %174 : vector<64x32xf32> to vector<8x8x32xf32>
    %176 = arith.addf %161, %175 : vector<8x8x32xf32>
    %177 = vector.extract_strided_slice %3 {offsets = [1, 0, 0], sizes = [1, 32, 96], strides = [1, 1, 1]} : vector<2x32x96xbf16> to vector<1x32x96xbf16>
    %178 = vector.shape_cast %177 : vector<1x32x96xbf16> to vector<32x96xbf16>
    %179 = vector.extract_strided_slice %5 {offsets = [7, 0], sizes = [1, 32], strides = [1, 1]} : vector<23x32xf32> to vector<1x32xf32>
    %180 = vector.extract_strided_slice %5 {offsets = [8, 0], sizes = [1, 32], strides = [1, 1]} : vector<23x32xf32> to vector<1x32xf32>
    %181 = vector.extract_strided_slice %5 {offsets = [9, 0], sizes = [1, 32], strides = [1, 1]} : vector<23x32xf32> to vector<1x32xf32>
    %182 = vector.extract_strided_slice %5 {offsets = [10, 0], sizes = [1, 32], strides = [1, 1]} : vector<23x32xf32> to vector<1x32xf32>
    %183 = vector.extract_strided_slice %4 {offsets = [2, 0, 0], sizes = [1, 32, 32], strides = [1, 1, 1]} : vector<5x32x32xbf16> to vector<1x32x32xbf16>
    %184 = vector.shape_cast %183 : vector<1x32x32xbf16> to vector<32x32xbf16>
    %185 = vector.extract_strided_slice %5 {offsets = [11, 0], sizes = [1, 32], strides = [1, 1]} : vector<23x32xf32> to vector<1x32xf32>
    %186 = vector.extract_strided_slice %4 {offsets = [3, 0, 0], sizes = [1, 32, 32], strides = [1, 1, 1]} : vector<5x32x32xbf16> to vector<1x32x32xbf16>
    %187 = vector.shape_cast %186 : vector<1x32x32xbf16> to vector<32x32xbf16>
    %188 = vector.extract_strided_slice %5 {offsets = [12, 0], sizes = [1, 32], strides = [1, 1]} : vector<23x32xf32> to vector<1x32xf32>
    %cst_43 = arith.constant dense<0.000000e+00> : vector<8x8xf32>
    %189 = vector.multi_reduction <add>, %176, %cst_43 [2] : vector<8x8x32xf32> to vector<8x8xf32>
    %190 = vector.shape_cast %189 : vector<8x8xf32> to vector<8x8x1xf32>
    %cst_44 = arith.constant 3.200000e+01 : f32
    %191 = vector.broadcast %cst_44 : f32 to vector<8x8x1xf32>
    %192 = arith.divf %190, %191 : vector<8x8x1xf32>
    %193 = vector.broadcast %192 : vector<8x8x1xf32> to vector<8x8x32xf32>
    %194 = arith.subf %176, %193 : vector<8x8x32xf32>
    %195 = arith.mulf %194, %194 : vector<8x8x32xf32>
    %cst_45 = arith.constant dense<0.000000e+00> : vector<8x8xf32>
    %196 = vector.multi_reduction <add>, %195, %cst_45 [2] : vector<8x8x32xf32> to vector<8x8xf32>
    %197 = vector.shape_cast %196 : vector<8x8xf32> to vector<8x8x1xf32>
    %cst_46 = arith.constant 3.200000e+01 : f32
    %198 = vector.broadcast %cst_46 : f32 to vector<8x8x1xf32>
    %199 = arith.divf %197, %198 : vector<8x8x1xf32>
    %200 = vector.broadcast %192 : vector<8x8x1xf32> to vector<8x8x32xf32>
    %201 = arith.subf %176, %200 : vector<8x8x32xf32>
    %cst_47 = arith.constant 9.99999974E-6 : f32
    %202 = vector.broadcast %cst_47 : f32 to vector<8x8x1xf32>
    %203 = arith.addf %199, %202 : vector<8x8x1xf32>
    %204 = math.rsqrt %203 : vector<8x8x1xf32>
    %205 = vector.broadcast %204 : vector<8x8x1xf32> to vector<8x8x32xf32>
    %206 = arith.mulf %201, %205 : vector<8x8x32xf32>
    %207 = vector.shape_cast %179 : vector<1x32xf32> to vector<1x1x32xf32>
    %208 = vector.broadcast %207 : vector<1x1x32xf32> to vector<8x8x32xf32>
    %209 = arith.mulf %206, %208 : vector<8x8x32xf32>
    %210 = vector.shape_cast %180 : vector<1x32xf32> to vector<1x1x32xf32>
    %211 = vector.broadcast %210 : vector<1x1x32xf32> to vector<8x8x32xf32>
    %212 = arith.addf %209, %211 : vector<8x8x32xf32>
    %213 = vector.shape_cast %212 : vector<8x8x32xf32> to vector<64x32xf32>
    %214 = arith.truncf %213 : vector<64x32xf32> to vector<64x32xbf16>
    "tpu.trace_start"() <{level = 10 : i32, message = "md,df->mf"}> : () -> ()
    %cst_48 = arith.constant dense<0.000000e+00> : vector<64x96xf32>
    %215 = tpu.matmul %214, %178, %cst_48 {dimension_numbers = #tpu.dot_dimension_numbers<[1], [0], [0], [1], [0, 0, 1, 1], [], []>} : vector<64x32xbf16>, vector<32x96xbf16>, vector<64x96xf32> -> vector<64x96xf32>
    "tpu.trace_stop"() : () -> ()
    %216 = vector.shape_cast %215 : vector<64x96xf32> to vector<8x8x96xf32>
    %217 = vector.extract_strided_slice %216 {offsets = [0, 0, 0], sizes = [8, 8, 32], strides = [1, 1, 1]} : vector<8x8x96xf32> to vector<8x8x32xf32>
    %218 = vector.extract_strided_slice %216 {offsets = [0, 0, 32], sizes = [8, 8, 32], strides = [1, 1, 1]} : vector<8x8x96xf32> to vector<8x8x32xf32>
    %219 = vector.extract_strided_slice %216 {offsets = [0, 0, 64], sizes = [8, 8, 32], strides = [1, 1, 1]} : vector<8x8x96xf32> to vector<8x8x32xf32>
    %220 = tpu.transpose %217, [1, 0, 2] : vector<8x8x32xf32> -> vector<8x8x32xf32>
    %221 = tpu.transpose %218, [1, 0, 2] : vector<8x8x32xf32> -> vector<8x8x32xf32>
    %222 = tpu.transpose %219, [1, 0, 2] : vector<8x8x32xf32> -> vector<8x8x32xf32>
    %cst_49 = arith.constant 2.500000e-01 : f32
    %223 = vector.broadcast %cst_49 : f32 to vector<8x8x32xf32>
    %224 = arith.mulf %220, %223 : vector<8x8x32xf32>
    %225 = vector.extract_strided_slice %224 {offsets = [0, 0, 0], sizes = [8, 8, 16], strides = [1, 1, 1]} : vector<8x8x32xf32> to vector<8x8x16xf32>
    %226 = vector.extract_strided_slice %221 {offsets = [0, 0, 0], sizes = [8, 8, 16], strides = [1, 1, 1]} : vector<8x8x32xf32> to vector<8x8x16xf32>
    %227 = vector.extract_strided_slice %222 {offsets = [0, 0, 0], sizes = [8, 8, 16], strides = [1, 1, 1]} : vector<8x8x32xf32> to vector<8x8x16xf32>
    %228 = arith.truncf %225 : vector<8x8x16xf32> to vector<8x8x16xbf16>
    %229 = arith.truncf %226 : vector<8x8x16xf32> to vector<8x8x16xbf16>
    "tpu.trace_start"() <{level = 10 : i32, message = "bqd,bkd->bqk"}> : () -> ()
    %cst_50 = arith.constant dense<0.000000e+00> : vector<8x8x8xf32>
    %230 = tpu.matmul %228, %229, %cst_50 {dimension_numbers = #tpu.dot_dimension_numbers<[2], [2], [1], [1], [0, 0, 0, 1, 1, 1], [0], [0]>} : vector<8x8x16xbf16>, vector<8x8x16xbf16>, vector<8x8x8xf32> -> vector<8x8x8xf32>
    "tpu.trace_stop"() : () -> ()
    %cst_51 = arith.constant dense<0xFF800000> : vector<8x8xf32>
    %231 = vector.multi_reduction <maximumf>, %230, %cst_51 [2] : vector<8x8x8xf32> to vector<8x8xf32>
    %232 = vector.shape_cast %231 : vector<8x8xf32> to vector<8x8x1xf32>
    %233 = vector.broadcast %232 : vector<8x8x1xf32> to vector<8x8x8xf32>
    %234 = arith.subf %230, %233 : vector<8x8x8xf32>
    %235 = math.exp %234 : vector<8x8x8xf32>
    %cst_52 = arith.constant dense<0.000000e+00> : vector<8x8xf32>
    %236 = vector.multi_reduction <add>, %235, %cst_52 [2] : vector<8x8x8xf32> to vector<8x8xf32>
    %237 = vector.shape_cast %236 : vector<8x8xf32> to vector<8x8x1xf32>
    %238 = tpu.reciprocal %237 {approx = true} : vector<8x8x1xf32> -> vector<8x8x1xf32>
    %239 = vector.broadcast %238 : vector<8x8x1xf32> to vector<8x8x8xf32>
    %240 = arith.mulf %235, %239 : vector<8x8x8xf32>
    %241 = arith.truncf %240 : vector<8x8x8xf32> to vector<8x8x8xbf16>
    %242 = arith.truncf %227 : vector<8x8x16xf32> to vector<8x8x16xbf16>
    "tpu.trace_start"() <{level = 10 : i32, message = "bqk,bkd->bqd"}> : () -> ()
    %cst_53 = arith.constant dense<0.000000e+00> : vector<8x8x16xf32>
    %243 = tpu.matmul %241, %242, %cst_53 {dimension_numbers = #tpu.dot_dimension_numbers<[2], [1], [1], [2], [0, 0, 0, 1, 1, 2], [0], [0]>} : vector<8x8x8xbf16>, vector<8x8x16xbf16>, vector<8x8x16xf32> -> vector<8x8x16xf32>
    "tpu.trace_stop"() : () -> ()
    %244 = vector.extract_strided_slice %224 {offsets = [0, 0, 16], sizes = [8, 8, 16], strides = [1, 1, 1]} : vector<8x8x32xf32> to vector<8x8x16xf32>
    %245 = vector.extract_strided_slice %221 {offsets = [0, 0, 16], sizes = [8, 8, 16], strides = [1, 1, 1]} : vector<8x8x32xf32> to vector<8x8x16xf32>
    %246 = vector.extract_strided_slice %222 {offsets = [0, 0, 16], sizes = [8, 8, 16], strides = [1, 1, 1]} : vector<8x8x32xf32> to vector<8x8x16xf32>
    %247 = arith.truncf %244 : vector<8x8x16xf32> to vector<8x8x16xbf16>
    %248 = arith.truncf %245 : vector<8x8x16xf32> to vector<8x8x16xbf16>
    "tpu.trace_start"() <{level = 10 : i32, message = "bqd,bkd->bqk"}> : () -> ()
    %cst_54 = arith.constant dense<0.000000e+00> : vector<8x8x8xf32>
    %249 = tpu.matmul %247, %248, %cst_54 {dimension_numbers = #tpu.dot_dimension_numbers<[2], [2], [1], [1], [0, 0, 0, 1, 1, 1], [0], [0]>} : vector<8x8x16xbf16>, vector<8x8x16xbf16>, vector<8x8x8xf32> -> vector<8x8x8xf32>
    "tpu.trace_stop"() : () -> ()
    %cst_55 = arith.constant dense<0xFF800000> : vector<8x8xf32>
    %250 = vector.multi_reduction <maximumf>, %249, %cst_55 [2] : vector<8x8x8xf32> to vector<8x8xf32>
    %251 = vector.shape_cast %250 : vector<8x8xf32> to vector<8x8x1xf32>
    %252 = vector.broadcast %251 : vector<8x8x1xf32> to vector<8x8x8xf32>
    %253 = arith.subf %249, %252 : vector<8x8x8xf32>
    %254 = math.exp %253 : vector<8x8x8xf32>
    %cst_56 = arith.constant dense<0.000000e+00> : vector<8x8xf32>
    %255 = vector.multi_reduction <add>, %254, %cst_56 [2] : vector<8x8x8xf32> to vector<8x8xf32>
    %256 = vector.shape_cast %255 : vector<8x8xf32> to vector<8x8x1xf32>
    %257 = tpu.reciprocal %256 {approx = true} : vector<8x8x1xf32> -> vector<8x8x1xf32>
    %258 = vector.broadcast %257 : vector<8x8x1xf32> to vector<8x8x8xf32>
    %259 = arith.mulf %254, %258 : vector<8x8x8xf32>
    %260 = arith.truncf %259 : vector<8x8x8xf32> to vector<8x8x8xbf16>
    %261 = arith.truncf %246 : vector<8x8x16xf32> to vector<8x8x16xbf16>
    "tpu.trace_start"() <{level = 10 : i32, message = "bqk,bkd->bqd"}> : () -> ()
    %cst_57 = arith.constant dense<0.000000e+00> : vector<8x8x16xf32>
    %262 = tpu.matmul %260, %261, %cst_57 {dimension_numbers = #tpu.dot_dimension_numbers<[2], [1], [1], [2], [0, 0, 0, 1, 1, 2], [0], [0]>} : vector<8x8x8xbf16>, vector<8x8x16xbf16>, vector<8x8x16xf32> -> vector<8x8x16xf32>
    "tpu.trace_stop"() : () -> ()
    %263 = tpu.concatenate %243, %262 in 2 : vector<8x8x16xf32>, vector<8x8x16xf32> -> vector<8x8x32xf32>
    %264 = tpu.transpose %263, [1, 0, 2] : vector<8x8x32xf32> -> vector<8x8x32xf32>
    %265 = arith.addf %212, %264 : vector<8x8x32xf32>
    %cst_58 = arith.constant dense<0.000000e+00> : vector<8x8xf32>
    %266 = vector.multi_reduction <add>, %265, %cst_58 [2] : vector<8x8x32xf32> to vector<8x8xf32>
    %267 = vector.shape_cast %266 : vector<8x8xf32> to vector<8x8x1xf32>
    %cst_59 = arith.constant 3.200000e+01 : f32
    %268 = vector.broadcast %cst_59 : f32 to vector<8x8x1xf32>
    %269 = arith.divf %267, %268 : vector<8x8x1xf32>
    %270 = vector.broadcast %269 : vector<8x8x1xf32> to vector<8x8x32xf32>
    %271 = arith.subf %265, %270 : vector<8x8x32xf32>
    %272 = arith.mulf %271, %271 : vector<8x8x32xf32>
    %cst_60 = arith.constant dense<0.000000e+00> : vector<8x8xf32>
    %273 = vector.multi_reduction <add>, %272, %cst_60 [2] : vector<8x8x32xf32> to vector<8x8xf32>
    %274 = vector.shape_cast %273 : vector<8x8xf32> to vector<8x8x1xf32>
    %cst_61 = arith.constant 3.200000e+01 : f32
    %275 = vector.broadcast %cst_61 : f32 to vector<8x8x1xf32>
    %276 = arith.divf %274, %275 : vector<8x8x1xf32>
    %277 = vector.broadcast %269 : vector<8x8x1xf32> to vector<8x8x32xf32>
    %278 = arith.subf %265, %277 : vector<8x8x32xf32>
    %cst_62 = arith.constant 9.99999974E-6 : f32
    %279 = vector.broadcast %cst_62 : f32 to vector<8x8x1xf32>
    %280 = arith.addf %276, %279 : vector<8x8x1xf32>
    %281 = math.rsqrt %280 : vector<8x8x1xf32>
    %282 = vector.broadcast %281 : vector<8x8x1xf32> to vector<8x8x32xf32>
    %283 = arith.mulf %278, %282 : vector<8x8x32xf32>
    %284 = vector.shape_cast %181 : vector<1x32xf32> to vector<1x1x32xf32>
    %285 = vector.broadcast %284 : vector<1x1x32xf32> to vector<8x8x32xf32>
    %286 = arith.mulf %283, %285 : vector<8x8x32xf32>
    %287 = vector.shape_cast %182 : vector<1x32xf32> to vector<1x1x32xf32>
    %288 = vector.broadcast %287 : vector<1x1x32xf32> to vector<8x8x32xf32>
    %289 = arith.addf %286, %288 : vector<8x8x32xf32>
    %290 = vector.shape_cast %289 : vector<8x8x32xf32> to vector<64x32xf32>
    %291 = arith.truncf %290 : vector<64x32xf32> to vector<64x32xbf16>
    "tpu.trace_start"() <{level = 10 : i32, message = "md,df->mf"}> : () -> ()
    %cst_63 = arith.constant dense<0.000000e+00> : vector<64x32xf32>
    %292 = tpu.matmul %291, %184, %cst_63 {dimension_numbers = #tpu.dot_dimension_numbers<[1], [0], [0], [1], [0, 0, 1, 1], [], []>} : vector<64x32xbf16>, vector<32x32xbf16>, vector<64x32xf32> -> vector<64x32xf32>
    "tpu.trace_stop"() : () -> ()
    %293 = vector.broadcast %185 : vector<1x32xf32> to vector<64x32xf32>
    %294 = arith.addf %292, %293 : vector<64x32xf32>
    %295 = vector.shape_cast %294 : vector<64x32xf32> to vector<8x8x32xf32>
    %cst_64 = arith.constant 0.000000e+00 : f32
    %296 = vector.broadcast %cst_64 : f32 to vector<8x8x32xf32>
    %297 = arith.maximumf %295, %296 : vector<8x8x32xf32>
    %298 = vector.shape_cast %297 : vector<8x8x32xf32> to vector<64x32xf32>
    %299 = arith.truncf %298 : vector<64x32xf32> to vector<64x32xbf16>
    "tpu.trace_start"() <{level = 10 : i32, message = "md,df->mf"}> : () -> ()
    %cst_65 = arith.constant dense<0.000000e+00> : vector<64x32xf32>
    %300 = tpu.matmul %299, %187, %cst_65 {dimension_numbers = #tpu.dot_dimension_numbers<[1], [0], [0], [1], [0, 0, 1, 1], [], []>} : vector<64x32xbf16>, vector<32x32xbf16>, vector<64x32xf32> -> vector<64x32xf32>
    "tpu.trace_stop"() : () -> ()
    %301 = vector.broadcast %188 : vector<1x32xf32> to vector<64x32xf32>
    %302 = arith.addf %300, %301 : vector<64x32xf32>
    %303 = vector.shape_cast %302 : vector<64x32xf32> to vector<8x8x32xf32>
    %304 = arith.addf %289, %303 : vector<8x8x32xf32>
    %305 = vector.extract_strided_slice %4 {offsets = [4, 0, 0], sizes = [1, 32, 32], strides = [1, 1, 1]} : vector<5x32x32xbf16> to vector<1x32x32xbf16>
    %306 = vector.shape_cast %305 : vector<1x32x32xbf16> to vector<32x32xbf16>
    %307 = vector.shape_cast %304 : vector<8x8x32xf32> to vector<64x32xf32>
    %308 = arith.truncf %307 : vector<64x32xf32> to vector<64x32xbf16>
    "tpu.trace_start"() <{level = 10 : i32, message = "md,df->mf"}> : () -> ()
    %cst_66 = arith.constant dense<0.000000e+00> : vector<64x32xf32>
    %309 = tpu.matmul %308, %306, %cst_66 {dimension_numbers = #tpu.dot_dimension_numbers<[1], [0], [0], [1], [0, 0, 1, 1], [], []>} : vector<64x32xbf16>, vector<32x32xbf16>, vector<64x32xf32> -> vector<64x32xf32>
    "tpu.trace_stop"() : () -> ()
    %310 = vector.shape_cast %309 : vector<64x32xf32> to vector<8x8x32xf32>
    %311 = vector.extract_strided_slice %310 {offsets = [0, 7, 0], sizes = [8, 1, 32], strides = [1, 1, 1]} : vector<8x8x32xf32> to vector<8x1x32xf32>
    %312 = vector.broadcast %311 : vector<8x1x32xf32> to vector<8x8x32xf32>
    %313 = arith.mulf %310, %312 : vector<8x8x32xf32>
    %cst_67 = arith.constant dense<0.000000e+00> : vector<8x8xf32>
    %314 = vector.multi_reduction <add>, %313, %cst_67 [2] : vector<8x8x32xf32> to vector<8x8xf32>
    %cst_68 = arith.constant dense<0xFF800000> : vector<8xf32>
    %315 = vector.multi_reduction <maximumf>, %314, %cst_68 [1] : vector<8x8xf32> to vector<8xf32>
    %316 = vector.shape_cast %315 : vector<8xf32> to vector<8x1xf32>
    %317 = vector.broadcast %316 : vector<8x1xf32> to vector<8x8xf32>
    %318 = arith.subf %314, %317 : vector<8x8xf32>
    %319 = math.exp %318 : vector<8x8xf32>
    %cst_69 = arith.constant dense<0.000000e+00> : vector<8xf32>
    %320 = vector.multi_reduction <add>, %319, %cst_69 [1] : vector<8x8xf32> to vector<8xf32>
    %321 = vector.shape_cast %320 : vector<8xf32> to vector<8x1xf32>
    %322 = tpu.reciprocal %321 {approx = true} : vector<8x1xf32> -> vector<8x1xf32>
    %323 = vector.broadcast %322 : vector<8x1xf32> to vector<8x8xf32>
    %324 = arith.mulf %319, %323 : vector<8x8xf32>
    %325 = vector.shape_cast %324 : vector<8x8xf32> to vector<8x8x1xf32>
    %326 = vector.broadcast %325 : vector<8x8x1xf32> to vector<8x8x32xf32>
    %327 = arith.mulf %326, %304 : vector<8x8x32xf32>
    %cst_70 = arith.constant dense<0.000000e+00> : vector<8x32xf32>
    %328 = vector.multi_reduction <add>, %327, %cst_70 [1] : vector<8x8x32xf32> to vector<8x32xf32>
    %329 = vector.extract_strided_slice %5 {offsets = [21, 0], sizes = [1, 32], strides = [1, 1]} : vector<23x32xf32> to vector<1x32xf32>
    %330 = arith.truncf %329 : vector<1x32xf32> to vector<1x32xbf16>
    %331 = arith.truncf %328 : vector<8x32xf32> to vector<8x32xbf16>
    "tpu.trace_start"() <{level = 10 : i32, message = "od,nd->on"}> : () -> ()
    %cst_71 = arith.constant dense<0.000000e+00> : vector<1x8xf32>
    %332 = tpu.matmul %330, %331, %cst_71 {dimension_numbers = #tpu.dot_dimension_numbers<[1], [1], [0], [0], [0, 0, 1, 0], [], []>} : vector<1x32xbf16>, vector<8x32xbf16>, vector<1x8xf32> -> vector<1x8xf32>
    "tpu.trace_stop"() : () -> ()
    %333 = vector.extract_strided_slice %5 {offsets = [22, 0], sizes = [1, 1], strides = [1, 1]} : vector<23x32xf32> to vector<1x1xf32>
    %334 = vector.broadcast %333 : vector<1x1xf32> to vector<1x8xf32>
    %335 = arith.addf %332, %334 : vector<1x8xf32>
    %cst_72 = arith.constant dense<0.000000e+00> : vector<1xf32>
    %336 = vector.multi_reduction <add>, %335, %cst_72 [1] : vector<1x8xf32> to vector<1xf32>
    %337 = vector.shape_cast %336 : vector<1xf32> to vector<1x1xf32>
    %cst_73 = arith.constant 8.000000e+00 : f32
    %338 = vector.broadcast %cst_73 : f32 to vector<1x1xf32>
    %339 = arith.divf %337, %338 : vector<1x1xf32>
    %340 = vector.broadcast %339 : vector<1x1xf32> to vector<1x8xf32>
    %341 = arith.subf %335, %340 : vector<1x8xf32>
    %c0_74 = arith.constant 0 : index
    %c0_75 = arith.constant 0 : index
    %c0_76 = arith.constant 0 : index
    %342 = vector.load %arg6[%c0_74, %c0_75, %c0_76] : memref<1x1x8xf32, #tpu.memory_space<vmem>>, vector<1x1x8xf32>
    %343 = vector.shape_cast %342 : vector<1x1x8xf32> to vector<1x8xf32>
    %344 = vector.shape_cast %341 : vector<1x8xf32> to vector<1x1x8xf32>
    tpu.vector_store %arg6[%c0_74, %c0_75, %c0_76], %344 {strides = array<i32>} : memref<1x1x8xf32, #tpu.memory_space<vmem>>, vector<1x1x8xf32>,
    return
  }
  func.func @transform_0(%arg0: i32) -> (i32, i32, i32, i32) {
    %c0_i32 = arith.constant 0 : i32
    %c0_i32_0 = arith.constant 0 : i32
    %c0_i32_1 = arith.constant 0 : i32
    %c0_i32_2 = arith.constant 0 : i32
    return %arg0, %c0_i32, %c0_i32_0, %c0_i32_1 : i32, i32, i32, i32
  }
  func.func @transform_1(%arg0: i32) -> (i32, i32) {
    %c0_i32 = arith.constant 0 : i32
    %c0_i32_0 = arith.constant 0 : i32
    %c0_i32_1 = arith.constant 0 : i32
    return %c0_i32, %c0_i32_0 : i32, i32
  }
  func.func @transform_2(%arg0: i32) -> (i32, i32, i32) {
    %c0_i32 = arith.constant 0 : i32
    %c0_i32_0 = arith.constant 0 : i32
    %c0_i32_1 = arith.constant 0 : i32
    %c0_i32_2 = arith.constant 0 : i32
    return %c0_i32, %c0_i32_0, %c0_i32_1 : i32, i32, i32
  }
  func.func @transform_3(%arg0: i32) -> (i32, i32, i32) {
    %c0_i32 = arith.constant 0 : i32
    %c0_i32_0 = arith.constant 0 : i32
    %c0_i32_1 = arith.constant 0 : i32
    %c0_i32_2 = arith.constant 0 : i32
    return %c0_i32, %c0_i32_0, %c0_i32_1 : i32, i32, i32
  }
  func.func @transform_4(%arg0: i32) -> (i32, i32) {
    %c0_i32 = arith.constant 0 : i32
    %c0_i32_0 = arith.constant 0 : i32
    %c0_i32_1 = arith.constant 0 : i32
    return %c0_i32, %c0_i32_0 : i32, i32
  }
  func.func @transform_5(%arg0: i32) -> (i32, i32, i32) {
    %c0_i32 = arith.constant 0 : i32
    %c0_i32_0 = arith.constant 0 : i32
    %c0_i32_1 = arith.constant 0 : i32
    return %arg0, %c0_i32, %c0_i32_0 : i32, i32, i32
  }
}

</mosaic_0001>

<llo_original>
// kernel: tpu_custom_call.1
$region0: #{tpu_custom_call.1}
  #allocation0 [shape = 'u32[]', space=smem, size = 0x4, offset = 0x4, fixed_abs, tag = 'smem constant byte address 0x4 - core index']
  #allocation1 [shape = 'u32[144,128]{1,0:T(1,128)}', space=vmem, size = 0x12000, scoped, tag = 'internal scratch']
  %s0 = inlined_call_operand.hbm [shape: f32[2,8,8,16], index: 0, kind: input, shape index: {}]
  %s1 = inlined_call_operand.hbm [shape: bf16[16,32], index: 1, kind: input, shape index: {}]
  %s2 = inlined_call_operand.hbm [shape: bf16[2,32,96], index: 2, kind: input, shape index: {}]
  %s3 = inlined_call_operand.hbm [shape: bf16[5,32,32], index: 3, kind: input, shape index: {}]
  %s4 = inlined_call_operand.hbm [shape: f32[23,32], index: 4, kind: input, shape index: {}]
  %s5 = inlined_call_operand.hbm [shape: f32[2,1,8], index: 5, kind: output, shape index: {}]
  %s6 = sld [smem:[#allocation0]]
  $region73: #{tpu_custom_call.1} parent=0
    _
  %s8 = ssub.s32 1, %s6
  %s9 = scalar_select 0, %s8, %s6
  $region1: #{tpu_custom_call.1} parent=0
    #allocation2 [shape = 'u8[65536]{0}', space=vmem, size = 0x10000, scoped, tag = 'input window, operand 0']
    #allocation3 [shape = 's32[2]{0}', space=sflag, size = 0x8, scoped, tag = 'scoped memory for tpu_custom_call.1']
    #allocation4 [shape = 's32[2]{0}', space=sflag, size = 0x8, scoped, tag = 'scoped memory for tpu_custom_call.1']
    #allocation5 [shape = 'u8[4096]{0}', space=vmem, size = 0x1000, scoped, tag = 'input window, operand 1, single buffered']
    #allocation6 [shape = 's32[1]{0}', space=sflag, size = 0x4, scoped, tag = 'scoped memory for tpu_custom_call.1']
    #allocation7 [shape = 'u8[16384]{0}', space=vmem, size = 0x4000, scoped, tag = 'input window, operand 2, single buffered']
    #allocation8 [shape = 'u8[40960]{0}', space=vmem, size = 0xa000, scoped, tag = 'input window, operand 3, single buffered']
    #allocation9 [shape = 's32[1]{0}', space=sflag, size = 0x4, scoped, tag = 'scoped memory for tpu_custom_call.1']
    #allocation10 [shape = 'u8[12288]{0}', space=vmem, size = 0x3000, scoped, tag = 'input window, operand 4, single buffered']
    #allocation11 [shape = 'u8[1024]{0}', space=vmem, size = 0x400, scoped, tag = 'output window, operand 0']
    %10 = vsyncpa [#allocation3], 0
    %s11 = scalar_lea.sflag [#allocation3], 1
    %12 = vsyncpa %s11, 0
    %13 = vsyncpa [#allocation6], 0
    %14 = vsyncpa [#allocation9], 0
    %15 = vsyncpa [#allocation4], 0
    %s16 = scalar_lea.sflag [#allocation4], 1
    %17 = vsyncpa %s16, 0
    loop: start=0, step=1, limit=4
    $region2: #{tpu_custom_call.1} parent=1 // loop_pre_header
      _
    $region3: #{tpu_custom_call.1} parent=1 // loop_header
      %s19 = sphi 0, %s23
      %p20 = scmp.ge.s32.totalorder %s19, 4
      %s29 = sphi 0, %s31
      %s32 = sphi 0, %s29
      %s33 = sphi 0, %s32
      %s49 = sphi 0, %s33
      %s53 = sphi 0, %s53
      %s55 = sphi 0, %s53
      %s56 = sphi 0, %s55
      %s70 = sphi 0, %s56
      %s74 = sphi 0, %s74
      %s76 = sphi 0, %s74
      %s77 = sphi 0, %s76
      %s91 = sphi 0, %s77
      %s95 = sphi 0, %s95
      %s97 = sphi 0, %s95
      %s98 = sphi 0, %s97
      %s112 = sphi 0, %s98
      %s116 = sphi 0, %s116
      %s118 = sphi 0, %s116
      %s119 = sphi 0, %s118
      %s133 = sphi 0, %s119
      %s139 = sphi 0, %s141
      %s142 = sphi 0, %s139
      %s143 = sphi 0, %s142
      %s159 = sphi 0, %s143
    $region4: #{tpu_custom_call.1} parent=1 // loop_header_branch
      %22 = sbr.rel (%p20) target = $region8
    $region5: #{tpu_custom_call.1} parent=1 // loop_body
      %s24 = ssub.s32 %s19, 1
      %s25 = ssub.s32 %s19, 2
      %s26 = sadd.s32 %s19, 1
      %s27 = ssub.s32 %s19, %s26
      %p28 = scmp.eq.s32.totalorder %s27, 0
      %s30 = sadd.s32 %s29, 1
      %s31 = scalar_select %p28, %s29, %s30
      %p34 = pneg %p28
      %p35 = scmp.eq.s32.totalorder %s19, 1
      %p36 = por %p34, %p35
      %p37 = scmp.ne.s32.totalorder %s29, %s32
      %p38 = scmp.eq.s32.totalorder %s19, 0
      %p39 = por %p37, %p38
      %p40 = scmp.ne.s32.totalorder %s29, %s32
      %p41 = scmp.eq.s32.totalorder %s24, 1
      %p42 = por %p40, %p41
      %p43 = scmp.ne.s32.totalorder %s32, %s33
      %p44 = scmp.eq.s32.totalorder %s24, 0
      %p45 = por %p43, %p44
      %p46 = scmp.ne.s32.totalorder %s32, %s33
      %p47 = scmp.eq.s32.totalorder %s25, 1
      %p48 = por %p46, %p47
      %p50 = scmp.ne.s32.totalorder %s33, %s49
      %p51 = scmp.eq.s32.totalorder %s25, 0
      %p52 = por %p50, %p51
      %s54 = sadd.s32 %s53, 1
      %p57 = scmp.eq.s32.totalorder %s19, 1
      %p58 = scmp.ne.s32.totalorder %s53, %s55
      %p59 = scmp.eq.s32.totalorder %s19, 0
      %p60 = por %p58, %p59
      %p61 = scmp.ne.s32.totalorder %s53, %s55
      %p62 = scmp.eq.s32.totalorder %s24, 1
      %p63 = por %p61, %p62
      %p64 = scmp.ne.s32.totalorder %s55, %s56
      %p65 = scmp.eq.s32.totalorder %s24, 0
      %p66 = por %p64, %p65
      %p67 = scmp.ne.s32.totalorder %s55, %s56
      %p68 = scmp.eq.s32.totalorder %s25, 1
      %p69 = por %p67, %p68
      %p71 = scmp.ne.s32.totalorder %s56, %s70
      %p72 = scmp.eq.s32.totalorder %s25, 0
      %p73 = por %p71, %p72
      %s75 = sadd.s32 %s74, 1
      %p78 = scmp.eq.s32.totalorder %s19, 1
      %p79 = scmp.ne.s32.totalorder %s74, %s76
      %p80 = scmp.eq.s32.totalorder %s19, 0
      %p81 = por %p79, %p80
      %p82 = scmp.ne.s32.totalorder %s74, %s76
      %p83 = scmp.eq.s32.totalorder %s24, 1
      %p84 = por %p82, %p83
      %p85 = scmp.ne.s32.totalorder %s76, %s77
      %p86 = scmp.eq.s32.totalorder %s24, 0
      %p87 = por %p85, %p86
      %p88 = scmp.ne.s32.totalorder %s76, %s77
      %p89 = scmp.eq.s32.totalorder %s25, 1
      %p90 = por %p88, %p89
      %p92 = scmp.ne.s32.totalorder %s77, %s91
      %p93 = scmp.eq.s32.totalorder %s25, 0
      %p94 = por %p92, %p93
      %s96 = sadd.s32 %s95, 1
      %p99 = scmp.eq.s32.totalorder %s19, 1
      %p100 = scmp.ne.s32.totalorder %s95, %s97
      %p101 = scmp.eq.s32.totalorder %s19, 0
      %p102 = por %p100, %p101
      %p103 = scmp.ne.s32.totalorder %s95, %s97
      %p104 = scmp.eq.s32.totalorder %s24, 1
      %p105 = por %p103, %p104
      %p106 = scmp.ne.s32.totalorder %s97, %s98
      %p107 = scmp.eq.s32.totalorder %s24, 0
      %p108 = por %p106, %p107
      %p109 = scmp.ne.s32.totalorder %s97, %s98
      %p110 = scmp.eq.s32.totalorder %s25, 1
      %p111 = por %p109, %p110
      %p113 = scmp.ne.s32.totalorder %s98, %s112
      %p114 = scmp.eq.s32.totalorder %s25, 0
      %p115 = por %p113, %p114
      %s117 = sadd.s32 %s116, 1
      %p120 = scmp.eq.s32.totalorder %s19, 1
      %p121 = scmp.ne.s32.totalorder %s116, %s118
      %p122 = scmp.eq.s32.totalorder %s19, 0
      %p123 = por %p121, %p122
      %p124 = scmp.ne.s32.totalorder %s116, %s118
      %p125 = scmp.eq.s32.totalorder %s24, 1
      %p126 = por %p124, %p125
      %p127 = scmp.ne.s32.totalorder %s118, %s119
      %p128 = scmp.eq.s32.totalorder %s24, 0
      %p129 = por %p127, %p128
      %p130 = scmp.ne.s32.totalorder %s118, %s119
      %p131 = scmp.eq.s32.totalorder %s25, 1
      %p132 = por %p130, %p131
      %p134 = scmp.ne.s32.totalorder %s119, %s133
      %p135 = scmp.eq.s32.totalorder %s25, 0
      %p136 = por %p134, %p135
      %s137 = ssub.s32 %s19, %s26
      %p138 = scmp.eq.s32.totalorder %s137, 0
      %s140 = sadd.s32 %s139, 1
      %s141 = scalar_select %p138, %s139, %s140
      %p144 = pneg %p138
      %p145 = scmp.eq.s32.totalorder %s19, 1
      %p146 = por %p144, %p145
      %p147 = scmp.ne.s32.totalorder %s139, %s142
      %p148 = scmp.eq.s32.totalorder %s19, 0
      %p149 = por %p147, %p148
      %p150 = scmp.ne.s32.totalorder %s139, %s142
      %p151 = scmp.eq.s32.totalorder %s24, 1
      %p152 = por %p150, %p151
      %p153 = scmp.ne.s32.totalorder %s142, %s143
      %p154 = scmp.eq.s32.totalorder %s24, 0
      %p155 = por %p153, %p154
      %p156 = scmp.ne.s32.totalorder %s142, %s143
      %p157 = scmp.eq.s32.totalorder %s25, 1
      %p158 = por %p156, %p157
      %p160 = scmp.ne.s32.totalorder %s143, %s159
      %p161 = scmp.eq.s32.totalorder %s25, 0
      %p162 = por %p160, %p161
      %p163 = scmp.le.s32.totalorder 1, %s19
      %p164 = scmp.lt.s32.totalorder %s19, 3
      %p165 = pnand %p163, %p164
      %p166 = pneg %p165
      // Predicated region
      $region9: #{tpu_custom_call.1} parent=5 // pred_check
        _
      $region10: #{tpu_custom_call.1} parent=5 // pred_check_branch
        %168 = sbr.rel (%p165) target = $region12
      $region11: #{tpu_custom_call.1} parent=5 // pred_region
        %s169 = ssub.s32 %s19, 1
        // Predicated region
        $region13: #{tpu_custom_call.1} parent=11 // pred_check
          %p170 = pneg %p66
        $region14: #{tpu_custom_call.1} parent=11 // pred_check_branch
          %172 = sbr.rel (%p170) target = $region16
        $region15: #{tpu_custom_call.1} parent=11 // pred_region
          %s174 = ssub.s32 128, 128
          %175 = vsyncadd [#allocation6], %s174
          %s176 = sshll.u32 [#allocation5], 4
          %s177 = int_to_ptr.vmem [resolvable:$true] %s176
          %182 = dma.hbm_to_vmem [thread:$0]  %s1, 128, %s177, [#allocation6], 64, 64, 4
        $region16: #{tpu_custom_call.1} parent=11 // pred_fallthru
          _
        // Predicated region
        $region17: #{tpu_custom_call.1} parent=11 // pred_check
          %p183 = pneg %p87
        $region18: #{tpu_custom_call.1} parent=11 // pred_check_branch
          %185 = sbr.rel (%p183) target = $region20
        $region19: #{tpu_custom_call.1} parent=11 // pred_region
          %s187 = ssub.s32 512, 512
          %188 = vsyncadd [#allocation6], %s187
          %s189 = sshll.u32 [#allocation7], 4
          %s190 = int_to_ptr.vmem [resolvable:$true] %s189
          %195 = dma.hbm_to_vmem [thread:$0]  %s2, 512, %s190, [#allocation6], 64, 64, 4
        $region20: #{tpu_custom_call.1} parent=11 // pred_fallthru
          _
        // Predicated region
        $region21: #{tpu_custom_call.1} parent=11 // pred_check
          %p196 = pneg %p108
        $region22: #{tpu_custom_call.1} parent=11 // pred_check_branch
          %198 = sbr.rel (%p196) target = $region24
        $region23: #{tpu_custom_call.1} parent=11 // pred_region
          %s200 = ssub.s32 1280, 1280
          %201 = vsyncadd [#allocation9], %s200
          %s202 = sshll.u32 [#allocation8], 4
          %s203 = int_to_ptr.vmem [resolvable:$true] %s202
          %208 = dma.hbm_to_vmem [thread:$0]  %s3, 1280, %s203, [#allocation9], 64, 64, 4
        $region24: #{tpu_custom_call.1} parent=11 // pred_fallthru
          _
        // Predicated region
        $region25: #{tpu_custom_call.1} parent=11 // pred_check
          %p209 = pneg %p129
        $region26: #{tpu_custom_call.1} parent=11 // pred_check_branch
          %211 = sbr.rel (%p209) target = $region28
        $region27: #{tpu_custom_call.1} parent=11 // pred_region
          %s213 = ssub.s32 384, 384
          %214 = vsyncadd [#allocation9], %s213
          %s215 = sshll.u32 [#allocation10], 4
          %s216 = int_to_ptr.vmem [resolvable:$true] %s215
          %221 = dma.hbm_to_vmem [thread:$0]  %s4, 384, %s216, [#allocation9], 128, 128, 8
        $region28: #{tpu_custom_call.1} parent=11 // pred_fallthru
          _
      $region12: #{tpu_custom_call.1} parent=5 // pred_fallthru
        _
      %p222 = scmp.lt.s32.totalorder %s19, 2
      // Predicated region
      $region29: #{tpu_custom_call.1} parent=5 // pred_check
        %p223 = pneg %p222
      $region30: #{tpu_custom_call.1} parent=5 // pred_check_branch
        %225 = sbr.rel (%p223) target = $region32
      $region31: #{tpu_custom_call.1} parent=5 // pred_region
        // Predicated region
        $region33: #{tpu_custom_call.1} parent=31 // pred_check
          %p226 = pneg %p39
        $region34: #{tpu_custom_call.1} parent=31 // pred_check_branch
          %228 = sbr.rel (%p226) target = $region36
        $region35: #{tpu_custom_call.1} parent=31 // pred_region
          %s229 = sand.u32 %s29, 1
          %s230 = scalar_lea.sflag [#allocation3], %s229
          %s231 = sand.u32 %s29, 1
          %s232 = smul.addr %s231, 64
          %s233 = scalar_lea.vmem [#allocation2], %s232
          %s235 = ssub.s32 1024, 1024
          %236 = vsyncadd %s230, %s235
          %s237 = smul.addr %s19, 8
          %s238 = smul.addr %s237, 128
          %s239 = scalar_lea.hbm %s0, %s238
          %s240 = sshll.u32 %s233, 4
          %s241 = int_to_ptr.vmem [resolvable:$true] %s240
          %246 = dma.hbm_to_vmem [thread:$0]  %s239, 1024, %s241, %s230, 128, 128, 8
        $region36: #{tpu_custom_call.1} parent=31 // pred_fallthru
          _
      $region32: #{tpu_custom_call.1} parent=5 // pred_fallthru
        _
      %p247 = scmp.le.s32.totalorder 1, %s19
      %p248 = scmp.lt.s32.totalorder %s19, 3
      %p249 = pnand %p247, %p248
      %p250 = pneg %p249
      // Predicated region
      $region37: #{tpu_custom_call.1} parent=5 // pred_check
        _
      $region38: #{tpu_custom_call.1} parent=5 // pred_check_branch
        %252 = sbr.rel (%p249) target = $region40
      $region39: #{tpu_custom_call.1} parent=5 // pred_region
        %s253 = ssub.s32 %s19, 1
        %s254 = sand.u32 %s32, 1
        %s255 = scalar_lea.sflag [#allocation3], %s254
        %s256 = sand.u32 %s32, 1
        %s257 = smul.addr %s256, 64
        %s258 = scalar_lea.vmem [#allocation2], %s257
        // Predicated region
        $region41: #{tpu_custom_call.1} parent=39 // pred_check
          %p259 = pneg %p45
        $region42: #{tpu_custom_call.1} parent=39 // pred_check_branch
          %261 = sbr.rel (%p259) target = $region44
        $region43: #{tpu_custom_call.1} parent=39 // pred_region
          %262 = dma.done %s255, 1024
        $region44: #{tpu_custom_call.1} parent=39 // pred_fallthru
          _
        // Predicated region
        $region45: #{tpu_custom_call.1} parent=39 // pred_check
          %p263 = pneg %p66
        $region46: #{tpu_custom_call.1} parent=39 // pred_check_branch
          %265 = sbr.rel (%p263) target = $region48
        $region47: #{tpu_custom_call.1} parent=39 // pred_region
          %266 = dma.done [#allocation6], 128
        $region48: #{tpu_custom_call.1} parent=39 // pred_fallthru
          _
        // Predicated region
        $region49: #{tpu_custom_call.1} parent=39 // pred_check
          %p267 = pneg %p87
        $region50: #{tpu_custom_call.1} parent=39 // pred_check_branch
          %269 = sbr.rel (%p267) target = $region52
        $region51: #{tpu_custom_call.1} parent=39 // pred_region
          %270 = dma.done [#allocation6], 512
        $region52: #{tpu_custom_call.1} parent=39 // pred_fallthru
          _
        // Predicated region
        $region53: #{tpu_custom_call.1} parent=39 // pred_check
          %p271 = pneg %p108
        $region54: #{tpu_custom_call.1} parent=39 // pred_check_branch
          %273 = sbr.rel (%p271) target = $region56
        $region55: #{tpu_custom_call.1} parent=39 // pred_region
          %274 = dma.done [#allocation9], 1280
        $region56: #{tpu_custom_call.1} parent=39 // pred_fallthru
          _
        // Predicated region
        $region57: #{tpu_custom_call.1} parent=39 // pred_check
          %p275 = pneg %p129
        $region58: #{tpu_custom_call.1} parent=39 // pred_check_branch
          %277 = sbr.rel (%p275) target = $region60
        $region59: #{tpu_custom_call.1} parent=39 // pred_region
          %278 = dma.done [#allocation9], 384
        $region60: #{tpu_custom_call.1} parent=39 // pred_fallthru
          _
        %s279 = sand.u32 %s32, 1
        %s280 = scalar_lea.sflag [#allocation3], %s279
        %s281 = sand.u32 %s32, 1
        %s282 = smul.addr %s281, 64
        %s283 = scalar_lea.vmem [#allocation2], %s282
        %p284 = pneg %p45
        %p285 = pneg %p42
        %p286 = pneg %p66
        %p287 = pneg %p63
        %p288 = pneg %p87
        %p289 = pneg %p84
        %p290 = pneg %p108
        %p291 = pneg %p105
        %p292 = pneg %p129
        %p293 = pneg %p126
        %p294 = pneg %p155
        %p295 = pneg %p152
        %s296 = sand.u32 %s142, 1
        %s297 = scalar_lea.sflag [#allocation4], %s296
        %s298 = sand.u32 %s142, 1
        %s299 = scalar_lea.vmem [#allocation11], %s298
        %v301 = vld [vmem:[%s258] sm:$0xff]
        %v302 = vld [vmem:[%s258 + $0x8] sm:$0xff]
        %v303 = vld [vmem:[%s258 + $0x10] sm:$0xff]
        %v304 = vld [vmem:[%s258 + $0x18] sm:$0xff]
        %v305 = vld [vmem:[%s258 + $0x20] sm:$0xff]
        %v306 = vld [vmem:[%s258 + $0x28] sm:$0xff]
        %v307 = vld [vmem:[%s258 + $0x30] sm:$0xff]
        %v308 = vld [vmem:[%s258 + $0x38] sm:$0xff]
        %v309 = vld [vmem:[#allocation5] sm:$0xf]
        %v310 = vld [vmem:[#allocation5 + $0x4] sm:$0xf]
        %v311 = vld [vmem:[#allocation7] sm:$0xf]
        %v312 = vld [vmem:[#allocation7 + $0x4] sm:$0xf]
        %v313 = vld [vmem:[#allocation7 + $0x8] sm:$0xf]
        %v314 = vld [vmem:[#allocation7 + $0xc] sm:$0xf]
        %v315 = vld [vmem:[#allocation7 + $0x10] sm:$0xf]
        %v316 = vld [vmem:[#allocation7 + $0x14] sm:$0xf]
        %v317 = vld [vmem:[#allocation7 + $0x18] sm:$0xf]
        %v318 = vld [vmem:[#allocation7 + $0x1c] sm:$0xf]
        %v319 = vld [vmem:[#allocation8] sm:$0xf]
        %v320 = vld [vmem:[#allocation8 + $0x4] sm:$0xf]
        %v321 = vld [vmem:[#allocation8 + $0x8] sm:$0xf]
        %v322 = vld [vmem:[#allocation8 + $0xc] sm:$0xf]
        %v323 = vld [vmem:[#allocation8 + $0x10] sm:$0xf]
        %v324 = vld [vmem:[#allocation8 + $0x14] sm:$0xf]
        %v325 = vld [vmem:[#allocation8 + $0x18] sm:$0xf]
        %v326 = vld [vmem:[#allocation8 + $0x1c] sm:$0xf]
        %v327 = vld [vmem:[#allocation8 + $0x20] sm:$0xf]
        %v328 = vld [vmem:[#allocation8 + $0x24] sm:$0xf]
        %v329 = vld [vmem:[#allocation8 + $0x28] sm:$0xf]
        %v330 = vld [vmem:[#allocation8 + $0x2c] sm:$0xf]
        %v331 = vld [vmem:[#allocation8 + $0x30] sm:$0xf]
        %v332 = vld [vmem:[#allocation8 + $0x34] sm:$0xf]
        %v333 = vld [vmem:[#allocation8 + $0x38] sm:$0xf]
        %v334 = vld [vmem:[#allocation8 + $0x3c] sm:$0xf]
        %v335 = vld [vmem:[#allocation8 + $0x40] sm:$0xf]
        %v336 = vld [vmem:[#allocation8 + $0x44] sm:$0xf]
        %v337 = vld [vmem:[#allocation8 + $0x48] sm:$0xf]
        %v338 = vld [vmem:[#allocation8 + $0x4c] sm:$0xf]
        %v339 = vld [vmem:[#allocation10] sm:$0xff]
        %v340 = vld [vmem:[#allocation10 + $0x8] sm:$0xff]
        %v341 = vld [vmem:[#allocation10 + $0x10] sm:$0x7f]
        %v342 = vpack.c.bf16 %v302, %v301
        %v343 = vpack.c.bf16 %v304, %v303
        %v344 = vpack.c.bf16 %v306, %v305
        %v345 = vpack.c.bf16 %v308, %v307
        %v346 = vlaneseq
        %v347 = vshrl.u32 %v346, 7
        %v348 = vsub.s32 0, %v347
        %v349 = vrot.slane %v339, %v348
        %v352 = vunpack.c.l.b16 %v309
        %v353 = vunpack.c.l.b16 %v310
        %v354 = vpack.c.b16 %v353, %v352
        %vm356 = vcmask 130048
        %v358 = vsel %vm356, %v342, 0
        %v361 = vsel %vm356, %v343, 0
        %v364 = vsel %vm356, %v344, 0
        %v367 = vsel %vm356, %v345, 0
        %369 = vmatprep.subr.bf16.mxu0 0
        %370 = vmatpush1.bf16.msra.mxu0 %v354
        %371 = vmatprep.subr.bf16.mxu0 0
        %372 = vmatpush1.bf16.msra.mxu0 0
        %373 = vmatprep.subr.bf16.mxu0 0
        %374 = vmatpush1.bf16.msra.mxu0 0
        %375 = vmatprep.subr.bf16.mxu0 0
        %376 = vmatpush1.bf16.msra.mxu0 0
        %377 = vmatprep.subr.bf16.mxu0 0
        %378 = vmatpush1.bf16.msra.mxu0 0
        %379 = vmatprep.subr.bf16.mxu0 0
        %380 = vmatpush1.bf16.msra.mxu0 0
        %381 = vmatprep.subr.bf16.mxu0 0
        %382 = vmatpush1.bf16.msra.mxu0 0
        %383 = vmatprep.subr.bf16.mxu0 0
        %384 = vmatpush1.bf16.msra.mxu0 0
        %385 = vmatprep.subr.bf16.mxu0 0
        %386 = vmatpush1.bf16.msra.mxu0 0
        %387 = vmatprep.subr.bf16.mxu0 0
        %388 = vmatpush1.bf16.msra.mxu0 0
        %389 = vmatprep.subr.bf16.mxu0 0
        %390 = vmatpush1.bf16.msra.mxu0 0
        %391 = vmatprep.subr.bf16.mxu0 0
        %392 = vmatpush1.bf16.msra.mxu0 0
        %393 = vmatprep.subr.bf16.mxu0 0
        %394 = vmatpush1.bf16.msra.mxu0 0
        %395 = vmatprep.subr.bf16.mxu0 0
        %396 = vmatpush1.bf16.msra.mxu0 0
        %397 = vmatprep.subr.bf16.mxu0 0
        %398 = vmatpush1.bf16.msra.mxu0 0
        %399 = vmatprep.subr.bf16.mxu0 0
        %400 = vmatpush1.bf16.msra.mxu0 0
        %401 = vmatprep.mubr.bf16.mxu0 0
        %402 = vmatmul.mubr.bf16.gmra.mrb[0].mxu0 %v358
        %v403 = vpop.f32.mrb[0].mxu0
        %v404 = vadd.f32 %v349, %v403
        %v405 = vpop.f32.mrb[0].mxu0
        %v406 = vpop.f32.mrb[0].mxu0
        %v407 = vadd.f32 %v349, %v406
        %v408 = vpop.f32.mrb[0].mxu0
        %409 = vmatprep.mubr.bf16.mxu0 0
        %410 = vmatmul.mubr.bf16.gmra.mrb[0].mxu0 %v361
        %v411 = vpop.f32.mrb[0].mxu0
        %v412 = vadd.f32 %v349, %v411
        %v413 = vpop.f32.mrb[0].mxu0
        %v414 = vpop.f32.mrb[0].mxu0
        %v415 = vadd.f32 %v349, %v414
        %v416 = vpop.f32.mrb[0].mxu0
        %417 = vmatprep.mubr.bf16.mxu0 0
        %418 = vmatmul.mubr.bf16.gmra.mrb[0].mxu0 %v364
        %v419 = vpop.f32.mrb[0].mxu0
        %v420 = vadd.f32 %v349, %v419
        %v421 = vpop.f32.mrb[0].mxu0
        %v422 = vpop.f32.mrb[0].mxu0
        %v423 = vadd.f32 %v349, %v422
        %v424 = vpop.f32.mrb[0].mxu0
        %425 = vmatprep.mubr.bf16.mxu0 0
        %426 = vmatmul.mubr.bf16.gmra.mrb[0].mxu0 %v367
        %v427 = vpop.f32.mrb[0].mxu0
        %v428 = vadd.f32 %v349, %v427
        %v429 = vpop.f32.mrb[0].mxu0
        %v430 = vpop.f32.mrb[0].mxu0
        %v431 = vadd.f32 %v349, %v430
        %v432 = vpop.f32.mrb[0].mxu0
        %433 = vdwg.mxu0
        %vm436 = vcmask 1042432
        %v437 = vrot.slane %v340, 5
        %v438 = vrot.slane %v341, 5
        %v439 = vsel %vm436, %v437, %v438
        %v441 = vadd.f32 %v404, %v439
        %v442 = vadd.f32 %v407, %v439
        %v443 = vadd.f32 %v412, %v439
        %v444 = vadd.f32 %v415, %v439
        %v445 = vadd.f32 %v420, %v439
        %v446 = vadd.f32 %v423, %v439
        %v447 = vadd.f32 %v428, %v439
        %v448 = vadd.f32 %v431, %v439
        %vm449 = vcmask 261120
        %v450 = vsel %vm449, %v441, 0.0
        %451 = vadd.xlane.f32.xlu0 %v450
        %v452 = vpop.xlane.xlu0 %451
        %v453 = vsel %vm449, %v442, 0.0
        %454 = vadd.xlane.f32.xlu0 %v453
        %v455 = vpop.xlane.xlu0 %454
        %v456 = vsel %vm449, %v443, 0.0
        %457 = vadd.xlane.f32.xlu0 %v456
        %v458 = vpop.xlane.xlu0 %457
        %v459 = vsel %vm449, %v444, 0.0
        %460 = vadd.xlane.f32.xlu0 %v459
        %v461 = vpop.xlane.xlu0 %460
        %v462 = vsel %vm449, %v445, 0.0
        %463 = vadd.xlane.f32.xlu0 %v462
        %v464 = vpop.xlane.xlu0 %463
        %v465 = vsel %vm449, %v446, 0.0
        %466 = vadd.xlane.f32.xlu0 %v465
        %v467 = vpop.xlane.xlu0 %466
        %v468 = vsel %vm449, %v447, 0.0
        %469 = vadd.xlane.f32.xlu0 %v468
        %v470 = vpop.xlane.xlu0 %469
        %v471 = vsel %vm449, %v448, 0.0
        %472 = vadd.xlane.f32.xlu0 %v471
        %v473 = vpop.xlane.xlu0 %472
        %v474 = vrcp.pop 32.0
        %v475 = vmul.f32 %v452, %v474
        %v476 = vmul.f32 %v455, %v474
        %v477 = vmul.f32 %v458, %v474
        %v478 = vmul.f32 %v461, %v474
        %v479 = vmul.f32 %v464, %v474
        %v480 = vmul.f32 %v467, %v474
        %v481 = vmul.f32 %v470, %v474
        %v482 = vmul.f32 %v473, %v474
        %v483 = vsub.f32 %v441, %v475
        %v484 = vsub.f32 %v442, %v476
        %v485 = vsub.f32 %v443, %v477
        %v486 = vsub.f32 %v444, %v478
        %v487 = vsub.f32 %v445, %v479
        %v488 = vsub.f32 %v446, %v480
        %v489 = vsub.f32 %v447, %v481
        %v490 = vsub.f32 %v448, %v482
        %v491 = vmul.f32 %v483, %v483
        %v492 = vmul.f32 %v484, %v484
        %v493 = vmul.f32 %v485, %v485
        %v494 = vmul.f32 %v486, %v486
        %v495 = vmul.f32 %v487, %v487
        %v496 = vmul.f32 %v488, %v488
        %v497 = vmul.f32 %v489, %v489
        %v498 = vmul.f32 %v490, %v490
        %v499 = vsel %vm449, %v491, 0.0
        %500 = vadd.xlane.f32.xlu0 %v499
        %v501 = vpop.xlane.xlu0 %500
        %v502 = vsel %vm449, %v492, 0.0
        %503 = vadd.xlane.f32.xlu0 %v502
        %v504 = vpop.xlane.xlu0 %503
        %v505 = vsel %vm449, %v493, 0.0
        %506 = vadd.xlane.f32.xlu0 %v505
        %v507 = vpop.xlane.xlu0 %506
        %v508 = vsel %vm449, %v494, 0.0
        %509 = vadd.xlane.f32.xlu0 %v508
        %v510 = vpop.xlane.xlu0 %509
        %v511 = vsel %vm449, %v495, 0.0
        %512 = vadd.xlane.f32.xlu0 %v511
        %v513 = vpop.xlane.xlu0 %512
        %v514 = vsel %vm449, %v496, 0.0
        %515 = vadd.xlane.f32.xlu0 %v514
        %v516 = vpop.xlane.xlu0 %515
        %v517 = vsel %vm449, %v497, 0.0
        %518 = vadd.xlane.f32.xlu0 %v517
        %v519 = vpop.xlane.xlu0 %518
        %v520 = vsel %vm449, %v498, 0.0
        %521 = vadd.xlane.f32.xlu0 %v520
        %v522 = vpop.xlane.xlu0 %521
        %v523 = vmul.f32 %v501, %v474
        %v524 = vmul.f32 %v504, %v474
        %v525 = vmul.f32 %v507, %v474
        %v526 = vmul.f32 %v510, %v474
        %v527 = vmul.f32 %v513, %v474
        %v528 = vmul.f32 %v516, %v474
        %v529 = vmul.f32 %v519, %v474
        %v530 = vmul.f32 %v522, %v474
        %v531 = vadd.f32 %v523, 1e-05
        %v532 = vadd.f32 %v524, 1e-05
        %v533 = vadd.f32 %v525, 1e-05
        %v534 = vadd.f32 %v526, 1e-05
        %v535 = vadd.f32 %v527, 1e-05
        %v536 = vadd.f32 %v528, 1e-05
        %v537 = vadd.f32 %v529, 1e-05
        %v538 = vadd.f32 %v530, 1e-05
        %v539 = vrsqrt.pop %v531
        %v540 = vrsqrt.pop %v532
        %v541 = vrsqrt.pop %v533
        %v542 = vrsqrt.pop %v534
        %v543 = vrsqrt.pop %v535
        %v544 = vrsqrt.pop %v536
        %v545 = vrsqrt.pop %v537
        %v546 = vrsqrt.pop %v538
        %v547 = vmul.f32 %v483, %v539
        %v548 = vmul.f32 %v484, %v540
        %v549 = vmul.f32 %v485, %v541
        %v550 = vmul.f32 %v486, %v542
        %v551 = vmul.f32 %v487, %v543
        %v552 = vmul.f32 %v488, %v544
        %v553 = vmul.f32 %v489, %v545
        %v554 = vmul.f32 %v490, %v546
        %v555 = vlaneseq
        %v556 = vshrl.u32 %v555, 7
        %v557 = vsub.s32 1, %v556
        %v558 = vrot.slane %v339, %v557
        %v559 = vmul.f32 %v547, %v558
        %v560 = vmul.f32 %v548, %v558
        %v561 = vmul.f32 %v549, %v558
        %v562 = vmul.f32 %v550, %v558
        %v563 = vmul.f32 %v551, %v558
        %v564 = vmul.f32 %v552, %v558
        %v565 = vmul.f32 %v553, %v558
        %v566 = vmul.f32 %v554, %v558
        %v567 = vlaneseq
        %v568 = vshrl.u32 %v567, 7
        %v569 = vsub.s32 2, %v568
        %v570 = vrot.slane %v339, %v569
        %v571 = vadd.f32 %v559, %v570
        %v572 = vadd.f32 %v560, %v570
        %v573 = vadd.f32 %v561, %v570
        %v574 = vadd.f32 %v562, %v570
        %v575 = vadd.f32 %v563, %v570
        %v576 = vadd.f32 %v564, %v570
        %v577 = vadd.f32 %v565, %v570
        %v578 = vadd.f32 %v566, %v570
        %v579 = vpack.c.bf16 %v572, %v571
        %v580 = vpack.c.bf16 %v574, %v573
        %v581 = vpack.c.bf16 %v576, %v575
        %v582 = vpack.c.bf16 %v578, %v577
        %v587 = vunpack.c.l.b16 %v311
        %v588 = vunpack.c.l.b16 %v312
        %v589 = vunpack.c.l.b16 %v313
        %v590 = vunpack.c.l.b16 %v314
        %v591 = vpack.c.b16 %v588, %v587
        %v592 = vpack.c.b16 %v590, %v589
        %v596 = vsel %vm449, %v579, 0
        %v599 = vsel %vm449, %v580, 0
        %v602 = vsel %vm449, %v581, 0
        %v605 = vsel %vm449, %v582, 0
        %607 = vmatprep.subr.bf16.mxu0 0
        %608 = vmatpush1.bf16.msra.mxu0 %v591
        %609 = vmatprep.subr.bf16.mxu0 0
        %610 = vmatpush1.bf16.msra.mxu0 %v592
        %611 = vmatprep.subr.bf16.mxu0 0
        %612 = vmatpush1.bf16.msra.mxu0 0
        %613 = vmatprep.subr.bf16.mxu0 0
        %614 = vmatpush1.bf16.msra.mxu0 0
        %615 = vmatprep.subr.bf16.mxu0 0
        %616 = vmatpush1.bf16.msra.mxu0 0
        %617 = vmatprep.subr.bf16.mxu0 0
        %618 = vmatpush1.bf16.msra.mxu0 0
        %619 = vmatprep.subr.bf16.mxu0 0
        %620 = vmatpush1.bf16.msra.mxu0 0
        %621 = vmatprep.subr.bf16.mxu0 0
        %622 = vmatpush1.bf16.msra.mxu0 0
        %623 = vmatprep.subr.bf16.mxu0 0
        %624 = vmatpush1.bf16.msra.mxu0 0
        %625 = vmatprep.subr.bf16.mxu0 0
        %626 = vmatpush1.bf16.msra.mxu0 0
        %627 = vmatprep.subr.bf16.mxu0 0
        %628 = vmatpush1.bf16.msra.mxu0 0
        %629 = vmatprep.subr.bf16.mxu0 0
        %630 = vmatpush1.bf16.msra.mxu0 0
        %631 = vmatprep.subr.bf16.mxu0 0
        %632 = vmatpush1.bf16.msra.mxu0 0
        %633 = vmatprep.subr.bf16.mxu0 0
        %634 = vmatpush1.bf16.msra.mxu0 0
        %635 = vmatprep.subr.bf16.mxu0 0
        %636 = vmatpush1.bf16.msra.mxu0 0
        %637 = vmatprep.subr.bf16.mxu0 0
        %638 = vmatpush1.bf16.msra.mxu0 0
        %639 = vmatprep.mubr.bf16.mxu0 0
        %640 = vmatmul.mubr.bf16.gmra.mrb[0].mxu0 %v596
        %v641 = vpop.f32.mrb[0].mxu0
        %v642 = vadd.f32 0.0, %v641
        %v643 = vpop.f32.mrb[0].mxu0
        %v644 = vpop.f32.mrb[0].mxu0
        %v645 = vadd.f32 0.0, %v644
        %v646 = vpop.f32.mrb[0].mxu0
        %647 = vmatprep.mubr.bf16.mxu0 0
        %648 = vmatmul.mubr.bf16.gmra.mrb[0].mxu0 %v599
        %v649 = vpop.f32.mrb[0].mxu0
        %v650 = vadd.f32 0.0, %v649
        %v651 = vpop.f32.mrb[0].mxu0
        %v652 = vpop.f32.mrb[0].mxu0
        %v653 = vadd.f32 0.0, %v652
        %v654 = vpop.f32.mrb[0].mxu0
        %655 = vmatprep.mubr.bf16.mxu0 0
        %656 = vmatmul.mubr.bf16.gmra.mrb[0].mxu0 %v602
        %v657 = vpop.f32.mrb[0].mxu0
        %v658 = vadd.f32 0.0, %v657
        %v659 = vpop.f32.mrb[0].mxu0
        %v660 = vpop.f32.mrb[0].mxu0
        %v661 = vadd.f32 0.0, %v660
        %v662 = vpop.f32.mrb[0].mxu0
        %663 = vmatprep.mubr.bf16.mxu0 0
        %664 = vmatmul.mubr.bf16.gmra.mrb[0].mxu0 %v605
        %v665 = vpop.f32.mrb[0].mxu0
        %v666 = vadd.f32 0.0, %v665
        %v667 = vpop.f32.mrb[0].mxu0
        %v668 = vpop.f32.mrb[0].mxu0
        %v669 = vadd.f32 0.0, %v668
        %v670 = vpop.f32.mrb[0].mxu0
        %671 = vdwg.mxu0
        %v672 = vpack.c.bf16 %v642, %v642
        %v673 = vpack.c.bf16 %v645, %v645
        %v674 = vpack.c.bf16 %v650, %v650
        %v675 = vpack.c.bf16 %v653, %v653
        %v676 = vpack.c.bf16 %v658, %v658
        %v677 = vpack.c.bf16 %v661, %v661
        %v678 = vpack.c.bf16 %v666, %v666
        %v679 = vpack.c.bf16 %v669, %v669
        %681 = vrot.lane.b32.xlu0 %v672, 96
        %v682 = vpop.permute.xlu0 %681
        %vm683 = vcmask 64512
        %v685 = vsel %vm683, %v672, 0
        %v688 = vsel %vm683, %v682, 0
        %690 = vmatprep.subr.bf16.mxu0 0
        %691 = vmatpush1.bf16.xpose.msra.mxu0 %v688
        %692 = vmatprep.subr.bf16.mxu0 0
        %693 = vmatpush1.bf16.xpose.msra.mxu0 0
        %694 = vmatprep.subr.bf16.mxu0 0
        %695 = vmatpush1.bf16.xpose.msra.mxu0 0
        %696 = vmatprep.subr.bf16.mxu0 0
        %697 = vmatpush1.bf16.xpose.msra.mxu0 0
        %698 = vmatprep.subr.bf16.mxu0 0
        %699 = vmatpush1.bf16.xpose.msra.mxu0 0
        %700 = vmatprep.subr.bf16.mxu0 0
        %701 = vmatpush1.bf16.xpose.msra.mxu0 0
        %702 = vmatprep.subr.bf16.mxu0 0
        %703 = vmatpush1.bf16.xpose.msra.mxu0 0
        %704 = vmatprep.subr.bf16.mxu0 0
        %705 = vmatpush1.bf16.xpose.msra.mxu0 0
        %706 = vmatprep.subr.bf16.mxu0 0
        %707 = vmatpush1.bf16.xpose.msra.mxu0 0
        %708 = vmatprep.subr.bf16.mxu0 0
        %709 = vmatpush1.bf16.xpose.msra.mxu0 0
        %710 = vmatprep.subr.bf16.mxu0 0
        %711 = vmatpush1.bf16.xpose.msra.mxu0 0
        %712 = vmatprep.subr.bf16.mxu0 0
        %713 = vmatpush1.bf16.xpose.msra.mxu0 0
        %714 = vmatprep.subr.bf16.mxu0 0
        %715 = vmatpush1.bf16.xpose.msra.mxu0 0
        %716 = vmatprep.subr.bf16.mxu0 0
        %717 = vmatpush1.bf16.xpose.msra.mxu0 0
        %718 = vmatprep.subr.bf16.mxu0 0
        %719 = vmatpush1.bf16.xpose.msra.mxu0 0
        %720 = vmatprep.subr.bf16.mxu0 0
        %721 = vmatpush1.bf16.xpose.msra.mxu0 0
        %722 = vmatprep.mubr.bf16.mxu0 0
        %723 = vmatmul.mubr.bf16.gmra.mrb[0].mxu0 %v685
        %v724 = vpop.f32.mrb[0].mxu0
        %v725 = vadd.f32 0.0, %v724
        %v726 = vpop.f32.mrb[0].mxu0
        %v727 = vpop.f32.mrb[0].mxu0
        %v728 = vpop.f32.mrb[0].mxu0
        %729 = vdwg.mxu0
        %731 = vrot.lane.b32.xlu0 %v673, 96
        %v732 = vpop.permute.xlu0 %731
        %v734 = vsel %vm683, %v673, 0
        %v737 = vsel %vm683, %v732, 0
        %739 = vmatprep.subr.bf16.mxu0 0
        %740 = vmatpush1.bf16.xpose.msra.mxu0 %v737
        %741 = vmatprep.subr.bf16.mxu0 0
        %742 = vmatpush1.bf16.xpose.msra.mxu0 0
        %743 = vmatprep.subr.bf16.mxu0 0
        %744 = vmatpush1.bf16.xpose.msra.mxu0 0
        %745 = vmatprep.subr.bf16.mxu0 0
        %746 = vmatpush1.bf16.xpose.msra.mxu0 0
        %747 = vmatprep.subr.bf16.mxu0 0
        %748 = vmatpush1.bf16.xpose.msra.mxu0 0
        %749 = vmatprep.subr.bf16.mxu0 0
        %750 = vmatpush1.bf16.xpose.msra.mxu0 0
        %751 = vmatprep.subr.bf16.mxu0 0
        %752 = vmatpush1.bf16.xpose.msra.mxu0 0
        %753 = vmatprep.subr.bf16.mxu0 0
        %754 = vmatpush1.bf16.xpose.msra.mxu0 0
        %755 = vmatprep.subr.bf16.mxu0 0
        %756 = vmatpush1.bf16.xpose.msra.mxu0 0
        %757 = vmatprep.subr.bf16.mxu0 0
        %758 = vmatpush1.bf16.xpose.msra.mxu0 0
        %759 = vmatprep.subr.bf16.mxu0 0
        %760 = vmatpush1.bf16.xpose.msra.mxu0 0
        %761 = vmatprep.subr.bf16.mxu0 0
        %762 = vmatpush1.bf16.xpose.msra.mxu0 0
        %763 = vmatprep.subr.bf16.mxu0 0
        %764 = vmatpush1.bf16.xpose.msra.mxu0 0
        %765 = vmatprep.subr.bf16.mxu0 0
        %766 = vmatpush1.bf16.xpose.msra.mxu0 0
        %767 = vmatprep.subr.bf16.mxu0 0
        %768 = vmatpush1.bf16.xpose.msra.mxu0 0
        %769 = vmatprep.subr.bf16.mxu0 0
        %770 = vmatpush1.bf16.xpose.msra.mxu0 0
        %771 = vmatprep.mubr.bf16.mxu0 0
        %772 = vmatmul.mubr.bf16.gmra.mrb[0].mxu0 %v734
        %v773 = vpop.f32.mrb[0].mxu0
        %v774 = vadd.f32 0.0, %v773
        %v775 = vpop.f32.mrb[0].mxu0
        %v776 = vpop.f32.mrb[0].mxu0
        %v777 = vpop.f32.mrb[0].mxu0
        %778 = vdwg.mxu0
        %780 = vrot.lane.b32.xlu0 %v674, 96
        %v781 = vpop.permute.xlu0 %780
        %v783 = vsel %vm683, %v674, 0
        %v786 = vsel %vm683, %v781, 0
        %788 = vmatprep.subr.bf16.mxu0 0
        %789 = vmatpush1.bf16.xpose.msra.mxu0 %v786
        %790 = vmatprep.subr.bf16.mxu0 0
        %791 = vmatpush1.bf16.xpose.msra.mxu0 0
        %792 = vmatprep.subr.bf16.mxu0 0
        %793 = vmatpush1.bf16.xpose.msra.mxu0 0
        %794 = vmatprep.subr.bf16.mxu0 0
        %795 = vmatpush1.bf16.xpose.msra.mxu0 0
        %796 = vmatprep.subr.bf16.mxu0 0
        %797 = vmatpush1.bf16.xpose.msra.mxu0 0
        %798 = vmatprep.subr.bf16.mxu0 0
        %799 = vmatpush1.bf16.xpose.msra.mxu0 0
        %800 = vmatprep.subr.bf16.mxu0 0
        %801 = vmatpush1.bf16.xpose.msra.mxu0 0
        %802 = vmatprep.subr.bf16.mxu0 0
        %803 = vmatpush1.bf16.xpose.msra.mxu0 0
        %804 = vmatprep.subr.bf16.mxu0 0
        %805 = vmatpush1.bf16.xpose.msra.mxu0 0
        %806 = vmatprep.subr.bf16.mxu0 0
        %807 = vmatpush1.bf16.xpose.msra.mxu0 0
        %808 = vmatprep.subr.bf16.mxu0 0
        %809 = vmatpush1.bf16.xpose.msra.mxu0 0
        %810 = vmatprep.subr.bf16.mxu0 0
        %811 = vmatpush1.bf16.xpose.msra.mxu0 0
        %812 = vmatprep.subr.bf16.mxu0 0
        %813 = vmatpush1.bf16.xpose.msra.mxu0 0
        %814 = vmatprep.subr.bf16.mxu0 0
        %815 = vmatpush1.bf16.xpose.msra.mxu0 0
        %816 = vmatprep.subr.bf16.mxu0 0
        %817 = vmatpush1.bf16.xpose.msra.mxu0 0
        %818 = vmatprep.subr.bf16.mxu0 0
        %819 = vmatpush1.bf16.xpose.msra.mxu0 0
        %820 = vmatprep.mubr.bf16.mxu0 0
        %821 = vmatmul.mubr.bf16.gmra.mrb[0].mxu0 %v783
        %v822 = vpop.f32.mrb[0].mxu0
        %v823 = vadd.f32 0.0, %v822
        %v824 = vpop.f32.mrb[0].mxu0
        %v825 = vpop.f32.mrb[0].mxu0
        %v826 = vpop.f32.mrb[0].mxu0
        %827 = vdwg.mxu0
        %829 = vrot.lane.b32.xlu0 %v675, 96
        %v830 = vpop.permute.xlu0 %829
        %v832 = vsel %vm683, %v675, 0
        %v835 = vsel %vm683, %v830, 0
        %837 = vmatprep.subr.bf16.mxu0 0
        %838 = vmatpush1.bf16.xpose.msra.mxu0 %v835
        %839 = vmatprep.subr.bf16.mxu0 0
        %840 = vmatpush1.bf16.xpose.msra.mxu0 0
        %841 = vmatprep.subr.bf16.mxu0 0
        %842 = vmatpush1.bf16.xpose.msra.mxu0 0
        %843 = vmatprep.subr.bf16.mxu0 0
        %844 = vmatpush1.bf16.xpose.msra.mxu0 0
        %845 = vmatprep.subr.bf16.mxu0 0
        %846 = vmatpush1.bf16.xpose.msra.mxu0 0
        %847 = vmatprep.subr.bf16.mxu0 0
        %848 = vmatpush1.bf16.xpose.msra.mxu0 0
        %849 = vmatprep.subr.bf16.mxu0 0
        %850 = vmatpush1.bf16.xpose.msra.mxu0 0
        %851 = vmatprep.subr.bf16.mxu0 0
        %852 = vmatpush1.bf16.xpose.msra.mxu0 0
        %853 = vmatprep.subr.bf16.mxu0 0
        %854 = vmatpush1.bf16.xpose.msra.mxu0 0
        %855 = vmatprep.subr.bf16.mxu0 0
        %856 = vmatpush1.bf16.xpose.msra.mxu0 0
        %857 = vmatprep.subr.bf16.mxu0 0
        %858 = vmatpush1.bf16.xpose.msra.mxu0 0
        %859 = vmatprep.subr.bf16.mxu0 0
        %860 = vmatpush1.bf16.xpose.msra.mxu0 0
        %861 = vmatprep.subr.bf16.mxu0 0
        %862 = vmatpush1.bf16.xpose.msra.mxu0 0
        %863 = vmatprep.subr.bf16.mxu0 0
        %864 = vmatpush1.bf16.xpose.msra.mxu0 0
        %865 = vmatprep.subr.bf16.mxu0 0
        %866 = vmatpush1.bf16.xpose.msra.mxu0 0
        %867 = vmatprep.subr.bf16.mxu0 0
        %868 = vmatpush1.bf16.xpose.msra.mxu0 0
        %869 = vmatprep.mubr.bf16.mxu0 0
        %870 = vmatmul.mubr.bf16.gmra.mrb[0].mxu0 %v832
        %v871 = vpop.f32.mrb[0].mxu0
        %v872 = vadd.f32 0.0, %v871
        %v873 = vpop.f32.mrb[0].mxu0
        %v874 = vpop.f32.mrb[0].mxu0
        %v875 = vpop.f32.mrb[0].mxu0
        %876 = vdwg.mxu0
        %878 = vrot.lane.b32.xlu0 %v676, 96
        %v879 = vpop.permute.xlu0 %878
        %v881 = vsel %vm683, %v676, 0
        %v884 = vsel %vm683, %v879, 0
        %886 = vmatprep.subr.bf16.mxu0 0
        %887 = vmatpush1.bf16.xpose.msra.mxu0 %v884
        %888 = vmatprep.subr.bf16.mxu0 0
        %889 = vmatpush1.bf16.xpose.msra.mxu0 0
        %890 = vmatprep.subr.bf16.mxu0 0
        %891 = vmatpush1.bf16.xpose.msra.mxu0 0
        %892 = vmatprep.subr.bf16.mxu0 0
        %893 = vmatpush1.bf16.xpose.msra.mxu0 0
        %894 = vmatprep.subr.bf16.mxu0 0
        %895 = vmatpush1.bf16.xpose.msra.mxu0 0
        %896 = vmatprep.subr.bf16.mxu0 0
        %897 = vmatpush1.bf16.xpose.msra.mxu0 0
        %898 = vmatprep.subr.bf16.mxu0 0
        %899 = vmatpush1.bf16.xpose.msra.mxu0 0
        %900 = vmatprep.subr.bf16.mxu0 0
        %901 = vmatpush1.bf16.xpose.msra.mxu0 0
        %902 = vmatprep.subr.bf16.mxu0 0
        %903 = vmatpush1.bf16.xpose.msra.mxu0 0
        %904 = vmatprep.subr.bf16.mxu0 0
        %905 = vmatpush1.bf16.xpose.msra.mxu0 0
        %906 = vmatprep.subr.bf16.mxu0 0
        %907 = vmatpush1.bf16.xpose.msra.mxu0 0
        %908 = vmatprep.subr.bf16.mxu0 0
        %909 = vmatpush1.bf16.xpose.msra.mxu0 0
        %910 = vmatprep.subr.bf16.mxu0 0
        %911 = vmatpush1.bf16.xpose.msra.mxu0 0
        %912 = vmatprep.subr.bf16.mxu0 0
        %913 = vmatpush1.bf16.xpose.msra.mxu0 0
        %914 = vmatprep.subr.bf16.mxu0 0
        %915 = vmatpush1.bf16.xpose.msra.mxu0 0
        %916 = vmatprep.subr.bf16.mxu0 0
        %917 = vmatpush1.bf16.xpose.msra.mxu0 0
        %918 = vmatprep.mubr.bf16.mxu0 0
        %919 = vmatmul.mubr.bf16.gmra.mrb[0].mxu0 %v881
        %v920 = vpop.f32.mrb[0].mxu0
        %v921 = vadd.f32 0.0, %v920
        %v922 = vpop.f32.mrb[0].mxu0
        %v923 = vpop.f32.mrb[0].mxu0
        %v924 = vpop.f32.mrb[0].mxu0
        %925 = vdwg.mxu0
        %927 = vrot.lane.b32.xlu0 %v677, 96
        %v928 = vpop.permute.xlu0 %927
        %v930 = vsel %vm683, %v677, 0
        %v933 = vsel %vm683, %v928, 0
        %935 = vmatprep.subr.bf16.mxu0 0
        %936 = vmatpush1.bf16.xpose.msra.mxu0 %v933
        %937 = vmatprep.subr.bf16.mxu0 0
        %938 = vmatpush1.bf16.xpose.msra.mxu0 0
        %939 = vmatprep.subr.bf16.mxu0 0
        %940 = vmatpush1.bf16.xpose.msra.mxu0 0
        %941 = vmatprep.subr.bf16.mxu0 0
        %942 = vmatpush1.bf16.xpose.msra.mxu0 0
        %943 = vmatprep.subr.bf16.mxu0 0
        %944 = vmatpush1.bf16.xpose.msra.mxu0 0
        %945 = vmatprep.subr.bf16.mxu0 0
        %946 = vmatpush1.bf16.xpose.msra.mxu0 0
        %947 = vmatprep.subr.bf16.mxu0 0
        %948 = vmatpush1.bf16.xpose.msra.mxu0 0
        %949 = vmatprep.subr.bf16.mxu0 0
        %950 = vmatpush1.bf16.xpose.msra.mxu0 0
        %951 = vmatprep.subr.bf16.mxu0 0
        %952 = vmatpush1.bf16.xpose.msra.mxu0 0
        %953 = vmatprep.subr.bf16.mxu0 0
        %954 = vmatpush1.bf16.xpose.msra.mxu0 0
        %955 = vmatprep.subr.bf16.mxu0 0
        %956 = vmatpush1.bf16.xpose.msra.mxu0 0
        %957 = vmatprep.subr.bf16.mxu0 0
        %958 = vmatpush1.bf16.xpose.msra.mxu0 0
        %959 = vmatprep.subr.bf16.mxu0 0
        %960 = vmatpush1.bf16.xpose.msra.mxu0 0
        %961 = vmatprep.subr.bf16.mxu0 0
        %962 = vmatpush1.bf16.xpose.msra.mxu0 0
        %963 = vmatprep.subr.bf16.mxu0 0
        %964 = vmatpush1.bf16.xpose.msra.mxu0 0
        %965 = vmatprep.subr.bf16.mxu0 0
        %966 = vmatpush1.bf16.xpose.msra.mxu0 0
        %967 = vmatprep.mubr.bf16.mxu0 0
        %968 = vmatmul.mubr.bf16.gmra.mrb[0].mxu0 %v930
        %v969 = vpop.f32.mrb[0].mxu0
        %v970 = vadd.f32 0.0, %v969
        %v971 = vpop.f32.mrb[0].mxu0
        %v972 = vpop.f32.mrb[0].mxu0
        %v973 = vpop.f32.mrb[0].mxu0
        %974 = vdwg.mxu0
        %976 = vrot.lane.b32.xlu0 %v678, 96
        %v977 = vpop.permute.xlu0 %976
        %v979 = vsel %vm683, %v678, 0
        %v982 = vsel %vm683, %v977, 0
        %984 = vmatprep.subr.bf16.mxu0 0
        %985 = vmatpush1.bf16.xpose.msra.mxu0 %v982
        %986 = vmatprep.subr.bf16.mxu0 0
        %987 = vmatpush1.bf16.xpose.msra.mxu0 0
        %988 = vmatprep.subr.bf16.mxu0 0
        %989 = vmatpush1.bf16.xpose.msra.mxu0 0
        %990 = vmatprep.subr.bf16.mxu0 0
        %991 = vmatpush1.bf16.xpose.msra.mxu0 0
        %992 = vmatprep.subr.bf16.mxu0 0
        %993 = vmatpush1.bf16.xpose.msra.mxu0 0
        %994 = vmatprep.subr.bf16.mxu0 0
        %995 = vmatpush1.bf16.xpose.msra.mxu0 0
        %996 = vmatprep.subr.bf16.mxu0 0
        %997 = vmatpush1.bf16.xpose.msra.mxu0 0
        %998 = vmatprep.subr.bf16.mxu0 0
        %999 = vmatpush1.bf16.xpose.msra.mxu0 0
        %1000 = vmatprep.subr.bf16.mxu0 0
        %1001 = vmatpush1.bf16.xpose.msra.mxu0 0
        %1002 = vmatprep.subr.bf16.mxu0 0
        %1003 = vmatpush1.bf16.xpose.msra.mxu0 0
        %1004 = vmatprep.subr.bf16.mxu0 0
        %1005 = vmatpush1.bf16.xpose.msra.mxu0 0
        %1006 = vmatprep.subr.bf16.mxu0 0
        %1007 = vmatpush1.bf16.xpose.msra.mxu0 0
        %1008 = vmatprep.subr.bf16.mxu0 0
        %1009 = vmatpush1.bf16.xpose.msra.mxu0 0
        %1010 = vmatprep.subr.bf16.mxu0 0
        %1011 = vmatpush1.bf16.xpose.msra.mxu0 0
        %1012 = vmatprep.subr.bf16.mxu0 0
        %1013 = vmatpush1.bf16.xpose.msra.mxu0 0
        %1014 = vmatprep.subr.bf16.mxu0 0
        %1015 = vmatpush1.bf16.xpose.msra.mxu0 0
        %1016 = vmatprep.mubr.bf16.mxu0 0
        %1017 = vmatmul.mubr.bf16.gmra.mrb[0].mxu0 %v979
        %v1018 = vpop.f32.mrb[0].mxu0
        %v1019 = vadd.f32 0.0, %v1018
        %v1020 = vpop.f32.mrb[0].mxu0
        %v1021 = vpop.f32.mrb[0].mxu0
        %v1022 = vpop.f32.mrb[0].mxu0
        %1023 = vdwg.mxu0
        %1025 = vrot.lane.b32.xlu0 %v679, 96
        %v1026 = vpop.permute.xlu0 %1025
        %v1028 = vsel %vm683, %v679, 0
        %v1031 = vsel %vm683, %v1026, 0
        %1033 = vmatprep.subr.bf16.mxu0 0
        %1034 = vmatpush1.bf16.xpose.msra.mxu0 %v1031
        %1035 = vmatprep.subr.bf16.mxu0 0
        %1036 = vmatpush1.bf16.xpose.msra.mxu0 0
        %1037 = vmatprep.subr.bf16.mxu0 0
        %1038 = vmatpush1.bf16.xpose.msra.mxu0 0
        %1039 = vmatprep.subr.bf16.mxu0 0
        %1040 = vmatpush1.bf16.xpose.msra.mxu0 0
        %1041 = vmatprep.subr.bf16.mxu0 0
        %1042 = vmatpush1.bf16.xpose.msra.mxu0 0
        %1043 = vmatprep.subr.bf16.mxu0 0
        %1044 = vmatpush1.bf16.xpose.msra.mxu0 0
        %1045 = vmatprep.subr.bf16.mxu0 0
        %1046 = vmatpush1.bf16.xpose.msra.mxu0 0
        %1047 = vmatprep.subr.bf16.mxu0 0
        %1048 = vmatpush1.bf16.xpose.msra.mxu0 0
        %1049 = vmatprep.subr.bf16.mxu0 0
        %1050 = vmatpush1.bf16.xpose.msra.mxu0 0
        %1051 = vmatprep.subr.bf16.mxu0 0
        %1052 = vmatpush1.bf16.xpose.msra.mxu0 0
        %1053 = vmatprep.subr.bf16.mxu0 0
        %1054 = vmatpush1.bf16.xpose.msra.mxu0 0
        %1055 = vmatprep.subr.bf16.mxu0 0
        %1056 = vmatpush1.bf16.xpose.msra.mxu0 0
        %1057 = vmatprep.subr.bf16.mxu0 0
        %1058 = vmatpush1.bf16.xpose.msra.mxu0 0
        %1059 = vmatprep.subr.bf16.mxu0 0
        %1060 = vmatpush1.bf16.xpose.msra.mxu0 0
        %1061 = vmatprep.subr.bf16.mxu0 0
        %1062 = vmatpush1.bf16.xpose.msra.mxu0 0
        %1063 = vmatprep.subr.bf16.mxu0 0
        %1064 = vmatpush1.bf16.xpose.msra.mxu0 0
        %1065 = vmatprep.mubr.bf16.mxu0 0
        %1066 = vmatmul.mubr.bf16.gmra.mrb[0].mxu0 %v1028
        %v1067 = vpop.f32.mrb[0].mxu0
        %v1068 = vadd.f32 0.0, %v1067
        %v1069 = vpop.f32.mrb[0].mxu0
        %v1070 = vpop.f32.mrb[0].mxu0
        %v1071 = vpop.f32.mrb[0].mxu0
        %1072 = vdwg.mxu0
        %v1073 = vsel %vm683, %v725, -inf
        %1074 = vmax.xlane.f32.xlu0 %v1073
        %v1075 = vpop.xlane.xlu0 %1074
        %v1076 = vsel %vm683, %v774, -inf
        %1077 = vmax.xlane.f32.xlu0 %v1076
        %v1078 = vpop.xlane.xlu0 %1077
        %v1079 = vsel %vm683, %v823, -inf
        %1080 = vmax.xlane.f32.xlu0 %v1079
        %v1081 = vpop.xlane.xlu0 %1080
        %v1082 = vsel %vm683, %v872, -inf
        %1083 = vmax.xlane.f32.xlu0 %v1082
        %v1084 = vpop.xlane.xlu0 %1083
        %v1085 = vsel %vm683, %v921, -inf
        %1086 = vmax.xlane.f32.xlu0 %v1085
        %v1087 = vpop.xlane.xlu0 %1086
        %v1088 = vsel %vm683, %v970, -inf
        %1089 = vmax.xlane.f32.xlu0 %v1088
        %v1090 = vpop.xlane.xlu0 %1089
        %v1091 = vsel %vm683, %v1019, -inf
        %1092 = vmax.xlane.f32.xlu0 %v1091
        %v1093 = vpop.xlane.xlu0 %1092
        %v1094 = vsel %vm683, %v1068, -inf
        %1095 = vmax.xlane.f32.xlu0 %v1094
        %v1096 = vpop.xlane.xlu0 %1095
        %v1097 = vsub.f32 %v725, %v1075
        %v1098 = vsub.f32 %v774, %v1078
        %v1099 = vsub.f32 %v823, %v1081
        %v1100 = vsub.f32 %v872, %v1084
        %v1101 = vsub.f32 %v921, %v1087
        %v1102 = vsub.f32 %v970, %v1090
        %v1103 = vsub.f32 %v1019, %v1093
        %v1104 = vsub.f32 %v1068, %v1096
        %v1105 = vmul.f32 %v1097, 1.442695
        %v1106 = vpow.pop %v1105
        %v1107 = vmul.f32 %v1098, 1.442695
        %v1108 = vpow.pop %v1107
        %v1109 = vmul.f32 %v1099, 1.442695
        %v1110 = vpow.pop %v1109
        %v1111 = vmul.f32 %v1100, 1.442695
        %v1112 = vpow.pop %v1111
        %v1113 = vmul.f32 %v1101, 1.442695
        %v1114 = vpow.pop %v1113
        %v1115 = vmul.f32 %v1102, 1.442695
        %v1116 = vpow.pop %v1115
        %v1117 = vmul.f32 %v1103, 1.442695
        %v1118 = vpow.pop %v1117
        %v1119 = vmul.f32 %v1104, 1.442695
        %v1120 = vpow.pop %v1119
        %v1121 = vsel %vm683, %v1106, 0.0
        %1122 = vadd.xlane.f32.xlu0 %v1121
        %v1123 = vpop.xlane.xlu0 %1122
        %v1124 = vsel %vm683, %v1108, 0.0
        %1125 = vadd.xlane.f32.xlu0 %v1124
        %v1126 = vpop.xlane.xlu0 %1125
        %v1127 = vsel %vm683, %v1110, 0.0
        %1128 = vadd.xlane.f32.xlu0 %v1127
        %v1129 = vpop.xlane.xlu0 %1128
        %v1130 = vsel %vm683, %v1112, 0.0
        %1131 = vadd.xlane.f32.xlu0 %v1130
        %v1132 = vpop.xlane.xlu0 %1131
        %v1133 = vsel %vm683, %v1114, 0.0
        %1134 = vadd.xlane.f32.xlu0 %v1133
        %v1135 = vpop.xlane.xlu0 %1134
        %v1136 = vsel %vm683, %v1116, 0.0
        %1137 = vadd.xlane.f32.xlu0 %v1136
        %v1138 = vpop.xlane.xlu0 %1137
        %v1139 = vsel %vm683, %v1118, 0.0
        %1140 = vadd.xlane.f32.xlu0 %v1139
        %v1141 = vpop.xlane.xlu0 %1140
        %v1142 = vsel %vm683, %v1120, 0.0
        %1143 = vadd.xlane.f32.xlu0 %v1142
        %v1144 = vpop.xlane.xlu0 %1143
        %v1145 = vrcp.pop %v1123
        %v1146 = vrcp.pop %v1126
        %v1147 = vrcp.pop %v1129
        %v1148 = vrcp.pop %v1132
        %v1149 = vrcp.pop %v1135
        %v1150 = vrcp.pop %v1138
        %v1151 = vrcp.pop %v1141
        %v1152 = vrcp.pop %v1144
        %v1153 = vmul.f32 %v1106, %v1145
        %v1154 = vmul.f32 %v1108, %v1146
        %v1155 = vmul.f32 %v1110, %v1147
        %v1156 = vmul.f32 %v1112, %v1148
        %v1157 = vmul.f32 %v1114, %v1149
        %v1158 = vmul.f32 %v1116, %v1150
        %v1159 = vmul.f32 %v1118, %v1151
        %v1160 = vmul.f32 %v1120, %v1152
        %v1161 = vpack.c.bf16 %v1153, %v1153
        %v1162 = vpack.c.bf16 %v1154, %v1154
        %v1163 = vpack.c.bf16 %v1155, %v1155
        %v1164 = vpack.c.bf16 %v1156, %v1156
        %v1165 = vpack.c.bf16 %v1157, %v1157
        %v1166 = vpack.c.bf16 %v1158, %v1158
        %v1167 = vpack.c.bf16 %v1159, %v1159
        %v1168 = vpack.c.bf16 %v1160, %v1160
        %1169 = vrot.lane.b32.xlu0 %v672, 64
        %v1170 = vpop.permute.xlu0 %1169
        %v1172 = vsel %vm683, %v1161, 0
        %vm1174 = vcmask 1043456
        %v1176 = vsel %vm1174, %v1170, 0
        %1178 = vmatprep.subr.bf16.mxu0 0
        %1179 = vmatpush1.bf16.msra.mxu0 %v1176
        %1180 = vmatprep.subr.bf16.mxu0 0
        %1181 = vmatpush1.bf16.msra.mxu0 0
        %1182 = vmatprep.subr.bf16.mxu0 0
        %1183 = vmatpush1.bf16.msra.mxu0 0
        %1184 = vmatprep.subr.bf16.mxu0 0
        %1185 = vmatpush1.bf16.msra.mxu0 0
        %1186 = vmatprep.subr.bf16.mxu0 0
        %1187 = vmatpush1.bf16.msra.mxu0 0
        %1188 = vmatprep.subr.bf16.mxu0 0
        %1189 = vmatpush1.bf16.msra.mxu0 0
        %1190 = vmatprep.subr.bf16.mxu0 0
        %1191 = vmatpush1.bf16.msra.mxu0 0
        %1192 = vmatprep.subr.bf16.mxu0 0
        %1193 = vmatpush1.bf16.msra.mxu0 0
        %1194 = vmatprep.subr.bf16.mxu0 0
        %1195 = vmatpush1.bf16.msra.mxu0 0
        %1196 = vmatprep.subr.bf16.mxu0 0
        %1197 = vmatpush1.bf16.msra.mxu0 0
        %1198 = vmatprep.subr.bf16.mxu0 0
        %1199 = vmatpush1.bf16.msra.mxu0 0
        %1200 = vmatprep.subr.bf16.mxu0 0
        %1201 = vmatpush1.bf16.msra.mxu0 0
        %1202 = vmatprep.subr.bf16.mxu0 0
        %1203 = vmatpush1.bf16.msra.mxu0 0
        %1204 = vmatprep.subr.bf16.mxu0 0
        %1205 = vmatpush1.bf16.msra.mxu0 0
        %1206 = vmatprep.subr.bf16.mxu0 0
        %1207 = vmatpush1.bf16.msra.mxu0 0
        %1208 = vmatprep.subr.bf16.mxu0 0
        %1209 = vmatpush1.bf16.msra.mxu0 0
        %1210 = vmatprep.mubr.bf16.mxu0 0
        %1211 = vmatmul.mubr.bf16.gmra.mrb[0].mxu0 %v1172
        %v1212 = vpop.f32.mrb[0].mxu0
        %v1213 = vadd.f32 0.0, %v1212
        %v1214 = vpop.f32.mrb[0].mxu0
        %v1215 = vpop.f32.mrb[0].mxu0
        %v1216 = vpop.f32.mrb[0].mxu0
        %1217 = vdwg.mxu0
        %1218 = vrot.lane.b32.xlu0 %v673, 64
        %v1219 = vpop.permute.xlu0 %1218
        %v1221 = vsel %vm683, %v1162, 0
        %v1224 = vsel %vm1174, %v1219, 0
        %1226 = vmatprep.subr.bf16.mxu0 0
        %1227 = vmatpush1.bf16.msra.mxu0 %v1224
        %1228 = vmatprep.subr.bf16.mxu0 0
        %1229 = vmatpush1.bf16.msra.mxu0 0
        %1230 = vmatprep.subr.bf16.mxu0 0
        %1231 = vmatpush1.bf16.msra.mxu0 0
        %1232 = vmatprep.subr.bf16.mxu0 0
        %1233 = vmatpush1.bf16.msra.mxu0 0
        %1234 = vmatprep.subr.bf16.mxu0 0
        %1235 = vmatpush1.bf16.msra.mxu0 0
        %1236 = vmatprep.subr.bf16.mxu0 0
        %1237 = vmatpush1.bf16.msra.mxu0 0
        %1238 = vmatprep.subr.bf16.mxu0 0
        %1239 = vmatpush1.bf16.msra.mxu0 0
        %1240 = vmatprep.subr.bf16.mxu0 0
        %1241 = vmatpush1.bf16.msra.mxu0 0
        %1242 = vmatprep.subr.bf16.mxu0 0
        %1243 = vmatpush1.bf16.msra.mxu0 0
        %1244 = vmatprep.subr.bf16.mxu0 0
        %1245 = vmatpush1.bf16.msra.mxu0 0
        %1246 = vmatprep.subr.bf16.mxu0 0
        %1247 = vmatpush1.bf16.msra.mxu0 0
        %1248 = vmatprep.subr.bf16.mxu0 0
        %1249 = vmatpush1.bf16.msra.mxu0 0
        %1250 = vmatprep.subr.bf16.mxu0 0
        %1251 = vmatpush1.bf16.msra.mxu0 0
        %1252 = vmatprep.subr.bf16.mxu0 0
        %1253 = vmatpush1.bf16.msra.mxu0 0
        %1254 = vmatprep.subr.bf16.mxu0 0
        %1255 = vmatpush1.bf16.msra.mxu0 0
        %1256 = vmatprep.subr.bf16.mxu0 0
        %1257 = vmatpush1.bf16.msra.mxu0 0
        %1258 = vmatprep.mubr.bf16.mxu0 0
        %1259 = vmatmul.mubr.bf16.gmra.mrb[0].mxu0 %v1221
        %v1260 = vpop.f32.mrb[0].mxu0
        %v1261 = vadd.f32 0.0, %v1260
        %v1262 = vpop.f32.mrb[0].mxu0
        %v1263 = vpop.f32.mrb[0].mxu0
        %v1264 = vpop.f32.mrb[0].mxu0
        %1265 = vdwg.mxu0
        %1266 = vrot.lane.b32.xlu0 %v674, 64
        %v1267 = vpop.permute.xlu0 %1266
        %v1269 = vsel %vm683, %v1163, 0
        %v1272 = vsel %vm1174, %v1267, 0
        %1274 = vmatprep.subr.bf16.mxu0 0
        %1275 = vmatpush1.bf16.msra.mxu0 %v1272
        %1276 = vmatprep.subr.bf16.mxu0 0
        %1277 = vmatpush1.bf16.msra.mxu0 0
        %1278 = vmatprep.subr.bf16.mxu0 0
        %1279 = vmatpush1.bf16.msra.mxu0 0
        %1280 = vmatprep.subr.bf16.mxu0 0
        %1281 = vmatpush1.bf16.msra.mxu0 0
        %1282 = vmatprep.subr.bf16.mxu0 0
        %1283 = vmatpush1.bf16.msra.mxu0 0
        %1284 = vmatprep.subr.bf16.mxu0 0
        %1285 = vmatpush1.bf16.msra.mxu0 0
        %1286 = vmatprep.subr.bf16.mxu0 0
        %1287 = vmatpush1.bf16.msra.mxu0 0
        %1288 = vmatprep.subr.bf16.mxu0 0
        %1289 = vmatpush1.bf16.msra.mxu0 0
        %1290 = vmatprep.subr.bf16.mxu0 0
        %1291 = vmatpush1.bf16.msra.mxu0 0
        %1292 = vmatprep.subr.bf16.mxu0 0
        %1293 = vmatpush1.bf16.msra.mxu0 0
        %1294 = vmatprep.subr.bf16.mxu0 0
        %1295 = vmatpush1.bf16.msra.mxu0 0
        %1296 = vmatprep.subr.bf16.mxu0 0
        %1297 = vmatpush1.bf16.msra.mxu0 0
        %1298 = vmatprep.subr.bf16.mxu0 0
        %1299 = vmatpush1.bf16.msra.mxu0 0
        %1300 = vmatprep.subr.bf16.mxu0 0
        %1301 = vmatpush1.bf16.msra.mxu0 0
        %1302 = vmatprep.subr.bf16.mxu0 0
        %1303 = vmatpush1.bf16.msra.mxu0 0
        %1304 = vmatprep.subr.bf16.mxu0 0
        %1305 = vmatpush1.bf16.msra.mxu0 0
        %1306 = vmatprep.mubr.bf16.mxu0 0
        %1307 = vmatmul.mubr.bf16.gmra.mrb[0].mxu0 %v1269
        %v1308 = vpop.f32.mrb[0].mxu0
        %v1309 = vadd.f32 0.0, %v1308
        %v1310 = vpop.f32.mrb[0].mxu0
        %v1311 = vpop.f32.mrb[0].mxu0
        %v1312 = vpop.f32.mrb[0].mxu0
        %1313 = vdwg.mxu0
        %1314 = vrot.lane.b32.xlu0 %v675, 64
        %v1315 = vpop.permute.xlu0 %1314
        %v1317 = vsel %vm683, %v1164, 0
        %v1320 = vsel %vm1174, %v1315, 0
        %1322 = vmatprep.subr.bf16.mxu0 0
        %1323 = vmatpush1.bf16.msra.mxu0 %v1320
        %1324 = vmatprep.subr.bf16.mxu0 0
        %1325 = vmatpush1.bf16.msra.mxu0 0
        %1326 = vmatprep.subr.bf16.mxu0 0
        %1327 = vmatpush1.bf16.msra.mxu0 0
        %1328 = vmatprep.subr.bf16.mxu0 0
        %1329 = vmatpush1.bf16.msra.mxu0 0
        %1330 = vmatprep.subr.bf16.mxu0 0
        %1331 = vmatpush1.bf16.msra.mxu0 0
        %1332 = vmatprep.subr.bf16.mxu0 0
        %1333 = vmatpush1.bf16.msra.mxu0 0
        %1334 = vmatprep.subr.bf16.mxu0 0
        %1335 = vmatpush1.bf16.msra.mxu0 0
        %1336 = vmatprep.subr.bf16.mxu0 0
        %1337 = vmatpush1.bf16.msra.mxu0 0
        %1338 = vmatprep.subr.bf16.mxu0 0
        %1339 = vmatpush1.bf16.msra.mxu0 0
        %1340 = vmatprep.subr.bf16.mxu0 0
        %1341 = vmatpush1.bf16.msra.mxu0 0
        %1342 = vmatprep.subr.bf16.mxu0 0
        %1343 = vmatpush1.bf16.msra.mxu0 0
        %1344 = vmatprep.subr.bf16.mxu0 0
        %1345 = vmatpush1.bf16.msra.mxu0 0
        %1346 = vmatprep.subr.bf16.mxu0 0
        %1347 = vmatpush1.bf16.msra.mxu0 0
        %1348 = vmatprep.subr.bf16.mxu0 0
        %1349 = vmatpush1.bf16.msra.mxu0 0
        %1350 = vmatprep.subr.bf16.mxu0 0
        %1351 = vmatpush1.bf16.msra.mxu0 0
        %1352 = vmatprep.subr.bf16.mxu0 0
        %1353 = vmatpush1.bf16.msra.mxu0 0
        %1354 = vmatprep.mubr.bf16.mxu0 0
        %1355 = vmatmul.mubr.bf16.gmra.mrb[0].mxu0 %v1317
        %v1356 = vpop.f32.mrb[0].mxu0
        %v1357 = vadd.f32 0.0, %v1356
        %v1358 = vpop.f32.mrb[0].mxu0
        %v1359 = vpop.f32.mrb[0].mxu0
        %v1360 = vpop.f32.mrb[0].mxu0
        %1361 = vdwg.mxu0
        %1362 = vrot.lane.b32.xlu0 %v676, 64
        %v1363 = vpop.permute.xlu0 %1362
        %v1365 = vsel %vm683, %v1165, 0
        %v1368 = vsel %vm1174, %v1363, 0
        %1370 = vmatprep.subr.bf16.mxu0 0
        %1371 = vmatpush1.bf16.msra.mxu0 %v1368
        %1372 = vmatprep.subr.bf16.mxu0 0
        %1373 = vmatpush1.bf16.msra.mxu0 0
        %1374 = vmatprep.subr.bf16.mxu0 0
        %1375 = vmatpush1.bf16.msra.mxu0 0
        %1376 = vmatprep.subr.bf16.mxu0 0
        %1377 = vmatpush1.bf16.msra.mxu0 0
        %1378 = vmatprep.subr.bf16.mxu0 0
        %1379 = vmatpush1.bf16.msra.mxu0 0
        %1380 = vmatprep.subr.bf16.mxu0 0
        %1381 = vmatpush1.bf16.msra.mxu0 0
        %1382 = vmatprep.subr.bf16.mxu0 0
        %1383 = vmatpush1.bf16.msra.mxu0 0
        %1384 = vmatprep.subr.bf16.mxu0 0
        %1385 = vmatpush1.bf16.msra.mxu0 0
        %1386 = vmatprep.subr.bf16.mxu0 0
        %1387 = vmatpush1.bf16.msra.mxu0 0
        %1388 = vmatprep.subr.bf16.mxu0 0
        %1389 = vmatpush1.bf16.msra.mxu0 0
        %1390 = vmatprep.subr.bf16.mxu0 0
        %1391 = vmatpush1.bf16.msra.mxu0 0
        %1392 = vmatprep.subr.bf16.mxu0 0
        %1393 = vmatpush1.bf16.msra.mxu0 0
        %1394 = vmatprep.subr.bf16.mxu0 0
        %1395 = vmatpush1.bf16.msra.mxu0 0
        %1396 = vmatprep.subr.bf16.mxu0 0
        %1397 = vmatpush1.bf16.msra.mxu0 0
        %1398 = vmatprep.subr.bf16.mxu0 0
        %1399 = vmatpush1.bf16.msra.mxu0 0
        %1400 = vmatprep.subr.bf16.mxu0 0
        %1401 = vmatpush1.bf16.msra.mxu0 0
        %1402 = vmatprep.mubr.bf16.mxu0 0
        %1403 = vmatmul.mubr.bf16.gmra.mrb[0].mxu0 %v1365
        %v1404 = vpop.f32.mrb[0].mxu0
        %v1405 = vadd.f32 0.0, %v1404
        %v1406 = vpop.f32.mrb[0].mxu0
        %v1407 = vpop.f32.mrb[0].mxu0
        %v1408 = vpop.f32.mrb[0].mxu0
        %1409 = vdwg.mxu0
        %1410 = vrot.lane.b32.xlu0 %v677, 64
        %v1411 = vpop.permute.xlu0 %1410
        %v1413 = vsel %vm683, %v1166, 0
        %v1416 = vsel %vm1174, %v1411, 0
        %1418 = vmatprep.subr.bf16.mxu0 0
        %1419 = vmatpush1.bf16.msra.mxu0 %v1416
        %1420 = vmatprep.subr.bf16.mxu0 0
        %1421 = vmatpush1.bf16.msra.mxu0 0
        %1422 = vmatprep.subr.bf16.mxu0 0
        %1423 = vmatpush1.bf16.msra.mxu0 0
        %1424 = vmatprep.subr.bf16.mxu0 0
        %1425 = vmatpush1.bf16.msra.mxu0 0
        %1426 = vmatprep.subr.bf16.mxu0 0
        %1427 = vmatpush1.bf16.msra.mxu0 0
        %1428 = vmatprep.subr.bf16.mxu0 0
        %1429 = vmatpush1.bf16.msra.mxu0 0
        %1430 = vmatprep.subr.bf16.mxu0 0
        %1431 = vmatpush1.bf16.msra.mxu0 0
        %1432 = vmatprep.subr.bf16.mxu0 0
        %1433 = vmatpush1.bf16.msra.mxu0 0
        %1434 = vmatprep.subr.bf16.mxu0 0
        %1435 = vmatpush1.bf16.msra.mxu0 0
        %1436 = vmatprep.subr.bf16.mxu0 0
        %1437 = vmatpush1.bf16.msra.mxu0 0
        %1438 = vmatprep.subr.bf16.mxu0 0
        %1439 = vmatpush1.bf16.msra.mxu0 0
        %1440 = vmatprep.subr.bf16.mxu0 0
        %1441 = vmatpush1.bf16.msra.mxu0 0
        %1442 = vmatprep.subr.bf16.mxu0 0
        %1443 = vmatpush1.bf16.msra.mxu0 0
        %1444 = vmatprep.subr.bf16.mxu0 0
        %1445 = vmatpush1.bf16.msra.mxu0 0
        %1446 = vmatprep.subr.bf16.mxu0 0
        %1447 = vmatpush1.bf16.msra.mxu0 0
        %1448 = vmatprep.subr.bf16.mxu0 0
        %1449 = vmatpush1.bf16.msra.mxu0 0
        %1450 = vmatprep.mubr.bf16.mxu0 0
        %1451 = vmatmul.mubr.bf16.gmra.mrb[0].mxu0 %v1413
        %v1452 = vpop.f32.mrb[0].mxu0
        %v1453 = vadd.f32 0.0, %v1452
        %v1454 = vpop.f32.mrb[0].mxu0
        %v1455 = vpop.f32.mrb[0].mxu0
        %v1456 = vpop.f32.mrb[0].mxu0
        %1457 = vdwg.mxu0
        %1458 = vrot.lane.b32.xlu0 %v678, 64
        %v1459 = vpop.permute.xlu0 %1458
        %v1461 = vsel %vm683, %v1167, 0
        %v1464 = vsel %vm1174, %v1459, 0
        %1466 = vmatprep.subr.bf16.mxu0 0
        %1467 = vmatpush1.bf16.msra.mxu0 %v1464
        %1468 = vmatprep.subr.bf16.mxu0 0
        %1469 = vmatpush1.bf16.msra.mxu0 0
        %1470 = vmatprep.subr.bf16.mxu0 0
        %1471 = vmatpush1.bf16.msra.mxu0 0
        %1472 = vmatprep.subr.bf16.mxu0 0
        %1473 = vmatpush1.bf16.msra.mxu0 0
        %1474 = vmatprep.subr.bf16.mxu0 0
        %1475 = vmatpush1.bf16.msra.mxu0 0
        %1476 = vmatprep.subr.bf16.mxu0 0
        %1477 = vmatpush1.bf16.msra.mxu0 0
        %1478 = vmatprep.subr.bf16.mxu0 0
        %1479 = vmatpush1.bf16.msra.mxu0 0
        %1480 = vmatprep.subr.bf16.mxu0 0
        %1481 = vmatpush1.bf16.msra.mxu0 0
        %1482 = vmatprep.subr.bf16.mxu0 0
        %1483 = vmatpush1.bf16.msra.mxu0 0
        %1484 = vmatprep.subr.bf16.mxu0 0
        %1485 = vmatpush1.bf16.msra.mxu0 0
        %1486 = vmatprep.subr.bf16.mxu0 0
        %1487 = vmatpush1.bf16.msra.mxu0 0
        %1488 = vmatprep.subr.bf16.mxu0 0
        %1489 = vmatpush1.bf16.msra.mxu0 0
        %1490 = vmatprep.subr.bf16.mxu0 0
        %1491 = vmatpush1.bf16.msra.mxu0 0
        %1492 = vmatprep.subr.bf16.mxu0 0
        %1493 = vmatpush1.bf16.msra.mxu0 0
        %1494 = vmatprep.subr.bf16.mxu0 0
        %1495 = vmatpush1.bf16.msra.mxu0 0
        %1496 = vmatprep.subr.bf16.mxu0 0
        %1497 = vmatpush1.bf16.msra.mxu0 0
        %1498 = vmatprep.mubr.bf16.mxu0 0
        %1499 = vmatmul.mubr.bf16.gmra.mrb[0].mxu0 %v1461
        %v1500 = vpop.f32.mrb[0].mxu0
        %v1501 = vadd.f32 0.0, %v1500
        %v1502 = vpop.f32.mrb[0].mxu0
        %v1503 = vpop.f32.mrb[0].mxu0
        %v1504 = vpop.f32.mrb[0].mxu0
        %1505 = vdwg.mxu0
        %1506 = vrot.lane.b32.xlu0 %v679, 64
        %v1507 = vpop.permute.xlu0 %1506
        %v1509 = vsel %vm683, %v1168, 0
        %v1512 = vsel %vm1174, %v1507, 0
        %1514 = vmatprep.subr.bf16.mxu0 0
        %1515 = vmatpush1.bf16.msra.mxu0 %v1512
        %1516 = vmatprep.subr.bf16.mxu0 0
        %1517 = vmatpush1.bf16.msra.mxu0 0
        %1518 = vmatprep.subr.bf16.mxu0 0
        %1519 = vmatpush1.bf16.msra.mxu0 0
        %1520 = vmatprep.subr.bf16.mxu0 0
        %1521 = vmatpush1.bf16.msra.mxu0 0
        %1522 = vmatprep.subr.bf16.mxu0 0
        %1523 = vmatpush1.bf16.msra.mxu0 0
        %1524 = vmatprep.subr.bf16.mxu0 0
        %1525 = vmatpush1.bf16.msra.mxu0 0
        %1526 = vmatprep.subr.bf16.mxu0 0
        %1527 = vmatpush1.bf16.msra.mxu0 0
        %1528 = vmatprep.subr.bf16.mxu0 0
        %1529 = vmatpush1.bf16.msra.mxu0 0
        %1530 = vmatprep.subr.bf16.mxu0 0
        %1531 = vmatpush1.bf16.msra.mxu0 0
        %1532 = vmatprep.subr.bf16.mxu0 0
        %1533 = vmatpush1.bf16.msra.mxu0 0
        %1534 = vmatprep.subr.bf16.mxu0 0
        %1535 = vmatpush1.bf16.msra.mxu0 0
        %1536 = vmatprep.subr.bf16.mxu0 0
        %1537 = vmatpush1.bf16.msra.mxu0 0
        %1538 = vmatprep.subr.bf16.mxu0 0
        %1539 = vmatpush1.bf16.msra.mxu0 0
        %1540 = vmatprep.subr.bf16.mxu0 0
        %1541 = vmatpush1.bf16.msra.mxu0 0
        %1542 = vmatprep.subr.bf16.mxu0 0
        %1543 = vmatpush1.bf16.msra.mxu0 0
        %1544 = vmatprep.subr.bf16.mxu0 0
        %1545 = vmatpush1.bf16.msra.mxu0 0
        %1546 = vmatprep.mubr.bf16.mxu0 0
        %1547 = vmatmul.mubr.bf16.gmra.mrb[0].mxu0 %v1509
        %v1548 = vpop.f32.mrb[0].mxu0
        %v1549 = vadd.f32 0.0, %v1548
        %v1550 = vpop.f32.mrb[0].mxu0
        %v1551 = vpop.f32.mrb[0].mxu0
        %v1552 = vpop.f32.mrb[0].mxu0
        %1553 = vdwg.mxu0
        %1554 = vrot.lane.b32.xlu0 %v672, 120
        %v1555 = vpop.permute.xlu0 %1554
        %1556 = vrot.lane.b32.xlu0 %v672, 88
        %v1557 = vpop.permute.xlu0 %1556
        %v1559 = vsel %vm683, %v1555, 0
        %v1562 = vsel %vm683, %v1557, 0
        %1564 = vmatprep.subr.bf16.mxu0 0
        %1565 = vmatpush1.bf16.xpose.msra.mxu0 %v1562
        %1566 = vmatprep.subr.bf16.mxu0 0
        %1567 = vmatpush1.bf16.xpose.msra.mxu0 0
        %1568 = vmatprep.subr.bf16.mxu0 0
        %1569 = vmatpush1.bf16.xpose.msra.mxu0 0
        %1570 = vmatprep.subr.bf16.mxu0 0
        %1571 = vmatpush1.bf16.xpose.msra.mxu0 0
        %1572 = vmatprep.subr.bf16.mxu0 0
        %1573 = vmatpush1.bf16.xpose.msra.mxu0 0
        %1574 = vmatprep.subr.bf16.mxu0 0
        %1575 = vmatpush1.bf16.xpose.msra.mxu0 0
        %1576 = vmatprep.subr.bf16.mxu0 0
        %1577 = vmatpush1.bf16.xpose.msra.mxu0 0
        %1578 = vmatprep.subr.bf16.mxu0 0
        %1579 = vmatpush1.bf16.xpose.msra.mxu0 0
        %1580 = vmatprep.subr.bf16.mxu0 0
        %1581 = vmatpush1.bf16.xpose.msra.mxu0 0
        %1582 = vmatprep.subr.bf16.mxu0 0
        %1583 = vmatpush1.bf16.xpose.msra.mxu0 0
        %1584 = vmatprep.subr.bf16.mxu0 0
        %1585 = vmatpush1.bf16.xpose.msra.mxu0 0
        %1586 = vmatprep.subr.bf16.mxu0 0
        %1587 = vmatpush1.bf16.xpose.msra.mxu0 0
        %1588 = vmatprep.subr.bf16.mxu0 0
        %1589 = vmatpush1.bf16.xpose.msra.mxu0 0
        %1590 = vmatprep.subr.bf16.mxu0 0
        %1591 = vmatpush1.bf16.xpose.msra.mxu0 0
        %1592 = vmatprep.subr.bf16.mxu0 0
        %1593 = vmatpush1.bf16.xpose.msra.mxu0 0
        %1594 = vmatprep.subr.bf16.mxu0 0
        %1595 = vmatpush1.bf16.xpose.msra.mxu0 0
        %1596 = vmatprep.mubr.bf16.mxu0 0
        %1597 = vmatmul.mubr.bf16.gmra.mrb[0].mxu0 %v1559
        %v1598 = vpop.f32.mrb[0].mxu0
        %v1599 = vadd.f32 0.0, %v1598
        %v1600 = vpop.f32.mrb[0].mxu0
        %v1601 = vpop.f32.mrb[0].mxu0
        %v1602 = vpop.f32.mrb[0].mxu0
        %1603 = vdwg.mxu0
        %1604 = vrot.lane.b32.xlu0 %v673, 120
        %v1605 = vpop.permute.xlu0 %1604
        %1606 = vrot.lane.b32.xlu0 %v673, 88
        %v1607 = vpop.permute.xlu0 %1606
        %v1609 = vsel %vm683, %v1605, 0
        %v1612 = vsel %vm683, %v1607, 0
        %1614 = vmatprep.subr.bf16.mxu0 0
        %1615 = vmatpush1.bf16.xpose.msra.mxu0 %v1612
        %1616 = vmatprep.subr.bf16.mxu0 0
        %1617 = vmatpush1.bf16.xpose.msra.mxu0 0
        %1618 = vmatprep.subr.bf16.mxu0 0
        %1619 = vmatpush1.bf16.xpose.msra.mxu0 0
        %1620 = vmatprep.subr.bf16.mxu0 0
        %1621 = vmatpush1.bf16.xpose.msra.mxu0 0
        %1622 = vmatprep.subr.bf16.mxu0 0
        %1623 = vmatpush1.bf16.xpose.msra.mxu0 0
        %1624 = vmatprep.subr.bf16.mxu0 0
        %1625 = vmatpush1.bf16.xpose.msra.mxu0 0
        %1626 = vmatprep.subr.bf16.mxu0 0
        %1627 = vmatpush1.bf16.xpose.msra.mxu0 0
        %1628 = vmatprep.subr.bf16.mxu0 0
        %1629 = vmatpush1.bf16.xpose.msra.mxu0 0
        %1630 = vmatprep.subr.bf16.mxu0 0
        %1631 = vmatpush1.bf16.xpose.msra.mxu0 0
        %1632 = vmatprep.subr.bf16.mxu0 0
        %1633 = vmatpush1.bf16.xpose.msra.mxu0 0
        %1634 = vmatprep.subr.bf16.mxu0 0
        %1635 = vmatpush1.bf16.xpose.msra.mxu0 0
        %1636 = vmatprep.subr.bf16.mxu0 0
        %1637 = vmatpush1.bf16.xpose.msra.mxu0 0
        %1638 = vmatprep.subr.bf16.mxu0 0
        %1639 = vmatpush1.bf16.xpose.msra.mxu0 0
        %1640 = vmatprep.subr.bf16.mxu0 0
        %1641 = vmatpush1.bf16.xpose.msra.mxu0 0
        %1642 = vmatprep.subr.bf16.mxu0 0
        %1643 = vmatpush1.bf16.xpose.msra.mxu0 0
        %1644 = vmatprep.subr.bf16.mxu0 0
        %1645 = vmatpush1.bf16.xpose.msra.mxu0 0
        %1646 = vmatprep.mubr.bf16.mxu0 0
        %1647 = vmatmul.mubr.bf16.gmra.mrb[0].mxu0 %v1609
        %v1648 = vpop.f32.mrb[0].mxu0
        %v1649 = vadd.f32 0.0, %v1648
        %v1650 = vpop.f32.mrb[0].mxu0
        %v1651 = vpop.f32.mrb[0].mxu0
        %v1652 = vpop.f32.mrb[0].mxu0
        %1653 = vdwg.mxu0
        %1654 = vrot.lane.b32.xlu0 %v674, 120
        %v1655 = vpop.permute.xlu0 %1654
        %1656 = vrot.lane.b32.xlu0 %v674, 88
        %v1657 = vpop.permute.xlu0 %1656
        %v1659 = vsel %vm683, %v1655, 0
        %v1662 = vsel %vm683, %v1657, 0
        %1664 = vmatprep.subr.bf16.mxu0 0
        %1665 = vmatpush1.bf16.xpose.msra.mxu0 %v1662
        %1666 = vmatprep.subr.bf16.mxu0 0
        %1667 = vmatpush1.bf16.xpose.msra.mxu0 0
        %1668 = vmatprep.subr.bf16.mxu0 0
        %1669 = vmatpush1.bf16.xpose.msra.mxu0 0
        %1670 = vmatprep.subr.bf16.mxu0 0
        %1671 = vmatpush1.bf16.xpose.msra.mxu0 0
        %1672 = vmatprep.subr.bf16.mxu0 0
        %1673 = vmatpush1.bf16.xpose.msra.mxu0 0
        %1674 = vmatprep.subr.bf16.mxu0 0
        %1675 = vmatpush1.bf16.xpose.msra.mxu0 0
        %1676 = vmatprep.subr.bf16.mxu0 0
        %1677 = vmatpush1.bf16.xpose.msra.mxu0 0
        %1678 = vmatprep.subr.bf16.mxu0 0
        %1679 = vmatpush1.bf16.xpose.msra.mxu0 0
        %1680 = vmatprep.subr.bf16.mxu0 0
        %1681 = vmatpush1.bf16.xpose.msra.mxu0 0
        %1682 = vmatprep.subr.bf16.mxu0 0
        %1683 = vmatpush1.bf16.xpose.msra.mxu0 0
        %1684 = vmatprep.subr.bf16.mxu0 0
        %1685 = vmatpush1.bf16.xpose.msra.mxu0 0
        %1686 = vmatprep.subr.bf16.mxu0 0
        %1687 = vmatpush1.bf16.xpose.msra.mxu0 0
        %1688 = vmatprep.subr.bf16.mxu0 0
        %1689 = vmatpush1.bf16.xpose.msra.mxu0 0
        %1690 = vmatprep.subr.bf16.mxu0 0
        %1691 = vmatpush1.bf16.xpose.msra.mxu0 0
        %1692 = vmatprep.subr.bf16.mxu0 0
        %1693 = vmatpush1.bf16.xpose.msra.mxu0 0
        %1694 = vmatprep.subr.bf16.mxu0 0
        %1695 = vmatpush1.bf16.xpose.msra.mxu0 0
        %1696 = vmatprep.mubr.bf16.mxu0 0
        %1697 = vmatmul.mubr.bf16.gmra.mrb[0].mxu0 %v1659
        %v1698 = vpop.f32.mrb[0].mxu0
        %v1699 = vadd.f32 0.0, %v1698
        %v1700 = vpop.f32.mrb[0].mxu0
        %v1701 = vpop.f32.mrb[0].mxu0
        %v1702 = vpop.f32.mrb[0].mxu0
        %1703 = vdwg.mxu0
        %1704 = vrot.lane.b32.xlu0 %v675, 120
        %v1705 = vpop.permute.xlu0 %1704
        %1706 = vrot.lane.b32.xlu0 %v675, 88
        %v1707 = vpop.permute.xlu0 %1706
        %v1709 = vsel %vm683, %v1705, 0
        %v1712 = vsel %vm683, %v1707, 0
        %1714 = vmatprep.subr.bf16.mxu0 0
        %1715 = vmatpush1.bf16.xpose.msra.mxu0 %v1712
        %1716 = vmatprep.subr.bf16.mxu0 0
        %1717 = vmatpush1.bf16.xpose.msra.mxu0 0
        %1718 = vmatprep.subr.bf16.mxu0 0
        %1719 = vmatpush1.bf16.xpose.msra.mxu0 0
        %1720 = vmatprep.subr.bf16.mxu0 0
        %1721 = vmatpush1.bf16.xpose.msra.mxu0 0
        %1722 = vmatprep.subr.bf16.mxu0 0
        %1723 = vmatpush1.bf16.xpose.msra.mxu0 0
        %1724 = vmatprep.subr.bf16.mxu0 0
        %1725 = vmatpush1.bf16.xpose.msra.mxu0 0
        %1726 = vmatprep.subr.bf16.mxu0 0
        %1727 = vmatpush1.bf16.xpose.msra.mxu0 0
        %1728 = vmatprep.subr.bf16.mxu0 0
        %1729 = vmatpush1.bf16.xpose.msra.mxu0 0
        %1730 = vmatprep.subr.bf16.mxu0 0
        %1731 = vmatpush1.bf16.xpose.msra.mxu0 0
        %1732 = vmatprep.subr.bf16.mxu0 0
        %1733 = vmatpush1.bf16.xpose.msra.mxu0 0
        %1734 = vmatprep.subr.bf16.mxu0 0
        %1735 = vmatpush1.bf16.xpose.msra.mxu0 0
        %1736 = vmatprep.subr.bf16.mxu0 0
        %1737 = vmatpush1.bf16.xpose.msra.mxu0 0
        %1738 = vmatprep.subr.bf16.mxu0 0
        %1739 = vmatpush1.bf16.xpose.msra.mxu0 0
        %1740 = vmatprep.subr.bf16.mxu0 0
        %1741 = vmatpush1.bf16.xpose.msra.mxu0 0
        %1742 = vmatprep.subr.bf16.mxu0 0
        %1743 = vmatpush1.bf16.xpose.msra.mxu0 0
        %1744 = vmatprep.subr.bf16.mxu0 0
        %1745 = vmatpush1.bf16.xpose.msra.mxu0 0
        %1746 = vmatprep.mubr.bf16.mxu0 0
        %1747 = vmatmul.mubr.bf16.gmra.mrb[0].mxu0 %v1709
        %v1748 = vpop.f32.mrb[0].mxu0
        %v1749 = vadd.f32 0.0, %v1748
        %v1750 = vpop.f32.mrb[0].mxu0
        %v1751 = vpop.f32.mrb[0].mxu0
        %v1752 = vpop.f32.mrb[0].mxu0
        %1753 = vdwg.mxu0
        %1754 = vrot.lane.b32.xlu0 %v676, 120
        %v1755 = vpop.permute.xlu0 %1754
        %1756 = vrot.lane.b32.xlu0 %v676, 88
        %v1757 = vpop.permute.xlu0 %1756
        %v1759 = vsel %vm683, %v1755, 0
        %v1762 = vsel %vm683, %v1757, 0
        %1764 = vmatprep.subr.bf16.mxu0 0
        %1765 = vmatpush1.bf16.xpose.msra.mxu0 %v1762
        %1766 = vmatprep.subr.bf16.mxu0 0
        %1767 = vmatpush1.bf16.xpose.msra.mxu0 0
        %1768 = vmatprep.subr.bf16.mxu0 0
        %1769 = vmatpush1.bf16.xpose.msra.mxu0 0
        %1770 = vmatprep.subr.bf16.mxu0 0
        %1771 = vmatpush1.bf16.xpose.msra.mxu0 0
        %1772 = vmatprep.subr.bf16.mxu0 0
        %1773 = vmatpush1.bf16.xpose.msra.mxu0 0
        %1774 = vmatprep.subr.bf16.mxu0 0
        %1775 = vmatpush1.bf16.xpose.msra.mxu0 0
        %1776 = vmatprep.subr.bf16.mxu0 0
        %1777 = vmatpush1.bf16.xpose.msra.mxu0 0
        %1778 = vmatprep.subr.bf16.mxu0 0
        %1779 = vmatpush1.bf16.xpose.msra.mxu0 0
        %1780 = vmatprep.subr.bf16.mxu0 0
        %1781 = vmatpush1.bf16.xpose.msra.mxu0 0
        %1782 = vmatprep.subr.bf16.mxu0 0
        %1783 = vmatpush1.bf16.xpose.msra.mxu0 0
        %1784 = vmatprep.subr.bf16.mxu0 0
        %1785 = vmatpush1.bf16.xpose.msra.mxu0 0
        %1786 = vmatprep.subr.bf16.mxu0 0
        %1787 = vmatpush1.bf16.xpose.msra.mxu0 0
        %1788 = vmatprep.subr.bf16.mxu0 0
        %1789 = vmatpush1.bf16.xpose.msra.mxu0 0
        %1790 = vmatprep.subr.bf16.mxu0 0
        %1791 = vmatpush1.bf16.xpose.msra.mxu0 0
        %1792 = vmatprep.subr.bf16.mxu0 0
        %1793 = vmatpush1.bf16.xpose.msra.mxu0 0
        %1794 = vmatprep.subr.bf16.mxu0 0
        %1795 = vmatpush1.bf16.xpose.msra.mxu0 0
        %1796 = vmatprep.mubr.bf16.mxu0 0
        %1797 = vmatmul.mubr.bf16.gmra.mrb[0].mxu0 %v1759
        %v1798 = vpop.f32.mrb[0].mxu0
        %v1799 = vadd.f32 0.0, %v1798
        %v1800 = vpop.f32.mrb[0].mxu0
        %v1801 = vpop.f32.mrb[0].mxu0
        %v1802 = vpop.f32.mrb[0].mxu0
        %1803 = vdwg.mxu0
        %1804 = vrot.lane.b32.xlu0 %v677, 120
        %v1805 = vpop.permute.xlu0 %1804
        %1806 = vrot.lane.b32.xlu0 %v677, 88
        %v1807 = vpop.permute.xlu0 %1806
        %v1809 = vsel %vm683, %v1805, 0
        %v1812 = vsel %vm683, %v1807, 0
        %1814 = vmatprep.subr.bf16.mxu0 0
        %1815 = vmatpush1.bf16.xpose.msra.mxu0 %v1812
        %1816 = vmatprep.subr.bf16.mxu0 0
        %1817 = vmatpush1.bf16.xpose.msra.mxu0 0
        %1818 = vmatprep.subr.bf16.mxu0 0
        %1819 = vmatpush1.bf16.xpose.msra.mxu0 0
        %1820 = vmatprep.subr.bf16.mxu0 0
        %1821 = vmatpush1.bf16.xpose.msra.mxu0 0
        %1822 = vmatprep.subr.bf16.mxu0 0
        %1823 = vmatpush1.bf16.xpose.msra.mxu0 0
        %1824 = vmatprep.subr.bf16.mxu0 0
        %1825 = vmatpush1.bf16.xpose.msra.mxu0 0
        %1826 = vmatprep.subr.bf16.mxu0 0
        %1827 = vmatpush1.bf16.xpose.msra.mxu0 0
        %1828 = vmatprep.subr.bf16.mxu0 0
        %1829 = vmatpush1.bf16.xpose.msra.mxu0 0
        %1830 = vmatprep.subr.bf16.mxu0 0
        %1831 = vmatpush1.bf16.xpose.msra.mxu0 0
        %1832 = vmatprep.subr.bf16.mxu0 0
        %1833 = vmatpush1.bf16.xpose.msra.mxu0 0
        %1834 = vmatprep.subr.bf16.mxu0 0
        %1835 = vmatpush1.bf16.xpose.msra.mxu0 0
        %1836 = vmatprep.subr.bf16.mxu0 0
        %1837 = vmatpush1.bf16.xpose.msra.mxu0 0
        %1838 = vmatprep.subr.bf16.mxu0 0
        %1839 = vmatpush1.bf16.xpose.msra.mxu0 0
        %1840 = vmatprep.subr.bf16.mxu0 0
        %1841 = vmatpush1.bf16.xpose.msra.mxu0 0
        %1842 = vmatprep.subr.bf16.mxu0 0
        %1843 = vmatpush1.bf16.xpose.msra.mxu0 0
        %1844 = vmatprep.subr.bf16.mxu0 0
        %1845 = vmatpush1.bf16.xpose.msra.mxu0 0
        %1846 = vmatprep.mubr.bf16.mxu0 0
        %1847 = vmatmul.mubr.bf16.gmra.mrb[0].mxu0 %v1809
        %v1848 = vpop.f32.mrb[0].mxu0
        %v1849 = vadd.f32 0.0, %v1848
        %v1850 = vpop.f32.mrb[0].mxu0
        %v1851 = vpop.f32.mrb[0].mxu0
        %v1852 = vpop.f32.mrb[0].mxu0
        %1853 = vdwg.mxu0
        %1854 = vrot.lane.b32.xlu0 %v678, 120
        %v1855 = vpop.permute.xlu0 %1854
        %1856 = vrot.lane.b32.xlu0 %v678, 88
        %v1857 = vpop.permute.xlu0 %1856
        %v1859 = vsel %vm683, %v1855, 0
        %v1862 = vsel %vm683, %v1857, 0
        %1864 = vmatprep.subr.bf16.mxu0 0
        %1865 = vmatpush1.bf16.xpose.msra.mxu0 %v1862
        %1866 = vmatprep.subr.bf16.mxu0 0
        %1867 = vmatpush1.bf16.xpose.msra.mxu0 0
        %1868 = vmatprep.subr.bf16.mxu0 0
        %1869 = vmatpush1.bf16.xpose.msra.mxu0 0
        %1870 = vmatprep.subr.bf16.mxu0 0
        %1871 = vmatpush1.bf16.xpose.msra.mxu0 0
        %1872 = vmatprep.subr.bf16.mxu0 0
        %1873 = vmatpush1.bf16.xpose.msra.mxu0 0
        %1874 = vmatprep.subr.bf16.mxu0 0
        %1875 = vmatpush1.bf16.xpose.msra.mxu0 0
        %1876 = vmatprep.subr.bf16.mxu0 0
        %1877 = vmatpush1.bf16.xpose.msra.mxu0 0
        %1878 = vmatprep.subr.bf16.mxu0 0
        %1879 = vmatpush1.bf16.xpose.msra.mxu0 0
        %1880 = vmatprep.subr.bf16.mxu0 0
        %1881 = vmatpush1.bf16.xpose.msra.mxu0 0
        %1882 = vmatprep.subr.bf16.mxu0 0
        %1883 = vmatpush1.bf16.xpose.msra.mxu0 0
        %1884 = vmatprep.subr.bf16.mxu0 0
        %1885 = vmatpush1.bf16.xpose.msra.mxu0 0
        %1886 = vmatprep.subr.bf16.mxu0 0
        %1887 = vmatpush1.bf16.xpose.msra.mxu0 0
        %1888 = vmatprep.subr.bf16.mxu0 0
        %1889 = vmatpush1.bf16.xpose.msra.mxu0 0
        %1890 = vmatprep.subr.bf16.mxu0 0
        %1891 = vmatpush1.bf16.xpose.msra.mxu0 0
        %1892 = vmatprep.subr.bf16.mxu0 0
        %1893 = vmatpush1.bf16.xpose.msra.mxu0 0
        %1894 = vmatprep.subr.bf16.mxu0 0
        %1895 = vmatpush1.bf16.xpose.msra.mxu0 0
        %1896 = vmatprep.mubr.bf16.mxu0 0
        %1897 = vmatmul.mubr.bf16.gmra.mrb[0].mxu0 %v1859
        %v1898 = vpop.f32.mrb[0].mxu0
        %v1899 = vadd.f32 0.0, %v1898
        %v1900 = vpop.f32.mrb[0].mxu0
        %v1901 = vpop.f32.mrb[0].mxu0
        %v1902 = vpop.f32.mrb[0].mxu0
        %1903 = vdwg.mxu0
        %1904 = vrot.lane.b32.xlu0 %v679, 120
        %v1905 = vpop.permute.xlu0 %1904
        %1906 = vrot.lane.b32.xlu0 %v679, 88
        %v1907 = vpop.permute.xlu0 %1906
        %v1909 = vsel %vm683, %v1905, 0
        %v1912 = vsel %vm683, %v1907, 0
        %1914 = vmatprep.subr.bf16.mxu0 0
        %1915 = vmatpush1.bf16.xpose.msra.mxu0 %v1912
        %1916 = vmatprep.subr.bf16.mxu0 0
        %1917 = vmatpush1.bf16.xpose.msra.mxu0 0
        %1918 = vmatprep.subr.bf16.mxu0 0
        %1919 = vmatpush1.bf16.xpose.msra.mxu0 0
        %1920 = vmatprep.subr.bf16.mxu0 0
        %1921 = vmatpush1.bf16.xpose.msra.mxu0 0
        %1922 = vmatprep.subr.bf16.mxu0 0
        %1923 = vmatpush1.bf16.xpose.msra.mxu0 0
        %1924 = vmatprep.subr.bf16.mxu0 0
        %1925 = vmatpush1.bf16.xpose.msra.mxu0 0
        %1926 = vmatprep.subr.bf16.mxu0 0
        %1927 = vmatpush1.bf16.xpose.msra.mxu0 0
        %1928 = vmatprep.subr.bf16.mxu0 0
        %1929 = vmatpush1.bf16.xpose.msra.mxu0 0
        %1930 = vmatprep.subr.bf16.mxu0 0
        %1931 = vmatpush1.bf16.xpose.msra.mxu0 0
        %1932 = vmatprep.subr.bf16.mxu0 0
        %1933 = vmatpush1.bf16.xpose.msra.mxu0 0
        %1934 = vmatprep.subr.bf16.mxu0 0
        %1935 = vmatpush1.bf16.xpose.msra.mxu0 0
        %1936 = vmatprep.subr.bf16.mxu0 0
        %1937 = vmatpush1.bf16.xpose.msra.mxu0 0
        %1938 = vmatprep.subr.bf16.mxu0 0
        %1939 = vmatpush1.bf16.xpose.msra.mxu0 0
        %1940 = vmatprep.subr.bf16.mxu0 0
        %1941 = vmatpush1.bf16.xpose.msra.mxu0 0
        %1942 = vmatprep.subr.bf16.mxu0 0
        %1943 = vmatpush1.bf16.xpose.msra.mxu0 0
        %1944 = vmatprep.subr.bf16.mxu0 0
        %1945 = vmatpush1.bf16.xpose.msra.mxu0 0
        %1946 = vmatprep.mubr.bf16.mxu0 0
        %1947 = vmatmul.mubr.bf16.gmra.mrb[0].mxu0 %v1909
        %v1948 = vpop.f32.mrb[0].mxu0
        %v1949 = vadd.f32 0.0, %v1948
        %v1950 = vpop.f32.mrb[0].mxu0
        %v1951 = vpop.f32.mrb[0].mxu0
        %v1952 = vpop.f32.mrb[0].mxu0
        %1953 = vdwg.mxu0
        %v1954 = vsel %vm683, %v1599, -inf
        %1955 = vmax.xlane.f32.xlu0 %v1954
        %v1956 = vpop.xlane.xlu0 %1955
        %v1957 = vsel %vm683, %v1649, -inf
        %1958 = vmax.xlane.f32.xlu0 %v1957
        %v1959 = vpop.xlane.xlu0 %1958
        %v1960 = vsel %vm683, %v1699, -inf
        %1961 = vmax.xlane.f32.xlu0 %v1960
        %v1962 = vpop.xlane.xlu0 %1961
        %v1963 = vsel %vm683, %v1749, -inf
        %1964 = vmax.xlane.f32.xlu0 %v1963
        %v1965 = vpop.xlane.xlu0 %1964
        %v1966 = vsel %vm683, %v1799, -inf
        %1967 = vmax.xlane.f32.xlu0 %v1966
        %v1968 = vpop.xlane.xlu0 %1967
        %v1969 = vsel %vm683, %v1849, -inf
        %1970 = vmax.xlane.f32.xlu0 %v1969
        %v1971 = vpop.xlane.xlu0 %1970
        %v1972 = vsel %vm683, %v1899, -inf
        %1973 = vmax.xlane.f32.xlu0 %v1972
        %v1974 = vpop.xlane.xlu0 %1973
        %v1975 = vsel %vm683, %v1949, -inf
        %1976 = vmax.xlane.f32.xlu0 %v1975
        %v1977 = vpop.xlane.xlu0 %1976
        %v1978 = vsub.f32 %v1599, %v1956
        %v1979 = vsub.f32 %v1649, %v1959
        %v1980 = vsub.f32 %v1699, %v1962
        %v1981 = vsub.f32 %v1749, %v1965
        %v1982 = vsub.f32 %v1799, %v1968
        %v1983 = vsub.f32 %v1849, %v1971
        %v1984 = vsub.f32 %v1899, %v1974
        %v1985 = vsub.f32 %v1949, %v1977
        %v1986 = vmul.f32 %v1978, 1.442695
        %v1987 = vpow.pop %v1986
        %v1988 = vmul.f32 %v1979, 1.442695
        %v1989 = vpow.pop %v1988
        %v1990 = vmul.f32 %v1980, 1.442695
        %v1991 = vpow.pop %v1990
        %v1992 = vmul.f32 %v1981, 1.442695
        %v1993 = vpow.pop %v1992
        %v1994 = vmul.f32 %v1982, 1.442695
        %v1995 = vpow.pop %v1994
        %v1996 = vmul.f32 %v1983, 1.442695
        %v1997 = vpow.pop %v1996
        %v1998 = vmul.f32 %v1984, 1.442695
        %v1999 = vpow.pop %v1998
        %v2000 = vmul.f32 %v1985, 1.442695
        %v2001 = vpow.pop %v2000
        %v2002 = vsel %vm683, %v1987, 0.0
        %2003 = vadd.xlane.f32.xlu0 %v2002
        %v2004 = vpop.xlane.xlu0 %2003
        %v2005 = vsel %vm683, %v1989, 0.0
        %2006 = vadd.xlane.f32.xlu0 %v2005
        %v2007 = vpop.xlane.xlu0 %2006
        %v2008 = vsel %vm683, %v1991, 0.0
        %2009 = vadd.xlane.f32.xlu0 %v2008
        %v2010 = vpop.xlane.xlu0 %2009
        %v2011 = vsel %vm683, %v1993, 0.0
        %2012 = vadd.xlane.f32.xlu0 %v2011
        %v2013 = vpop.xlane.xlu0 %2012
        %v2014 = vsel %vm683, %v1995, 0.0
        %2015 = vadd.xlane.f32.xlu0 %v2014
        %v2016 = vpop.xlane.xlu0 %2015
        %v2017 = vsel %vm683, %v1997, 0.0
        %2018 = vadd.xlane.f32.xlu0 %v2017
        %v2019 = vpop.xlane.xlu0 %2018
        %v2020 = vsel %vm683, %v1999, 0.0
        %2021 = vadd.xlane.f32.xlu0 %v2020
        %v2022 = vpop.xlane.xlu0 %2021
        %v2023 = vsel %vm683, %v2001, 0.0
        %2024 = vadd.xlane.f32.xlu0 %v2023
        %v2025 = vpop.xlane.xlu0 %2024
        %v2026 = vrcp.pop %v2004
        %v2027 = vrcp.pop %v2007
        %v2028 = vrcp.pop %v2010
        %v2029 = vrcp.pop %v2013
        %v2030 = vrcp.pop %v2016
        %v2031 = vrcp.pop %v2019
        %v2032 = vrcp.pop %v2022
        %v2033 = vrcp.pop %v2025
        %v2034 = vmul.f32 %v1987, %v2026
        %v2035 = vmul.f32 %v1989, %v2027
        %v2036 = vmul.f32 %v1991, %v2028
        %v2037 = vmul.f32 %v1993, %v2029
        %v2038 = vmul.f32 %v1995, %v2030
        %v2039 = vmul.f32 %v1997, %v2031
        %v2040 = vmul.f32 %v1999, %v2032
        %v2041 = vmul.f32 %v2001, %v2033
        %v2042 = vpack.c.bf16 %v2034, %v2034
        %v2043 = vpack.c.bf16 %v2035, %v2035
        %v2044 = vpack.c.bf16 %v2036, %v2036
        %v2045 = vpack.c.bf16 %v2037, %v2037
        %v2046 = vpack.c.bf16 %v2038, %v2038
        %v2047 = vpack.c.bf16 %v2039, %v2039
        %v2048 = vpack.c.bf16 %v2040, %v2040
        %v2049 = vpack.c.bf16 %v2041, %v2041
        %2050 = vrot.lane.b32.xlu0 %v672, 56
        %v2051 = vpop.permute.xlu0 %2050
        %v2053 = vsel %vm683, %v2042, 0
        %v2056 = vsel %vm1174, %v2051, 0
        %2058 = vmatprep.subr.bf16.mxu0 0
        %2059 = vmatpush1.bf16.msra.mxu0 %v2056
        %2060 = vmatprep.subr.bf16.mxu0 0
        %2061 = vmatpush1.bf16.msra.mxu0 0
        %2062 = vmatprep.subr.bf16.mxu0 0
        %2063 = vmatpush1.bf16.msra.mxu0 0
        %2064 = vmatprep.subr.bf16.mxu0 0
        %2065 = vmatpush1.bf16.msra.mxu0 0
        %2066 = vmatprep.subr.bf16.mxu0 0
        %2067 = vmatpush1.bf16.msra.mxu0 0
        %2068 = vmatprep.subr.bf16.mxu0 0
        %2069 = vmatpush1.bf16.msra.mxu0 0
        %2070 = vmatprep.subr.bf16.mxu0 0
        %2071 = vmatpush1.bf16.msra.mxu0 0
        %2072 = vmatprep.subr.bf16.mxu0 0
        %2073 = vmatpush1.bf16.msra.mxu0 0
        %2074 = vmatprep.subr.bf16.mxu0 0
        %2075 = vmatpush1.bf16.msra.mxu0 0
        %2076 = vmatprep.subr.bf16.mxu0 0
        %2077 = vmatpush1.bf16.msra.mxu0 0
        %2078 = vmatprep.subr.bf16.mxu0 0
        %2079 = vmatpush1.bf16.msra.mxu0 0
        %2080 = vmatprep.subr.bf16.mxu0 0
        %2081 = vmatpush1.bf16.msra.mxu0 0
        %2082 = vmatprep.subr.bf16.mxu0 0
        %2083 = vmatpush1.bf16.msra.mxu0 0
        %2084 = vmatprep.subr.bf16.mxu0 0
        %2085 = vmatpush1.bf16.msra.mxu0 0
        %2086 = vmatprep.subr.bf16.mxu0 0
        %2087 = vmatpush1.bf16.msra.mxu0 0
        %2088 = vmatprep.subr.bf16.mxu0 0
        %2089 = vmatpush1.bf16.msra.mxu0 0
        %2090 = vmatprep.mubr.bf16.mxu0 0
        %2091 = vmatmul.mubr.bf16.gmra.mrb[0].mxu0 %v2053
        %v2092 = vpop.f32.mrb[0].mxu0
        %v2093 = vadd.f32 0.0, %v2092
        %v2094 = vpop.f32.mrb[0].mxu0
        %v2095 = vpop.f32.mrb[0].mxu0
        %v2096 = vpop.f32.mrb[0].mxu0
        %2097 = vdwg.mxu0
        %2098 = vrot.lane.b32.xlu0 %v673, 56
        %v2099 = vpop.permute.xlu0 %2098
        %v2101 = vsel %vm683, %v2043, 0
        %v2104 = vsel %vm1174, %v2099, 0
        %2106 = vmatprep.subr.bf16.mxu0 0
        %2107 = vmatpush1.bf16.msra.mxu0 %v2104
        %2108 = vmatprep.subr.bf16.mxu0 0
        %2109 = vmatpush1.bf16.msra.mxu0 0
        %2110 = vmatprep.subr.bf16.mxu0 0
        %2111 = vmatpush1.bf16.msra.mxu0 0
        %2112 = vmatprep.subr.bf16.mxu0 0
        %2113 = vmatpush1.bf16.msra.mxu0 0
        %2114 = vmatprep.subr.bf16.mxu0 0
        %2115 = vmatpush1.bf16.msra.mxu0 0
        %2116 = vmatprep.subr.bf16.mxu0 0
        %2117 = vmatpush1.bf16.msra.mxu0 0
        %2118 = vmatprep.subr.bf16.mxu0 0
        %2119 = vmatpush1.bf16.msra.mxu0 0
        %2120 = vmatprep.subr.bf16.mxu0 0
        %2121 = vmatpush1.bf16.msra.mxu0 0
        %2122 = vmatprep.subr.bf16.mxu0 0
        %2123 = vmatpush1.bf16.msra.mxu0 0
        %2124 = vmatprep.subr.bf16.mxu0 0
        %2125 = vmatpush1.bf16.msra.mxu0 0
        %2126 = vmatprep.subr.bf16.mxu0 0
        %2127 = vmatpush1.bf16.msra.mxu0 0
        %2128 = vmatprep.subr.bf16.mxu0 0
        %2129 = vmatpush1.bf16.msra.mxu0 0
        %2130 = vmatprep.subr.bf16.mxu0 0
        %2131 = vmatpush1.bf16.msra.mxu0 0
        %2132 = vmatprep.subr.bf16.mxu0 0
        %2133 = vmatpush1.bf16.msra.mxu0 0
        %2134 = vmatprep.subr.bf16.mxu0 0
        %2135 = vmatpush1.bf16.msra.mxu0 0
        %2136 = vmatprep.subr.bf16.mxu0 0
        %2137 = vmatpush1.bf16.msra.mxu0 0
        %2138 = vmatprep.mubr.bf16.mxu0 0
        %2139 = vmatmul.mubr.bf16.gmra.mrb[0].mxu0 %v2101
        %v2140 = vpop.f32.mrb[0].mxu0
        %v2141 = vadd.f32 0.0, %v2140
        %v2142 = vpop.f32.mrb[0].mxu0
        %v2143 = vpop.f32.mrb[0].mxu0
        %v2144 = vpop.f32.mrb[0].mxu0
        %2145 = vdwg.mxu0
        %2146 = vrot.lane.b32.xlu0 %v674, 56
        %v2147 = vpop.permute.xlu0 %2146
        %v2149 = vsel %vm683, %v2044, 0
        %v2152 = vsel %vm1174, %v2147, 0
        %2154 = vmatprep.subr.bf16.mxu0 0
        %2155 = vmatpush1.bf16.msra.mxu0 %v2152
        %2156 = vmatprep.subr.bf16.mxu0 0
        %2157 = vmatpush1.bf16.msra.mxu0 0
        %2158 = vmatprep.subr.bf16.mxu0 0
        %2159 = vmatpush1.bf16.msra.mxu0 0
        %2160 = vmatprep.subr.bf16.mxu0 0
        %2161 = vmatpush1.bf16.msra.mxu0 0
        %2162 = vmatprep.subr.bf16.mxu0 0
        %2163 = vmatpush1.bf16.msra.mxu0 0
        %2164 = vmatprep.subr.bf16.mxu0 0
        %2165 = vmatpush1.bf16.msra.mxu0 0
        %2166 = vmatprep.subr.bf16.mxu0 0
        %2167 = vmatpush1.bf16.msra.mxu0 0
        %2168 = vmatprep.subr.bf16.mxu0 0
        %2169 = vmatpush1.bf16.msra.mxu0 0
        %2170 = vmatprep.subr.bf16.mxu0 0
        %2171 = vmatpush1.bf16.msra.mxu0 0
        %2172 = vmatprep.subr.bf16.mxu0 0
        %2173 = vmatpush1.bf16.msra.mxu0 0
        %2174 = vmatprep.subr.bf16.mxu0 0
        %2175 = vmatpush1.bf16.msra.mxu0 0
        %2176 = vmatprep.subr.bf16.mxu0 0
        %2177 = vmatpush1.bf16.msra.mxu0 0
        %2178 = vmatprep.subr.bf16.mxu0 0
        %2179 = vmatpush1.bf16.msra.mxu0 0
        %2180 = vmatprep.subr.bf16.mxu0 0
        %2181 = vmatpush1.bf16.msra.mxu0 0
        %2182 = vmatprep.subr.bf16.mxu0 0
        %2183 = vmatpush1.bf16.msra.mxu0 0
        %2184 = vmatprep.subr.bf16.mxu0 0
        %2185 = vmatpush1.bf16.msra.mxu0 0
        %2186 = vmatprep.mubr.bf16.mxu0 0
        %2187 = vmatmul.mubr.bf16.gmra.mrb[0].mxu0 %v2149
        %v2188 = vpop.f32.mrb[0].mxu0
        %v2189 = vadd.f32 0.0, %v2188
        %v2190 = vpop.f32.mrb[0].mxu0
        %v2191 = vpop.f32.mrb[0].mxu0
        %v2192 = vpop.f32.mrb[0].mxu0
        %2193 = vdwg.mxu0
        %2194 = vrot.lane.b32.xlu0 %v675, 56
        %v2195 = vpop.permute.xlu0 %2194
        %v2197 = vsel %vm683, %v2045, 0
        %v2200 = vsel %vm1174, %v2195, 0
        %2202 = vmatprep.subr.bf16.mxu0 0
        %2203 = vmatpush1.bf16.msra.mxu0 %v2200
        %2204 = vmatprep.subr.bf16.mxu0 0
        %2205 = vmatpush1.bf16.msra.mxu0 0
        %2206 = vmatprep.subr.bf16.mxu0 0
        %2207 = vmatpush1.bf16.msra.mxu0 0
        %2208 = vmatprep.subr.bf16.mxu0 0
        %2209 = vmatpush1.bf16.msra.mxu0 0
        %2210 = vmatprep.subr.bf16.mxu0 0
        %2211 = vmatpush1.bf16.msra.mxu0 0
        %2212 = vmatprep.subr.bf16.mxu0 0
        %2213 = vmatpush1.bf16.msra.mxu0 0
        %2214 = vmatprep.subr.bf16.mxu0 0
        %2215 = vmatpush1.bf16.msra.mxu0 0
        %2216 = vmatprep.subr.bf16.mxu0 0
        %2217 = vmatpush1.bf16.msra.mxu0 0
        %2218 = vmatprep.subr.bf16.mxu0 0
        %2219 = vmatpush1.bf16.msra.mxu0 0
        %2220 = vmatprep.subr.bf16.mxu0 0
        %2221 = vmatpush1.bf16.msra.mxu0 0
        %2222 = vmatprep.subr.bf16.mxu0 0
        %2223 = vmatpush1.bf16.msra.mxu0 0
        %2224 = vmatprep.subr.bf16.mxu0 0
        %2225 = vmatpush1.bf16.msra.mxu0 0
        %2226 = vmatprep.subr.bf16.mxu0 0
        %2227 = vmatpush1.bf16.msra.mxu0 0
        %2228 = vmatprep.subr.bf16.mxu0 0
        %2229 = vmatpush1.bf16.msra.mxu0 0
        %2230 = vmatprep.subr.bf16.mxu0 0
        %2231 = vmatpush1.bf16.msra.mxu0 0
        %2232 = vmatprep.subr.bf16.mxu0 0
        %2233 = vmatpush1.bf16.msra.mxu0 0
        %2234 = vmatprep.mubr.bf16.mxu0 0
        %2235 = vmatmul.mubr.bf16.gmra.mrb[0].mxu0 %v2197
        %v2236 = vpop.f32.mrb[0].mxu0
        %v2237 = vadd.f32 0.0, %v2236
        %v2238 = vpop.f32.mrb[0].mxu0
        %v2239 = vpop.f32.mrb[0].mxu0
        %v2240 = vpop.f32.mrb[0].mxu0
        %2241 = vdwg.mxu0
        %2242 = vrot.lane.b32.xlu0 %v676, 56
        %v2243 = vpop.permute.xlu0 %2242
        %v2245 = vsel %vm683, %v2046, 0
        %v2248 = vsel %vm1174, %v2243, 0
        %2250 = vmatprep.subr.bf16.mxu0 0
        %2251 = vmatpush1.bf16.msra.mxu0 %v2248
        %2252 = vmatprep.subr.bf16.mxu0 0
        %2253 = vmatpush1.bf16.msra.mxu0 0
        %2254 = vmatprep.subr.bf16.mxu0 0
        %2255 = vmatpush1.bf16.msra.mxu0 0
        %2256 = vmatprep.subr.bf16.mxu0 0
        %2257 = vmatpush1.bf16.msra.mxu0 0
        %2258 = vmatprep.subr.bf16.mxu0 0
        %2259 = vmatpush1.bf16.msra.mxu0 0
        %2260 = vmatprep.subr.bf16.mxu0 0
        %2261 = vmatpush1.bf16.msra.mxu0 0
        %2262 = vmatprep.subr.bf16.mxu0 0
        %2263 = vmatpush1.bf16.msra.mxu0 0
        %2264 = vmatprep.subr.bf16.mxu0 0
        %2265 = vmatpush1.bf16.msra.mxu0 0
        %2266 = vmatprep.subr.bf16.mxu0 0
        %2267 = vmatpush1.bf16.msra.mxu0 0
        %2268 = vmatprep.subr.bf16.mxu0 0
        %2269 = vmatpush1.bf16.msra.mxu0 0
        %2270 = vmatprep.subr.bf16.mxu0 0
        %2271 = vmatpush1.bf16.msra.mxu0 0
        %2272 = vmatprep.subr.bf16.mxu0 0
        %2273 = vmatpush1.bf16.msra.mxu0 0
        %2274 = vmatprep.subr.bf16.mxu0 0
        %2275 = vmatpush1.bf16.msra.mxu0 0
        %2276 = vmatprep.subr.bf16.mxu0 0
        %2277 = vmatpush1.bf16.msra.mxu0 0
        %2278 = vmatprep.subr.bf16.mxu0 0
        %2279 = vmatpush1.bf16.msra.mxu0 0
        %2280 = vmatprep.subr.bf16.mxu0 0
        %2281 = vmatpush1.bf16.msra.mxu0 0
        %2282 = vmatprep.mubr.bf16.mxu0 0
        %2283 = vmatmul.mubr.bf16.gmra.mrb[0].mxu0 %v2245
        %v2284 = vpop.f32.mrb[0].mxu0
        %v2285 = vadd.f32 0.0, %v2284
        %v2286 = vpop.f32.mrb[0].mxu0
        %v2287 = vpop.f32.mrb[0].mxu0
        %v2288 = vpop.f32.mrb[0].mxu0
        %2289 = vdwg.mxu0
        %2290 = vrot.lane.b32.xlu0 %v677, 56
        %v2291 = vpop.permute.xlu0 %2290
        %v2293 = vsel %vm683, %v2047, 0
        %v2296 = vsel %vm1174, %v2291, 0
        %2298 = vmatprep.subr.bf16.mxu0 0
        %2299 = vmatpush1.bf16.msra.mxu0 %v2296
        %2300 = vmatprep.subr.bf16.mxu0 0
        %2301 = vmatpush1.bf16.msra.mxu0 0
        %2302 = vmatprep.subr.bf16.mxu0 0
        %2303 = vmatpush1.bf16.msra.mxu0 0
        %2304 = vmatprep.subr.bf16.mxu0 0
        %2305 = vmatpush1.bf16.msra.mxu0 0
        %2306 = vmatprep.subr.bf16.mxu0 0
        %2307 = vmatpush1.bf16.msra.mxu0 0
        %2308 = vmatprep.subr.bf16.mxu0 0
        %2309 = vmatpush1.bf16.msra.mxu0 0
        %2310 = vmatprep.subr.bf16.mxu0 0
        %2311 = vmatpush1.bf16.msra.mxu0 0
        %2312 = vmatprep.subr.bf16.mxu0 0
        %2313 = vmatpush1.bf16.msra.mxu0 0
        %2314 = vmatprep.subr.bf16.mxu0 0
        %2315 = vmatpush1.bf16.msra.mxu0 0
        %2316 = vmatprep.subr.bf16.mxu0 0
        %2317 = vmatpush1.bf16.msra.mxu0 0
        %2318 = vmatprep.subr.bf16.mxu0 0
        %2319 = vmatpush1.bf16.msra.mxu0 0
        %2320 = vmatprep.subr.bf16.mxu0 0
        %2321 = vmatpush1.bf16.msra.mxu0 0
        %2322 = vmatprep.subr.bf16.mxu0 0
        %2323 = vmatpush1.bf16.msra.mxu0 0
        %2324 = vmatprep.subr.bf16.mxu0 0
        %2325 = vmatpush1.bf16.msra.mxu0 0
        %2326 = vmatprep.subr.bf16.mxu0 0
        %2327 = vmatpush1.bf16.msra.mxu0 0
        %2328 = vmatprep.subr.bf16.mxu0 0
        %2329 = vmatpush1.bf16.msra.mxu0 0
        %2330 = vmatprep.mubr.bf16.mxu0 0
        %2331 = vmatmul.mubr.bf16.gmra.mrb[0].mxu0 %v2293
        %v2332 = vpop.f32.mrb[0].mxu0
        %v2333 = vadd.f32 0.0, %v2332
        %v2334 = vpop.f32.mrb[0].mxu0
        %v2335 = vpop.f32.mrb[0].mxu0
        %v2336 = vpop.f32.mrb[0].mxu0
        %2337 = vdwg.mxu0
        %2338 = vrot.lane.b32.xlu0 %v678, 56
        %v2339 = vpop.permute.xlu0 %2338
        %v2341 = vsel %vm683, %v2048, 0
        %v2344 = vsel %vm1174, %v2339, 0
        %2346 = vmatprep.subr.bf16.mxu0 0
        %2347 = vmatpush1.bf16.msra.mxu0 %v2344
        %2348 = vmatprep.subr.bf16.mxu0 0
        %2349 = vmatpush1.bf16.msra.mxu0 0
        %2350 = vmatprep.subr.bf16.mxu0 0
        %2351 = vmatpush1.bf16.msra.mxu0 0
        %2352 = vmatprep.subr.bf16.mxu0 0
        %2353 = vmatpush1.bf16.msra.mxu0 0
        %2354 = vmatprep.subr.bf16.mxu0 0
        %2355 = vmatpush1.bf16.msra.mxu0 0
        %2356 = vmatprep.subr.bf16.mxu0 0
        %2357 = vmatpush1.bf16.msra.mxu0 0
        %2358 = vmatprep.subr.bf16.mxu0 0
        %2359 = vmatpush1.bf16.msra.mxu0 0
        %2360 = vmatprep.subr.bf16.mxu0 0
        %2361 = vmatpush1.bf16.msra.mxu0 0
        %2362 = vmatprep.subr.bf16.mxu0 0
        %2363 = vmatpush1.bf16.msra.mxu0 0
        %2364 = vmatprep.subr.bf16.mxu0 0
        %2365 = vmatpush1.bf16.msra.mxu0 0
        %2366 = vmatprep.subr.bf16.mxu0 0
        %2367 = vmatpush1.bf16.msra.mxu0 0
        %2368 = vmatprep.subr.bf16.mxu0 0
        %2369 = vmatpush1.bf16.msra.mxu0 0
        %2370 = vmatprep.subr.bf16.mxu0 0
        %2371 = vmatpush1.bf16.msra.mxu0 0
        %2372 = vmatprep.subr.bf16.mxu0 0
        %2373 = vmatpush1.bf16.msra.mxu0 0
        %2374 = vmatprep.subr.bf16.mxu0 0
        %2375 = vmatpush1.bf16.msra.mxu0 0
        %2376 = vmatprep.subr.bf16.mxu0 0
        %2377 = vmatpush1.bf16.msra.mxu0 0
        %2378 = vmatprep.mubr.bf16.mxu0 0
        %2379 = vmatmul.mubr.bf16.gmra.mrb[0].mxu0 %v2341
        %v2380 = vpop.f32.mrb[0].mxu0
        %v2381 = vadd.f32 0.0, %v2380
        %v2382 = vpop.f32.mrb[0].mxu0
        %v2383 = vpop.f32.mrb[0].mxu0
        %v2384 = vpop.f32.mrb[0].mxu0
        %2385 = vdwg.mxu0
        %2386 = vrot.lane.b32.xlu0 %v679, 56
        %v2387 = vpop.permute.xlu0 %2386
        %v2389 = vsel %vm683, %v2049, 0
        %v2392 = vsel %vm1174, %v2387, 0
        %2394 = vmatprep.subr.bf16.mxu0 0
        %2395 = vmatpush1.bf16.msra.mxu0 %v2392
        %2396 = vmatprep.subr.bf16.mxu0 0
        %2397 = vmatpush1.bf16.msra.mxu0 0
        %2398 = vmatprep.subr.bf16.mxu0 0
        %2399 = vmatpush1.bf16.msra.mxu0 0
        %2400 = vmatprep.subr.bf16.mxu0 0
        %2401 = vmatpush1.bf16.msra.mxu0 0
        %2402 = vmatprep.subr.bf16.mxu0 0
        %2403 = vmatpush1.bf16.msra.mxu0 0
        %2404 = vmatprep.subr.bf16.mxu0 0
        %2405 = vmatpush1.bf16.msra.mxu0 0
        %2406 = vmatprep.subr.bf16.mxu0 0
        %2407 = vmatpush1.bf16.msra.mxu0 0
        %2408 = vmatprep.subr.bf16.mxu0 0
        %2409 = vmatpush1.bf16.msra.mxu0 0
        %2410 = vmatprep.subr.bf16.mxu0 0
        %2411 = vmatpush1.bf16.msra.mxu0 0
        %2412 = vmatprep.subr.bf16.mxu0 0
        %2413 = vmatpush1.bf16.msra.mxu0 0
        %2414 = vmatprep.subr.bf16.mxu0 0
        %2415 = vmatpush1.bf16.msra.mxu0 0
        %2416 = vmatprep.subr.bf16.mxu0 0
        %2417 = vmatpush1.bf16.msra.mxu0 0
        %2418 = vmatprep.subr.bf16.mxu0 0
        %2419 = vmatpush1.bf16.msra.mxu0 0
        %2420 = vmatprep.subr.bf16.mxu0 0
        %2421 = vmatpush1.bf16.msra.mxu0 0
        %2422 = vmatprep.subr.bf16.mxu0 0
        %2423 = vmatpush1.bf16.msra.mxu0 0
        %2424 = vmatprep.subr.bf16.mxu0 0
        %2425 = vmatpush1.bf16.msra.mxu0 0
        %2426 = vmatprep.mubr.bf16.mxu0 0
        %2427 = vmatmul.mubr.bf16.gmra.mrb[0].mxu0 %v2389
        %v2428 = vpop.f32.mrb[0].mxu0
        %v2429 = vadd.f32 0.0, %v2428
        %v2430 = vpop.f32.mrb[0].mxu0
        %v2431 = vpop.f32.mrb[0].mxu0
        %v2432 = vpop.f32.mrb[0].mxu0
        %2433 = vdwg.mxu0
        %2434 = vrot.lane.b32.xlu0 %v672, 112
        %v2435 = vpop.permute.xlu0 %2434
        %2436 = vrot.lane.b32.xlu0 %v672, 80
        %v2437 = vpop.permute.xlu0 %2436
        %v2439 = vsel %vm683, %v2435, 0
        %v2442 = vsel %vm683, %v2437, 0
        %2444 = vmatprep.subr.bf16.mxu0 0
        %2445 = vmatpush1.bf16.xpose.msra.mxu0 %v2442
        %2446 = vmatprep.subr.bf16.mxu0 0
        %2447 = vmatpush1.bf16.xpose.msra.mxu0 0
        %2448 = vmatprep.subr.bf16.mxu0 0
        %2449 = vmatpush1.bf16.xpose.msra.mxu0 0
        %2450 = vmatprep.subr.bf16.mxu0 0
        %2451 = vmatpush1.bf16.xpose.msra.mxu0 0
        %2452 = vmatprep.subr.bf16.mxu0 0
        %2453 = vmatpush1.bf16.xpose.msra.mxu0 0
        %2454 = vmatprep.subr.bf16.mxu0 0
        %2455 = vmatpush1.bf16.xpose.msra.mxu0 0
        %2456 = vmatprep.subr.bf16.mxu0 0
        %2457 = vmatpush1.bf16.xpose.msra.mxu0 0
        %2458 = vmatprep.subr.bf16.mxu0 0
        %2459 = vmatpush1.bf16.xpose.msra.mxu0 0
        %2460 = vmatprep.subr.bf16.mxu0 0
        %2461 = vmatpush1.bf16.xpose.msra.mxu0 0
        %2462 = vmatprep.subr.bf16.mxu0 0
        %2463 = vmatpush1.bf16.xpose.msra.mxu0 0
        %2464 = vmatprep.subr.bf16.mxu0 0
        %2465 = vmatpush1.bf16.xpose.msra.mxu0 0
        %2466 = vmatprep.subr.bf16.mxu0 0
        %2467 = vmatpush1.bf16.xpose.msra.mxu0 0
        %2468 = vmatprep.subr.bf16.mxu0 0
        %2469 = vmatpush1.bf16.xpose.msra.mxu0 0
        %2470 = vmatprep.subr.bf16.mxu0 0
        %2471 = vmatpush1.bf16.xpose.msra.mxu0 0
        %2472 = vmatprep.subr.bf16.mxu0 0
        %2473 = vmatpush1.bf16.xpose.msra.mxu0 0
        %2474 = vmatprep.subr.bf16.mxu0 0
        %2475 = vmatpush1.bf16.xpose.msra.mxu0 0
        %2476 = vmatprep.mubr.bf16.mxu0 0
        %2477 = vmatmul.mubr.bf16.gmra.mrb[0].mxu0 %v2439
        %v2478 = vpop.f32.mrb[0].mxu0
        %v2479 = vadd.f32 0.0, %v2478
        %v2480 = vpop.f32.mrb[0].mxu0
        %v2481 = vpop.f32.mrb[0].mxu0
        %v2482 = vpop.f32.mrb[0].mxu0
        %2483 = vdwg.mxu0
        %2484 = vrot.lane.b32.xlu0 %v673, 112
        %v2485 = vpop.permute.xlu0 %2484
        %2486 = vrot.lane.b32.xlu0 %v673, 80
        %v2487 = vpop.permute.xlu0 %2486
        %v2489 = vsel %vm683, %v2485, 0
        %v2492 = vsel %vm683, %v2487, 0
        %2494 = vmatprep.subr.bf16.mxu0 0
        %2495 = vmatpush1.bf16.xpose.msra.mxu0 %v2492
        %2496 = vmatprep.subr.bf16.mxu0 0
        %2497 = vmatpush1.bf16.xpose.msra.mxu0 0
        %2498 = vmatprep.subr.bf16.mxu0 0
        %2499 = vmatpush1.bf16.xpose.msra.mxu0 0
        %2500 = vmatprep.subr.bf16.mxu0 0
        %2501 = vmatpush1.bf16.xpose.msra.mxu0 0
        %2502 = vmatprep.subr.bf16.mxu0 0
        %2503 = vmatpush1.bf16.xpose.msra.mxu0 0
        %2504 = vmatprep.subr.bf16.mxu0 0
        %2505 = vmatpush1.bf16.xpose.msra.mxu0 0
        %2506 = vmatprep.subr.bf16.mxu0 0
        %2507 = vmatpush1.bf16.xpose.msra.mxu0 0
        %2508 = vmatprep.subr.bf16.mxu0 0
        %2509 = vmatpush1.bf16.xpose.msra.mxu0 0
        %2510 = vmatprep.subr.bf16.mxu0 0
        %2511 = vmatpush1.bf16.xpose.msra.mxu0 0
        %2512 = vmatprep.subr.bf16.mxu0 0
        %2513 = vmatpush1.bf16.xpose.msra.mxu0 0
        %2514 = vmatprep.subr.bf16.mxu0 0
        %2515 = vmatpush1.bf16.xpose.msra.mxu0 0
        %2516 = vmatprep.subr.bf16.mxu0 0
        %2517 = vmatpush1.bf16.xpose.msra.mxu0 0
        %2518 = vmatprep.subr.bf16.mxu0 0
        %2519 = vmatpush1.bf16.xpose.msra.mxu0 0
        %2520 = vmatprep.subr.bf16.mxu0 0
        %2521 = vmatpush1.bf16.xpose.msra.mxu0 0
        %2522 = vmatprep.subr.bf16.mxu0 0
        %2523 = vmatpush1.bf16.xpose.msra.mxu0 0
        %2524 = vmatprep.subr.bf16.mxu0 0
        %2525 = vmatpush1.bf16.xpose.msra.mxu0 0
        %2526 = vmatprep.mubr.bf16.mxu0 0
        %2527 = vmatmul.mubr.bf16.gmra.mrb[0].mxu0 %v2489
        %v2528 = vpop.f32.mrb[0].mxu0
        %v2529 = vadd.f32 0.0, %v2528
        %v2530 = vpop.f32.mrb[0].mxu0
        %v2531 = vpop.f32.mrb[0].mxu0
        %v2532 = vpop.f32.mrb[0].mxu0
        %2533 = vdwg.mxu0
        %2534 = vrot.lane.b32.xlu0 %v674, 112
        %v2535 = vpop.permute.xlu0 %2534
        %2536 = vrot.lane.b32.xlu0 %v674, 80
        %v2537 = vpop.permute.xlu0 %2536
        %v2539 = vsel %vm683, %v2535, 0
        %v2542 = vsel %vm683, %v2537, 0
        %2544 = vmatprep.subr.bf16.mxu0 0
        %2545 = vmatpush1.bf16.xpose.msra.mxu0 %v2542
        %2546 = vmatprep.subr.bf16.mxu0 0
        %2547 = vmatpush1.bf16.xpose.msra.mxu0 0
        %2548 = vmatprep.subr.bf16.mxu0 0
        %2549 = vmatpush1.bf16.xpose.msra.mxu0 0
        %2550 = vmatprep.subr.bf16.mxu0 0
        %2551 = vmatpush1.bf16.xpose.msra.mxu0 0
        %2552 = vmatprep.subr.bf16.mxu0 0
        %2553 = vmatpush1.bf16.xpose.msra.mxu0 0
        %2554 = vmatprep.subr.bf16.mxu0 0
        %2555 = vmatpush1.bf16.xpose.msra.mxu0 0
        %2556 = vmatprep.subr.bf16.mxu0 0
        %2557 = vmatpush1.bf16.xpose.msra.mxu0 0
        %2558 = vmatprep.subr.bf16.mxu0 0
        %2559 = vmatpush1.bf16.xpose.msra.mxu0 0
        %2560 = vmatprep.subr.bf16.mxu0 0
        %2561 = vmatpush1.bf16.xpose.msra.mxu0 0
        %2562 = vmatprep.subr.bf16.mxu0 0
        %2563 = vmatpush1.bf16.xpose.msra.mxu0 0
        %2564 = vmatprep.subr.bf16.mxu0 0
        %2565 = vmatpush1.bf16.xpose.msra.mxu0 0
        %2566 = vmatprep.subr.bf16.mxu0 0
        %2567 = vmatpush1.bf16.xpose.msra.mxu0 0
        %2568 = vmatprep.subr.bf16.mxu0 0
        %2569 = vmatpush1.bf16.xpose.msra.mxu0 0
        %2570 = vmatprep.subr.bf16.mxu0 0
        %2571 = vmatpush1.bf16.xpose.msra.mxu0 0
        %2572 = vmatprep.subr.bf16.mxu0 0
        %2573 = vmatpush1.bf16.xpose.msra.mxu0 0
        %2574 = vmatprep.subr.bf16.mxu0 0
        %2575 = vmatpush1.bf16.xpose.msra.mxu0 0
        %2576 = vmatprep.mubr.bf16.mxu0 0
        %2577 = vmatmul.mubr.bf16.gmra.mrb[0].mxu0 %v2539
        %v2578 = vpop.f32.mrb[0].mxu0
        %v2579 = vadd.f32 0.0, %v2578
        %v2580 = vpop.f32.mrb[0].mxu0
        %v2581 = vpop.f32.mrb[0].mxu0
        %v2582 = vpop.f32.mrb[0].mxu0
        %2583 = vdwg.mxu0
        %2584 = vrot.lane.b32.xlu0 %v675, 112
        %v2585 = vpop.permute.xlu0 %2584
        %2586 = vrot.lane.b32.xlu0 %v675, 80
        %v2587 = vpop.permute.xlu0 %2586
        %v2589 = vsel %vm683, %v2585, 0
        %v2592 = vsel %vm683, %v2587, 0
        %2594 = vmatprep.subr.bf16.mxu0 0
        %2595 = vmatpush1.bf16.xpose.msra.mxu0 %v2592
        %2596 = vmatprep.subr.bf16.mxu0 0
        %2597 = vmatpush1.bf16.xpose.msra.mxu0 0
        %2598 = vmatprep.subr.bf16.mxu0 0
        %2599 = vmatpush1.bf16.xpose.msra.mxu0 0
        %2600 = vmatprep.subr.bf16.mxu0 0
        %2601 = vmatpush1.bf16.xpose.msra.mxu0 0
        %2602 = vmatprep.subr.bf16.mxu0 0
        %2603 = vmatpush1.bf16.xpose.msra.mxu0 0
        %2604 = vmatprep.subr.bf16.mxu0 0
        %2605 = vmatpush1.bf16.xpose.msra.mxu0 0
        %2606 = vmatprep.subr.bf16.mxu0 0
        %2607 = vmatpush1.bf16.xpose.msra.mxu0 0
        %2608 = vmatprep.subr.bf16.mxu0 0
        %2609 = vmatpush1.bf16.xpose.msra.mxu0 0
        %2610 = vmatprep.subr.bf16.mxu0 0
        %2611 = vmatpush1.bf16.xpose.msra.mxu0 0
        %2612 = vmatprep.subr.bf16.mxu0 0
        %2613 = vmatpush1.bf16.xpose.msra.mxu0 0
        %2614 = vmatprep.subr.bf16.mxu0 0
        %2615 = vmatpush1.bf16.xpose.msra.mxu0 0
        %2616 = vmatprep.subr.bf16.mxu0 0
        %2617 = vmatpush1.bf16.xpose.msra.mxu0 0
        %2618 = vmatprep.subr.bf16.mxu0 0
        %2619 = vmatpush1.bf16.xpose.msra.mxu0 0
        %2620 = vmatprep.subr.bf16.mxu0 0
        %2621 = vmatpush1.bf16.xpose.msra.mxu0 0
        %2622 = vmatprep.subr.bf16.mxu0 0
        %2623 = vmatpush1.bf16.xpose.msra.mxu0 0
        %2624 = vmatprep.subr.bf16.mxu0 0
        %2625 = vmatpush1.bf16.xpose.msra.mxu0 0
        %2626 = vmatprep.mubr.bf16.mxu0 0
        %2627 = vmatmul.mubr.bf16.gmra.mrb[0].mxu0 %v2589
        %v2628 = vpop.f32.mrb[0].mxu0
        %v2629 = vadd.f32 0.0, %v2628
        %v2630 = vpop.f32.mrb[0].mxu0
        %v2631 = vpop.f32.mrb[0].mxu0
        %v2632 = vpop.f32.mrb[0].mxu0
        %2633 = vdwg.mxu0
        %2634 = vrot.lane.b32.xlu0 %v676, 112
        %v2635 = vpop.permute.xlu0 %2634
        %2636 = vrot.lane.b32.xlu0 %v676, 80
        %v2637 = vpop.permute.xlu0 %2636
        %v2639 = vsel %vm683, %v2635, 0
        %v2642 = vsel %vm683, %v2637, 0
        %2644 = vmatprep.subr.bf16.mxu0 0
        %2645 = vmatpush1.bf16.xpose.msra.mxu0 %v2642
        %2646 = vmatprep.subr.bf16.mxu0 0
        %2647 = vmatpush1.bf16.xpose.msra.mxu0 0
        %2648 = vmatprep.subr.bf16.mxu0 0
        %2649 = vmatpush1.bf16.xpose.msra.mxu0 0
        %2650 = vmatprep.subr.bf16.mxu0 0
        %2651 = vmatpush1.bf16.xpose.msra.mxu0 0
        %2652 = vmatprep.subr.bf16.mxu0 0
        %2653 = vmatpush1.bf16.xpose.msra.mxu0 0
        %2654 = vmatprep.subr.bf16.mxu0 0
        %2655 = vmatpush1.bf16.xpose.msra.mxu0 0
        %2656 = vmatprep.subr.bf16.mxu0 0
        %2657 = vmatpush1.bf16.xpose.msra.mxu0 0
        %2658 = vmatprep.subr.bf16.mxu0 0
        %2659 = vmatpush1.bf16.xpose.msra.mxu0 0
        %2660 = vmatprep.subr.bf16.mxu0 0
        %2661 = vmatpush1.bf16.xpose.msra.mxu0 0
        %2662 = vmatprep.subr.bf16.mxu0 0
        %2663 = vmatpush1.bf16.xpose.msra.mxu0 0
        %2664 = vmatprep.subr.bf16.mxu0 0
        %2665 = vmatpush1.bf16.xpose.msra.mxu0 0
        %2666 = vmatprep.subr.bf16.mxu0 0
        %2667 = vmatpush1.bf16.xpose.msra.mxu0 0
        %2668 = vmatprep.subr.bf16.mxu0 0
        %2669 = vmatpush1.bf16.xpose.msra.mxu0 0
        %2670 = vmatprep.subr.bf16.mxu0 0
        %2671 = vmatpush1.bf16.xpose.msra.mxu0 0
        %2672 = vmatprep.subr.bf16.mxu0 0
        %2673 = vmatpush1.bf16.xpose.msra.mxu0 0
        %2674 = vmatprep.subr.bf16.mxu0 0
        %2675 = vmatpush1.bf16.xpose.msra.mxu0 0
        %2676 = vmatprep.mubr.bf16.mxu0 0
        %2677 = vmatmul.mubr.bf16.gmra.mrb[0].mxu0 %v2639
        %v2678 = vpop.f32.mrb[0].mxu0
        %v2679 = vadd.f32 0.0, %v2678
        %v2680 = vpop.f32.mrb[0].mxu0
        %v2681 = vpop.f32.mrb[0].mxu0
        %v2682 = vpop.f32.mrb[0].mxu0
        %2683 = vdwg.mxu0
        %2684 = vrot.lane.b32.xlu0 %v677, 112
        %v2685 = vpop.permute.xlu0 %2684
        %2686 = vrot.lane.b32.xlu0 %v677, 80
        %v2687 = vpop.permute.xlu0 %2686
        %v2689 = vsel %vm683, %v2685, 0
        %v2692 = vsel %vm683, %v2687, 0
        %2694 = vmatprep.subr.bf16.mxu0 0
        %2695 = vmatpush1.bf16.xpose.msra.mxu0 %v2692
        %2696 = vmatprep.subr.bf16.mxu0 0
        %2697 = vmatpush1.bf16.xpose.msra.mxu0 0
        %2698 = vmatprep.subr.bf16.mxu0 0
        %2699 = vmatpush1.bf16.xpose.msra.mxu0 0
        %2700 = vmatprep.subr.bf16.mxu0 0
        %2701 = vmatpush1.bf16.xpose.msra.mxu0 0
        %2702 = vmatprep.subr.bf16.mxu0 0
        %2703 = vmatpush1.bf16.xpose.msra.mxu0 0
        %2704 = vmatprep.subr.bf16.mxu0 0
        %2705 = vmatpush1.bf16.xpose.msra.mxu0 0
        %2706 = vmatprep.subr.bf16.mxu0 0
        %2707 = vmatpush1.bf16.xpose.msra.mxu0 0
        %2708 = vmatprep.subr.bf16.mxu0 0
        %2709 = vmatpush1.bf16.xpose.msra.mxu0 0
        %2710 = vmatprep.subr.bf16.mxu0 0
        %2711 = vmatpush1.bf16.xpose.msra.mxu0 0
        %2712 = vmatprep.subr.bf16.mxu0 0
        %2713 = vmatpush1.bf16.xpose.msra.mxu0 0
        %2714 = vmatprep.subr.bf16.mxu0 0
        %2715 = vmatpush1.bf16.xpose.msra.mxu0 0
        %2716 = vmatprep.subr.bf16.mxu0 0
        %2717 = vmatpush1.bf16.xpose.msra.mxu0 0
        %2718 = vmatprep.subr.bf16.mxu0 0
        %2719 = vmatpush1.bf16.xpose.msra.mxu0 0
        %2720 = vmatprep.subr.bf16.mxu0 0
        %2721 = vmatpush1.bf16.xpose.msra.mxu0 0
        %2722 = vmatprep.subr.bf16.mxu0 0
        %2723 = vmatpush1.bf16.xpose.msra.mxu0 0
        %2724 = vmatprep.subr.bf16.mxu0 0
        %2725 = vmatpush1.bf16.xpose.msra.mxu0 0
        %2726 = vmatprep.mubr.bf16.mxu0 0
        %2727 = vmatmul.mubr.bf16.gmra.mrb[0].mxu0 %v2689
        %v2728 = vpop.f32.mrb[0].mxu0
        %v2729 = vadd.f32 0.0, %v2728
        %v2730 = vpop.f32.mrb[0].mxu0
        %v2731 = vpop.f32.mrb[0].mxu0
        %v2732 = vpop.f32.mrb[0].mxu0
        %2733 = vdwg.mxu0
        %2734 = vrot.lane.b32.xlu0 %v678, 112
        %v2735 = vpop.permute.xlu0 %2734
        %2736 = vrot.lane.b32.xlu0 %v678, 80
        %v2737 = vpop.permute.xlu0 %2736
        %v2739 = vsel %vm683, %v2735, 0
        %v2742 = vsel %vm683, %v2737, 0
        %2744 = vmatprep.subr.bf16.mxu0 0
        %2745 = vmatpush1.bf16.xpose.msra.mxu0 %v2742
        %2746 = vmatprep.subr.bf16.mxu0 0
        %2747 = vmatpush1.bf16.xpose.msra.mxu0 0
        %2748 = vmatprep.subr.bf16.mxu0 0
        %2749 = vmatpush1.bf16.xpose.msra.mxu0 0
        %2750 = vmatprep.subr.bf16.mxu0 0
        %2751 = vmatpush1.bf16.xpose.msra.mxu0 0
        %2752 = vmatprep.subr.bf16.mxu0 0
        %2753 = vmatpush1.bf16.xpose.msra.mxu0 0
        %2754 = vmatprep.subr.bf16.mxu0 0
        %2755 = vmatpush1.bf16.xpose.msra.mxu0 0
        %2756 = vmatprep.subr.bf16.mxu0 0
        %2757 = vmatpush1.bf16.xpose.msra.mxu0 0
        %2758 = vmatprep.subr.bf16.mxu0 0
        %2759 = vmatpush1.bf16.xpose.msra.mxu0 0
        %2760 = vmatprep.subr.bf16.mxu0 0
        %2761 = vmatpush1.bf16.xpose.msra.mxu0 0
        %2762 = vmatprep.subr.bf16.mxu0 0
        %2763 = vmatpush1.bf16.xpose.msra.mxu0 0
        %2764 = vmatprep.subr.bf16.mxu0 0
        %2765 = vmatpush1.bf16.xpose.msra.mxu0 0
        %2766 = vmatprep.subr.bf16.mxu0 0
        %2767 = vmatpush1.bf16.xpose.msra.mxu0 0
        %2768 = vmatprep.subr.bf16.mxu0 0
        %2769 = vmatpush1.bf16.xpose.msra.mxu0 0
        %2770 = vmatprep.subr.bf16.mxu0 0
        %2771 = vmatpush1.bf16.xpose.msra.mxu0 0
        %2772 = vmatprep.subr.bf16.mxu0 0
        %2773 = vmatpush1.bf16.xpose.msra.mxu0 0
        %2774 = vmatprep.subr.bf16.mxu0 0
        %2775 = vmatpush1.bf16.xpose.msra.mxu0 0
        %2776 = vmatprep.mubr.bf16.mxu0 0
        %2777 = vmatmul.mubr.bf16.gmra.mrb[0].mxu0 %v2739
        %v2778 = vpop.f32.mrb[0].mxu0
        %v2779 = vadd.f32 0.0, %v2778
        %v2780 = vpop.f32.mrb[0].mxu0
        %v2781 = vpop.f32.mrb[0].mxu0
        %v2782 = vpop.f32.mrb[0].mxu0
        %2783 = vdwg.mxu0
        %2784 = vrot.lane.b32.xlu0 %v679, 112
        %v2785 = vpop.permute.xlu0 %2784
        %2786 = vrot.lane.b32.xlu0 %v679, 80
        %v2787 = vpop.permute.xlu0 %2786
        %v2789 = vsel %vm683, %v2785, 0
        %v2792 = vsel %vm683, %v2787, 0
        %2794 = vmatprep.subr.bf16.mxu0 0
        %2795 = vmatpush1.bf16.xpose.msra.mxu0 %v2792
        %2796 = vmatprep.subr.bf16.mxu0 0
        %2797 = vmatpush1.bf16.xpose.msra.mxu0 0
        %2798 = vmatprep.subr.bf16.mxu0 0
        %2799 = vmatpush1.bf16.xpose.msra.mxu0 0
        %2800 = vmatprep.subr.bf16.mxu0 0
        %2801 = vmatpush1.bf16.xpose.msra.mxu0 0
        %2802 = vmatprep.subr.bf16.mxu0 0
        %2803 = vmatpush1.bf16.xpose.msra.mxu0 0
        %2804 = vmatprep.subr.bf16.mxu0 0
        %2805 = vmatpush1.bf16.xpose.msra.mxu0 0
        %2806 = vmatprep.subr.bf16.mxu0 0
        %2807 = vmatpush1.bf16.xpose.msra.mxu0 0
        %2808 = vmatprep.subr.bf16.mxu0 0
        %2809 = vmatpush1.bf16.xpose.msra.mxu0 0
        %2810 = vmatprep.subr.bf16.mxu0 0
        %2811 = vmatpush1.bf16.xpose.msra.mxu0 0
        %2812 = vmatprep.subr.bf16.mxu0 0
        %2813 = vmatpush1.bf16.xpose.msra.mxu0 0
        %2814 = vmatprep.subr.bf16.mxu0 0
        %2815 = vmatpush1.bf16.xpose.msra.mxu0 0
        %2816 = vmatprep.subr.bf16.mxu0 0
        %2817 = vmatpush1.bf16.xpose.msra.mxu0 0
        %2818 = vmatprep.subr.bf16.mxu0 0
        %2819 = vmatpush1.bf16.xpose.msra.mxu0 0
        %2820 = vmatprep.subr.bf16.mxu0 0
        %2821 = vmatpush1.bf16.xpose.msra.mxu0 0
        %2822 = vmatprep.subr.bf16.mxu0 0
        %2823 = vmatpush1.bf16.xpose.msra.mxu0 0
        %2824 = vmatprep.subr.bf16.mxu0 0
        %2825 = vmatpush1.bf16.xpose.msra.mxu0 0
        %2826 = vmatprep.mubr.bf16.mxu0 0
        %2827 = vmatmul.mubr.bf16.gmra.mrb[0].mxu0 %v2789
        %v2828 = vpop.f32.mrb[0].mxu0
        %v2829 = vadd.f32 0.0, %v2828
        %v2830 = vpop.f32.mrb[0].mxu0
        %v2831 = vpop.f32.mrb[0].mxu0
        %v2832 = vpop.f32.mrb[0].mxu0
        %2833 = vdwg.mxu0
        %v2834 = vsel %vm683, %v2479, -inf
        %2835 = vmax.xlane.f32.xlu0 %v2834
        %v2836 = vpop.xlane.xlu0 %2835
        %v2837 = vsel %vm683, %v2529, -inf
        %2838 = vmax.xlane.f32.xlu0 %v2837
        %v2839 = vpop.xlane.xlu0 %2838
        %v2840 = vsel %vm683, %v2579, -inf
        %2841 = vmax.xlane.f32.xlu0 %v2840
        %v2842 = vpop.xlane.xlu0 %2841
        %v2843 = vsel %vm683, %v2629, -inf
        %2844 = vmax.xlane.f32.xlu0 %v2843
        %v2845 = vpop.xlane.xlu0 %2844
        %v2846 = vsel %vm683, %v2679, -inf
        %2847 = vmax.xlane.f32.xlu0 %v2846
        %v2848 = vpop.xlane.xlu0 %2847
        %v2849 = vsel %vm683, %v2729, -inf
        %2850 = vmax.xlane.f32.xlu0 %v2849
        %v2851 = vpop.xlane.xlu0 %2850
        %v2852 = vsel %vm683, %v2779, -inf
        %2853 = vmax.xlane.f32.xlu0 %v2852
        %v2854 = vpop.xlane.xlu0 %2853
        %v2855 = vsel %vm683, %v2829, -inf
        %2856 = vmax.xlane.f32.xlu0 %v2855
        %v2857 = vpop.xlane.xlu0 %2856
        %v2858 = vsub.f32 %v2479, %v2836
        %v2859 = vsub.f32 %v2529, %v2839
        %v2860 = vsub.f32 %v2579, %v2842
        %v2861 = vsub.f32 %v2629, %v2845
        %v2862 = vsub.f32 %v2679, %v2848
        %v2863 = vsub.f32 %v2729, %v2851
        %v2864 = vsub.f32 %v2779, %v2854
        %v2865 = vsub.f32 %v2829, %v2857
        %v2866 = vmul.f32 %v2858, 1.442695
        %v2867 = vpow.pop %v2866
        %v2868 = vmul.f32 %v2859, 1.442695
        %v2869 = vpow.pop %v2868
        %v2870 = vmul.f32 %v2860, 1.442695
        %v2871 = vpow.pop %v2870
        %v2872 = vmul.f32 %v2861, 1.442695
        %v2873 = vpow.pop %v2872
        %v2874 = vmul.f32 %v2862, 1.442695
        %v2875 = vpow.pop %v2874
        %v2876 = vmul.f32 %v2863, 1.442695
        %v2877 = vpow.pop %v2876
        %v2878 = vmul.f32 %v2864, 1.442695
        %v2879 = vpow.pop %v2878
        %v2880 = vmul.f32 %v2865, 1.442695
        %v2881 = vpow.pop %v2880
        %v2882 = vsel %vm683, %v2867, 0.0
        %2883 = vadd.xlane.f32.xlu0 %v2882
        %v2884 = vpop.xlane.xlu0 %2883
        %v2885 = vsel %vm683, %v2869, 0.0
        %2886 = vadd.xlane.f32.xlu0 %v2885
        %v2887 = vpop.xlane.xlu0 %2886
        %v2888 = vsel %vm683, %v2871, 0.0
        %2889 = vadd.xlane.f32.xlu0 %v2888
        %v2890 = vpop.xlane.xlu0 %2889
        %v2891 = vsel %vm683, %v2873, 0.0
        %2892 = vadd.xlane.f32.xlu0 %v2891
        %v2893 = vpop.xlane.xlu0 %2892
        %v2894 = vsel %vm683, %v2875, 0.0
        %2895 = vadd.xlane.f32.xlu0 %v2894
        %v2896 = vpop.xlane.xlu0 %2895
        %v2897 = vsel %vm683, %v2877, 0.0
        %2898 = vadd.xlane.f32.xlu0 %v2897
        %v2899 = vpop.xlane.xlu0 %2898
        %v2900 = vsel %vm683, %v2879, 0.0
        %2901 = vadd.xlane.f32.xlu0 %v2900
        %v2902 = vpop.xlane.xlu0 %2901
        %v2903 = vsel %vm683, %v2881, 0.0
        %2904 = vadd.xlane.f32.xlu0 %v2903
        %v2905 = vpop.xlane.xlu0 %2904
        %v2906 = vrcp.pop %v2884
        %v2907 = vrcp.pop %v2887
        %v2908 = vrcp.pop %v2890
        %v2909 = vrcp.pop %v2893
        %v2910 = vrcp.pop %v2896
        %v2911 = vrcp.pop %v2899
        %v2912 = vrcp.pop %v2902
        %v2913 = vrcp.pop %v2905
        %v2914 = vmul.f32 %v2867, %v2906
        %v2915 = vmul.f32 %v2869, %v2907
        %v2916 = vmul.f32 %v2871, %v2908
        %v2917 = vmul.f32 %v2873, %v2909
        %v2918 = vmul.f32 %v2875, %v2910
        %v2919 = vmul.f32 %v2877, %v2911
        %v2920 = vmul.f32 %v2879, %v2912
        %v2921 = vmul.f32 %v2881, %v2913
        %v2922 = vpack.c.bf16 %v2914, %v2914
        %v2923 = vpack.c.bf16 %v2915, %v2915
        %v2924 = vpack.c.bf16 %v2916, %v2916
        %v2925 = vpack.c.bf16 %v2917, %v2917
        %v2926 = vpack.c.bf16 %v2918, %v2918
        %v2927 = vpack.c.bf16 %v2919, %v2919
        %v2928 = vpack.c.bf16 %v2920, %v2920
        %v2929 = vpack.c.bf16 %v2921, %v2921
        %2930 = vrot.lane.b32.xlu0 %v672, 48
        %v2931 = vpop.permute.xlu0 %2930
        %v2933 = vsel %vm683, %v2922, 0
        %v2936 = vsel %vm1174, %v2931, 0
        %2938 = vmatprep.subr.bf16.mxu0 0
        %2939 = vmatpush1.bf16.msra.mxu0 %v2936
        %2940 = vmatprep.subr.bf16.mxu0 0
        %2941 = vmatpush1.bf16.msra.mxu0 0
        %2942 = vmatprep.subr.bf16.mxu0 0
        %2943 = vmatpush1.bf16.msra.mxu0 0
        %2944 = vmatprep.subr.bf16.mxu0 0
        %2945 = vmatpush1.bf16.msra.mxu0 0
        %2946 = vmatprep.subr.bf16.mxu0 0
        %2947 = vmatpush1.bf16.msra.mxu0 0
        %2948 = vmatprep.subr.bf16.mxu0 0
        %2949 = vmatpush1.bf16.msra.mxu0 0
        %2950 = vmatprep.subr.bf16.mxu0 0
        %2951 = vmatpush1.bf16.msra.mxu0 0
        %2952 = vmatprep.subr.bf16.mxu0 0
        %2953 = vmatpush1.bf16.msra.mxu0 0
        %2954 = vmatprep.subr.bf16.mxu0 0
        %2955 = vmatpush1.bf16.msra.mxu0 0
        %2956 = vmatprep.subr.bf16.mxu0 0
        %2957 = vmatpush1.bf16.msra.mxu0 0
        %2958 = vmatprep.subr.bf16.mxu0 0
        %2959 = vmatpush1.bf16.msra.mxu0 0
        %2960 = vmatprep.subr.bf16.mxu0 0
        %2961 = vmatpush1.bf16.msra.mxu0 0
        %2962 = vmatprep.subr.bf16.mxu0 0
        %2963 = vmatpush1.bf16.msra.mxu0 0
        %2964 = vmatprep.subr.bf16.mxu0 0
        %2965 = vmatpush1.bf16.msra.mxu0 0
        %2966 = vmatprep.subr.bf16.mxu0 0
        %2967 = vmatpush1.bf16.msra.mxu0 0
        %2968 = vmatprep.subr.bf16.mxu0 0
        %2969 = vmatpush1.bf16.msra.mxu0 0
        %2970 = vmatprep.mubr.bf16.mxu0 0
        %2971 = vmatmul.mubr.bf16.gmra.mrb[0].mxu0 %v2933
        %v2972 = vpop.f32.mrb[0].mxu0
        %v2973 = vadd.f32 0.0, %v2972
        %v2974 = vpop.f32.mrb[0].mxu0
        %v2975 = vpop.f32.mrb[0].mxu0
        %v2976 = vpop.f32.mrb[0].mxu0
        %2977 = vdwg.mxu0
        %2978 = vrot.lane.b32.xlu0 %v673, 48
        %v2979 = vpop.permute.xlu0 %2978
        %v2981 = vsel %vm683, %v2923, 0
        %v2984 = vsel %vm1174, %v2979, 0
        %2986 = vmatprep.subr.bf16.mxu0 0
        %2987 = vmatpush1.bf16.msra.mxu0 %v2984
        %2988 = vmatprep.subr.bf16.mxu0 0
        %2989 = vmatpush1.bf16.msra.mxu0 0
        %2990 = vmatprep.subr.bf16.mxu0 0
        %2991 = vmatpush1.bf16.msra.mxu0 0
        %2992 = vmatprep.subr.bf16.mxu0 0
        %2993 = vmatpush1.bf16.msra.mxu0 0
        %2994 = vmatprep.subr.bf16.mxu0 0
        %2995 = vmatpush1.bf16.msra.mxu0 0
        %2996 = vmatprep.subr.bf16.mxu0 0
        %2997 = vmatpush1.bf16.msra.mxu0 0
        %2998 = vmatprep.subr.bf16.mxu0 0
        %2999 = vmatpush1.bf16.msra.mxu0 0
        %3000 = vmatprep.subr.bf16.mxu0 0
        %3001 = vmatpush1.bf16.msra.mxu0 0
        %3002 = vmatprep.subr.bf16.mxu0 0
        %3003 = vmatpush1.bf16.msra.mxu0 0
        %3004 = vmatprep.subr.bf16.mxu0 0
        %3005 = vmatpush1.bf16.msra.mxu0 0
        %3006 = vmatprep.subr.bf16.mxu0 0
        %3007 = vmatpush1.bf16.msra.mxu0 0
        %3008 = vmatprep.subr.bf16.mxu0 0
        %3009 = vmatpush1.bf16.msra.mxu0 0
        %3010 = vmatprep.subr.bf16.mxu0 0
        %3011 = vmatpush1.bf16.msra.mxu0 0
        %3012 = vmatprep.subr.bf16.mxu0 0
        %3013 = vmatpush1.bf16.msra.mxu0 0
        %3014 = vmatprep.subr.bf16.mxu0 0
        %3015 = vmatpush1.bf16.msra.mxu0 0
        %3016 = vmatprep.subr.bf16.mxu0 0
        %3017 = vmatpush1.bf16.msra.mxu0 0
        %3018 = vmatprep.mubr.bf16.mxu0 0
        %3019 = vmatmul.mubr.bf16.gmra.mrb[0].mxu0 %v2981
        %v3020 = vpop.f32.mrb[0].mxu0
        %v3021 = vadd.f32 0.0, %v3020
        %v3022 = vpop.f32.mrb[0].mxu0
        %v3023 = vpop.f32.mrb[0].mxu0
        %v3024 = vpop.f32.mrb[0].mxu0
        %3025 = vdwg.mxu0
        %3026 = vrot.lane.b32.xlu0 %v674, 48
        %v3027 = vpop.permute.xlu0 %3026
        %v3029 = vsel %vm683, %v2924, 0
        %v3032 = vsel %vm1174, %v3027, 0
        %3034 = vmatprep.subr.bf16.mxu0 0
        %3035 = vmatpush1.bf16.msra.mxu0 %v3032
        %3036 = vmatprep.subr.bf16.mxu0 0
        %3037 = vmatpush1.bf16.msra.mxu0 0
        %3038 = vmatprep.subr.bf16.mxu0 0
        %3039 = vmatpush1.bf16.msra.mxu0 0
        %3040 = vmatprep.subr.bf16.mxu0 0
        %3041 = vmatpush1.bf16.msra.mxu0 0
        %3042 = vmatprep.subr.bf16.mxu0 0
        %3043 = vmatpush1.bf16.msra.mxu0 0
        %3044 = vmatprep.subr.bf16.mxu0 0
        %3045 = vmatpush1.bf16.msra.mxu0 0
        %3046 = vmatprep.subr.bf16.mxu0 0
        %3047 = vmatpush1.bf16.msra.mxu0 0
        %3048 = vmatprep.subr.bf16.mxu0 0
        %3049 = vmatpush1.bf16.msra.mxu0 0
        %3050 = vmatprep.subr.bf16.mxu0 0
        %3051 = vmatpush1.bf16.msra.mxu0 0
        %3052 = vmatprep.subr.bf16.mxu0 0
        %3053 = vmatpush1.bf16.msra.mxu0 0
        %3054 = vmatprep.subr.bf16.mxu0 0
        %3055 = vmatpush1.bf16.msra.mxu0 0
        %3056 = vmatprep.subr.bf16.mxu0 0
        %3057 = vmatpush1.bf16.msra.mxu0 0
        %3058 = vmatprep.subr.bf16.mxu0 0
        %3059 = vmatpush1.bf16.msra.mxu0 0
        %3060 = vmatprep.subr.bf16.mxu0 0
        %3061 = vmatpush1.bf16.msra.mxu0 0
        %3062 = vmatprep.subr.bf16.mxu0 0
        %3063 = vmatpush1.bf16.msra.mxu0 0
        %3064 = vmatprep.subr.bf16.mxu0 0
        %3065 = vmatpush1.bf16.msra.mxu0 0
        %3066 = vmatprep.mubr.bf16.mxu0 0
        %3067 = vmatmul.mubr.bf16.gmra.mrb[0].mxu0 %v3029
        %v3068 = vpop.f32.mrb[0].mxu0
        %v3069 = vadd.f32 0.0, %v3068
        %v3070 = vpop.f32.mrb[0].mxu0
        %v3071 = vpop.f32.mrb[0].mxu0
        %v3072 = vpop.f32.mrb[0].mxu0
        %3073 = vdwg.mxu0
        %3074 = vrot.lane.b32.xlu0 %v675, 48
        %v3075 = vpop.permute.xlu0 %3074
        %v3077 = vsel %vm683, %v2925, 0
        %v3080 = vsel %vm1174, %v3075, 0
        %3082 = vmatprep.subr.bf16.mxu0 0
        %3083 = vmatpush1.bf16.msra.mxu0 %v3080
        %3084 = vmatprep.subr.bf16.mxu0 0
        %3085 = vmatpush1.bf16.msra.mxu0 0
        %3086 = vmatprep.subr.bf16.mxu0 0
        %3087 = vmatpush1.bf16.msra.mxu0 0
        %3088 = vmatprep.subr.bf16.mxu0 0
        %3089 = vmatpush1.bf16.msra.mxu0 0
        %3090 = vmatprep.subr.bf16.mxu0 0
        %3091 = vmatpush1.bf16.msra.mxu0 0
        %3092 = vmatprep.subr.bf16.mxu0 0
        %3093 = vmatpush1.bf16.msra.mxu0 0
        %3094 = vmatprep.subr.bf16.mxu0 0
        %3095 = vmatpush1.bf16.msra.mxu0 0
        %3096 = vmatprep.subr.bf16.mxu0 0
        %3097 = vmatpush1.bf16.msra.mxu0 0
        %3098 = vmatprep.subr.bf16.mxu0 0
        %3099 = vmatpush1.bf16.msra.mxu0 0
        %3100 = vmatprep.subr.bf16.mxu0 0
        %3101 = vmatpush1.bf16.msra.mxu0 0
        %3102 = vmatprep.subr.bf16.mxu0 0
        %3103 = vmatpush1.bf16.msra.mxu0 0
        %3104 = vmatprep.subr.bf16.mxu0 0
        %3105 = vmatpush1.bf16.msra.mxu0 0
        %3106 = vmatprep.subr.bf16.mxu0 0
        %3107 = vmatpush1.bf16.msra.mxu0 0
        %3108 = vmatprep.subr.bf16.mxu0 0
        %3109 = vmatpush1.bf16.msra.mxu0 0
        %3110 = vmatprep.subr.bf16.mxu0 0
        %3111 = vmatpush1.bf16.msra.mxu0 0
        %3112 = vmatprep.subr.bf16.mxu0 0
        %3113 = vmatpush1.bf16.msra.mxu0 0
        %3114 = vmatprep.mubr.bf16.mxu0 0
        %3115 = vmatmul.mubr.bf16.gmra.mrb[0].mxu0 %v3077
        %v3116 = vpop.f32.mrb[0].mxu0
        %v3117 = vadd.f32 0.0, %v3116
        %v3118 = vpop.f32.mrb[0].mxu0
        %v3119 = vpop.f32.mrb[0].mxu0
        %v3120 = vpop.f32.mrb[0].mxu0
        %3121 = vdwg.mxu0
        %3122 = vrot.lane.b32.xlu0 %v676, 48
        %v3123 = vpop.permute.xlu0 %3122
        %v3125 = vsel %vm683, %v2926, 0
        %v3128 = vsel %vm1174, %v3123, 0
        %3130 = vmatprep.subr.bf16.mxu0 0
        %3131 = vmatpush1.bf16.msra.mxu0 %v3128
        %3132 = vmatprep.subr.bf16.mxu0 0
        %3133 = vmatpush1.bf16.msra.mxu0 0
        %3134 = vmatprep.subr.bf16.mxu0 0
        %3135 = vmatpush1.bf16.msra.mxu0 0
        %3136 = vmatprep.subr.bf16.mxu0 0
        %3137 = vmatpush1.bf16.msra.mxu0 0
        %3138 = vmatprep.subr.bf16.mxu0 0
        %3139 = vmatpush1.bf16.msra.mxu0 0
        %3140 = vmatprep.subr.bf16.mxu0 0
        %3141 = vmatpush1.bf16.msra.mxu0 0
        %3142 = vmatprep.subr.bf16.mxu0 0
        %3143 = vmatpush1.bf16.msra.mxu0 0
        %3144 = vmatprep.subr.bf16.mxu0 0
        %3145 = vmatpush1.bf16.msra.mxu0 0
        %3146 = vmatprep.subr.bf16.mxu0 0
        %3147 = vmatpush1.bf16.msra.mxu0 0
        %3148 = vmatprep.subr.bf16.mxu0 0
        %3149 = vmatpush1.bf16.msra.mxu0 0
        %3150 = vmatprep.subr.bf16.mxu0 0
        %3151 = vmatpush1.bf16.msra.mxu0 0
        %3152 = vmatprep.subr.bf16.mxu0 0
        %3153 = vmatpush1.bf16.msra.mxu0 0
        %3154 = vmatprep.subr.bf16.mxu0 0
        %3155 = vmatpush1.bf16.msra.mxu0 0
        %3156 = vmatprep.subr.bf16.mxu0 0
        %3157 = vmatpush1.bf16.msra.mxu0 0
        %3158 = vmatprep.subr.bf16.mxu0 0
        %3159 = vmatpush1.bf16.msra.mxu0 0
        %3160 = vmatprep.subr.bf16.mxu0 0
        %3161 = vmatpush1.bf16.msra.mxu0 0
        %3162 = vmatprep.mubr.bf16.mxu0 0
        %3163 = vmatmul.mubr.bf16.gmra.mrb[0].mxu0 %v3125
        %v3164 = vpop.f32.mrb[0].mxu0
        %v3165 = vadd.f32 0.0, %v3164
        %v3166 = vpop.f32.mrb[0].mxu0
        %v3167 = vpop.f32.mrb[0].mxu0
        %v3168 = vpop.f32.mrb[0].mxu0
        %3169 = vdwg.mxu0
        %3170 = vrot.lane.b32.xlu0 %v677, 48
        %v3171 = vpop.permute.xlu0 %3170
        %v3173 = vsel %vm683, %v2927, 0
        %v3176 = vsel %vm1174, %v3171, 0
        %3178 = vmatprep.subr.bf16.mxu0 0
        %3179 = vmatpush1.bf16.msra.mxu0 %v3176
        %3180 = vmatprep.subr.bf16.mxu0 0
        %3181 = vmatpush1.bf16.msra.mxu0 0
        %3182 = vmatprep.subr.bf16.mxu0 0
        %3183 = vmatpush1.bf16.msra.mxu0 0
        %3184 = vmatprep.subr.bf16.mxu0 0
        %3185 = vmatpush1.bf16.msra.mxu0 0
        %3186 = vmatprep.subr.bf16.mxu0 0
        %3187 = vmatpush1.bf16.msra.mxu0 0
        %3188 = vmatprep.subr.bf16.mxu0 0
        %3189 = vmatpush1.bf16.msra.mxu0 0
        %3190 = vmatprep.subr.bf16.mxu0 0
        %3191 = vmatpush1.bf16.msra.mxu0 0
        %3192 = vmatprep.subr.bf16.mxu0 0
        %3193 = vmatpush1.bf16.msra.mxu0 0
        %3194 = vmatprep.subr.bf16.mxu0 0
        %3195 = vmatpush1.bf16.msra.mxu0 0
        %3196 = vmatprep.subr.bf16.mxu0 0
        %3197 = vmatpush1.bf16.msra.mxu0 0
        %3198 = vmatprep.subr.bf16.mxu0 0
        %3199 = vmatpush1.bf16.msra.mxu0 0
        %3200 = vmatprep.subr.bf16.mxu0 0
        %3201 = vmatpush1.bf16.msra.mxu0 0
        %3202 = vmatprep.subr.bf16.mxu0 0
        %3203 = vmatpush1.bf16.msra.mxu0 0
        %3204 = vmatprep.subr.bf16.mxu0 0
        %3205 = vmatpush1.bf16.msra.mxu0 0
        %3206 = vmatprep.subr.bf16.mxu0 0
        %3207 = vmatpush1.bf16.msra.mxu0 0
        %3208 = vmatprep.subr.bf16.mxu0 0
        %3209 = vmatpush1.bf16.msra.mxu0 0
        %3210 = vmatprep.mubr.bf16.mxu0 0
        %3211 = vmatmul.mubr.bf16.gmra.mrb[0].mxu0 %v3173
        %v3212 = vpop.f32.mrb[0].mxu0
        %v3213 = vadd.f32 0.0, %v3212
        %v3214 = vpop.f32.mrb[0].mxu0
        %v3215 = vpop.f32.mrb[0].mxu0
        %v3216 = vpop.f32.mrb[0].mxu0
        %3217 = vdwg.mxu0
        %3218 = vrot.lane.b32.xlu0 %v678, 48
        %v3219 = vpop.permute.xlu0 %3218
        %v3221 = vsel %vm683, %v2928, 0
        %v3224 = vsel %vm1174, %v3219, 0
        %3226 = vmatprep.subr.bf16.mxu0 0
        %3227 = vmatpush1.bf16.msra.mxu0 %v3224
        %3228 = vmatprep.subr.bf16.mxu0 0
        %3229 = vmatpush1.bf16.msra.mxu0 0
        %3230 = vmatprep.subr.bf16.mxu0 0
        %3231 = vmatpush1.bf16.msra.mxu0 0
        %3232 = vmatprep.subr.bf16.mxu0 0
        %3233 = vmatpush1.bf16.msra.mxu0 0
        %3234 = vmatprep.subr.bf16.mxu0 0
        %3235 = vmatpush1.bf16.msra.mxu0 0
        %3236 = vmatprep.subr.bf16.mxu0 0
        %3237 = vmatpush1.bf16.msra.mxu0 0
        %3238 = vmatprep.subr.bf16.mxu0 0
        %3239 = vmatpush1.bf16.msra.mxu0 0
        %3240 = vmatprep.subr.bf16.mxu0 0
        %3241 = vmatpush1.bf16.msra.mxu0 0
        %3242 = vmatprep.subr.bf16.mxu0 0
        %3243 = vmatpush1.bf16.msra.mxu0 0
        %3244 = vmatprep.subr.bf16.mxu0 0
        %3245 = vmatpush1.bf16.msra.mxu0 0
        %3246 = vmatprep.subr.bf16.mxu0 0
        %3247 = vmatpush1.bf16.msra.mxu0 0
        %3248 = vmatprep.subr.bf16.mxu0 0
        %3249 = vmatpush1.bf16.msra.mxu0 0
        %3250 = vmatprep.subr.bf16.mxu0 0
        %3251 = vmatpush1.bf16.msra.mxu0 0
        %3252 = vmatprep.subr.bf16.mxu0 0
        %3253 = vmatpush1.bf16.msra.mxu0 0
        %3254 = vmatprep.subr.bf16.mxu0 0
        %3255 = vmatpush1.bf16.msra.mxu0 0
        %3256 = vmatprep.subr.bf16.mxu0 0
        %3257 = vmatpush1.bf16.msra.mxu0 0
        %3258 = vmatprep.mubr.bf16.mxu0 0
        %3259 = vmatmul.mubr.bf16.gmra.mrb[0].mxu0 %v3221
        %v3260 = vpop.f32.mrb[0].mxu0
        %v3261 = vadd.f32 0.0, %v3260
        %v3262 = vpop.f32.mrb[0].mxu0
        %v3263 = vpop.f32.mrb[0].mxu0
        %v3264 = vpop.f32.mrb[0].mxu0
        %3265 = vdwg.mxu0
        %3266 = vrot.lane.b32.xlu0 %v679, 48
        %v3267 = vpop.permute.xlu0 %3266
        %v3269 = vsel %vm683, %v2929, 0
        %v3272 = vsel %vm1174, %v3267, 0
        %3274 = vmatprep.subr.bf16.mxu0 0
        %3275 = vmatpush1.bf16.msra.mxu0 %v3272
        %3276 = vmatprep.subr.bf16.mxu0 0
        %3277 = vmatpush1.bf16.msra.mxu0 0
        %3278 = vmatprep.subr.bf16.mxu0 0
        %3279 = vmatpush1.bf16.msra.mxu0 0
        %3280 = vmatprep.subr.bf16.mxu0 0
        %3281 = vmatpush1.bf16.msra.mxu0 0
        %3282 = vmatprep.subr.bf16.mxu0 0
        %3283 = vmatpush1.bf16.msra.mxu0 0
        %3284 = vmatprep.subr.bf16.mxu0 0
        %3285 = vmatpush1.bf16.msra.mxu0 0
        %3286 = vmatprep.subr.bf16.mxu0 0
        %3287 = vmatpush1.bf16.msra.mxu0 0
        %3288 = vmatprep.subr.bf16.mxu0 0
        %3289 = vmatpush1.bf16.msra.mxu0 0
        %3290 = vmatprep.subr.bf16.mxu0 0
        %3291 = vmatpush1.bf16.msra.mxu0 0
        %3292 = vmatprep.subr.bf16.mxu0 0
        %3293 = vmatpush1.bf16.msra.mxu0 0
        %3294 = vmatprep.subr.bf16.mxu0 0
        %3295 = vmatpush1.bf16.msra.mxu0 0
        %3296 = vmatprep.subr.bf16.mxu0 0
        %3297 = vmatpush1.bf16.msra.mxu0 0
        %3298 = vmatprep.subr.bf16.mxu0 0
        %3299 = vmatpush1.bf16.msra.mxu0 0
        %3300 = vmatprep.subr.bf16.mxu0 0
        %3301 = vmatpush1.bf16.msra.mxu0 0
        %3302 = vmatprep.subr.bf16.mxu0 0
        %3303 = vmatpush1.bf16.msra.mxu0 0
        %3304 = vmatprep.subr.bf16.mxu0 0
        %3305 = vmatpush1.bf16.msra.mxu0 0
        %3306 = vmatprep.mubr.bf16.mxu0 0
        %3307 = vmatmul.mubr.bf16.gmra.mrb[0].mxu0 %v3269
        %v3308 = vpop.f32.mrb[0].mxu0
        %v3309 = vadd.f32 0.0, %v3308
        %v3310 = vpop.f32.mrb[0].mxu0
        %v3311 = vpop.f32.mrb[0].mxu0
        %v3312 = vpop.f32.mrb[0].mxu0
        %3313 = vdwg.mxu0
        %3314 = vrot.lane.b32.xlu0 %v672, 104
        %v3315 = vpop.permute.xlu0 %3314
        %3316 = vrot.lane.b32.xlu0 %v672, 72
        %v3317 = vpop.permute.xlu0 %3316
        %v3319 = vsel %vm683, %v3315, 0
        %v3322 = vsel %vm683, %v3317, 0
        %3324 = vmatprep.subr.bf16.mxu0 0
        %3325 = vmatpush1.bf16.xpose.msra.mxu0 %v3322
        %3326 = vmatprep.subr.bf16.mxu0 0
        %3327 = vmatpush1.bf16.xpose.msra.mxu0 0
        %3328 = vmatprep.subr.bf16.mxu0 0
        %3329 = vmatpush1.bf16.xpose.msra.mxu0 0
        %3330 = vmatprep.subr.bf16.mxu0 0
        %3331 = vmatpush1.bf16.xpose.msra.mxu0 0
        %3332 = vmatprep.subr.bf16.mxu0 0
        %3333 = vmatpush1.bf16.xpose.msra.mxu0 0
        %3334 = vmatprep.subr.bf16.mxu0 0
        %3335 = vmatpush1.bf16.xpose.msra.mxu0 0
        %3336 = vmatprep.subr.bf16.mxu0 0
        %3337 = vmatpush1.bf16.xpose.msra.mxu0 0
        %3338 = vmatprep.subr.bf16.mxu0 0
        %3339 = vmatpush1.bf16.xpose.msra.mxu0 0
        %3340 = vmatprep.subr.bf16.mxu0 0
        %3341 = vmatpush1.bf16.xpose.msra.mxu0 0
        %3342 = vmatprep.subr.bf16.mxu0 0
        %3343 = vmatpush1.bf16.xpose.msra.mxu0 0
        %3344 = vmatprep.subr.bf16.mxu0 0
        %3345 = vmatpush1.bf16.xpose.msra.mxu0 0
        %3346 = vmatprep.subr.bf16.mxu0 0
        %3347 = vmatpush1.bf16.xpose.msra.mxu0 0
        %3348 = vmatprep.subr.bf16.mxu0 0
        %3349 = vmatpush1.bf16.xpose.msra.mxu0 0
        %3350 = vmatprep.subr.bf16.mxu0 0
        %3351 = vmatpush1.bf16.xpose.msra.mxu0 0
        %3352 = vmatprep.subr.bf16.mxu0 0
        %3353 = vmatpush1.bf16.xpose.msra.mxu0 0
        %3354 = vmatprep.subr.bf16.mxu0 0
        %3355 = vmatpush1.bf16.xpose.msra.mxu0 0
        %3356 = vmatprep.mubr.bf16.mxu0 0
        %3357 = vmatmul.mubr.bf16.gmra.mrb[0].mxu0 %v3319
        %v3358 = vpop.f32.mrb[0].mxu0
        %v3359 = vadd.f32 0.0, %v3358
        %v3360 = vpop.f32.mrb[0].mxu0
        %v3361 = vpop.f32.mrb[0].mxu0
        %v3362 = vpop.f32.mrb[0].mxu0
        %3363 = vdwg.mxu0
        %3364 = vrot.lane.b32.xlu0 %v673, 104
        %v3365 = vpop.permute.xlu0 %3364
        %3366 = vrot.lane.b32.xlu0 %v673, 72
        %v3367 = vpop.permute.xlu0 %3366
        %v3369 = vsel %vm683, %v3365, 0
        %v3372 = vsel %vm683, %v3367, 0
        %3374 = vmatprep.subr.bf16.mxu0 0
        %3375 = vmatpush1.bf16.xpose.msra.mxu0 %v3372
        %3376 = vmatprep.subr.bf16.mxu0 0
        %3377 = vmatpush1.bf16.xpose.msra.mxu0 0
        %3378 = vmatprep.subr.bf16.mxu0 0
        %3379 = vmatpush1.bf16.xpose.msra.mxu0 0
        %3380 = vmatprep.subr.bf16.mxu0 0
        %3381 = vmatpush1.bf16.xpose.msra.mxu0 0
        %3382 = vmatprep.subr.bf16.mxu0 0
        %3383 = vmatpush1.bf16.xpose.msra.mxu0 0
        %3384 = vmatprep.subr.bf16.mxu0 0
        %3385 = vmatpush1.bf16.xpose.msra.mxu0 0
        %3386 = vmatprep.subr.bf16.mxu0 0
        %3387 = vmatpush1.bf16.xpose.msra.mxu0 0
        %3388 = vmatprep.subr.bf16.mxu0 0
        %3389 = vmatpush1.bf16.xpose.msra.mxu0 0
        %3390 = vmatprep.subr.bf16.mxu0 0
        %3391 = vmatpush1.bf16.xpose.msra.mxu0 0
        %3392 = vmatprep.subr.bf16.mxu0 0
        %3393 = vmatpush1.bf16.xpose.msra.mxu0 0
        %3394 = vmatprep.subr.bf16.mxu0 0
        %3395 = vmatpush1.bf16.xpose.msra.mxu0 0
        %3396 = vmatprep.subr.bf16.mxu0 0
        %3397 = vmatpush1.bf16.xpose.msra.mxu0 0
        %3398 = vmatprep.subr.bf16.mxu0 0
        %3399 = vmatpush1.bf16.xpose.msra.mxu0 0
        %3400 = vmatprep.subr.bf16.mxu0 0
        %3401 = vmatpush1.bf16.xpose.msra.mxu0 0
        %3402 = vmatprep.subr.bf16.mxu0 0
        %3403 = vmatpush1.bf16.xpose.msra.mxu0 0
        %3404 = vmatprep.subr.bf16.mxu0 0
        %3405 = vmatpush1.bf16.xpose.msra.mxu0 0
        %3406 = vmatprep.mubr.bf16.mxu0 0
        %3407 = vmatmul.mubr.bf16.gmra.mrb[0].mxu0 %v3369
        %v3408 = vpop.f32.mrb[0].mxu0
        %v3409 = vadd.f32 0.0, %v3408
        %v3410 = vpop.f32.mrb[0].mxu0
        %v3411 = vpop.f32.mrb[0].mxu0
        %v3412 = vpop.f32.mrb[0].mxu0
        %3413 = vdwg.mxu0
        %3414 = vrot.lane.b32.xlu0 %v674, 104
        %v3415 = vpop.permute.xlu0 %3414
        %3416 = vrot.lane.b32.xlu0 %v674, 72
        %v3417 = vpop.permute.xlu0 %3416
        %v3419 = vsel %vm683, %v3415, 0
        %v3422 = vsel %vm683, %v3417, 0
        %3424 = vmatprep.subr.bf16.mxu0 0
        %3425 = vmatpush1.bf16.xpose.msra.mxu0 %v3422
        %3426 = vmatprep.subr.bf16.mxu0 0
        %3427 = vmatpush1.bf16.xpose.msra.mxu0 0
        %3428 = vmatprep.subr.bf16.mxu0 0
        %3429 = vmatpush1.bf16.xpose.msra.mxu0 0
        %3430 = vmatprep.subr.bf16.mxu0 0
        %3431 = vmatpush1.bf16.xpose.msra.mxu0 0
        %3432 = vmatprep.subr.bf16.mxu0 0
        %3433 = vmatpush1.bf16.xpose.msra.mxu0 0
        %3434 = vmatprep.subr.bf16.mxu0 0
        %3435 = vmatpush1.bf16.xpose.msra.mxu0 0
        %3436 = vmatprep.subr.bf16.mxu0 0
        %3437 = vmatpush1.bf16.xpose.msra.mxu0 0
        %3438 = vmatprep.subr.bf16.mxu0 0
        %3439 = vmatpush1.bf16.xpose.msra.mxu0 0
        %3440 = vmatprep.subr.bf16.mxu0 0
        %3441 = vmatpush1.bf16.xpose.msra.mxu0 0
        %3442 = vmatprep.subr.bf16.mxu0 0
        %3443 = vmatpush1.bf16.xpose.msra.mxu0 0
        %3444 = vmatprep.subr.bf16.mxu0 0
        %3445 = vmatpush1.bf16.xpose.msra.mxu0 0
        %3446 = vmatprep.subr.bf16.mxu0 0
        %3447 = vmatpush1.bf16.xpose.msra.mxu0 0
        %3448 = vmatprep.subr.bf16.mxu0 0
        %3449 = vmatpush1.bf16.xpose.msra.mxu0 0
        %3450 = vmatprep.subr.bf16.mxu0 0
        %3451 = vmatpush1.bf16.xpose.msra.mxu0 0
        %3452 = vmatprep.subr.bf16.mxu0 0
        %3453 = vmatpush1.bf16.xpose.msra.mxu0 0
        %3454 = vmatprep.subr.bf16.mxu0 0
        %3455 = vmatpush1.bf16.xpose.msra.mxu0 0
        %3456 = vmatprep.mubr.bf16.mxu0 0
        %3457 = vmatmul.mubr.bf16.gmra.mrb[0].mxu0 %v3419
        %v3458 = vpop.f32.mrb[0].mxu0
        %v3459 = vadd.f32 0.0, %v3458
        %v3460 = vpop.f32.mrb[0].mxu0
        %v3461 = vpop.f32.mrb[0].mxu0
        %v3462 = vpop.f32.mrb[0].mxu0
        %3463 = vdwg.mxu0
        %3464 = vrot.lane.b32.xlu0 %v675, 104
        %v3465 = vpop.permute.xlu0 %3464
        %3466 = vrot.lane.b32.xlu0 %v675, 72
        %v3467 = vpop.permute.xlu0 %3466
        %v3469 = vsel %vm683, %v3465, 0
        %v3472 = vsel %vm683, %v3467, 0
        %3474 = vmatprep.subr.bf16.mxu0 0
        %3475 = vmatpush1.bf16.xpose.msra.mxu0 %v3472
        %3476 = vmatprep.subr.bf16.mxu0 0
        %3477 = vmatpush1.bf16.xpose.msra.mxu0 0
        %3478 = vmatprep.subr.bf16.mxu0 0
        %3479 = vmatpush1.bf16.xpose.msra.mxu0 0
        %3480 = vmatprep.subr.bf16.mxu0 0
        %3481 = vmatpush1.bf16.xpose.msra.mxu0 0
        %3482 = vmatprep.subr.bf16.mxu0 0
        %3483 = vmatpush1.bf16.xpose.msra.mxu0 0
        %3484 = vmatprep.subr.bf16.mxu0 0
        %3485 = vmatpush1.bf16.xpose.msra.mxu0 0
        %3486 = vmatprep.subr.bf16.mxu0 0
        %3487 = vmatpush1.bf16.xpose.msra.mxu0 0
        %3488 = vmatprep.subr.bf16.mxu0 0
        %3489 = vmatpush1.bf16.xpose.msra.mxu0 0
        %3490 = vmatprep.subr.bf16.mxu0 0
        %3491 = vmatpush1.bf16.xpose.msra.mxu0 0
        %3492 = vmatprep.subr.bf16.mxu0 0
        %3493 = vmatpush1.bf16.xpose.msra.mxu0 0
        %3494 = vmatprep.subr.bf16.mxu0 0
        %3495 = vmatpush1.bf16.xpose.msra.mxu0 0
        %3496 = vmatprep.subr.bf16.mxu0 0
        %3497 = vmatpush1.bf16.xpose.msra.mxu0 0
        %3498 = vmatprep.subr.bf16.mxu0 0
        %3499 = vmatpush1.bf16.xpose.msra.mxu0 0
        %3500 = vmatprep.subr.bf16.mxu0 0
        %3501 = vmatpush1.bf16.xpose.msra.mxu0 0
        %3502 = vmatprep.subr.bf16.mxu0 0
        %3503 = vmatpush1.bf16.xpose.msra.mxu0 0
        %3504 = vmatprep.subr.bf16.mxu0 0
        %3505 = vmatpush1.bf16.xpose.msra.mxu0 0
        %3506 = vmatprep.mubr.bf16.mxu0 0
        %3507 = vmatmul.mubr.bf16.gmra.mrb[0].mxu0 %v3469
        %v3508 = vpop.f32.mrb[0].mxu0
        %v3509 = vadd.f32 0.0, %v3508
        %v3510 = vpop.f32.mrb[0].mxu0
        %v3511 = vpop.f32.mrb[0].mxu0
        %v3512 = vpop.f32.mrb[0].mxu0
        %3513 = vdwg.mxu0
        %3514 = vrot.lane.b32.xlu0 %v676, 104
        %v3515 = vpop.permute.xlu0 %3514
        %3516 = vrot.lane.b32.xlu0 %v676, 72
        %v3517 = vpop.permute.xlu0 %3516
        %v3519 = vsel %vm683, %v3515, 0
        %v3522 = vsel %vm683, %v3517, 0
        %3524 = vmatprep.subr.bf16.mxu0 0
        %3525 = vmatpush1.bf16.xpose.msra.mxu0 %v3522
        %3526 = vmatprep.subr.bf16.mxu0 0
        %3527 = vmatpush1.bf16.xpose.msra.mxu0 0
        %3528 = vmatprep.subr.bf16.mxu0 0
        %3529 = vmatpush1.bf16.xpose.msra.mxu0 0
        %3530 = vmatprep.subr.bf16.mxu0 0
        %3531 = vmatpush1.bf16.xpose.msra.mxu0 0
        %3532 = vmatprep.subr.bf16.mxu0 0
        %3533 = vmatpush1.bf16.xpose.msra.mxu0 0
        %3534 = vmatprep.subr.bf16.mxu0 0
        %3535 = vmatpush1.bf16.xpose.msra.mxu0 0
        %3536 = vmatprep.subr.bf16.mxu0 0
        %3537 = vmatpush1.bf16.xpose.msra.mxu0 0
        %3538 = vmatprep.subr.bf16.mxu0 0
        %3539 = vmatpush1.bf16.xpose.msra.mxu0 0
        %3540 = vmatprep.subr.bf16.mxu0 0
        %3541 = vmatpush1.bf16.xpose.msra.mxu0 0
        %3542 = vmatprep.subr.bf16.mxu0 0
        %3543 = vmatpush1.bf16.xpose.msra.mxu0 0
        %3544 = vmatprep.subr.bf16.mxu0 0
        %3545 = vmatpush1.bf16.xpose.msra.mxu0 0
        %3546 = vmatprep.subr.bf16.mxu0 0
        %3547 = vmatpush1.bf16.xpose.msra.mxu0 0
        %3548 = vmatprep.subr.bf16.mxu0 0
        %3549 = vmatpush1.bf16.xpose.msra.mxu0 0
        %3550 = vmatprep.subr.bf16.mxu0 0
        %3551 = vmatpush1.bf16.xpose.msra.mxu0 0
        %3552 = vmatprep.subr.bf16.mxu0 0
        %3553 = vmatpush1.bf16.xpose.msra.mxu0 0
        %3554 = vmatprep.subr.bf16.mxu0 0
        %3555 = vmatpush1.bf16.xpose.msra.mxu0 0
        %3556 = vmatprep.mubr.bf16.mxu0 0
        %3557 = vmatmul.mubr.bf16.gmra.mrb[0].mxu0 %v3519
        %v3558 = vpop.f32.mrb[0].mxu0
        %v3559 = vadd.f32 0.0, %v3558
        %v3560 = vpop.f32.mrb[0].mxu0
        %v3561 = vpop.f32.mrb[0].mxu0
        %v3562 = vpop.f32.mrb[0].mxu0
        %3563 = vdwg.mxu0
        %3564 = vrot.lane.b32.xlu0 %v677, 104
        %v3565 = vpop.permute.xlu0 %3564
        %3566 = vrot.lane.b32.xlu0 %v677, 72
        %v3567 = vpop.permute.xlu0 %3566
        %v3569 = vsel %vm683, %v3565, 0
        %v3572 = vsel %vm683, %v3567, 0
        %3574 = vmatprep.subr.bf16.mxu0 0
        %3575 = vmatpush1.bf16.xpose.msra.mxu0 %v3572
        %3576 = vmatprep.subr.bf16.mxu0 0
        %3577 = vmatpush1.bf16.xpose.msra.mxu0 0
        %3578 = vmatprep.subr.bf16.mxu0 0
        %3579 = vmatpush1.bf16.xpose.msra.mxu0 0
        %3580 = vmatprep.subr.bf16.mxu0 0
        %3581 = vmatpush1.bf16.xpose.msra.mxu0 0
        %3582 = vmatprep.subr.bf16.mxu0 0
        %3583 = vmatpush1.bf16.xpose.msra.mxu0 0
        %3584 = vmatprep.subr.bf16.mxu0 0
        %3585 = vmatpush1.bf16.xpose.msra.mxu0 0
        %3586 = vmatprep.subr.bf16.mxu0 0
        %3587 = vmatpush1.bf16.xpose.msra.mxu0 0
        %3588 = vmatprep.subr.bf16.mxu0 0
        %3589 = vmatpush1.bf16.xpose.msra.mxu0 0
        %3590 = vmatprep.subr.bf16.mxu0 0
        %3591 = vmatpush1.bf16.xpose.msra.mxu0 0
        %3592 = vmatprep.subr.bf16.mxu0 0
        %3593 = vmatpush1.bf16.xpose.msra.mxu0 0
        %3594 = vmatprep.subr.bf16.mxu0 0
        %3595 = vmatpush1.bf16.xpose.msra.mxu0 0
        %3596 = vmatprep.subr.bf16.mxu0 0
        %3597 = vmatpush1.bf16.xpose.msra.mxu0 0
        %3598 = vmatprep.subr.bf16.mxu0 0
        %3599 = vmatpush1.bf16.xpose.msra.mxu0 0
        %3600 = vmatprep.subr.bf16.mxu0 0
        %3601 = vmatpush1.bf16.xpose.msra.mxu0 0
        %3602 = vmatprep.subr.bf16.mxu0 0
        %3603 = vmatpush1.bf16.xpose.msra.mxu0 0
        %3604 = vmatprep.subr.bf16.mxu0 0
        %3605 = vmatpush1.bf16.xpose.msra.mxu0 0
        %3606 = vmatprep.mubr.bf16.mxu0 0
        %3607 = vmatmul.mubr.bf16.gmra.mrb[0].mxu0 %v3569
        %v3608 = vpop.f32.mrb[0].mxu0
        %v3609 = vadd.f32 0.0, %v3608
        %v3610 = vpop.f32.mrb[0].mxu0
        %v3611 = vpop.f32.mrb[0].mxu0
        %v3612 = vpop.f32.mrb[0].mxu0
        %3613 = vdwg.mxu0
        %3614 = vrot.lane.b32.xlu0 %v678, 104
        %v3615 = vpop.permute.xlu0 %3614
        %3616 = vrot.lane.b32.xlu0 %v678, 72
        %v3617 = vpop.permute.xlu0 %3616
        %v3619 = vsel %vm683, %v3615, 0
        %v3622 = vsel %vm683, %v3617, 0
        %3624 = vmatprep.subr.bf16.mxu0 0
        %3625 = vmatpush1.bf16.xpose.msra.mxu0 %v3622
        %3626 = vmatprep.subr.bf16.mxu0 0
        %3627 = vmatpush1.bf16.xpose.msra.mxu0 0
        %3628 = vmatprep.subr.bf16.mxu0 0
        %3629 = vmatpush1.bf16.xpose.msra.mxu0 0
        %3630 = vmatprep.subr.bf16.mxu0 0
        %3631 = vmatpush1.bf16.xpose.msra.mxu0 0
        %3632 = vmatprep.subr.bf16.mxu0 0
        %3633 = vmatpush1.bf16.xpose.msra.mxu0 0
        %3634 = vmatprep.subr.bf16.mxu0 0
        %3635 = vmatpush1.bf16.xpose.msra.mxu0 0
        %3636 = vmatprep.subr.bf16.mxu0 0
        %3637 = vmatpush1.bf16.xpose.msra.mxu0 0
        %3638 = vmatprep.subr.bf16.mxu0 0
        %3639 = vmatpush1.bf16.xpose.msra.mxu0 0
        %3640 = vmatprep.subr.bf16.mxu0 0
        %3641 = vmatpush1.bf16.xpose.msra.mxu0 0
        %3642 = vmatprep.subr.bf16.mxu0 0
        %3643 = vmatpush1.bf16.xpose.msra.mxu0 0
        %3644 = vmatprep.subr.bf16.mxu0 0
        %3645 = vmatpush1.bf16.xpose.msra.mxu0 0
        %3646 = vmatprep.subr.bf16.mxu0 0
        %3647 = vmatpush1.bf16.xpose.msra.mxu0 0
        %3648 = vmatprep.subr.bf16.mxu0 0
        %3649 = vmatpush1.bf16.xpose.msra.mxu0 0
        %3650 = vmatprep.subr.bf16.mxu0 0
        %3651 = vmatpush1.bf16.xpose.msra.mxu0 0
        %3652 = vmatprep.subr.bf16.mxu0 0
        %3653 = vmatpush1.bf16.xpose.msra.mxu0 0
        %3654 = vmatprep.subr.bf16.mxu0 0
        %3655 = vmatpush1.bf16.xpose.msra.mxu0 0
        %3656 = vmatprep.mubr.bf16.mxu0 0
        %3657 = vmatmul.mubr.bf16.gmra.mrb[0].mxu0 %v3619
        %v3658 = vpop.f32.mrb[0].mxu0
        %v3659 = vadd.f32 0.0, %v3658
        %v3660 = vpop.f32.mrb[0].mxu0
        %v3661 = vpop.f32.mrb[0].mxu0
        %v3662 = vpop.f32.mrb[0].mxu0
        %3663 = vdwg.mxu0
        %3664 = vrot.lane.b32.xlu0 %v679, 104
        %v3665 = vpop.permute.xlu0 %3664
        %3666 = vrot.lane.b32.xlu0 %v679, 72
        %v3667 = vpop.permute.xlu0 %3666
        %v3669 = vsel %vm683, %v3665, 0
        %v3672 = vsel %vm683, %v3667, 0
        %3674 = vmatprep.subr.bf16.mxu0 0
        %3675 = vmatpush1.bf16.xpose.msra.mxu0 %v3672
        %3676 = vmatprep.subr.bf16.mxu0 0
        %3677 = vmatpush1.bf16.xpose.msra.mxu0 0
        %3678 = vmatprep.subr.bf16.mxu0 0
        %3679 = vmatpush1.bf16.xpose.msra.mxu0 0
        %3680 = vmatprep.subr.bf16.mxu0 0
        %3681 = vmatpush1.bf16.xpose.msra.mxu0 0
        %3682 = vmatprep.subr.bf16.mxu0 0
        %3683 = vmatpush1.bf16.xpose.msra.mxu0 0
        %3684 = vmatprep.subr.bf16.mxu0 0
        %3685 = vmatpush1.bf16.xpose.msra.mxu0 0
        %3686 = vmatprep.subr.bf16.mxu0 0
        %3687 = vmatpush1.bf16.xpose.msra.mxu0 0
        %3688 = vmatprep.subr.bf16.mxu0 0
        %3689 = vmatpush1.bf16.xpose.msra.mxu0 0
        %3690 = vmatprep.subr.bf16.mxu0 0
        %3691 = vmatpush1.bf16.xpose.msra.mxu0 0
        %3692 = vmatprep.subr.bf16.mxu0 0
        %3693 = vmatpush1.bf16.xpose.msra.mxu0 0
        %3694 = vmatprep.subr.bf16.mxu0 0
        %3695 = vmatpush1.bf16.xpose.msra.mxu0 0
        %3696 = vmatprep.subr.bf16.mxu0 0
        %3697 = vmatpush1.bf16.xpose.msra.mxu0 0
        %3698 = vmatprep.subr.bf16.mxu0 0
        %3699 = vmatpush1.bf16.xpose.msra.mxu0 0
        %3700 = vmatprep.subr.bf16.mxu0 0
        %3701 = vmatpush1.bf16.xpose.msra.mxu0 0
        %3702 = vmatprep.subr.bf16.mxu0 0
        %3703 = vmatpush1.bf16.xpose.msra.mxu0 0
        %3704 = vmatprep.subr.bf16.mxu0 0
        %3705 = vmatpush1.bf16.xpose.msra.mxu0 0
        %3706 = vmatprep.mubr.bf16.mxu0 0
        %3707 = vmatmul.mubr.bf16.gmra.mrb[0].mxu0 %v3669
        %v3708 = vpop.f32.mrb[0].mxu0
        %v3709 = vadd.f32 0.0, %v3708
        %v3710 = vpop.f32.mrb[0].mxu0
        %v3711 = vpop.f32.mrb[0].mxu0
        %v3712 = vpop.f32.mrb[0].mxu0
        %3713 = vdwg.mxu0
        %v3714 = vsel %vm683, %v3359, -inf
        %3715 = vmax.xlane.f32.xlu0 %v3714
        %v3716 = vpop.xlane.xlu0 %3715
        %v3717 = vsel %vm683, %v3409, -inf
        %3718 = vmax.xlane.f32.xlu0 %v3717
        %v3719 = vpop.xlane.xlu0 %3718
        %v3720 = vsel %vm683, %v3459, -inf
        %3721 = vmax.xlane.f32.xlu0 %v3720
        %v3722 = vpop.xlane.xlu0 %3721
        %v3723 = vsel %vm683, %v3509, -inf
        %3724 = vmax.xlane.f32.xlu0 %v3723
        %v3725 = vpop.xlane.xlu0 %3724
        %v3726 = vsel %vm683, %v3559, -inf
        %3727 = vmax.xlane.f32.xlu0 %v3726
        %v3728 = vpop.xlane.xlu0 %3727
        %v3729 = vsel %vm683, %v3609, -inf
        %3730 = vmax.xlane.f32.xlu0 %v3729
        %v3731 = vpop.xlane.xlu0 %3730
        %v3732 = vsel %vm683, %v3659, -inf
        %3733 = vmax.xlane.f32.xlu0 %v3732
        %v3734 = vpop.xlane.xlu0 %3733
        %v3735 = vsel %vm683, %v3709, -inf
        %3736 = vmax.xlane.f32.xlu0 %v3735
        %v3737 = vpop.xlane.xlu0 %3736
        %v3738 = vsub.f32 %v3359, %v3716
        %v3739 = vsub.f32 %v3409, %v3719
        %v3740 = vsub.f32 %v3459, %v3722
        %v3741 = vsub.f32 %v3509, %v3725
        %v3742 = vsub.f32 %v3559, %v3728
        %v3743 = vsub.f32 %v3609, %v3731
        %v3744 = vsub.f32 %v3659, %v3734
        %v3745 = vsub.f32 %v3709, %v3737
        %v3746 = vmul.f32 %v3738, 1.442695
        %v3747 = vpow.pop %v3746
        %v3748 = vmul.f32 %v3739, 1.442695
        %v3749 = vpow.pop %v3748
        %v3750 = vmul.f32 %v3740, 1.442695
        %v3751 = vpow.pop %v3750
        %v3752 = vmul.f32 %v3741, 1.442695
        %v3753 = vpow.pop %v3752
        %v3754 = vmul.f32 %v3742, 1.442695
        %v3755 = vpow.pop %v3754
        %v3756 = vmul.f32 %v3743, 1.442695
        %v3757 = vpow.pop %v3756
        %v3758 = vmul.f32 %v3744, 1.442695
        %v3759 = vpow.pop %v3758
        %v3760 = vmul.f32 %v3745, 1.442695
        %v3761 = vpow.pop %v3760
        %v3762 = vsel %vm683, %v3747, 0.0
        %3763 = vadd.xlane.f32.xlu0 %v3762
        %v3764 = vpop.xlane.xlu0 %3763
        %v3765 = vsel %vm683, %v3749, 0.0
        %3766 = vadd.xlane.f32.xlu0 %v3765
        %v3767 = vpop.xlane.xlu0 %3766
        %v3768 = vsel %vm683, %v3751, 0.0
        %3769 = vadd.xlane.f32.xlu0 %v3768
        %v3770 = vpop.xlane.xlu0 %3769
        %v3771 = vsel %vm683, %v3753, 0.0
        %3772 = vadd.xlane.f32.xlu0 %v3771
        %v3773 = vpop.xlane.xlu0 %3772
        %v3774 = vsel %vm683, %v3755, 0.0
        %3775 = vadd.xlane.f32.xlu0 %v3774
        %v3776 = vpop.xlane.xlu0 %3775
        %v3777 = vsel %vm683, %v3757, 0.0
        %3778 = vadd.xlane.f32.xlu0 %v3777
        %v3779 = vpop.xlane.xlu0 %3778
        %v3780 = vsel %vm683, %v3759, 0.0
        %3781 = vadd.xlane.f32.xlu0 %v3780
        %v3782 = vpop.xlane.xlu0 %3781
        %v3783 = vsel %vm683, %v3761, 0.0
        %3784 = vadd.xlane.f32.xlu0 %v3783
        %v3785 = vpop.xlane.xlu0 %3784
        %v3786 = vrcp.pop %v3764
        %v3787 = vrcp.pop %v3767
        %v3788 = vrcp.pop %v3770
        %v3789 = vrcp.pop %v3773
        %v3790 = vrcp.pop %v3776
        %v3791 = vrcp.pop %v3779
        %v3792 = vrcp.pop %v3782
        %v3793 = vrcp.pop %v3785
        %v3794 = vmul.f32 %v3747, %v3786
        %v3795 = vmul.f32 %v3749, %v3787
        %v3796 = vmul.f32 %v3751, %v3788
        %v3797 = vmul.f32 %v3753, %v3789
        %v3798 = vmul.f32 %v3755, %v3790
        %v3799 = vmul.f32 %v3757, %v3791
        %v3800 = vmul.f32 %v3759, %v3792
        %v3801 = vmul.f32 %v3761, %v3793
        %v3802 = vpack.c.bf16 %v3794, %v3794
        %v3803 = vpack.c.bf16 %v3795, %v3795
        %v3804 = vpack.c.bf16 %v3796, %v3796
        %v3805 = vpack.c.bf16 %v3797, %v3797
        %v3806 = vpack.c.bf16 %v3798, %v3798
        %v3807 = vpack.c.bf16 %v3799, %v3799
        %v3808 = vpack.c.bf16 %v3800, %v3800
        %v3809 = vpack.c.bf16 %v3801, %v3801
        %3810 = vrot.lane.b32.xlu0 %v672, 40
        %v3811 = vpop.permute.xlu0 %3810
        %v3813 = vsel %vm683, %v3802, 0
        %v3816 = vsel %vm1174, %v3811, 0
        %3818 = vmatprep.subr.bf16.mxu0 0
        %3819 = vmatpush1.bf16.msra.mxu0 %v3816
        %3820 = vmatprep.subr.bf16.mxu0 0
        %3821 = vmatpush1.bf16.msra.mxu0 0
        %3822 = vmatprep.subr.bf16.mxu0 0
        %3823 = vmatpush1.bf16.msra.mxu0 0
        %3824 = vmatprep.subr.bf16.mxu0 0
        %3825 = vmatpush1.bf16.msra.mxu0 0
        %3826 = vmatprep.subr.bf16.mxu0 0
        %3827 = vmatpush1.bf16.msra.mxu0 0
        %3828 = vmatprep.subr.bf16.mxu0 0
        %3829 = vmatpush1.bf16.msra.mxu0 0
        %3830 = vmatprep.subr.bf16.mxu0 0
        %3831 = vmatpush1.bf16.msra.mxu0 0
        %3832 = vmatprep.subr.bf16.mxu0 0
        %3833 = vmatpush1.bf16.msra.mxu0 0
        %3834 = vmatprep.subr.bf16.mxu0 0
        %3835 = vmatpush1.bf16.msra.mxu0 0
        %3836 = vmatprep.subr.bf16.mxu0 0
        %3837 = vmatpush1.bf16.msra.mxu0 0
        %3838 = vmatprep.subr.bf16.mxu0 0
        %3839 = vmatpush1.bf16.msra.mxu0 0
        %3840 = vmatprep.subr.bf16.mxu0 0
        %3841 = vmatpush1.bf16.msra.mxu0 0
        %3842 = vmatprep.subr.bf16.mxu0 0
        %3843 = vmatpush1.bf16.msra.mxu0 0
        %3844 = vmatprep.subr.bf16.mxu0 0
        %3845 = vmatpush1.bf16.msra.mxu0 0
        %3846 = vmatprep.subr.bf16.mxu0 0
        %3847 = vmatpush1.bf16.msra.mxu0 0
        %3848 = vmatprep.subr.bf16.mxu0 0
        %3849 = vmatpush1.bf16.msra.mxu0 0
        %3850 = vmatprep.mubr.bf16.mxu0 0
        %3851 = vmatmul.mubr.bf16.gmra.mrb[0].mxu0 %v3813
        %v3852 = vpop.f32.mrb[0].mxu0
        %v3853 = vadd.f32 0.0, %v3852
        %v3854 = vpop.f32.mrb[0].mxu0
        %v3855 = vpop.f32.mrb[0].mxu0
        %v3856 = vpop.f32.mrb[0].mxu0
        %3857 = vdwg.mxu0
        %3858 = vrot.lane.b32.xlu0 %v673, 40
        %v3859 = vpop.permute.xlu0 %3858
        %v3861 = vsel %vm683, %v3803, 0
        %v3864 = vsel %vm1174, %v3859, 0
        %3866 = vmatprep.subr.bf16.mxu0 0
        %3867 = vmatpush1.bf16.msra.mxu0 %v3864
        %3868 = vmatprep.subr.bf16.mxu0 0
        %3869 = vmatpush1.bf16.msra.mxu0 0
        %3870 = vmatprep.subr.bf16.mxu0 0
        %3871 = vmatpush1.bf16.msra.mxu0 0
        %3872 = vmatprep.subr.bf16.mxu0 0
        %3873 = vmatpush1.bf16.msra.mxu0 0
        %3874 = vmatprep.subr.bf16.mxu0 0
        %3875 = vmatpush1.bf16.msra.mxu0 0
        %3876 = vmatprep.subr.bf16.mxu0 0
        %3877 = vmatpush1.bf16.msra.mxu0 0
        %3878 = vmatprep.subr.bf16.mxu0 0
        %3879 = vmatpush1.bf16.msra.mxu0 0
        %3880 = vmatprep.subr.bf16.mxu0 0
        %3881 = vmatpush1.bf16.msra.mxu0 0
        %3882 = vmatprep.subr.bf16.mxu0 0
        %3883 = vmatpush1.bf16.msra.mxu0 0
        %3884 = vmatprep.subr.bf16.mxu0 0
        %3885 = vmatpush1.bf16.msra.mxu0 0
        %3886 = vmatprep.subr.bf16.mxu0 0
        %3887 = vmatpush1.bf16.msra.mxu0 0
        %3888 = vmatprep.subr.bf16.mxu0 0
        %3889 = vmatpush1.bf16.msra.mxu0 0
        %3890 = vmatprep.subr.bf16.mxu0 0
        %3891 = vmatpush1.bf16.msra.mxu0 0
        %3892 = vmatprep.subr.bf16.mxu0 0
        %3893 = vmatpush1.bf16.msra.mxu0 0
        %3894 = vmatprep.subr.bf16.mxu0 0
        %3895 = vmatpush1.bf16.msra.mxu0 0
        %3896 = vmatprep.subr.bf16.mxu0 0
        %3897 = vmatpush1.bf16.msra.mxu0 0
        %3898 = vmatprep.mubr.bf16.mxu0 0
        %3899 = vmatmul.mubr.bf16.gmra.mrb[0].mxu0 %v3861
        %v3900 = vpop.f32.mrb[0].mxu0
        %v3901 = vadd.f32 0.0, %v3900
        %v3902 = vpop.f32.mrb[0].mxu0
        %v3903 = vpop.f32.mrb[0].mxu0
        %v3904 = vpop.f32.mrb[0].mxu0
        %3905 = vdwg.mxu0
        %3906 = vrot.lane.b32.xlu0 %v674, 40
        %v3907 = vpop.permute.xlu0 %3906
        %v3909 = vsel %vm683, %v3804, 0
        %v3912 = vsel %vm1174, %v3907, 0
        %3914 = vmatprep.subr.bf16.mxu0 0
        %3915 = vmatpush1.bf16.msra.mxu0 %v3912
        %3916 = vmatprep.subr.bf16.mxu0 0
        %3917 = vmatpush1.bf16.msra.mxu0 0
        %3918 = vmatprep.subr.bf16.mxu0 0
        %3919 = vmatpush1.bf16.msra.mxu0 0
        %3920 = vmatprep.subr.bf16.mxu0 0
        %3921 = vmatpush1.bf16.msra.mxu0 0
        %3922 = vmatprep.subr.bf16.mxu0 0
        %3923 = vmatpush1.bf16.msra.mxu0 0
        %3924 = vmatprep.subr.bf16.mxu0 0
        %3925 = vmatpush1.bf16.msra.mxu0 0
        %3926 = vmatprep.subr.bf16.mxu0 0
        %3927 = vmatpush1.bf16.msra.mxu0 0
        %3928 = vmatprep.subr.bf16.mxu0 0
        %3929 = vmatpush1.bf16.msra.mxu0 0
        %3930 = vmatprep.subr.bf16.mxu0 0
        %3931 = vmatpush1.bf16.msra.mxu0 0
        %3932 = vmatprep.subr.bf16.mxu0 0
        %3933 = vmatpush1.bf16.msra.mxu0 0
        %3934 = vmatprep.subr.bf16.mxu0 0
        %3935 = vmatpush1.bf16.msra.mxu0 0
        %3936 = vmatprep.subr.bf16.mxu0 0
        %3937 = vmatpush1.bf16.msra.mxu0 0
        %3938 = vmatprep.subr.bf16.mxu0 0
        %3939 = vmatpush1.bf16.msra.mxu0 0
        %3940 = vmatprep.subr.bf16.mxu0 0
        %3941 = vmatpush1.bf16.msra.mxu0 0
        %3942 = vmatprep.subr.bf16.mxu0 0
        %3943 = vmatpush1.bf16.msra.mxu0 0
        %3944 = vmatprep.subr.bf16.mxu0 0
        %3945 = vmatpush1.bf16.msra.mxu0 0
        %3946 = vmatprep.mubr.bf16.mxu0 0
        %3947 = vmatmul.mubr.bf16.gmra.mrb[0].mxu0 %v3909
        %v3948 = vpop.f32.mrb[0].mxu0
        %v3949 = vadd.f32 0.0, %v3948
        %v3950 = vpop.f32.mrb[0].mxu0
        %v3951 = vpop.f32.mrb[0].mxu0
        %v3952 = vpop.f32.mrb[0].mxu0
        %3953 = vdwg.mxu0
        %3954 = vrot.lane.b32.xlu0 %v675, 40
        %v3955 = vpop.permute.xlu0 %3954
        %v3957 = vsel %vm683, %v3805, 0
        %v3960 = vsel %vm1174, %v3955, 0
        %3962 = vmatprep.subr.bf16.mxu0 0
        %3963 = vmatpush1.bf16.msra.mxu0 %v3960
        %3964 = vmatprep.subr.bf16.mxu0 0
        %3965 = vmatpush1.bf16.msra.mxu0 0
        %3966 = vmatprep.subr.bf16.mxu0 0
        %3967 = vmatpush1.bf16.msra.mxu0 0
        %3968 = vmatprep.subr.bf16.mxu0 0
        %3969 = vmatpush1.bf16.msra.mxu0 0
        %3970 = vmatprep.subr.bf16.mxu0 0
        %3971 = vmatpush1.bf16.msra.mxu0 0
        %3972 = vmatprep.subr.bf16.mxu0 0
        %3973 = vmatpush1.bf16.msra.mxu0 0
        %3974 = vmatprep.subr.bf16.mxu0 0
        %3975 = vmatpush1.bf16.msra.mxu0 0
        %3976 = vmatprep.subr.bf16.mxu0 0
        %3977 = vmatpush1.bf16.msra.mxu0 0
        %3978 = vmatprep.subr.bf16.mxu0 0
        %3979 = vmatpush1.bf16.msra.mxu0 0
        %3980 = vmatprep.subr.bf16.mxu0 0
        %3981 = vmatpush1.bf16.msra.mxu0 0
        %3982 = vmatprep.subr.bf16.mxu0 0
        %3983 = vmatpush1.bf16.msra.mxu0 0
        %3984 = vmatprep.subr.bf16.mxu0 0
        %3985 = vmatpush1.bf16.msra.mxu0 0
        %3986 = vmatprep.subr.bf16.mxu0 0
        %3987 = vmatpush1.bf16.msra.mxu0 0
        %3988 = vmatprep.subr.bf16.mxu0 0
        %3989 = vmatpush1.bf16.msra.mxu0 0
        %3990 = vmatprep.subr.bf16.mxu0 0
        %3991 = vmatpush1.bf16.msra.mxu0 0
        %3992 = vmatprep.subr.bf16.mxu0 0
        %3993 = vmatpush1.bf16.msra.mxu0 0
        %3994 = vmatprep.mubr.bf16.mxu0 0
        %3995 = vmatmul.mubr.bf16.gmra.mrb[0].mxu0 %v3957
        %v3996 = vpop.f32.mrb[0].mxu0
        %v3997 = vadd.f32 0.0, %v3996
        %v3998 = vpop.f32.mrb[0].mxu0
        %v3999 = vpop.f32.mrb[0].mxu0
        %v4000 = vpop.f32.mrb[0].mxu0
        %4001 = vdwg.mxu0
        %4002 = vrot.lane.b32.xlu0 %v676, 40
        %v4003 = vpop.permute.xlu0 %4002
        %v4005 = vsel %vm683, %v3806, 0
        %v4008 = vsel %vm1174, %v4003, 0
        %4010 = vmatprep.subr.bf16.mxu0 0
        %4011 = vmatpush1.bf16.msra.mxu0 %v4008
        %4012 = vmatprep.subr.bf16.mxu0 0
        %4013 = vmatpush1.bf16.msra.mxu0 0
        %4014 = vmatprep.subr.bf16.mxu0 0
        %4015 = vmatpush1.bf16.msra.mxu0 0
        %4016 = vmatprep.subr.bf16.mxu0 0
        %4017 = vmatpush1.bf16.msra.mxu0 0
        %4018 = vmatprep.subr.bf16.mxu0 0
        %4019 = vmatpush1.bf16.msra.mxu0 0
        %4020 = vmatprep.subr.bf16.mxu0 0
        %4021 = vmatpush1.bf16.msra.mxu0 0
        %4022 = vmatprep.subr.bf16.mxu0 0
        %4023 = vmatpush1.bf16.msra.mxu0 0
        %4024 = vmatprep.subr.bf16.mxu0 0
        %4025 = vmatpush1.bf16.msra.mxu0 0
        %4026 = vmatprep.subr.bf16.mxu0 0
        %4027 = vmatpush1.bf16.msra.mxu0 0
        %4028 = vmatprep.subr.bf16.mxu0 0
        %4029 = vmatpush1.bf16.msra.mxu0 0
        %4030 = vmatprep.subr.bf16.mxu0 0
        %4031 = vmatpush1.bf16.msra.mxu0 0
        %4032 = vmatprep.subr.bf16.mxu0 0
        %4033 = vmatpush1.bf16.msra.mxu0 0
        %4034 = vmatprep.subr.bf16.mxu0 0
        %4035 = vmatpush1.bf16.msra.mxu0 0
        %4036 = vmatprep.subr.bf16.mxu0 0
        %4037 = vmatpush1.bf16.msra.mxu0 0
        %4038 = vmatprep.subr.bf16.mxu0 0
        %4039 = vmatpush1.bf16.msra.mxu0 0
        %4040 = vmatprep.subr.bf16.mxu0 0
        %4041 = vmatpush1.bf16.msra.mxu0 0
        %4042 = vmatprep.mubr.bf16.mxu0 0
        %4043 = vmatmul.mubr.bf16.gmra.mrb[0].mxu0 %v4005
        %v4044 = vpop.f32.mrb[0].mxu0
        %v4045 = vadd.f32 0.0, %v4044
        %v4046 = vpop.f32.mrb[0].mxu0
        %v4047 = vpop.f32.mrb[0].mxu0
        %v4048 = vpop.f32.mrb[0].mxu0
        %4049 = vdwg.mxu0
        %4050 = vrot.lane.b32.xlu0 %v677, 40
        %v4051 = vpop.permute.xlu0 %4050
        %v4053 = vsel %vm683, %v3807, 0
        %v4056 = vsel %vm1174, %v4051, 0
        %4058 = vmatprep.subr.bf16.mxu0 0
        %4059 = vmatpush1.bf16.msra.mxu0 %v4056
        %4060 = vmatprep.subr.bf16.mxu0 0
        %4061 = vmatpush1.bf16.msra.mxu0 0
        %4062 = vmatprep.subr.bf16.mxu0 0
        %4063 = vmatpush1.bf16.msra.mxu0 0
        %4064 = vmatprep.subr.bf16.mxu0 0
        %4065 = vmatpush1.bf16.msra.mxu0 0
        %4066 = vmatprep.subr.bf16.mxu0 0
        %4067 = vmatpush1.bf16.msra.mxu0 0
        %4068 = vmatprep.subr.bf16.mxu0 0
        %4069 = vmatpush1.bf16.msra.mxu0 0
        %4070 = vmatprep.subr.bf16.mxu0 0
        %4071 = vmatpush1.bf16.msra.mxu0 0
        %4072 = vmatprep.subr.bf16.mxu0 0
        %4073 = vmatpush1.bf16.msra.mxu0 0
        %4074 = vmatprep.subr.bf16.mxu0 0
        %4075 = vmatpush1.bf16.msra.mxu0 0
        %4076 = vmatprep.subr.bf16.mxu0 0
        %4077 = vmatpush1.bf16.msra.mxu0 0
        %4078 = vmatprep.subr.bf16.mxu0 0
        %4079 = vmatpush1.bf16.msra.mxu0 0
        %4080 = vmatprep.subr.bf16.mxu0 0
        %4081 = vmatpush1.bf16.msra.mxu0 0
        %4082 = vmatprep.subr.bf16.mxu0 0
        %4083 = vmatpush1.bf16.msra.mxu0 0
        %4084 = vmatprep.subr.bf16.mxu0 0
        %4085 = vmatpush1.bf16.msra.mxu0 0
        %4086 = vmatprep.subr.bf16.mxu0 0
        %4087 = vmatpush1.bf16.msra.mxu0 0
        %4088 = vmatprep.subr.bf16.mxu0 0
        %4089 = vmatpush1.bf16.msra.mxu0 0
        %4090 = vmatprep.mubr.bf16.mxu0 0
        %4091 = vmatmul.mubr.bf16.gmra.mrb[0].mxu0 %v4053
        %v4092 = vpop.f32.mrb[0].mxu0
        %v4093 = vadd.f32 0.0, %v4092
        %v4094 = vpop.f32.mrb[0].mxu0
        %v4095 = vpop.f32.mrb[0].mxu0
        %v4096 = vpop.f32.mrb[0].mxu0
        %4097 = vdwg.mxu0
        %4098 = vrot.lane.b32.xlu0 %v678, 40
        %v4099 = vpop.permute.xlu0 %4098
        %v4101 = vsel %vm683, %v3808, 0
        %v4104 = vsel %vm1174, %v4099, 0
        %4106 = vmatprep.subr.bf16.mxu0 0
        %4107 = vmatpush1.bf16.msra.mxu0 %v4104
        %4108 = vmatprep.subr.bf16.mxu0 0
        %4109 = vmatpush1.bf16.msra.mxu0 0
        %4110 = vmatprep.subr.bf16.mxu0 0
        %4111 = vmatpush1.bf16.msra.mxu0 0
        %4112 = vmatprep.subr.bf16.mxu0 0
        %4113 = vmatpush1.bf16.msra.mxu0 0
        %4114 = vmatprep.subr.bf16.mxu0 0
        %4115 = vmatpush1.bf16.msra.mxu0 0
        %4116 = vmatprep.subr.bf16.mxu0 0
        %4117 = vmatpush1.bf16.msra.mxu0 0
        %4118 = vmatprep.subr.bf16.mxu0 0
        %4119 = vmatpush1.bf16.msra.mxu0 0
        %4120 = vmatprep.subr.bf16.mxu0 0
        %4121 = vmatpush1.bf16.msra.mxu0 0
        %4122 = vmatprep.subr.bf16.mxu0 0
        %4123 = vmatpush1.bf16.msra.mxu0 0
        %4124 = vmatprep.subr.bf16.mxu0 0
        %4125 = vmatpush1.bf16.msra.mxu0 0
        %4126 = vmatprep.subr.bf16.mxu0 0
        %4127 = vmatpush1.bf16.msra.mxu0 0
        %4128 = vmatprep.subr.bf16.mxu0 0
        %4129 = vmatpush1.bf16.msra.mxu0 0
        %4130 = vmatprep.subr.bf16.mxu0 0
        %4131 = vmatpush1.bf16.msra.mxu0 0
        %4132 = vmatprep.subr.bf16.mxu0 0
        %4133 = vmatpush1.bf16.msra.mxu0 0
        %4134 = vmatprep.subr.bf16.mxu0 0
        %4135 = vmatpush1.bf16.msra.mxu0 0
        %4136 = vmatprep.subr.bf16.mxu0 0
        %4137 = vmatpush1.bf16.msra.mxu0 0
        %4138 = vmatprep.mubr.bf16.mxu0 0
        %4139 = vmatmul.mubr.bf16.gmra.mrb[0].mxu0 %v4101
        %v4140 = vpop.f32.mrb[0].mxu0
        %v4141 = vadd.f32 0.0, %v4140
        %v4142 = vpop.f32.mrb[0].mxu0
        %v4143 = vpop.f32.mrb[0].mxu0
        %v4144 = vpop.f32.mrb[0].mxu0
        %4145 = vdwg.mxu0
        %4146 = vrot.lane.b32.xlu0 %v679, 40
        %v4147 = vpop.permute.xlu0 %4146
        %v4149 = vsel %vm683, %v3809, 0
        %v4152 = vsel %vm1174, %v4147, 0
        %4154 = vmatprep.subr.bf16.mxu0 0
        %4155 = vmatpush1.bf16.msra.mxu0 %v4152
        %4156 = vmatprep.subr.bf16.mxu0 0
        %4157 = vmatpush1.bf16.msra.mxu0 0
        %4158 = vmatprep.subr.bf16.mxu0 0
        %4159 = vmatpush1.bf16.msra.mxu0 0
        %4160 = vmatprep.subr.bf16.mxu0 0
        %4161 = vmatpush1.bf16.msra.mxu0 0
        %4162 = vmatprep.subr.bf16.mxu0 0
        %4163 = vmatpush1.bf16.msra.mxu0 0
        %4164 = vmatprep.subr.bf16.mxu0 0
        %4165 = vmatpush1.bf16.msra.mxu0 0
        %4166 = vmatprep.subr.bf16.mxu0 0
        %4167 = vmatpush1.bf16.msra.mxu0 0
        %4168 = vmatprep.subr.bf16.mxu0 0
        %4169 = vmatpush1.bf16.msra.mxu0 0
        %4170 = vmatprep.subr.bf16.mxu0 0
        %4171 = vmatpush1.bf16.msra.mxu0 0
        %4172 = vmatprep.subr.bf16.mxu0 0
        %4173 = vmatpush1.bf16.msra.mxu0 0
        %4174 = vmatprep.subr.bf16.mxu0 0
        %4175 = vmatpush1.bf16.msra.mxu0 0
        %4176 = vmatprep.subr.bf16.mxu0 0
        %4177 = vmatpush1.bf16.msra.mxu0 0
        %4178 = vmatprep.subr.bf16.mxu0 0
        %4179 = vmatpush1.bf16.msra.mxu0 0
        %4180 = vmatprep.subr.bf16.mxu0 0
        %4181 = vmatpush1.bf16.msra.mxu0 0
        %4182 = vmatprep.subr.bf16.mxu0 0
        %4183 = vmatpush1.bf16.msra.mxu0 0
        %4184 = vmatprep.subr.bf16.mxu0 0
        %4185 = vmatpush1.bf16.msra.mxu0 0
        %4186 = vmatprep.mubr.bf16.mxu0 0
        %4187 = vmatmul.mubr.bf16.gmra.mrb[0].mxu0 %v4149
        %v4188 = vpop.f32.mrb[0].mxu0
        %v4189 = vadd.f32 0.0, %v4188
        %v4190 = vpop.f32.mrb[0].mxu0
        %v4191 = vpop.f32.mrb[0].mxu0
        %v4192 = vpop.f32.mrb[0].mxu0
        %4193 = vdwg.mxu0
        %4202 = vrot.lane.b32.xlu0 %v2093, 8
        %v4203 = vpop.permute.xlu0 %4202
        %4204 = vrot.lane.b32.xlu0 %v2141, 8
        %v4205 = vpop.permute.xlu0 %4204
        %4206 = vrot.lane.b32.xlu0 %v2189, 8
        %v4207 = vpop.permute.xlu0 %4206
        %4208 = vrot.lane.b32.xlu0 %v2237, 8
        %v4209 = vpop.permute.xlu0 %4208
        %4210 = vrot.lane.b32.xlu0 %v2285, 8
        %v4211 = vpop.permute.xlu0 %4210
        %4212 = vrot.lane.b32.xlu0 %v2333, 8
        %v4213 = vpop.permute.xlu0 %4212
        %4214 = vrot.lane.b32.xlu0 %v2381, 8
        %v4215 = vpop.permute.xlu0 %4214
        %4216 = vrot.lane.b32.xlu0 %v2429, 8
        %v4217 = vpop.permute.xlu0 %4216
        %4234 = vrot.lane.b32.xlu0 %v2973, 16
        %v4235 = vpop.permute.xlu0 %4234
        %4236 = vrot.lane.b32.xlu0 %v3021, 16
        %v4237 = vpop.permute.xlu0 %4236
        %4238 = vrot.lane.b32.xlu0 %v3069, 16
        %v4239 = vpop.permute.xlu0 %4238
        %4240 = vrot.lane.b32.xlu0 %v3117, 16
        %v4241 = vpop.permute.xlu0 %4240
        %4242 = vrot.lane.b32.xlu0 %v3165, 16
        %v4243 = vpop.permute.xlu0 %4242
        %4244 = vrot.lane.b32.xlu0 %v3213, 16
        %v4245 = vpop.permute.xlu0 %4244
        %4246 = vrot.lane.b32.xlu0 %v3261, 16
        %v4247 = vpop.permute.xlu0 %4246
        %4248 = vrot.lane.b32.xlu0 %v3309, 16
        %v4249 = vpop.permute.xlu0 %4248
        %4266 = vrot.lane.b32.xlu0 %v3853, 24
        %v4267 = vpop.permute.xlu0 %4266
        %4268 = vrot.lane.b32.xlu0 %v3901, 24
        %v4269 = vpop.permute.xlu0 %4268
        %4270 = vrot.lane.b32.xlu0 %v3949, 24
        %v4271 = vpop.permute.xlu0 %4270
        %4272 = vrot.lane.b32.xlu0 %v3997, 24
        %v4273 = vpop.permute.xlu0 %4272
        %4274 = vrot.lane.b32.xlu0 %v4045, 24
        %v4275 = vpop.permute.xlu0 %4274
        %4276 = vrot.lane.b32.xlu0 %v4093, 24
        %v4277 = vpop.permute.xlu0 %4276
        %4278 = vrot.lane.b32.xlu0 %v4141, 24
        %v4279 = vpop.permute.xlu0 %4278
        %4280 = vrot.lane.b32.xlu0 %v4189, 24
        %v4281 = vpop.permute.xlu0 %4280
        %v4290 = vsel %vm683, %v1213, %v4203
        %v4291 = vsel %vm683, %v1261, %v4205
        %v4292 = vsel %vm683, %v1309, %v4207
        %v4293 = vsel %vm683, %v1357, %v4209
        %v4294 = vsel %vm683, %v1405, %v4211
        %v4295 = vsel %vm683, %v1453, %v4213
        %v4296 = vsel %vm683, %v1501, %v4215
        %v4297 = vsel %vm683, %v1549, %v4217
        %v4298 = vsel %vm356, %v4290, %v4235
        %v4299 = vsel %vm356, %v4291, %v4237
        %v4300 = vsel %vm356, %v4292, %v4239
        %v4301 = vsel %vm356, %v4293, %v4241
        %v4302 = vsel %vm356, %v4294, %v4243
        %v4303 = vsel %vm356, %v4295, %v4245
        %v4304 = vsel %vm356, %v4296, %v4247
        %v4305 = vsel %vm356, %v4297, %v4249
        %vm4306 = vcmask 195584
        %v4307 = vsel %vm4306, %v4298, %v4267
        %v4308 = vsel %vm4306, %v4299, %v4269
        %v4309 = vsel %vm4306, %v4300, %v4271
        %v4310 = vsel %vm4306, %v4301, %v4273
        %v4311 = vsel %vm4306, %v4302, %v4275
        %v4312 = vsel %vm4306, %v4303, %v4277
        %v4313 = vsel %vm4306, %v4304, %v4279
        %v4314 = vsel %vm4306, %v4305, %v4281
        %v4315 = vadd.f32 %v571, %v4307
        %v4316 = vadd.f32 %v572, %v4308
        %v4317 = vadd.f32 %v573, %v4309
        %v4318 = vadd.f32 %v574, %v4310
        %v4319 = vadd.f32 %v575, %v4311
        %v4320 = vadd.f32 %v576, %v4312
        %v4321 = vadd.f32 %v577, %v4313
        %v4322 = vadd.f32 %v578, %v4314
        %v4323 = vsel %vm449, %v4315, 0.0
        %4324 = vadd.xlane.f32.xlu0 %v4323
        %v4325 = vpop.xlane.xlu0 %4324
        %v4326 = vsel %vm449, %v4316, 0.0
        %4327 = vadd.xlane.f32.xlu0 %v4326
        %v4328 = vpop.xlane.xlu0 %4327
        %v4329 = vsel %vm449, %v4317, 0.0
        %4330 = vadd.xlane.f32.xlu0 %v4329
        %v4331 = vpop.xlane.xlu0 %4330
        %v4332 = vsel %vm449, %v4318, 0.0
        %4333 = vadd.xlane.f32.xlu0 %v4332
        %v4334 = vpop.xlane.xlu0 %4333
        %v4335 = vsel %vm449, %v4319, 0.0
        %4336 = vadd.xlane.f32.xlu0 %v4335
        %v4337 = vpop.xlane.xlu0 %4336
        %v4338 = vsel %vm449, %v4320, 0.0
        %4339 = vadd.xlane.f32.xlu0 %v4338
        %v4340 = vpop.xlane.xlu0 %4339
        %v4341 = vsel %vm449, %v4321, 0.0
        %4342 = vadd.xlane.f32.xlu0 %v4341
        %v4343 = vpop.xlane.xlu0 %4342
        %v4344 = vsel %vm449, %v4322, 0.0
        %4345 = vadd.xlane.f32.xlu0 %v4344
        %v4346 = vpop.xlane.xlu0 %4345
        %v4347 = vmul.f32 %v4325, %v474
        %v4348 = vmul.f32 %v4328, %v474
        %v4349 = vmul.f32 %v4331, %v474
        %v4350 = vmul.f32 %v4334, %v474
        %v4351 = vmul.f32 %v4337, %v474
        %v4352 = vmul.f32 %v4340, %v474
        %v4353 = vmul.f32 %v4343, %v474
        %v4354 = vmul.f32 %v4346, %v474
        %v4355 = vsub.f32 %v4315, %v4347
        %v4356 = vsub.f32 %v4316, %v4348
        %v4357 = vsub.f32 %v4317, %v4349
        %v4358 = vsub.f32 %v4318, %v4350
        %v4359 = vsub.f32 %v4319, %v4351
        %v4360 = vsub.f32 %v4320, %v4352
        %v4361 = vsub.f32 %v4321, %v4353
        %v4362 = vsub.f32 %v4322, %v4354
        %v4363 = vmul.f32 %v4355, %v4355
        %v4364 = vmul.f32 %v4356, %v4356
        %v4365 = vmul.f32 %v4357, %v4357
        %v4366 = vmul.f32 %v4358, %v4358
        %v4367 = vmul.f32 %v4359, %v4359
        %v4368 = vmul.f32 %v4360, %v4360
        %v4369 = vmul.f32 %v4361, %v4361
        %v4370 = vmul.f32 %v4362, %v4362
        %v4371 = vsel %vm449, %v4363, 0.0
        %4372 = vadd.xlane.f32.xlu0 %v4371
        %v4373 = vpop.xlane.xlu0 %4372
        %v4374 = vsel %vm449, %v4364, 0.0
        %4375 = vadd.xlane.f32.xlu0 %v4374
        %v4376 = vpop.xlane.xlu0 %4375
        %v4377 = vsel %vm449, %v4365, 0.0
        %4378 = vadd.xlane.f32.xlu0 %v4377
        %v4379 = vpop.xlane.xlu0 %4378
        %v4380 = vsel %vm449, %v4366, 0.0
        %4381 = vadd.xlane.f32.xlu0 %v4380
        %v4382 = vpop.xlane.xlu0 %4381
        %v4383 = vsel %vm449, %v4367, 0.0
        %4384 = vadd.xlane.f32.xlu0 %v4383
        %v4385 = vpop.xlane.xlu0 %4384
        %v4386 = vsel %vm449, %v4368, 0.0
        %4387 = vadd.xlane.f32.xlu0 %v4386
        %v4388 = vpop.xlane.xlu0 %4387
        %v4389 = vsel %vm449, %v4369, 0.0
        %4390 = vadd.xlane.f32.xlu0 %v4389
        %v4391 = vpop.xlane.xlu0 %4390
        %v4392 = vsel %vm449, %v4370, 0.0
        %4393 = vadd.xlane.f32.xlu0 %v4392
        %v4394 = vpop.xlane.xlu0 %4393
        %v4395 = vmul.f32 %v4373, %v474
        %v4396 = vmul.f32 %v4376, %v474
        %v4397 = vmul.f32 %v4379, %v474
        %v4398 = vmul.f32 %v4382, %v474
        %v4399 = vmul.f32 %v4385, %v474
        %v4400 = vmul.f32 %v4388, %v474
        %v4401 = vmul.f32 %v4391, %v474
        %v4402 = vmul.f32 %v4394, %v474
        %v4403 = vadd.f32 %v4395, 1e-05
        %v4404 = vadd.f32 %v4396, 1e-05
        %v4405 = vadd.f32 %v4397, 1e-05
        %v4406 = vadd.f32 %v4398, 1e-05
        %v4407 = vadd.f32 %v4399, 1e-05
        %v4408 = vadd.f32 %v4400, 1e-05
        %v4409 = vadd.f32 %v4401, 1e-05
        %v4410 = vadd.f32 %v4402, 1e-05
        %v4411 = vrsqrt.pop %v4403
        %v4412 = vrsqrt.pop %v4404
        %v4413 = vrsqrt.pop %v4405
        %v4414 = vrsqrt.pop %v4406
        %v4415 = vrsqrt.pop %v4407
        %v4416 = vrsqrt.pop %v4408
        %v4417 = vrsqrt.pop %v4409
        %v4418 = vrsqrt.pop %v4410
        %v4419 = vmul.f32 %v4355, %v4411
        %v4420 = vmul.f32 %v4356, %v4412
        %v4421 = vmul.f32 %v4357, %v4413
        %v4422 = vmul.f32 %v4358, %v4414
        %v4423 = vmul.f32 %v4359, %v4415
        %v4424 = vmul.f32 %v4360, %v4416
        %v4425 = vmul.f32 %v4361, %v4417
        %v4426 = vmul.f32 %v4362, %v4418
        %v4427 = vlaneseq
        %v4428 = vshrl.u32 %v4427, 7
        %v4429 = vsub.s32 3, %v4428
        %v4430 = vrot.slane %v339, %v4429
        %v4431 = vmul.f32 %v4419, %v4430
        %v4432 = vmul.f32 %v4420, %v4430
        %v4433 = vmul.f32 %v4421, %v4430
        %v4434 = vmul.f32 %v4422, %v4430
        %v4435 = vmul.f32 %v4423, %v4430
        %v4436 = vmul.f32 %v4424, %v4430
        %v4437 = vmul.f32 %v4425, %v4430
        %v4438 = vmul.f32 %v4426, %v4430
        %v4439 = vlaneseq
        %v4440 = vshrl.u32 %v4439, 7
        %v4441 = vsub.s32 4, %v4440
        %v4442 = vrot.slane %v339, %v4441
        %v4443 = vadd.f32 %v4431, %v4442
        %v4444 = vadd.f32 %v4432, %v4442
        %v4445 = vadd.f32 %v4433, %v4442
        %v4446 = vadd.f32 %v4434, %v4442
        %v4447 = vadd.f32 %v4435, %v4442
        %v4448 = vadd.f32 %v4436, %v4442
        %v4449 = vadd.f32 %v4437, %v4442
        %v4450 = vadd.f32 %v4438, %v4442
        %v4451 = vpack.c.bf16 %v4444, %v4443
        %v4452 = vpack.c.bf16 %v4446, %v4445
        %v4453 = vpack.c.bf16 %v4448, %v4447
        %v4454 = vpack.c.bf16 %v4450, %v4449
        %v4455 = vlaneseq
        %v4456 = vshrl.u32 %v4455, 7
        %v4457 = vsub.s32 5, %v4456
        %v4458 = vrot.slane %v339, %v4457
        %v4463 = vunpack.c.l.b16 %v319
        %v4464 = vunpack.c.l.b16 %v320
        %v4465 = vunpack.c.l.b16 %v321
        %v4466 = vunpack.c.l.b16 %v322
        %v4467 = vpack.c.b16 %v4464, %v4463
        %v4468 = vpack.c.b16 %v4466, %v4465
        %v4472 = vsel %vm449, %v4451, 0
        %v4475 = vsel %vm449, %v4452, 0
        %v4478 = vsel %vm449, %v4453, 0
        %v4481 = vsel %vm449, %v4454, 0
        %4483 = vmatprep.subr.bf16.mxu0 0
        %4484 = vmatpush1.bf16.msra.mxu0 %v4467
        %4485 = vmatprep.subr.bf16.mxu0 0
        %4486 = vmatpush1.bf16.msra.mxu0 %v4468
        %4487 = vmatprep.subr.bf16.mxu0 0
        %4488 = vmatpush1.bf16.msra.mxu0 0
        %4489 = vmatprep.subr.bf16.mxu0 0
        %4490 = vmatpush1.bf16.msra.mxu0 0
        %4491 = vmatprep.subr.bf16.mxu0 0
        %4492 = vmatpush1.bf16.msra.mxu0 0
        %4493 = vmatprep.subr.bf16.mxu0 0
        %4494 = vmatpush1.bf16.msra.mxu0 0
        %4495 = vmatprep.subr.bf16.mxu0 0
        %4496 = vmatpush1.bf16.msra.mxu0 0
        %4497 = vmatprep.subr.bf16.mxu0 0
        %4498 = vmatpush1.bf16.msra.mxu0 0
        %4499 = vmatprep.subr.bf16.mxu0 0
        %4500 = vmatpush1.bf16.msra.mxu0 0
        %4501 = vmatprep.subr.bf16.mxu0 0
        %4502 = vmatpush1.bf16.msra.mxu0 0
        %4503 = vmatprep.subr.bf16.mxu0 0
        %4504 = vmatpush1.bf16.msra.mxu0 0
        %4505 = vmatprep.subr.bf16.mxu0 0
        %4506 = vmatpush1.bf16.msra.mxu0 0
        %4507 = vmatprep.subr.bf16.mxu0 0
        %4508 = vmatpush1.bf16.msra.mxu0 0
        %4509 = vmatprep.subr.bf16.mxu0 0
        %4510 = vmatpush1.bf16.msra.mxu0 0
        %4511 = vmatprep.subr.bf16.mxu0 0
        %4512 = vmatpush1.bf16.msra.mxu0 0
        %4513 = vmatprep.subr.bf16.mxu0 0
        %4514 = vmatpush1.bf16.msra.mxu0 0
        %4515 = vmatprep.mubr.bf16.mxu0 0
        %4516 = vmatmul.mubr.bf16.gmra.mrb[0].mxu0 %v4472
        %v4517 = vpop.f32.mrb[0].mxu0
        %v4518 = vadd.f32 %v4458, %v4517
        %v4519 = vpop.f32.mrb[0].mxu0
        %v4520 = vpop.f32.mrb[0].mxu0
        %v4521 = vadd.f32 %v4458, %v4520
        %v4522 = vpop.f32.mrb[0].mxu0
        %4523 = vmatprep.mubr.bf16.mxu0 0
        %4524 = vmatmul.mubr.bf16.gmra.mrb[0].mxu0 %v4475
        %v4525 = vpop.f32.mrb[0].mxu0
        %v4526 = vadd.f32 %v4458, %v4525
        %v4527 = vpop.f32.mrb[0].mxu0
        %v4528 = vpop.f32.mrb[0].mxu0
        %v4529 = vadd.f32 %v4458, %v4528
        %v4530 = vpop.f32.mrb[0].mxu0
        %4531 = vmatprep.mubr.bf16.mxu0 0
        %4532 = vmatmul.mubr.bf16.gmra.mrb[0].mxu0 %v4478
        %v4533 = vpop.f32.mrb[0].mxu0
        %v4534 = vadd.f32 %v4458, %v4533
        %v4535 = vpop.f32.mrb[0].mxu0
        %v4536 = vpop.f32.mrb[0].mxu0
        %v4537 = vadd.f32 %v4458, %v4536
        %v4538 = vpop.f32.mrb[0].mxu0
        %4539 = vmatprep.mubr.bf16.mxu0 0
        %4540 = vmatmul.mubr.bf16.gmra.mrb[0].mxu0 %v4481
        %v4541 = vpop.f32.mrb[0].mxu0
        %v4542 = vadd.f32 %v4458, %v4541
        %v4543 = vpop.f32.mrb[0].mxu0
        %v4544 = vpop.f32.mrb[0].mxu0
        %v4545 = vadd.f32 %v4458, %v4544
        %v4546 = vpop.f32.mrb[0].mxu0
        %4547 = vdwg.mxu0
        %v4548 = vmax.f32 %v4518, 0.0
        %v4549 = vmax.f32 %v4521, 0.0
        %v4550 = vmax.f32 %v4526, 0.0
        %v4551 = vmax.f32 %v4529, 0.0
        %v4552 = vmax.f32 %v4534, 0.0
        %v4553 = vmax.f32 %v4537, 0.0
        %v4554 = vmax.f32 %v4542, 0.0
        %v4555 = vmax.f32 %v4545, 0.0
        %v4556 = vpack.c.bf16 %v4549, %v4548
        %v4557 = vpack.c.bf16 %v4551, %v4550
        %v4558 = vpack.c.bf16 %v4553, %v4552
        %v4559 = vpack.c.bf16 %v4555, %v4554
        %v4560 = vlaneseq
        %v4561 = vshrl.u32 %v4560, 7
        %v4562 = vsub.s32 6, %v4561
        %v4563 = vrot.slane %v339, %v4562
        %v4568 = vunpack.c.l.b16 %v323
        %v4569 = vunpack.c.l.b16 %v324
        %v4570 = vunpack.c.l.b16 %v325
        %v4571 = vunpack.c.l.b16 %v326
        %v4572 = vpack.c.b16 %v4569, %v4568
        %v4573 = vpack.c.b16 %v4571, %v4570
        %v4577 = vsel %vm449, %v4556, 0
        %v4580 = vsel %vm449, %v4557, 0
        %v4583 = vsel %vm449, %v4558, 0
        %v4586 = vsel %vm449, %v4559, 0
        %4588 = vmatprep.subr.bf16.mxu0 0
        %4589 = vmatpush1.bf16.msra.mxu0 %v4572
        %4590 = vmatprep.subr.bf16.mxu0 0
        %4591 = vmatpush1.bf16.msra.mxu0 %v4573
        %4592 = vmatprep.subr.bf16.mxu0 0
        %4593 = vmatpush1.bf16.msra.mxu0 0
        %4594 = vmatprep.subr.bf16.mxu0 0
        %4595 = vmatpush1.bf16.msra.mxu0 0
        %4596 = vmatprep.subr.bf16.mxu0 0
        %4597 = vmatpush1.bf16.msra.mxu0 0
        %4598 = vmatprep.subr.bf16.mxu0 0
        %4599 = vmatpush1.bf16.msra.mxu0 0
        %4600 = vmatprep.subr.bf16.mxu0 0
        %4601 = vmatpush1.bf16.msra.mxu0 0
        %4602 = vmatprep.subr.bf16.mxu0 0
        %4603 = vmatpush1.bf16.msra.mxu0 0
        %4604 = vmatprep.subr.bf16.mxu0 0
        %4605 = vmatpush1.bf16.msra.mxu0 0
        %4606 = vmatprep.subr.bf16.mxu0 0
        %4607 = vmatpush1.bf16.msra.mxu0 0
        %4608 = vmatprep.subr.bf16.mxu0 0
        %4609 = vmatpush1.bf16.msra.mxu0 0
        %4610 = vmatprep.subr.bf16.mxu0 0
        %4611 = vmatpush1.bf16.msra.mxu0 0
        %4612 = vmatprep.subr.bf16.mxu0 0
        %4613 = vmatpush1.bf16.msra.mxu0 0
        %4614 = vmatprep.subr.bf16.mxu0 0
        %4615 = vmatpush1.bf16.msra.mxu0 0
        %4616 = vmatprep.subr.bf16.mxu0 0
        %4617 = vmatpush1.bf16.msra.mxu0 0
        %4618 = vmatprep.subr.bf16.mxu0 0
        %4619 = vmatpush1.bf16.msra.mxu0 0
        %4620 = vmatprep.mubr.bf16.mxu0 0
        %4621 = vmatmul.mubr.bf16.gmra.mrb[0].mxu0 %v4577
        %v4622 = vpop.f32.mrb[0].mxu0
        %v4623 = vadd.f32 %v4563, %v4622
        %v4624 = vpop.f32.mrb[0].mxu0
        %v4625 = vpop.f32.mrb[0].mxu0
        %v4626 = vadd.f32 %v4563, %v4625
        %v4627 = vpop.f32.mrb[0].mxu0
        %4628 = vmatprep.mubr.bf16.mxu0 0
        %4629 = vmatmul.mubr.bf16.gmra.mrb[0].mxu0 %v4580
        %v4630 = vpop.f32.mrb[0].mxu0
        %v4631 = vadd.f32 %v4563, %v4630
        %v4632 = vpop.f32.mrb[0].mxu0
        %v4633 = vpop.f32.mrb[0].mxu0
        %v4634 = vadd.f32 %v4563, %v4633
        %v4635 = vpop.f32.mrb[0].mxu0
        %4636 = vmatprep.mubr.bf16.mxu0 0
        %4637 = vmatmul.mubr.bf16.gmra.mrb[0].mxu0 %v4583
        %v4638 = vpop.f32.mrb[0].mxu0
        %v4639 = vadd.f32 %v4563, %v4638
        %v4640 = vpop.f32.mrb[0].mxu0
        %v4641 = vpop.f32.mrb[0].mxu0
        %v4642 = vadd.f32 %v4563, %v4641
        %v4643 = vpop.f32.mrb[0].mxu0
        %4644 = vmatprep.mubr.bf16.mxu0 0
        %4645 = vmatmul.mubr.bf16.gmra.mrb[0].mxu0 %v4586
        %v4646 = vpop.f32.mrb[0].mxu0
        %v4647 = vadd.f32 %v4563, %v4646
        %v4648 = vpop.f32.mrb[0].mxu0
        %v4649 = vpop.f32.mrb[0].mxu0
        %v4650 = vadd.f32 %v4563, %v4649
        %v4651 = vpop.f32.mrb[0].mxu0
        %4652 = vdwg.mxu0
        %v4653 = vadd.f32 %v4443, %v4623
        %v4654 = vadd.f32 %v4444, %v4626
        %v4655 = vadd.f32 %v4445, %v4631
        %v4656 = vadd.f32 %v4446, %v4634
        %v4657 = vadd.f32 %v4447, %v4639
        %v4658 = vadd.f32 %v4448, %v4642
        %v4659 = vadd.f32 %v4449, %v4647
        %v4660 = vadd.f32 %v4450, %v4650
        %v4661 = vsel %vm449, %v4653, 0.0
        %4662 = vadd.xlane.f32.xlu0 %v4661
        %v4663 = vpop.xlane.xlu0 %4662
        %v4664 = vsel %vm449, %v4654, 0.0
        %4665 = vadd.xlane.f32.xlu0 %v4664
        %v4666 = vpop.xlane.xlu0 %4665
        %v4667 = vsel %vm449, %v4655, 0.0
        %4668 = vadd.xlane.f32.xlu0 %v4667
        %v4669 = vpop.xlane.xlu0 %4668
        %v4670 = vsel %vm449, %v4656, 0.0
        %4671 = vadd.xlane.f32.xlu0 %v4670
        %v4672 = vpop.xlane.xlu0 %4671
        %v4673 = vsel %vm449, %v4657, 0.0
        %4674 = vadd.xlane.f32.xlu0 %v4673
        %v4675 = vpop.xlane.xlu0 %4674
        %v4676 = vsel %vm449, %v4658, 0.0
        %4677 = vadd.xlane.f32.xlu0 %v4676
        %v4678 = vpop.xlane.xlu0 %4677
        %v4679 = vsel %vm449, %v4659, 0.0
        %4680 = vadd.xlane.f32.xlu0 %v4679
        %v4681 = vpop.xlane.xlu0 %4680
        %v4682 = vsel %vm449, %v4660, 0.0
        %4683 = vadd.xlane.f32.xlu0 %v4682
        %v4684 = vpop.xlane.xlu0 %4683
        %v4685 = vmul.f32 %v4663, %v474
        %v4686 = vmul.f32 %v4666, %v474
        %v4687 = vmul.f32 %v4669, %v474
        %v4688 = vmul.f32 %v4672, %v474
        %v4689 = vmul.f32 %v4675, %v474
        %v4690 = vmul.f32 %v4678, %v474
        %v4691 = vmul.f32 %v4681, %v474
        %v4692 = vmul.f32 %v4684, %v474
        %v4693 = vsub.f32 %v4653, %v4685
        %v4694 = vsub.f32 %v4654, %v4686
        %v4695 = vsub.f32 %v4655, %v4687
        %v4696 = vsub.f32 %v4656, %v4688
        %v4697 = vsub.f32 %v4657, %v4689
        %v4698 = vsub.f32 %v4658, %v4690
        %v4699 = vsub.f32 %v4659, %v4691
        %v4700 = vsub.f32 %v4660, %v4692
        %v4701 = vmul.f32 %v4693, %v4693
        %v4702 = vmul.f32 %v4694, %v4694
        %v4703 = vmul.f32 %v4695, %v4695
        %v4704 = vmul.f32 %v4696, %v4696
        %v4705 = vmul.f32 %v4697, %v4697
        %v4706 = vmul.f32 %v4698, %v4698
        %v4707 = vmul.f32 %v4699, %v4699
        %v4708 = vmul.f32 %v4700, %v4700
        %v4709 = vsel %vm449, %v4701, 0.0
        %4710 = vadd.xlane.f32.xlu0 %v4709
        %v4711 = vpop.xlane.xlu0 %4710
        %v4712 = vsel %vm449, %v4702, 0.0
        %4713 = vadd.xlane.f32.xlu0 %v4712
        %v4714 = vpop.xlane.xlu0 %4713
        %v4715 = vsel %vm449, %v4703, 0.0
        %4716 = vadd.xlane.f32.xlu0 %v4715
        %v4717 = vpop.xlane.xlu0 %4716
        %v4718 = vsel %vm449, %v4704, 0.0
        %4719 = vadd.xlane.f32.xlu0 %v4718
        %v4720 = vpop.xlane.xlu0 %4719
        %v4721 = vsel %vm449, %v4705, 0.0
        %4722 = vadd.xlane.f32.xlu0 %v4721
        %v4723 = vpop.xlane.xlu0 %4722
        %v4724 = vsel %vm449, %v4706, 0.0
        %4725 = vadd.xlane.f32.xlu0 %v4724
        %v4726 = vpop.xlane.xlu0 %4725
        %v4727 = vsel %vm449, %v4707, 0.0
        %4728 = vadd.xlane.f32.xlu0 %v4727
        %v4729 = vpop.xlane.xlu0 %4728
        %v4730 = vsel %vm449, %v4708, 0.0
        %4731 = vadd.xlane.f32.xlu0 %v4730
        %v4732 = vpop.xlane.xlu0 %4731
        %v4733 = vmul.f32 %v4711, %v474
        %v4734 = vmul.f32 %v4714, %v474
        %v4735 = vmul.f32 %v4717, %v474
        %v4736 = vmul.f32 %v4720, %v474
        %v4737 = vmul.f32 %v4723, %v474
        %v4738 = vmul.f32 %v4726, %v474
        %v4739 = vmul.f32 %v4729, %v474
        %v4740 = vmul.f32 %v4732, %v474
        %v4741 = vadd.f32 %v4733, 1e-05
        %v4742 = vadd.f32 %v4734, 1e-05
        %v4743 = vadd.f32 %v4735, 1e-05
        %v4744 = vadd.f32 %v4736, 1e-05
        %v4745 = vadd.f32 %v4737, 1e-05
        %v4746 = vadd.f32 %v4738, 1e-05
        %v4747 = vadd.f32 %v4739, 1e-05
        %v4748 = vadd.f32 %v4740, 1e-05
        %v4749 = vrsqrt.pop %v4741
        %v4750 = vrsqrt.pop %v4742
        %v4751 = vrsqrt.pop %v4743
        %v4752 = vrsqrt.pop %v4744
        %v4753 = vrsqrt.pop %v4745
        %v4754 = vrsqrt.pop %v4746
        %v4755 = vrsqrt.pop %v4747
        %v4756 = vrsqrt.pop %v4748
        %v4757 = vmul.f32 %v4693, %v4749
        %v4758 = vmul.f32 %v4694, %v4750
        %v4759 = vmul.f32 %v4695, %v4751
        %v4760 = vmul.f32 %v4696, %v4752
        %v4761 = vmul.f32 %v4697, %v4753
        %v4762 = vmul.f32 %v4698, %v4754
        %v4763 = vmul.f32 %v4699, %v4755
        %v4764 = vmul.f32 %v4700, %v4756
        %v4765 = vlaneseq
        %v4766 = vshrl.u32 %v4765, 7
        %v4767 = vsub.s32 7, %v4766
        %v4768 = vrot.slane %v339, %v4767
        %v4769 = vmul.f32 %v4757, %v4768
        %v4770 = vmul.f32 %v4758, %v4768
        %v4771 = vmul.f32 %v4759, %v4768
        %v4772 = vmul.f32 %v4760, %v4768
        %v4773 = vmul.f32 %v4761, %v4768
        %v4774 = vmul.f32 %v4762, %v4768
        %v4775 = vmul.f32 %v4763, %v4768
        %v4776 = vmul.f32 %v4764, %v4768
        %v4777 = vlaneseq
        %v4778 = vshrl.u32 %v4777, 7
        %v4779 = vsub.s32 0, %v4778
        %v4780 = vrot.slane %v340, %v4779
        %v4781 = vadd.f32 %v4769, %v4780
        %v4782 = vadd.f32 %v4770, %v4780
        %v4783 = vadd.f32 %v4771, %v4780
        %v4784 = vadd.f32 %v4772, %v4780
        %v4785 = vadd.f32 %v4773, %v4780
        %v4786 = vadd.f32 %v4774, %v4780
        %v4787 = vadd.f32 %v4775, %v4780
        %v4788 = vadd.f32 %v4776, %v4780
        %v4789 = vpack.c.bf16 %v4782, %v4781
        %v4790 = vpack.c.bf16 %v4784, %v4783
        %v4791 = vpack.c.bf16 %v4786, %v4785
        %v4792 = vpack.c.bf16 %v4788, %v4787
        %v4797 = vunpack.c.l.b16 %v315
        %v4798 = vunpack.c.l.b16 %v316
        %v4799 = vunpack.c.l.b16 %v317
        %v4800 = vunpack.c.l.b16 %v318
        %v4801 = vpack.c.b16 %v4798, %v4797
        %v4802 = vpack.c.b16 %v4800, %v4799
        %v4806 = vsel %vm449, %v4789, 0
        %v4809 = vsel %vm449, %v4790, 0
        %v4812 = vsel %vm449, %v4791, 0
        %v4815 = vsel %vm449, %v4792, 0
        %4817 = vmatprep.subr.bf16.mxu0 0
        %4818 = vmatpush1.bf16.msra.mxu0 %v4801
        %4819 = vmatprep.subr.bf16.mxu0 0
        %4820 = vmatpush1.bf16.msra.mxu0 %v4802
        %4821 = vmatprep.subr.bf16.mxu0 0
        %4822 = vmatpush1.bf16.msra.mxu0 0
        %4823 = vmatprep.subr.bf16.mxu0 0
        %4824 = vmatpush1.bf16.msra.mxu0 0
        %4825 = vmatprep.subr.bf16.mxu0 0
        %4826 = vmatpush1.bf16.msra.mxu0 0
        %4827 = vmatprep.subr.bf16.mxu0 0
        %4828 = vmatpush1.bf16.msra.mxu0 0
        %4829 = vmatprep.subr.bf16.mxu0 0
        %4830 = vmatpush1.bf16.msra.mxu0 0
        %4831 = vmatprep.subr.bf16.mxu0 0
        %4832 = vmatpush1.bf16.msra.mxu0 0
        %4833 = vmatprep.subr.bf16.mxu0 0
        %4834 = vmatpush1.bf16.msra.mxu0 0
        %4835 = vmatprep.subr.bf16.mxu0 0
        %4836 = vmatpush1.bf16.msra.mxu0 0
        %4837 = vmatprep.subr.bf16.mxu0 0
        %4838 = vmatpush1.bf16.msra.mxu0 0
        %4839 = vmatprep.subr.bf16.mxu0 0
        %4840 = vmatpush1.bf16.msra.mxu0 0
        %4841 = vmatprep.subr.bf16.mxu0 0
        %4842 = vmatpush1.bf16.msra.mxu0 0
        %4843 = vmatprep.subr.bf16.mxu0 0
        %4844 = vmatpush1.bf16.msra.mxu0 0
        %4845 = vmatprep.subr.bf16.mxu0 0
        %4846 = vmatpush1.bf16.msra.mxu0 0
        %4847 = vmatprep.subr.bf16.mxu0 0
        %4848 = vmatpush1.bf16.msra.mxu0 0
        %4849 = vmatprep.mubr.bf16.mxu0 0
        %4850 = vmatmul.mubr.bf16.gmra.mrb[0].mxu0 %v4806
        %v4851 = vpop.f32.mrb[0].mxu0
        %v4852 = vadd.f32 0.0, %v4851
        %v4853 = vpop.f32.mrb[0].mxu0
        %v4854 = vpop.f32.mrb[0].mxu0
        %v4855 = vadd.f32 0.0, %v4854
        %v4856 = vpop.f32.mrb[0].mxu0
        %4857 = vmatprep.mubr.bf16.mxu0 0
        %4858 = vmatmul.mubr.bf16.gmra.mrb[0].mxu0 %v4809
        %v4859 = vpop.f32.mrb[0].mxu0
        %v4860 = vadd.f32 0.0, %v4859
        %v4861 = vpop.f32.mrb[0].mxu0
        %v4862 = vpop.f32.mrb[0].mxu0
        %v4863 = vadd.f32 0.0, %v4862
        %v4864 = vpop.f32.mrb[0].mxu0
        %4865 = vmatprep.mubr.bf16.mxu0 0
        %4866 = vmatmul.mubr.bf16.gmra.mrb[0].mxu0 %v4812
        %v4867 = vpop.f32.mrb[0].mxu0
        %v4868 = vadd.f32 0.0, %v4867
        %v4869 = vpop.f32.mrb[0].mxu0
        %v4870 = vpop.f32.mrb[0].mxu0
        %v4871 = vadd.f32 0.0, %v4870
        %v4872 = vpop.f32.mrb[0].mxu0
        %4873 = vmatprep.mubr.bf16.mxu0 0
        %4874 = vmatmul.mubr.bf16.gmra.mrb[0].mxu0 %v4815
        %v4875 = vpop.f32.mrb[0].mxu0
        %v4876 = vadd.f32 0.0, %v4875
        %v4877 = vpop.f32.mrb[0].mxu0
        %v4878 = vpop.f32.mrb[0].mxu0
        %v4879 = vadd.f32 0.0, %v4878
        %v4880 = vpop.f32.mrb[0].mxu0
        %4881 = vdwg.mxu0
        %v4882 = vcombine.low %v4852, %v4860
        %v4883 = vcombine.high %v4852, %v4860
        %v4885 = vunpack.c.l.s4 1983009808
        %v4886 = vunpack.c.0.s8 %v4885
        %v4887 = vlaneseq
        %v4888 = vshrl.u32 %v4887, 7
        %v4889 = vsub.s32 %v4886, %v4888
        %v4890 = vrot.slane %v4882, %v4889
        %v4892 = vunpack.c.l.s4 1983009808
        %v4893 = vunpack.c.0.s8 %v4892
        %v4894 = vlaneseq
        %v4895 = vshrl.u32 %v4894, 7
        %v4896 = vsub.s32 %v4893, %v4895
        %v4897 = vrot.slane %v4883, %v4896
        %v4898 = vcombine.low %v4855, %v4863
        %v4899 = vcombine.high %v4855, %v4863
        %v4901 = vunpack.c.l.s4 1983009808
        %v4902 = vunpack.c.0.s8 %v4901
        %v4903 = vlaneseq
        %v4904 = vshrl.u32 %v4903, 7
        %v4905 = vsub.s32 %v4902, %v4904
        %v4906 = vrot.slane %v4898, %v4905
        %v4908 = vunpack.c.l.s4 1983009808
        %v4909 = vunpack.c.0.s8 %v4908
        %v4910 = vlaneseq
        %v4911 = vshrl.u32 %v4910, 7
        %v4912 = vsub.s32 %v4909, %v4911
        %v4913 = vrot.slane %v4899, %v4912
        %v4914 = vcombine.low %v4868, %v4876
        %v4915 = vcombine.high %v4868, %v4876
        %v4917 = vunpack.c.l.s4 1983009808
        %v4918 = vunpack.c.0.s8 %v4917
        %v4919 = vlaneseq
        %v4920 = vshrl.u32 %v4919, 7
        %v4921 = vsub.s32 %v4918, %v4920
        %v4922 = vrot.slane %v4914, %v4921
        %v4924 = vunpack.c.l.s4 1983009808
        %v4925 = vunpack.c.0.s8 %v4924
        %v4926 = vlaneseq
        %v4927 = vshrl.u32 %v4926, 7
        %v4928 = vsub.s32 %v4925, %v4927
        %v4929 = vrot.slane %v4915, %v4928
        %v4930 = vcombine.low %v4871, %v4879
        %v4931 = vcombine.high %v4871, %v4879
        %v4933 = vunpack.c.l.s4 1983009808
        %v4934 = vunpack.c.0.s8 %v4933
        %v4935 = vlaneseq
        %v4936 = vshrl.u32 %v4935, 7
        %v4937 = vsub.s32 %v4934, %v4936
        %v4938 = vrot.slane %v4930, %v4937
        %v4940 = vunpack.c.l.s4 1983009808
        %v4941 = vunpack.c.0.s8 %v4940
        %v4942 = vlaneseq
        %v4943 = vshrl.u32 %v4942, 7
        %v4944 = vsub.s32 %v4941, %v4943
        %v4945 = vrot.slane %v4931, %v4944
        %v4946 = vcombine.low %v4890, %v4906
        %v4947 = vcombine.high %v4890, %v4906
        %v4949 = vunpack.c.l.s4 1934713408
        %v4950 = vunpack.c.0.s8 %v4949
        %v4951 = vlaneseq
        %v4952 = vshrl.u32 %v4951, 7
        %v4953 = vsub.s32 %v4950, %v4952
        %v4954 = vrot.slane %v4946, %v4953
        %v4956 = vunpack.c.l.s4 1934713408
        %v4957 = vunpack.c.0.s8 %v4956
        %v4958 = vlaneseq
        %v4959 = vshrl.u32 %v4958, 7
        %v4960 = vsub.s32 %v4957, %v4959
        %v4961 = vrot.slane %v4947, %v4960
        %v4962 = vcombine.low %v4897, %v4913
        %v4963 = vcombine.high %v4897, %v4913
        %v4965 = vunpack.c.l.s4 1934713408
        %v4966 = vunpack.c.0.s8 %v4965
        %v4967 = vlaneseq
        %v4968 = vshrl.u32 %v4967, 7
        %v4969 = vsub.s32 %v4966, %v4968
        %v4970 = vrot.slane %v4962, %v4969
        %v4972 = vunpack.c.l.s4 1934713408
        %v4973 = vunpack.c.0.s8 %v4972
        %v4974 = vlaneseq
        %v4975 = vshrl.u32 %v4974, 7
        %v4976 = vsub.s32 %v4973, %v4975
        %v4977 = vrot.slane %v4963, %v4976
        %v4978 = vcombine.low %v4922, %v4938
        %v4979 = vcombine.high %v4922, %v4938
        %v4981 = vunpack.c.l.s4 1934713408
        %v4982 = vunpack.c.0.s8 %v4981
        %v4983 = vlaneseq
        %v4984 = vshrl.u32 %v4983, 7
        %v4985 = vsub.s32 %v4982, %v4984
        %v4986 = vrot.slane %v4978, %v4985
        %v4988 = vunpack.c.l.s4 1934713408
        %v4989 = vunpack.c.0.s8 %v4988
        %v4990 = vlaneseq
        %v4991 = vshrl.u32 %v4990, 7
        %v4992 = vsub.s32 %v4989, %v4991
        %v4993 = vrot.slane %v4979, %v4992
        %v4994 = vcombine.low %v4929, %v4945
        %v4995 = vcombine.high %v4929, %v4945
        %v4997 = vunpack.c.l.s4 1934713408
        %v4998 = vunpack.c.0.s8 %v4997
        %v4999 = vlaneseq
        %v5000 = vshrl.u32 %v4999, 7
        %v5001 = vsub.s32 %v4998, %v5000
        %v5002 = vrot.slane %v4994, %v5001
        %v5004 = vunpack.c.l.s4 1934713408
        %v5005 = vunpack.c.0.s8 %v5004
        %v5006 = vlaneseq
        %v5007 = vshrl.u32 %v5006, 7
        %v5008 = vsub.s32 %v5005, %v5007
        %v5009 = vrot.slane %v4995, %v5008
        %v5010 = vcombine.low %v4954, %v4986
        %v5011 = vcombine.high %v4954, %v4986
        %v5012 = vcombine.low %v4961, %v4993
        %v5013 = vcombine.high %v4961, %v4993
        %v5014 = vcombine.low %v4970, %v5002
        %v5015 = vcombine.high %v4970, %v5002
        %v5016 = vcombine.low %v4977, %v5009
        %v5017 = vcombine.high %v4977, %v5009
        %5026 = vrot.lane.b32.xlu0 %v4852, 96
        %v5027 = vpop.permute.xlu0 %5026
        %5028 = vrot.lane.b32.xlu0 %v4855, 96
        %v5029 = vpop.permute.xlu0 %5028
        %5030 = vrot.lane.b32.xlu0 %v4860, 96
        %v5031 = vpop.permute.xlu0 %5030
        %5032 = vrot.lane.b32.xlu0 %v4863, 96
        %v5033 = vpop.permute.xlu0 %5032
        %5034 = vrot.lane.b32.xlu0 %v4868, 96
        %v5035 = vpop.permute.xlu0 %5034
        %5036 = vrot.lane.b32.xlu0 %v4871, 96
        %v5037 = vpop.permute.xlu0 %5036
        %5038 = vrot.lane.b32.xlu0 %v4876, 96
        %v5039 = vpop.permute.xlu0 %5038
        %5040 = vrot.lane.b32.xlu0 %v4879, 96
        %v5041 = vpop.permute.xlu0 %5040
        %v5050 = vcombine.low %v5027, %v5031
        %v5051 = vcombine.high %v5027, %v5031
        %v5053 = vunpack.c.l.s4 1983009808
        %v5054 = vunpack.c.0.s8 %v5053
        %v5055 = vlaneseq
        %v5056 = vshrl.u32 %v5055, 7
        %v5057 = vsub.s32 %v5054, %v5056
        %v5058 = vrot.slane %v5050, %v5057
        %v5060 = vunpack.c.l.s4 1983009808
        %v5061 = vunpack.c.0.s8 %v5060
        %v5062 = vlaneseq
        %v5063 = vshrl.u32 %v5062, 7
        %v5064 = vsub.s32 %v5061, %v5063
        %v5065 = vrot.slane %v5051, %v5064
        %v5066 = vcombine.low %v5029, %v5033
        %v5067 = vcombine.high %v5029, %v5033
        %v5069 = vunpack.c.l.s4 1983009808
        %v5070 = vunpack.c.0.s8 %v5069
        %v5071 = vlaneseq
        %v5072 = vshrl.u32 %v5071, 7
        %v5073 = vsub.s32 %v5070, %v5072
        %v5074 = vrot.slane %v5066, %v5073
        %v5076 = vunpack.c.l.s4 1983009808
        %v5077 = vunpack.c.0.s8 %v5076
        %v5078 = vlaneseq
        %v5079 = vshrl.u32 %v5078, 7
        %v5080 = vsub.s32 %v5077, %v5079
        %v5081 = vrot.slane %v5067, %v5080
        %v5082 = vcombine.low %v5035, %v5039
        %v5083 = vcombine.high %v5035, %v5039
        %v5085 = vunpack.c.l.s4 1983009808
        %v5086 = vunpack.c.0.s8 %v5085
        %v5087 = vlaneseq
        %v5088 = vshrl.u32 %v5087, 7
        %v5089 = vsub.s32 %v5086, %v5088
        %v5090 = vrot.slane %v5082, %v5089
        %v5092 = vunpack.c.l.s4 1983009808
        %v5093 = vunpack.c.0.s8 %v5092
        %v5094 = vlaneseq
        %v5095 = vshrl.u32 %v5094, 7
        %v5096 = vsub.s32 %v5093, %v5095
        %v5097 = vrot.slane %v5083, %v5096
        %v5098 = vcombine.low %v5037, %v5041
        %v5099 = vcombine.high %v5037, %v5041
        %v5101 = vunpack.c.l.s4 1983009808
        %v5102 = vunpack.c.0.s8 %v5101
        %v5103 = vlaneseq
        %v5104 = vshrl.u32 %v5103, 7
        %v5105 = vsub.s32 %v5102, %v5104
        %v5106 = vrot.slane %v5098, %v5105
        %v5108 = vunpack.c.l.s4 1983009808
        %v5109 = vunpack.c.0.s8 %v5108
        %v5110 = vlaneseq
        %v5111 = vshrl.u32 %v5110, 7
        %v5112 = vsub.s32 %v5109, %v5111
        %v5113 = vrot.slane %v5099, %v5112
        %v5114 = vcombine.low %v5058, %v5074
        %v5115 = vcombine.high %v5058, %v5074
        %v5117 = vunpack.c.l.s4 1934713408
        %v5118 = vunpack.c.0.s8 %v5117
        %v5119 = vlaneseq
        %v5120 = vshrl.u32 %v5119, 7
        %v5121 = vsub.s32 %v5118, %v5120
        %v5122 = vrot.slane %v5114, %v5121
        %v5124 = vunpack.c.l.s4 1934713408
        %v5125 = vunpack.c.0.s8 %v5124
        %v5126 = vlaneseq
        %v5127 = vshrl.u32 %v5126, 7
        %v5128 = vsub.s32 %v5125, %v5127
        %v5129 = vrot.slane %v5115, %v5128
        %v5130 = vcombine.low %v5065, %v5081
        %v5131 = vcombine.high %v5065, %v5081
        %v5133 = vunpack.c.l.s4 1934713408
        %v5134 = vunpack.c.0.s8 %v5133
        %v5135 = vlaneseq
        %v5136 = vshrl.u32 %v5135, 7
        %v5137 = vsub.s32 %v5134, %v5136
        %v5138 = vrot.slane %v5130, %v5137
        %v5140 = vunpack.c.l.s4 1934713408
        %v5141 = vunpack.c.0.s8 %v5140
        %v5142 = vlaneseq
        %v5143 = vshrl.u32 %v5142, 7
        %v5144 = vsub.s32 %v5141, %v5143
        %v5145 = vrot.slane %v5131, %v5144
        %v5146 = vcombine.low %v5090, %v5106
        %v5147 = vcombine.high %v5090, %v5106
        %v5149 = vunpack.c.l.s4 1934713408
        %v5150 = vunpack.c.0.s8 %v5149
        %v5151 = vlaneseq
        %v5152 = vshrl.u32 %v5151, 7
        %v5153 = vsub.s32 %v5150, %v5152
        %v5154 = vrot.slane %v5146, %v5153
        %v5156 = vunpack.c.l.s4 1934713408
        %v5157 = vunpack.c.0.s8 %v5156
        %v5158 = vlaneseq
        %v5159 = vshrl.u32 %v5158, 7
        %v5160 = vsub.s32 %v5157, %v5159
        %v5161 = vrot.slane %v5147, %v5160
        %v5162 = vcombine.low %v5097, %v5113
        %v5163 = vcombine.high %v5097, %v5113
        %v5165 = vunpack.c.l.s4 1934713408
        %v5166 = vunpack.c.0.s8 %v5165
        %v5167 = vlaneseq
        %v5168 = vshrl.u32 %v5167, 7
        %v5169 = vsub.s32 %v5166, %v5168
        %v5170 = vrot.slane %v5162, %v5169
        %v5172 = vunpack.c.l.s4 1934713408
        %v5173 = vunpack.c.0.s8 %v5172
        %v5174 = vlaneseq
        %v5175 = vshrl.u32 %v5174, 7
        %v5176 = vsub.s32 %v5173, %v5175
        %v5177 = vrot.slane %v5163, %v5176
        %v5178 = vcombine.low %v5122, %v5154
        %v5179 = vcombine.high %v5122, %v5154
        %v5180 = vcombine.low %v5129, %v5161
        %v5181 = vcombine.high %v5129, %v5161
        %v5182 = vcombine.low %v5138, %v5170
        %v5183 = vcombine.high %v5138, %v5170
        %v5184 = vcombine.low %v5145, %v5177
        %v5185 = vcombine.high %v5145, %v5177
        %5186 = vrot.lane.b32.xlu0 %v4852, 64
        %v5187 = vpop.permute.xlu0 %5186
        %5188 = vrot.lane.b32.xlu0 %v4855, 64
        %v5189 = vpop.permute.xlu0 %5188
        %5190 = vrot.lane.b32.xlu0 %v4860, 64
        %v5191 = vpop.permute.xlu0 %5190
        %5192 = vrot.lane.b32.xlu0 %v4863, 64
        %v5193 = vpop.permute.xlu0 %5192
        %5194 = vrot.lane.b32.xlu0 %v4868, 64
        %v5195 = vpop.permute.xlu0 %5194
        %5196 = vrot.lane.b32.xlu0 %v4871, 64
        %v5197 = vpop.permute.xlu0 %5196
        %5198 = vrot.lane.b32.xlu0 %v4876, 64
        %v5199 = vpop.permute.xlu0 %5198
        %5200 = vrot.lane.b32.xlu0 %v4879, 64
        %v5201 = vpop.permute.xlu0 %5200
        %v5210 = vcombine.low %v5187, %v5191
        %v5211 = vcombine.high %v5187, %v5191
        %v5213 = vunpack.c.l.s4 1983009808
        %v5214 = vunpack.c.0.s8 %v5213
        %v5215 = vlaneseq
        %v5216 = vshrl.u32 %v5215, 7
        %v5217 = vsub.s32 %v5214, %v5216
        %v5218 = vrot.slane %v5210, %v5217
        %v5220 = vunpack.c.l.s4 1983009808
        %v5221 = vunpack.c.0.s8 %v5220
        %v5222 = vlaneseq
        %v5223 = vshrl.u32 %v5222, 7
        %v5224 = vsub.s32 %v5221, %v5223
        %v5225 = vrot.slane %v5211, %v5224
        %v5226 = vcombine.low %v5189, %v5193
        %v5227 = vcombine.high %v5189, %v5193
        %v5229 = vunpack.c.l.s4 1983009808
        %v5230 = vunpack.c.0.s8 %v5229
        %v5231 = vlaneseq
        %v5232 = vshrl.u32 %v5231, 7
        %v5233 = vsub.s32 %v5230, %v5232
        %v5234 = vrot.slane %v5226, %v5233
        %v5236 = vunpack.c.l.s4 1983009808
        %v5237 = vunpack.c.0.s8 %v5236
        %v5238 = vlaneseq
        %v5239 = vshrl.u32 %v5238, 7
        %v5240 = vsub.s32 %v5237, %v5239
        %v5241 = vrot.slane %v5227, %v5240
        %v5242 = vcombine.low %v5195, %v5199
        %v5243 = vcombine.high %v5195, %v5199
        %v5245 = vunpack.c.l.s4 1983009808
        %v5246 = vunpack.c.0.s8 %v5245
        %v5247 = vlaneseq
        %v5248 = vshrl.u32 %v5247, 7
        %v5249 = vsub.s32 %v5246, %v5248
        %v5250 = vrot.slane %v5242, %v5249
        %v5252 = vunpack.c.l.s4 1983009808
        %v5253 = vunpack.c.0.s8 %v5252
        %v5254 = vlaneseq
        %v5255 = vshrl.u32 %v5254, 7
        %v5256 = vsub.s32 %v5253, %v5255
        %v5257 = vrot.slane %v5243, %v5256
        %v5258 = vcombine.low %v5197, %v5201
        %v5259 = vcombine.high %v5197, %v5201
        %v5261 = vunpack.c.l.s4 1983009808
        %v5262 = vunpack.c.0.s8 %v5261
        %v5263 = vlaneseq
        %v5264 = vshrl.u32 %v5263, 7
        %v5265 = vsub.s32 %v5262, %v5264
        %v5266 = vrot.slane %v5258, %v5265
        %v5268 = vunpack.c.l.s4 1983009808
        %v5269 = vunpack.c.0.s8 %v5268
        %v5270 = vlaneseq
        %v5271 = vshrl.u32 %v5270, 7
        %v5272 = vsub.s32 %v5269, %v5271
        %v5273 = vrot.slane %v5259, %v5272
        %v5274 = vcombine.low %v5218, %v5234
        %v5275 = vcombine.high %v5218, %v5234
        %v5277 = vunpack.c.l.s4 1934713408
        %v5278 = vunpack.c.0.s8 %v5277
        %v5279 = vlaneseq
        %v5280 = vshrl.u32 %v5279, 7
        %v5281 = vsub.s32 %v5278, %v5280
        %v5282 = vrot.slane %v5274, %v5281
        %v5284 = vunpack.c.l.s4 1934713408
        %v5285 = vunpack.c.0.s8 %v5284
        %v5286 = vlaneseq
        %v5287 = vshrl.u32 %v5286, 7
        %v5288 = vsub.s32 %v5285, %v5287
        %v5289 = vrot.slane %v5275, %v5288
        %v5290 = vcombine.low %v5225, %v5241
        %v5291 = vcombine.high %v5225, %v5241
        %v5293 = vunpack.c.l.s4 1934713408
        %v5294 = vunpack.c.0.s8 %v5293
        %v5295 = vlaneseq
        %v5296 = vshrl.u32 %v5295, 7
        %v5297 = vsub.s32 %v5294, %v5296
        %v5298 = vrot.slane %v5290, %v5297
        %v5300 = vunpack.c.l.s4 1934713408
        %v5301 = vunpack.c.0.s8 %v5300
        %v5302 = vlaneseq
        %v5303 = vshrl.u32 %v5302, 7
        %v5304 = vsub.s32 %v5301, %v5303
        %v5305 = vrot.slane %v5291, %v5304
        %v5306 = vcombine.low %v5250, %v5266
        %v5307 = vcombine.high %v5250, %v5266
        %v5309 = vunpack.c.l.s4 1934713408
        %v5310 = vunpack.c.0.s8 %v5309
        %v5311 = vlaneseq
        %v5312 = vshrl.u32 %v5311, 7
        %v5313 = vsub.s32 %v5310, %v5312
        %v5314 = vrot.slane %v5306, %v5313
        %v5316 = vunpack.c.l.s4 1934713408
        %v5317 = vunpack.c.0.s8 %v5316
        %v5318 = vlaneseq
        %v5319 = vshrl.u32 %v5318, 7
        %v5320 = vsub.s32 %v5317, %v5319
        %v5321 = vrot.slane %v5307, %v5320
        %v5322 = vcombine.low %v5257, %v5273
        %v5323 = vcombine.high %v5257, %v5273
        %v5325 = vunpack.c.l.s4 1934713408
        %v5326 = vunpack.c.0.s8 %v5325
        %v5327 = vlaneseq
        %v5328 = vshrl.u32 %v5327, 7
        %v5329 = vsub.s32 %v5326, %v5328
        %v5330 = vrot.slane %v5322, %v5329
        %v5332 = vunpack.c.l.s4 1934713408
        %v5333 = vunpack.c.0.s8 %v5332
        %v5334 = vlaneseq
        %v5335 = vshrl.u32 %v5334, 7
        %v5336 = vsub.s32 %v5333, %v5335
        %v5337 = vrot.slane %v5323, %v5336
        %v5338 = vcombine.low %v5282, %v5314
        %v5339 = vcombine.high %v5282, %v5314
        %v5340 = vcombine.low %v5289, %v5321
        %v5341 = vcombine.high %v5289, %v5321
        %v5342 = vcombine.low %v5298, %v5330
        %v5343 = vcombine.high %v5298, %v5330
        %v5344 = vcombine.low %v5305, %v5337
        %v5345 = vcombine.high %v5305, %v5337
        %v5346 = vmul.f32 %v5010, 0.25
        %v5347 = vmul.f32 %v5011, 0.25
        %v5348 = vmul.f32 %v5012, 0.25
        %v5349 = vmul.f32 %v5013, 0.25
        %v5350 = vmul.f32 %v5014, 0.25
        %v5351 = vmul.f32 %v5015, 0.25
        %v5352 = vmul.f32 %v5016, 0.25
        %v5353 = vmul.f32 %v5017, 0.25
        %v5354 = vpack.c.bf16 %v5346, %v5346
        %v5355 = vpack.c.bf16 %v5347, %v5347
        %v5356 = vpack.c.bf16 %v5348, %v5348
        %v5357 = vpack.c.bf16 %v5349, %v5349
        %v5358 = vpack.c.bf16 %v5350, %v5350
        %v5359 = vpack.c.bf16 %v5351, %v5351
        %v5360 = vpack.c.bf16 %v5352, %v5352
        %v5361 = vpack.c.bf16 %v5353, %v5353
        %v5362 = vpack.c.bf16 %v5178, %v5178
        %v5363 = vpack.c.bf16 %v5179, %v5179
        %v5364 = vpack.c.bf16 %v5180, %v5180
        %v5365 = vpack.c.bf16 %v5181, %v5181
        %v5366 = vpack.c.bf16 %v5182, %v5182
        %v5367 = vpack.c.bf16 %v5183, %v5183
        %v5368 = vpack.c.bf16 %v5184, %v5184
        %v5369 = vpack.c.bf16 %v5185, %v5185
        %v5371 = vsel %vm356, %v5354, 0
        %v5374 = vsel %vm356, %v5362, 0
        %5376 = vmatprep.subr.bf16.mxu0 0
        %5377 = vmatpush1.bf16.xpose.msra.mxu0 %v5374
        %5378 = vmatprep.subr.bf16.mxu0 0
        %5379 = vmatpush1.bf16.xpose.msra.mxu0 0
        %5380 = vmatprep.subr.bf16.mxu0 0
        %5381 = vmatpush1.bf16.xpose.msra.mxu0 0
        %5382 = vmatprep.subr.bf16.mxu0 0
        %5383 = vmatpush1.bf16.xpose.msra.mxu0 0
        %5384 = vmatprep.subr.bf16.mxu0 0
        %5385 = vmatpush1.bf16.xpose.msra.mxu0 0
        %5386 = vmatprep.subr.bf16.mxu0 0
        %5387 = vmatpush1.bf16.xpose.msra.mxu0 0
        %5388 = vmatprep.subr.bf16.mxu0 0
        %5389 = vmatpush1.bf16.xpose.msra.mxu0 0
        %5390 = vmatprep.subr.bf16.mxu0 0
        %5391 = vmatpush1.bf16.xpose.msra.mxu0 0
        %5392 = vmatprep.subr.bf16.mxu0 0
        %5393 = vmatpush1.bf16.xpose.msra.mxu0 0
        %5394 = vmatprep.subr.bf16.mxu0 0
        %5395 = vmatpush1.bf16.xpose.msra.mxu0 0
        %5396 = vmatprep.subr.bf16.mxu0 0
        %5397 = vmatpush1.bf16.xpose.msra.mxu0 0
        %5398 = vmatprep.subr.bf16.mxu0 0
        %5399 = vmatpush1.bf16.xpose.msra.mxu0 0
        %5400 = vmatprep.subr.bf16.mxu0 0
        %5401 = vmatpush1.bf16.xpose.msra.mxu0 0
        %5402 = vmatprep.subr.bf16.mxu0 0
        %5403 = vmatpush1.bf16.xpose.msra.mxu0 0
        %5404 = vmatprep.subr.bf16.mxu0 0
        %5405 = vmatpush1.bf16.xpose.msra.mxu0 0
        %5406 = vmatprep.subr.bf16.mxu0 0
        %5407 = vmatpush1.bf16.xpose.msra.mxu0 0
        %5408 = vmatprep.mubr.bf16.mxu0 0
        %5409 = vmatmul.mubr.bf16.gmra.mrb[0].mxu0 %v5371
        %v5410 = vpop.f32.mrb[0].mxu0
        %v5411 = vadd.f32 0.0, %v5410
        %v5412 = vpop.f32.mrb[0].mxu0
        %v5413 = vpop.f32.mrb[0].mxu0
        %v5414 = vpop.f32.mrb[0].mxu0
        %5415 = vdwg.mxu0
        %v5417 = vsel %vm356, %v5355, 0
        %v5420 = vsel %vm356, %v5363, 0
        %5422 = vmatprep.subr.bf16.mxu0 0
        %5423 = vmatpush1.bf16.xpose.msra.mxu0 %v5420
        %5424 = vmatprep.subr.bf16.mxu0 0
        %5425 = vmatpush1.bf16.xpose.msra.mxu0 0
        %5426 = vmatprep.subr.bf16.mxu0 0
        %5427 = vmatpush1.bf16.xpose.msra.mxu0 0
        %5428 = vmatprep.subr.bf16.mxu0 0
        %5429 = vmatpush1.bf16.xpose.msra.mxu0 0
        %5430 = vmatprep.subr.bf16.mxu0 0
        %5431 = vmatpush1.bf16.xpose.msra.mxu0 0
        %5432 = vmatprep.subr.bf16.mxu0 0
        %5433 = vmatpush1.bf16.xpose.msra.mxu0 0
        %5434 = vmatprep.subr.bf16.mxu0 0
        %5435 = vmatpush1.bf16.xpose.msra.mxu0 0
        %5436 = vmatprep.subr.bf16.mxu0 0
        %5437 = vmatpush1.bf16.xpose.msra.mxu0 0
        %5438 = vmatprep.subr.bf16.mxu0 0
        %5439 = vmatpush1.bf16.xpose.msra.mxu0 0
        %5440 = vmatprep.subr.bf16.mxu0 0
        %5441 = vmatpush1.bf16.xpose.msra.mxu0 0
        %5442 = vmatprep.subr.bf16.mxu0 0
        %5443 = vmatpush1.bf16.xpose.msra.mxu0 0
        %5444 = vmatprep.subr.bf16.mxu0 0
        %5445 = vmatpush1.bf16.xpose.msra.mxu0 0
        %5446 = vmatprep.subr.bf16.mxu0 0
        %5447 = vmatpush1.bf16.xpose.msra.mxu0 0
        %5448 = vmatprep.subr.bf16.mxu0 0
        %5449 = vmatpush1.bf16.xpose.msra.mxu0 0
        %5450 = vmatprep.subr.bf16.mxu0 0
        %5451 = vmatpush1.bf16.xpose.msra.mxu0 0
        %5452 = vmatprep.subr.bf16.mxu0 0
        %5453 = vmatpush1.bf16.xpose.msra.mxu0 0
        %5454 = vmatprep.mubr.bf16.mxu0 0
        %5455 = vmatmul.mubr.bf16.gmra.mrb[0].mxu0 %v5417
        %v5456 = vpop.f32.mrb[0].mxu0
        %v5457 = vadd.f32 0.0, %v5456
        %v5458 = vpop.f32.mrb[0].mxu0
        %v5459 = vpop.f32.mrb[0].mxu0
        %v5460 = vpop.f32.mrb[0].mxu0
        %5461 = vdwg.mxu0
        %v5463 = vsel %vm356, %v5356, 0
        %v5466 = vsel %vm356, %v5364, 0
        %5468 = vmatprep.subr.bf16.mxu0 0
        %5469 = vmatpush1.bf16.xpose.msra.mxu0 %v5466
        %5470 = vmatprep.subr.bf16.mxu0 0
        %5471 = vmatpush1.bf16.xpose.msra.mxu0 0
        %5472 = vmatprep.subr.bf16.mxu0 0
        %5473 = vmatpush1.bf16.xpose.msra.mxu0 0
        %5474 = vmatprep.subr.bf16.mxu0 0
        %5475 = vmatpush1.bf16.xpose.msra.mxu0 0
        %5476 = vmatprep.subr.bf16.mxu0 0
        %5477 = vmatpush1.bf16.xpose.msra.mxu0 0
        %5478 = vmatprep.subr.bf16.mxu0 0
        %5479 = vmatpush1.bf16.xpose.msra.mxu0 0
        %5480 = vmatprep.subr.bf16.mxu0 0
        %5481 = vmatpush1.bf16.xpose.msra.mxu0 0
        %5482 = vmatprep.subr.bf16.mxu0 0
        %5483 = vmatpush1.bf16.xpose.msra.mxu0 0
        %5484 = vmatprep.subr.bf16.mxu0 0
        %5485 = vmatpush1.bf16.xpose.msra.mxu0 0
        %5486 = vmatprep.subr.bf16.mxu0 0
        %5487 = vmatpush1.bf16.xpose.msra.mxu0 0
        %5488 = vmatprep.subr.bf16.mxu0 0
        %5489 = vmatpush1.bf16.xpose.msra.mxu0 0
        %5490 = vmatprep.subr.bf16.mxu0 0
        %5491 = vmatpush1.bf16.xpose.msra.mxu0 0
        %5492 = vmatprep.subr.bf16.mxu0 0
        %5493 = vmatpush1.bf16.xpose.msra.mxu0 0
        %5494 = vmatprep.subr.bf16.mxu0 0
        %5495 = vmatpush1.bf16.xpose.msra.mxu0 0
        %5496 = vmatprep.subr.bf16.mxu0 0
        %5497 = vmatpush1.bf16.xpose.msra.mxu0 0
        %5498 = vmatprep.subr.bf16.mxu0 0
        %5499 = vmatpush1.bf16.xpose.msra.mxu0 0
        %5500 = vmatprep.mubr.bf16.mxu0 0
        %5501 = vmatmul.mubr.bf16.gmra.mrb[0].mxu0 %v5463
        %v5502 = vpop.f32.mrb[0].mxu0
        %v5503 = vadd.f32 0.0, %v5502
        %v5504 = vpop.f32.mrb[0].mxu0
        %v5505 = vpop.f32.mrb[0].mxu0
        %v5506 = vpop.f32.mrb[0].mxu0
        %5507 = vdwg.mxu0
        %v5509 = vsel %vm356, %v5357, 0
        %v5512 = vsel %vm356, %v5365, 0
        %5514 = vmatprep.subr.bf16.mxu0 0
        %5515 = vmatpush1.bf16.xpose.msra.mxu0 %v5512
        %5516 = vmatprep.subr.bf16.mxu0 0
        %5517 = vmatpush1.bf16.xpose.msra.mxu0 0
        %5518 = vmatprep.subr.bf16.mxu0 0
        %5519 = vmatpush1.bf16.xpose.msra.mxu0 0
        %5520 = vmatprep.subr.bf16.mxu0 0
        %5521 = vmatpush1.bf16.xpose.msra.mxu0 0
        %5522 = vmatprep.subr.bf16.mxu0 0
        %5523 = vmatpush1.bf16.xpose.msra.mxu0 0
        %5524 = vmatprep.subr.bf16.mxu0 0
        %5525 = vmatpush1.bf16.xpose.msra.mxu0 0
        %5526 = vmatprep.subr.bf16.mxu0 0
        %5527 = vmatpush1.bf16.xpose.msra.mxu0 0
        %5528 = vmatprep.subr.bf16.mxu0 0
        %5529 = vmatpush1.bf16.xpose.msra.mxu0 0
        %5530 = vmatprep.subr.bf16.mxu0 0
        %5531 = vmatpush1.bf16.xpose.msra.mxu0 0
        %5532 = vmatprep.subr.bf16.mxu0 0
        %5533 = vmatpush1.bf16.xpose.msra.mxu0 0
        %5534 = vmatprep.subr.bf16.mxu0 0
        %5535 = vmatpush1.bf16.xpose.msra.mxu0 0
        %5536 = vmatprep.subr.bf16.mxu0 0
        %5537 = vmatpush1.bf16.xpose.msra.mxu0 0
        %5538 = vmatprep.subr.bf16.mxu0 0
        %5539 = vmatpush1.bf16.xpose.msra.mxu0 0
        %5540 = vmatprep.subr.bf16.mxu0 0
        %5541 = vmatpush1.bf16.xpose.msra.mxu0 0
        %5542 = vmatprep.subr.bf16.mxu0 0
        %5543 = vmatpush1.bf16.xpose.msra.mxu0 0
        %5544 = vmatprep.subr.bf16.mxu0 0
        %5545 = vmatpush1.bf16.xpose.msra.mxu0 0
        %5546 = vmatprep.mubr.bf16.mxu0 0
        %5547 = vmatmul.mubr.bf16.gmra.mrb[0].mxu0 %v5509
        %v5548 = vpop.f32.mrb[0].mxu0
        %v5549 = vadd.f32 0.0, %v5548
        %v5550 = vpop.f32.mrb[0].mxu0
        %v5551 = vpop.f32.mrb[0].mxu0
        %v5552 = vpop.f32.mrb[0].mxu0
        %5553 = vdwg.mxu0
        %v5555 = vsel %vm356, %v5358, 0
        %v5558 = vsel %vm356, %v5366, 0
        %5560 = vmatprep.subr.bf16.mxu0 0
        %5561 = vmatpush1.bf16.xpose.msra.mxu0 %v5558
        %5562 = vmatprep.subr.bf16.mxu0 0
        %5563 = vmatpush1.bf16.xpose.msra.mxu0 0
        %5564 = vmatprep.subr.bf16.mxu0 0
        %5565 = vmatpush1.bf16.xpose.msra.mxu0 0
        %5566 = vmatprep.subr.bf16.mxu0 0
        %5567 = vmatpush1.bf16.xpose.msra.mxu0 0
        %5568 = vmatprep.subr.bf16.mxu0 0
        %5569 = vmatpush1.bf16.xpose.msra.mxu0 0
        %5570 = vmatprep.subr.bf16.mxu0 0
        %5571 = vmatpush1.bf16.xpose.msra.mxu0 0
        %5572 = vmatprep.subr.bf16.mxu0 0
        %5573 = vmatpush1.bf16.xpose.msra.mxu0 0
        %5574 = vmatprep.subr.bf16.mxu0 0
        %5575 = vmatpush1.bf16.xpose.msra.mxu0 0
        %5576 = vmatprep.subr.bf16.mxu0 0
        %5577 = vmatpush1.bf16.xpose.msra.mxu0 0
        %5578 = vmatprep.subr.bf16.mxu0 0
        %5579 = vmatpush1.bf16.xpose.msra.mxu0 0
        %5580 = vmatprep.subr.bf16.mxu0 0
        %5581 = vmatpush1.bf16.xpose.msra.mxu0 0
        %5582 = vmatprep.subr.bf16.mxu0 0
        %5583 = vmatpush1.bf16.xpose.msra.mxu0 0
        %5584 = vmatprep.subr.bf16.mxu0 0
        %5585 = vmatpush1.bf16.xpose.msra.mxu0 0
        %5586 = vmatprep.subr.bf16.mxu0 0
        %5587 = vmatpush1.bf16.xpose.msra.mxu0 0
        %5588 = vmatprep.subr.bf16.mxu0 0
        %5589 = vmatpush1.bf16.xpose.msra.mxu0 0
        %5590 = vmatprep.subr.bf16.mxu0 0
        %5591 = vmatpush1.bf16.xpose.msra.mxu0 0
        %5592 = vmatprep.mubr.bf16.mxu0 0
        %5593 = vmatmul.mubr.bf16.gmra.mrb[0].mxu0 %v5555
        %v5594 = vpop.f32.mrb[0].mxu0
        %v5595 = vadd.f32 0.0, %v5594
        %v5596 = vpop.f32.mrb[0].mxu0
        %v5597 = vpop.f32.mrb[0].mxu0
        %v5598 = vpop.f32.mrb[0].mxu0
        %5599 = vdwg.mxu0
        %v5601 = vsel %vm356, %v5359, 0
        %v5604 = vsel %vm356, %v5367, 0
        %5606 = vmatprep.subr.bf16.mxu0 0
        %5607 = vmatpush1.bf16.xpose.msra.mxu0 %v5604
        %5608 = vmatprep.subr.bf16.mxu0 0
        %5609 = vmatpush1.bf16.xpose.msra.mxu0 0
        %5610 = vmatprep.subr.bf16.mxu0 0
        %5611 = vmatpush1.bf16.xpose.msra.mxu0 0
        %5612 = vmatprep.subr.bf16.mxu0 0
        %5613 = vmatpush1.bf16.xpose.msra.mxu0 0
        %5614 = vmatprep.subr.bf16.mxu0 0
        %5615 = vmatpush1.bf16.xpose.msra.mxu0 0
        %5616 = vmatprep.subr.bf16.mxu0 0
        %5617 = vmatpush1.bf16.xpose.msra.mxu0 0
        %5618 = vmatprep.subr.bf16.mxu0 0
        %5619 = vmatpush1.bf16.xpose.msra.mxu0 0
        %5620 = vmatprep.subr.bf16.mxu0 0
        %5621 = vmatpush1.bf16.xpose.msra.mxu0 0
        %5622 = vmatprep.subr.bf16.mxu0 0
        %5623 = vmatpush1.bf16.xpose.msra.mxu0 0
        %5624 = vmatprep.subr.bf16.mxu0 0
        %5625 = vmatpush1.bf16.xpose.msra.mxu0 0
        %5626 = vmatprep.subr.bf16.mxu0 0
        %5627 = vmatpush1.bf16.xpose.msra.mxu0 0
        %5628 = vmatprep.subr.bf16.mxu0 0
        %5629 = vmatpush1.bf16.xpose.msra.mxu0 0
        %5630 = vmatprep.subr.bf16.mxu0 0
        %5631 = vmatpush1.bf16.xpose.msra.mxu0 0
        %5632 = vmatprep.subr.bf16.mxu0 0
        %5633 = vmatpush1.bf16.xpose.msra.mxu0 0
        %5634 = vmatprep.subr.bf16.mxu0 0
        %5635 = vmatpush1.bf16.xpose.msra.mxu0 0
        %5636 = vmatprep.subr.bf16.mxu0 0
        %5637 = vmatpush1.bf16.xpose.msra.mxu0 0
        %5638 = vmatprep.mubr.bf16.mxu0 0
        %5639 = vmatmul.mubr.bf16.gmra.mrb[0].mxu0 %v5601
        %v5640 = vpop.f32.mrb[0].mxu0
        %v5641 = vadd.f32 0.0, %v5640
        %v5642 = vpop.f32.mrb[0].mxu0
        %v5643 = vpop.f32.mrb[0].mxu0
        %v5644 = vpop.f32.mrb[0].mxu0
        %5645 = vdwg.mxu0
        %v5647 = vsel %vm356, %v5360, 0
        %v5650 = vsel %vm356, %v5368, 0
        %5652 = vmatprep.subr.bf16.mxu0 0
        %5653 = vmatpush1.bf16.xpose.msra.mxu0 %v5650
        %5654 = vmatprep.subr.bf16.mxu0 0
        %5655 = vmatpush1.bf16.xpose.msra.mxu0 0
        %5656 = vmatprep.subr.bf16.mxu0 0
        %5657 = vmatpush1.bf16.xpose.msra.mxu0 0
        %5658 = vmatprep.subr.bf16.mxu0 0
        %5659 = vmatpush1.bf16.xpose.msra.mxu0 0
        %5660 = vmatprep.subr.bf16.mxu0 0
        %5661 = vmatpush1.bf16.xpose.msra.mxu0 0
        %5662 = vmatprep.subr.bf16.mxu0 0
        %5663 = vmatpush1.bf16.xpose.msra.mxu0 0
        %5664 = vmatprep.subr.bf16.mxu0 0
        %5665 = vmatpush1.bf16.xpose.msra.mxu0 0
        %5666 = vmatprep.subr.bf16.mxu0 0
        %5667 = vmatpush1.bf16.xpose.msra.mxu0 0
        %5668 = vmatprep.subr.bf16.mxu0 0
        %5669 = vmatpush1.bf16.xpose.msra.mxu0 0
        %5670 = vmatprep.subr.bf16.mxu0 0
        %5671 = vmatpush1.bf16.xpose.msra.mxu0 0
        %5672 = vmatprep.subr.bf16.mxu0 0
        %5673 = vmatpush1.bf16.xpose.msra.mxu0 0
        %5674 = vmatprep.subr.bf16.mxu0 0
        %5675 = vmatpush1.bf16.xpose.msra.mxu0 0
        %5676 = vmatprep.subr.bf16.mxu0 0
        %5677 = vmatpush1.bf16.xpose.msra.mxu0 0
        %5678 = vmatprep.subr.bf16.mxu0 0
        %5679 = vmatpush1.bf16.xpose.msra.mxu0 0
        %5680 = vmatprep.subr.bf16.mxu0 0
        %5681 = vmatpush1.bf16.xpose.msra.mxu0 0
        %5682 = vmatprep.subr.bf16.mxu0 0
        %5683 = vmatpush1.bf16.xpose.msra.mxu0 0
        %5684 = vmatprep.mubr.bf16.mxu0 0
        %5685 = vmatmul.mubr.bf16.gmra.mrb[0].mxu0 %v5647
        %v5686 = vpop.f32.mrb[0].mxu0
        %v5687 = vadd.f32 0.0, %v5686
        %v5688 = vpop.f32.mrb[0].mxu0
        %v5689 = vpop.f32.mrb[0].mxu0
        %v5690 = vpop.f32.mrb[0].mxu0
        %5691 = vdwg.mxu0
        %v5693 = vsel %vm356, %v5361, 0
        %v5696 = vsel %vm356, %v5369, 0
        %5698 = vmatprep.subr.bf16.mxu0 0
        %5699 = vmatpush1.bf16.xpose.msra.mxu0 %v5696
        %5700 = vmatprep.subr.bf16.mxu0 0
        %5701 = vmatpush1.bf16.xpose.msra.mxu0 0
        %5702 = vmatprep.subr.bf16.mxu0 0
        %5703 = vmatpush1.bf16.xpose.msra.mxu0 0
        %5704 = vmatprep.subr.bf16.mxu0 0
        %5705 = vmatpush1.bf16.xpose.msra.mxu0 0
        %5706 = vmatprep.subr.bf16.mxu0 0
        %5707 = vmatpush1.bf16.xpose.msra.mxu0 0
        %5708 = vmatprep.subr.bf16.mxu0 0
        %5709 = vmatpush1.bf16.xpose.msra.mxu0 0
        %5710 = vmatprep.subr.bf16.mxu0 0
        %5711 = vmatpush1.bf16.xpose.msra.mxu0 0
        %5712 = vmatprep.subr.bf16.mxu0 0
        %5713 = vmatpush1.bf16.xpose.msra.mxu0 0
        %5714 = vmatprep.subr.bf16.mxu0 0
        %5715 = vmatpush1.bf16.xpose.msra.mxu0 0
        %5716 = vmatprep.subr.bf16.mxu0 0
        %5717 = vmatpush1.bf16.xpose.msra.mxu0 0
        %5718 = vmatprep.subr.bf16.mxu0 0
        %5719 = vmatpush1.bf16.xpose.msra.mxu0 0
        %5720 = vmatprep.subr.bf16.mxu0 0
        %5721 = vmatpush1.bf16.xpose.msra.mxu0 0
        %5722 = vmatprep.subr.bf16.mxu0 0
        %5723 = vmatpush1.bf16.xpose.msra.mxu0 0
        %5724 = vmatprep.subr.bf16.mxu0 0
        %5725 = vmatpush1.bf16.xpose.msra.mxu0 0
        %5726 = vmatprep.subr.bf16.mxu0 0
        %5727 = vmatpush1.bf16.xpose.msra.mxu0 0
        %5728 = vmatprep.subr.bf16.mxu0 0
        %5729 = vmatpush1.bf16.xpose.msra.mxu0 0
        %5730 = vmatprep.mubr.bf16.mxu0 0
        %5731 = vmatmul.mubr.bf16.gmra.mrb[0].mxu0 %v5693
        %v5732 = vpop.f32.mrb[0].mxu0
        %v5733 = vadd.f32 0.0, %v5732
        %v5734 = vpop.f32.mrb[0].mxu0
        %v5735 = vpop.f32.mrb[0].mxu0
        %v5736 = vpop.f32.mrb[0].mxu0
        %5737 = vdwg.mxu0
        %v5738 = vsel %vm683, %v5411, -inf
        %5739 = vmax.xlane.f32.xlu0 %v5738
        %v5740 = vpop.xlane.xlu0 %5739
        %v5741 = vsel %vm683, %v5457, -inf
        %5742 = vmax.xlane.f32.xlu0 %v5741
        %v5743 = vpop.xlane.xlu0 %5742
        %v5744 = vsel %vm683, %v5503, -inf
        %5745 = vmax.xlane.f32.xlu0 %v5744
        %v5746 = vpop.xlane.xlu0 %5745
        %v5747 = vsel %vm683, %v5549, -inf
        %5748 = vmax.xlane.f32.xlu0 %v5747
        %v5749 = vpop.xlane.xlu0 %5748
        %v5750 = vsel %vm683, %v5595, -inf
        %5751 = vmax.xlane.f32.xlu0 %v5750
        %v5752 = vpop.xlane.xlu0 %5751
        %v5753 = vsel %vm683, %v5641, -inf
        %5754 = vmax.xlane.f32.xlu0 %v5753
        %v5755 = vpop.xlane.xlu0 %5754
        %v5756 = vsel %vm683, %v5687, -inf
        %5757 = vmax.xlane.f32.xlu0 %v5756
        %v5758 = vpop.xlane.xlu0 %5757
        %v5759 = vsel %vm683, %v5733, -inf
        %5760 = vmax.xlane.f32.xlu0 %v5759
        %v5761 = vpop.xlane.xlu0 %5760
        %v5762 = vsub.f32 %v5411, %v5740
        %v5763 = vsub.f32 %v5457, %v5743
        %v5764 = vsub.f32 %v5503, %v5746
        %v5765 = vsub.f32 %v5549, %v5749
        %v5766 = vsub.f32 %v5595, %v5752
        %v5767 = vsub.f32 %v5641, %v5755
        %v5768 = vsub.f32 %v5687, %v5758
        %v5769 = vsub.f32 %v5733, %v5761
        %v5770 = vmul.f32 %v5762, 1.442695
        %v5771 = vpow.pop %v5770
        %v5772 = vmul.f32 %v5763, 1.442695
        %v5773 = vpow.pop %v5772
        %v5774 = vmul.f32 %v5764, 1.442695
        %v5775 = vpow.pop %v5774
        %v5776 = vmul.f32 %v5765, 1.442695
        %v5777 = vpow.pop %v5776
        %v5778 = vmul.f32 %v5766, 1.442695
        %v5779 = vpow.pop %v5778
        %v5780 = vmul.f32 %v5767, 1.442695
        %v5781 = vpow.pop %v5780
        %v5782 = vmul.f32 %v5768, 1.442695
        %v5783 = vpow.pop %v5782
        %v5784 = vmul.f32 %v5769, 1.442695
        %v5785 = vpow.pop %v5784
        %v5786 = vsel %vm683, %v5771, 0.0
        %5787 = vadd.xlane.f32.xlu0 %v5786
        %v5788 = vpop.xlane.xlu0 %5787
        %v5789 = vsel %vm683, %v5773, 0.0
        %5790 = vadd.xlane.f32.xlu0 %v5789
        %v5791 = vpop.xlane.xlu0 %5790
        %v5792 = vsel %vm683, %v5775, 0.0
        %5793 = vadd.xlane.f32.xlu0 %v5792
        %v5794 = vpop.xlane.xlu0 %5793
        %v5795 = vsel %vm683, %v5777, 0.0
        %5796 = vadd.xlane.f32.xlu0 %v5795
        %v5797 = vpop.xlane.xlu0 %5796
        %v5798 = vsel %vm683, %v5779, 0.0
        %5799 = vadd.xlane.f32.xlu0 %v5798
        %v5800 = vpop.xlane.xlu0 %5799
        %v5801 = vsel %vm683, %v5781, 0.0
        %5802 = vadd.xlane.f32.xlu0 %v5801
        %v5803 = vpop.xlane.xlu0 %5802
        %v5804 = vsel %vm683, %v5783, 0.0
        %5805 = vadd.xlane.f32.xlu0 %v5804
        %v5806 = vpop.xlane.xlu0 %5805
        %v5807 = vsel %vm683, %v5785, 0.0
        %5808 = vadd.xlane.f32.xlu0 %v5807
        %v5809 = vpop.xlane.xlu0 %5808
        %v5810 = vrcp.pop %v5788
        %v5811 = vrcp.pop %v5791
        %v5812 = vrcp.pop %v5794
        %v5813 = vrcp.pop %v5797
        %v5814 = vrcp.pop %v5800
        %v5815 = vrcp.pop %v5803
        %v5816 = vrcp.pop %v5806
        %v5817 = vrcp.pop %v5809
        %v5818 = vmul.f32 %v5771, %v5810
        %v5819 = vmul.f32 %v5773, %v5811
        %v5820 = vmul.f32 %v5775, %v5812
        %v5821 = vmul.f32 %v5777, %v5813
        %v5822 = vmul.f32 %v5779, %v5814
        %v5823 = vmul.f32 %v5781, %v5815
        %v5824 = vmul.f32 %v5783, %v5816
        %v5825 = vmul.f32 %v5785, %v5817
        %v5826 = vpack.c.bf16 %v5818, %v5818
        %v5827 = vpack.c.bf16 %v5819, %v5819
        %v5828 = vpack.c.bf16 %v5820, %v5820
        %v5829 = vpack.c.bf16 %v5821, %v5821
        %v5830 = vpack.c.bf16 %v5822, %v5822
        %v5831 = vpack.c.bf16 %v5823, %v5823
        %v5832 = vpack.c.bf16 %v5824, %v5824
        %v5833 = vpack.c.bf16 %v5825, %v5825
        %v5834 = vpack.c.bf16 %v5338, %v5338
        %v5835 = vpack.c.bf16 %v5339, %v5339
        %v5836 = vpack.c.bf16 %v5340, %v5340
        %v5837 = vpack.c.bf16 %v5341, %v5341
        %v5838 = vpack.c.bf16 %v5342, %v5342
        %v5839 = vpack.c.bf16 %v5343, %v5343
        %v5840 = vpack.c.bf16 %v5344, %v5344
        %v5841 = vpack.c.bf16 %v5345, %v5345
        %v5843 = vsel %vm683, %v5826, 0
        %v5846 = vsel %vm1174, %v5834, 0
        %5848 = vmatprep.subr.bf16.mxu0 0
        %5849 = vmatpush1.bf16.msra.mxu0 %v5846
        %5850 = vmatprep.subr.bf16.mxu0 0
        %5851 = vmatpush1.bf16.msra.mxu0 0
        %5852 = vmatprep.subr.bf16.mxu0 0
        %5853 = vmatpush1.bf16.msra.mxu0 0
        %5854 = vmatprep.subr.bf16.mxu0 0
        %5855 = vmatpush1.bf16.msra.mxu0 0
        %5856 = vmatprep.subr.bf16.mxu0 0
        %5857 = vmatpush1.bf16.msra.mxu0 0
        %5858 = vmatprep.subr.bf16.mxu0 0
        %5859 = vmatpush1.bf16.msra.mxu0 0
        %5860 = vmatprep.subr.bf16.mxu0 0
        %5861 = vmatpush1.bf16.msra.mxu0 0
        %5862 = vmatprep.subr.bf16.mxu0 0
        %5863 = vmatpush1.bf16.msra.mxu0 0
        %5864 = vmatprep.subr.bf16.mxu0 0
        %5865 = vmatpush1.bf16.msra.mxu0 0
        %5866 = vmatprep.subr.bf16.mxu0 0
        %5867 = vmatpush1.bf16.msra.mxu0 0
        %5868 = vmatprep.subr.bf16.mxu0 0
        %5869 = vmatpush1.bf16.msra.mxu0 0
        %5870 = vmatprep.subr.bf16.mxu0 0
        %5871 = vmatpush1.bf16.msra.mxu0 0
        %5872 = vmatprep.subr.bf16.mxu0 0
        %5873 = vmatpush1.bf16.msra.mxu0 0
        %5874 = vmatprep.subr.bf16.mxu0 0
        %5875 = vmatpush1.bf16.msra.mxu0 0
        %5876 = vmatprep.subr.bf16.mxu0 0
        %5877 = vmatpush1.bf16.msra.mxu0 0
        %5878 = vmatprep.subr.bf16.mxu0 0
        %5879 = vmatpush1.bf16.msra.mxu0 0
        %5880 = vmatprep.mubr.bf16.mxu0 0
        %5881 = vmatmul.mubr.bf16.gmra.mrb[0].mxu0 %v5843
        %v5882 = vpop.f32.mrb[0].mxu0
        %v5883 = vadd.f32 0.0, %v5882
        %v5884 = vpop.f32.mrb[0].mxu0
        %v5885 = vpop.f32.mrb[0].mxu0
        %v5886 = vpop.f32.mrb[0].mxu0
        %5887 = vdwg.mxu0
        %v5889 = vsel %vm683, %v5827, 0
        %v5892 = vsel %vm1174, %v5835, 0
        %5894 = vmatprep.subr.bf16.mxu0 0
        %5895 = vmatpush1.bf16.msra.mxu0 %v5892
        %5896 = vmatprep.subr.bf16.mxu0 0
        %5897 = vmatpush1.bf16.msra.mxu0 0
        %5898 = vmatprep.subr.bf16.mxu0 0
        %5899 = vmatpush1.bf16.msra.mxu0 0
        %5900 = vmatprep.subr.bf16.mxu0 0
        %5901 = vmatpush1.bf16.msra.mxu0 0
        %5902 = vmatprep.subr.bf16.mxu0 0
        %5903 = vmatpush1.bf16.msra.mxu0 0
        %5904 = vmatprep.subr.bf16.mxu0 0
        %5905 = vmatpush1.bf16.msra.mxu0 0
        %5906 = vmatprep.subr.bf16.mxu0 0
        %5907 = vmatpush1.bf16.msra.mxu0 0
        %5908 = vmatprep.subr.bf16.mxu0 0
        %5909 = vmatpush1.bf16.msra.mxu0 0
        %5910 = vmatprep.subr.bf16.mxu0 0
        %5911 = vmatpush1.bf16.msra.mxu0 0
        %5912 = vmatprep.subr.bf16.mxu0 0
        %5913 = vmatpush1.bf16.msra.mxu0 0
        %5914 = vmatprep.subr.bf16.mxu0 0
        %5915 = vmatpush1.bf16.msra.mxu0 0
        %5916 = vmatprep.subr.bf16.mxu0 0
        %5917 = vmatpush1.bf16.msra.mxu0 0
        %5918 = vmatprep.subr.bf16.mxu0 0
        %5919 = vmatpush1.bf16.msra.mxu0 0
        %5920 = vmatprep.subr.bf16.mxu0 0
        %5921 = vmatpush1.bf16.msra.mxu0 0
        %5922 = vmatprep.subr.bf16.mxu0 0
        %5923 = vmatpush1.bf16.msra.mxu0 0
        %5924 = vmatprep.subr.bf16.mxu0 0
        %5925 = vmatpush1.bf16.msra.mxu0 0
        %5926 = vmatprep.mubr.bf16.mxu0 0
        %5927 = vmatmul.mubr.bf16.gmra.mrb[0].mxu0 %v5889
        %v5928 = vpop.f32.mrb[0].mxu0
        %v5929 = vadd.f32 0.0, %v5928
        %v5930 = vpop.f32.mrb[0].mxu0
        %v5931 = vpop.f32.mrb[0].mxu0
        %v5932 = vpop.f32.mrb[0].mxu0
        %5933 = vdwg.mxu0
        %v5935 = vsel %vm683, %v5828, 0
        %v5938 = vsel %vm1174, %v5836, 0
        %5940 = vmatprep.subr.bf16.mxu0 0
        %5941 = vmatpush1.bf16.msra.mxu0 %v5938
        %5942 = vmatprep.subr.bf16.mxu0 0
        %5943 = vmatpush1.bf16.msra.mxu0 0
        %5944 = vmatprep.subr.bf16.mxu0 0
        %5945 = vmatpush1.bf16.msra.mxu0 0
        %5946 = vmatprep.subr.bf16.mxu0 0
        %5947 = vmatpush1.bf16.msra.mxu0 0
        %5948 = vmatprep.subr.bf16.mxu0 0
        %5949 = vmatpush1.bf16.msra.mxu0 0
        %5950 = vmatprep.subr.bf16.mxu0 0
        %5951 = vmatpush1.bf16.msra.mxu0 0
        %5952 = vmatprep.subr.bf16.mxu0 0
        %5953 = vmatpush1.bf16.msra.mxu0 0
        %5954 = vmatprep.subr.bf16.mxu0 0
        %5955 = vmatpush1.bf16.msra.mxu0 0
        %5956 = vmatprep.subr.bf16.mxu0 0
        %5957 = vmatpush1.bf16.msra.mxu0 0
        %5958 = vmatprep.subr.bf16.mxu0 0
        %5959 = vmatpush1.bf16.msra.mxu0 0
        %5960 = vmatprep.subr.bf16.mxu0 0
        %5961 = vmatpush1.bf16.msra.mxu0 0
        %5962 = vmatprep.subr.bf16.mxu0 0
        %5963 = vmatpush1.bf16.msra.mxu0 0
        %5964 = vmatprep.subr.bf16.mxu0 0
        %5965 = vmatpush1.bf16.msra.mxu0 0
        %5966 = vmatprep.subr.bf16.mxu0 0
        %5967 = vmatpush1.bf16.msra.mxu0 0
        %5968 = vmatprep.subr.bf16.mxu0 0
        %5969 = vmatpush1.bf16.msra.mxu0 0
        %5970 = vmatprep.subr.bf16.mxu0 0
        %5971 = vmatpush1.bf16.msra.mxu0 0
        %5972 = vmatprep.mubr.bf16.mxu0 0
        %5973 = vmatmul.mubr.bf16.gmra.mrb[0].mxu0 %v5935
        %v5974 = vpop.f32.mrb[0].mxu0
        %v5975 = vadd.f32 0.0, %v5974
        %v5976 = vpop.f32.mrb[0].mxu0
        %v5977 = vpop.f32.mrb[0].mxu0
        %v5978 = vpop.f32.mrb[0].mxu0
        %5979 = vdwg.mxu0
        %v5981 = vsel %vm683, %v5829, 0
        %v5984 = vsel %vm1174, %v5837, 0
        %5986 = vmatprep.subr.bf16.mxu0 0
        %5987 = vmatpush1.bf16.msra.mxu0 %v5984
        %5988 = vmatprep.subr.bf16.mxu0 0
        %5989 = vmatpush1.bf16.msra.mxu0 0
        %5990 = vmatprep.subr.bf16.mxu0 0
        %5991 = vmatpush1.bf16.msra.mxu0 0
        %5992 = vmatprep.subr.bf16.mxu0 0
        %5993 = vmatpush1.bf16.msra.mxu0 0
        %5994 = vmatprep.subr.bf16.mxu0 0
        %5995 = vmatpush1.bf16.msra.mxu0 0
        %5996 = vmatprep.subr.bf16.mxu0 0
        %5997 = vmatpush1.bf16.msra.mxu0 0
        %5998 = vmatprep.subr.bf16.mxu0 0
        %5999 = vmatpush1.bf16.msra.mxu0 0
        %6000 = vmatprep.subr.bf16.mxu0 0
        %6001 = vmatpush1.bf16.msra.mxu0 0
        %6002 = vmatprep.subr.bf16.mxu0 0
        %6003 = vmatpush1.bf16.msra.mxu0 0
        %6004 = vmatprep.subr.bf16.mxu0 0
        %6005 = vmatpush1.bf16.msra.mxu0 0
        %6006 = vmatprep.subr.bf16.mxu0 0
        %6007 = vmatpush1.bf16.msra.mxu0 0
        %6008 = vmatprep.subr.bf16.mxu0 0
        %6009 = vmatpush1.bf16.msra.mxu0 0
        %6010 = vmatprep.subr.bf16.mxu0 0
        %6011 = vmatpush1.bf16.msra.mxu0 0
        %6012 = vmatprep.subr.bf16.mxu0 0
        %6013 = vmatpush1.bf16.msra.mxu0 0
        %6014 = vmatprep.subr.bf16.mxu0 0
        %6015 = vmatpush1.bf16.msra.mxu0 0
        %6016 = vmatprep.subr.bf16.mxu0 0
        %6017 = vmatpush1.bf16.msra.mxu0 0
        %6018 = vmatprep.mubr.bf16.mxu0 0
        %6019 = vmatmul.mubr.bf16.gmra.mrb[0].mxu0 %v5981
        %v6020 = vpop.f32.mrb[0].mxu0
        %v6021 = vadd.f32 0.0, %v6020
        %v6022 = vpop.f32.mrb[0].mxu0
        %v6023 = vpop.f32.mrb[0].mxu0
        %v6024 = vpop.f32.mrb[0].mxu0
        %6025 = vdwg.mxu0
        %v6027 = vsel %vm683, %v5830, 0
        %v6030 = vsel %vm1174, %v5838, 0
        %6032 = vmatprep.subr.bf16.mxu0 0
        %6033 = vmatpush1.bf16.msra.mxu0 %v6030
        %6034 = vmatprep.subr.bf16.mxu0 0
        %6035 = vmatpush1.bf16.msra.mxu0 0
        %6036 = vmatprep.subr.bf16.mxu0 0
        %6037 = vmatpush1.bf16.msra.mxu0 0
        %6038 = vmatprep.subr.bf16.mxu0 0
        %6039 = vmatpush1.bf16.msra.mxu0 0
        %6040 = vmatprep.subr.bf16.mxu0 0
        %6041 = vmatpush1.bf16.msra.mxu0 0
        %6042 = vmatprep.subr.bf16.mxu0 0
        %6043 = vmatpush1.bf16.msra.mxu0 0
        %6044 = vmatprep.subr.bf16.mxu0 0
        %6045 = vmatpush1.bf16.msra.mxu0 0
        %6046 = vmatprep.subr.bf16.mxu0 0
        %6047 = vmatpush1.bf16.msra.mxu0 0
        %6048 = vmatprep.subr.bf16.mxu0 0
        %6049 = vmatpush1.bf16.msra.mxu0 0
        %6050 = vmatprep.subr.bf16.mxu0 0
        %6051 = vmatpush1.bf16.msra.mxu0 0
        %6052 = vmatprep.subr.bf16.mxu0 0
        %6053 = vmatpush1.bf16.msra.mxu0 0
        %6054 = vmatprep.subr.bf16.mxu0 0
        %6055 = vmatpush1.bf16.msra.mxu0 0
        %6056 = vmatprep.subr.bf16.mxu0 0
        %6057 = vmatpush1.bf16.msra.mxu0 0
        %6058 = vmatprep.subr.bf16.mxu0 0
        %6059 = vmatpush1.bf16.msra.mxu0 0
        %6060 = vmatprep.subr.bf16.mxu0 0
        %6061 = vmatpush1.bf16.msra.mxu0 0
        %6062 = vmatprep.subr.bf16.mxu0 0
        %6063 = vmatpush1.bf16.msra.mxu0 0
        %6064 = vmatprep.mubr.bf16.mxu0 0
        %6065 = vmatmul.mubr.bf16.gmra.mrb[0].mxu0 %v6027
        %v6066 = vpop.f32.mrb[0].mxu0
        %v6067 = vadd.f32 0.0, %v6066
        %v6068 = vpop.f32.mrb[0].mxu0
        %v6069 = vpop.f32.mrb[0].mxu0
        %v6070 = vpop.f32.mrb[0].mxu0
        %6071 = vdwg.mxu0
        %v6073 = vsel %vm683, %v5831, 0
        %v6076 = vsel %vm1174, %v5839, 0
        %6078 = vmatprep.subr.bf16.mxu0 0
        %6079 = vmatpush1.bf16.msra.mxu0 %v6076
        %6080 = vmatprep.subr.bf16.mxu0 0
        %6081 = vmatpush1.bf16.msra.mxu0 0
        %6082 = vmatprep.subr.bf16.mxu0 0
        %6083 = vmatpush1.bf16.msra.mxu0 0
        %6084 = vmatprep.subr.bf16.mxu0 0
        %6085 = vmatpush1.bf16.msra.mxu0 0
        %6086 = vmatprep.subr.bf16.mxu0 0
        %6087 = vmatpush1.bf16.msra.mxu0 0
        %6088 = vmatprep.subr.bf16.mxu0 0
        %6089 = vmatpush1.bf16.msra.mxu0 0
        %6090 = vmatprep.subr.bf16.mxu0 0
        %6091 = vmatpush1.bf16.msra.mxu0 0
        %6092 = vmatprep.subr.bf16.mxu0 0
        %6093 = vmatpush1.bf16.msra.mxu0 0
        %6094 = vmatprep.subr.bf16.mxu0 0
        %6095 = vmatpush1.bf16.msra.mxu0 0
        %6096 = vmatprep.subr.bf16.mxu0 0
        %6097 = vmatpush1.bf16.msra.mxu0 0
        %6098 = vmatprep.subr.bf16.mxu0 0
        %6099 = vmatpush1.bf16.msra.mxu0 0
        %6100 = vmatprep.subr.bf16.mxu0 0
        %6101 = vmatpush1.bf16.msra.mxu0 0
        %6102 = vmatprep.subr.bf16.mxu0 0
        %6103 = vmatpush1.bf16.msra.mxu0 0
        %6104 = vmatprep.subr.bf16.mxu0 0
        %6105 = vmatpush1.bf16.msra.mxu0 0
        %6106 = vmatprep.subr.bf16.mxu0 0
        %6107 = vmatpush1.bf16.msra.mxu0 0
        %6108 = vmatprep.subr.bf16.mxu0 0
        %6109 = vmatpush1.bf16.msra.mxu0 0
        %6110 = vmatprep.mubr.bf16.mxu0 0
        %6111 = vmatmul.mubr.bf16.gmra.mrb[0].mxu0 %v6073
        %v6112 = vpop.f32.mrb[0].mxu0
        %v6113 = vadd.f32 0.0, %v6112
        %v6114 = vpop.f32.mrb[0].mxu0
        %v6115 = vpop.f32.mrb[0].mxu0
        %v6116 = vpop.f32.mrb[0].mxu0
        %6117 = vdwg.mxu0
        %v6119 = vsel %vm683, %v5832, 0
        %v6122 = vsel %vm1174, %v5840, 0
        %6124 = vmatprep.subr.bf16.mxu0 0
        %6125 = vmatpush1.bf16.msra.mxu0 %v6122
        %6126 = vmatprep.subr.bf16.mxu0 0
        %6127 = vmatpush1.bf16.msra.mxu0 0
        %6128 = vmatprep.subr.bf16.mxu0 0
        %6129 = vmatpush1.bf16.msra.mxu0 0
        %6130 = vmatprep.subr.bf16.mxu0 0
        %6131 = vmatpush1.bf16.msra.mxu0 0
        %6132 = vmatprep.subr.bf16.mxu0 0
        %6133 = vmatpush1.bf16.msra.mxu0 0
        %6134 = vmatprep.subr.bf16.mxu0 0
        %6135 = vmatpush1.bf16.msra.mxu0 0
        %6136 = vmatprep.subr.bf16.mxu0 0
        %6137 = vmatpush1.bf16.msra.mxu0 0
        %6138 = vmatprep.subr.bf16.mxu0 0
        %6139 = vmatpush1.bf16.msra.mxu0 0
        %6140 = vmatprep.subr.bf16.mxu0 0
        %6141 = vmatpush1.bf16.msra.mxu0 0
        %6142 = vmatprep.subr.bf16.mxu0 0
        %6143 = vmatpush1.bf16.msra.mxu0 0
        %6144 = vmatprep.subr.bf16.mxu0 0
        %6145 = vmatpush1.bf16.msra.mxu0 0
        %6146 = vmatprep.subr.bf16.mxu0 0
        %6147 = vmatpush1.bf16.msra.mxu0 0
        %6148 = vmatprep.subr.bf16.mxu0 0
        %6149 = vmatpush1.bf16.msra.mxu0 0
        %6150 = vmatprep.subr.bf16.mxu0 0
        %6151 = vmatpush1.bf16.msra.mxu0 0
        %6152 = vmatprep.subr.bf16.mxu0 0
        %6153 = vmatpush1.bf16.msra.mxu0 0
        %6154 = vmatprep.subr.bf16.mxu0 0
        %6155 = vmatpush1.bf16.msra.mxu0 0
        %6156 = vmatprep.mubr.bf16.mxu0 0
        %6157 = vmatmul.mubr.bf16.gmra.mrb[0].mxu0 %v6119
        %v6158 = vpop.f32.mrb[0].mxu0
        %v6159 = vadd.f32 0.0, %v6158
        %v6160 = vpop.f32.mrb[0].mxu0
        %v6161 = vpop.f32.mrb[0].mxu0
        %v6162 = vpop.f32.mrb[0].mxu0
        %6163 = vdwg.mxu0
        %v6165 = vsel %vm683, %v5833, 0
        %v6168 = vsel %vm1174, %v5841, 0
        %6170 = vmatprep.subr.bf16.mxu0 0
        %6171 = vmatpush1.bf16.msra.mxu0 %v6168
        %6172 = vmatprep.subr.bf16.mxu0 0
        %6173 = vmatpush1.bf16.msra.mxu0 0
        %6174 = vmatprep.subr.bf16.mxu0 0
        %6175 = vmatpush1.bf16.msra.mxu0 0
        %6176 = vmatprep.subr.bf16.mxu0 0
        %6177 = vmatpush1.bf16.msra.mxu0 0
        %6178 = vmatprep.subr.bf16.mxu0 0
        %6179 = vmatpush1.bf16.msra.mxu0 0
        %6180 = vmatprep.subr.bf16.mxu0 0
        %6181 = vmatpush1.bf16.msra.mxu0 0
        %6182 = vmatprep.subr.bf16.mxu0 0
        %6183 = vmatpush1.bf16.msra.mxu0 0
        %6184 = vmatprep.subr.bf16.mxu0 0
        %6185 = vmatpush1.bf16.msra.mxu0 0
        %6186 = vmatprep.subr.bf16.mxu0 0
        %6187 = vmatpush1.bf16.msra.mxu0 0
        %6188 = vmatprep.subr.bf16.mxu0 0
        %6189 = vmatpush1.bf16.msra.mxu0 0
        %6190 = vmatprep.subr.bf16.mxu0 0
        %6191 = vmatpush1.bf16.msra.mxu0 0
        %6192 = vmatprep.subr.bf16.mxu0 0
        %6193 = vmatpush1.bf16.msra.mxu0 0
        %6194 = vmatprep.subr.bf16.mxu0 0
        %6195 = vmatpush1.bf16.msra.mxu0 0
        %6196 = vmatprep.subr.bf16.mxu0 0
        %6197 = vmatpush1.bf16.msra.mxu0 0
        %6198 = vmatprep.subr.bf16.mxu0 0
        %6199 = vmatpush1.bf16.msra.mxu0 0
        %6200 = vmatprep.subr.bf16.mxu0 0
        %6201 = vmatpush1.bf16.msra.mxu0 0
        %6202 = vmatprep.mubr.bf16.mxu0 0
        %6203 = vmatmul.mubr.bf16.gmra.mrb[0].mxu0 %v6165
        %v6204 = vpop.f32.mrb[0].mxu0
        %v6205 = vadd.f32 0.0, %v6204
        %v6206 = vpop.f32.mrb[0].mxu0
        %v6207 = vpop.f32.mrb[0].mxu0
        %v6208 = vpop.f32.mrb[0].mxu0
        %6209 = vdwg.mxu0
        %6211 = vrot.lane.b32.xlu0 %v5354, 112
        %v6212 = vpop.permute.xlu0 %6211
        %6214 = vrot.lane.b32.xlu0 %v5362, 112
        %v6215 = vpop.permute.xlu0 %6214
        %v6217 = vsel %vm356, %v6212, 0
        %v6220 = vsel %vm356, %v6215, 0
        %6222 = vmatprep.subr.bf16.mxu0 0
        %6223 = vmatpush1.bf16.xpose.msra.mxu0 %v6220
        %6224 = vmatprep.subr.bf16.mxu0 0
        %6225 = vmatpush1.bf16.xpose.msra.mxu0 0
        %6226 = vmatprep.subr.bf16.mxu0 0
        %6227 = vmatpush1.bf16.xpose.msra.mxu0 0
        %6228 = vmatprep.subr.bf16.mxu0 0
        %6229 = vmatpush1.bf16.xpose.msra.mxu0 0
        %6230 = vmatprep.subr.bf16.mxu0 0
        %6231 = vmatpush1.bf16.xpose.msra.mxu0 0
        %6232 = vmatprep.subr.bf16.mxu0 0
        %6233 = vmatpush1.bf16.xpose.msra.mxu0 0
        %6234 = vmatprep.subr.bf16.mxu0 0
        %6235 = vmatpush1.bf16.xpose.msra.mxu0 0
        %6236 = vmatprep.subr.bf16.mxu0 0
        %6237 = vmatpush1.bf16.xpose.msra.mxu0 0
        %6238 = vmatprep.subr.bf16.mxu0 0
        %6239 = vmatpush1.bf16.xpose.msra.mxu0 0
        %6240 = vmatprep.subr.bf16.mxu0 0
        %6241 = vmatpush1.bf16.xpose.msra.mxu0 0
        %6242 = vmatprep.subr.bf16.mxu0 0
        %6243 = vmatpush1.bf16.xpose.msra.mxu0 0
        %6244 = vmatprep.subr.bf16.mxu0 0
        %6245 = vmatpush1.bf16.xpose.msra.mxu0 0
        %6246 = vmatprep.subr.bf16.mxu0 0
        %6247 = vmatpush1.bf16.xpose.msra.mxu0 0
        %6248 = vmatprep.subr.bf16.mxu0 0
        %6249 = vmatpush1.bf16.xpose.msra.mxu0 0
        %6250 = vmatprep.subr.bf16.mxu0 0
        %6251 = vmatpush1.bf16.xpose.msra.mxu0 0
        %6252 = vmatprep.subr.bf16.mxu0 0
        %6253 = vmatpush1.bf16.xpose.msra.mxu0 0
        %6254 = vmatprep.mubr.bf16.mxu0 0
        %6255 = vmatmul.mubr.bf16.gmra.mrb[0].mxu0 %v6217
        %v6256 = vpop.f32.mrb[0].mxu0
        %v6257 = vadd.f32 0.0, %v6256
        %v6258 = vpop.f32.mrb[0].mxu0
        %v6259 = vpop.f32.mrb[0].mxu0
        %v6260 = vpop.f32.mrb[0].mxu0
        %6261 = vdwg.mxu0
        %6263 = vrot.lane.b32.xlu0 %v5355, 112
        %v6264 = vpop.permute.xlu0 %6263
        %6266 = vrot.lane.b32.xlu0 %v5363, 112
        %v6267 = vpop.permute.xlu0 %6266
        %v6269 = vsel %vm356, %v6264, 0
        %v6272 = vsel %vm356, %v6267, 0
        %6274 = vmatprep.subr.bf16.mxu0 0
        %6275 = vmatpush1.bf16.xpose.msra.mxu0 %v6272
        %6276 = vmatprep.subr.bf16.mxu0 0
        %6277 = vmatpush1.bf16.xpose.msra.mxu0 0
        %6278 = vmatprep.subr.bf16.mxu0 0
        %6279 = vmatpush1.bf16.xpose.msra.mxu0 0
        %6280 = vmatprep.subr.bf16.mxu0 0
        %6281 = vmatpush1.bf16.xpose.msra.mxu0 0
        %6282 = vmatprep.subr.bf16.mxu0 0
        %6283 = vmatpush1.bf16.xpose.msra.mxu0 0
        %6284 = vmatprep.subr.bf16.mxu0 0
        %6285 = vmatpush1.bf16.xpose.msra.mxu0 0
        %6286 = vmatprep.subr.bf16.mxu0 0
        %6287 = vmatpush1.bf16.xpose.msra.mxu0 0
        %6288 = vmatprep.subr.bf16.mxu0 0
        %6289 = vmatpush1.bf16.xpose.msra.mxu0 0
        %6290 = vmatprep.subr.bf16.mxu0 0
        %6291 = vmatpush1.bf16.xpose.msra.mxu0 0
        %6292 = vmatprep.subr.bf16.mxu0 0
        %6293 = vmatpush1.bf16.xpose.msra.mxu0 0
        %6294 = vmatprep.subr.bf16.mxu0 0
        %6295 = vmatpush1.bf16.xpose.msra.mxu0 0
        %6296 = vmatprep.subr.bf16.mxu0 0
        %6297 = vmatpush1.bf16.xpose.msra.mxu0 0
        %6298 = vmatprep.subr.bf16.mxu0 0
        %6299 = vmatpush1.bf16.xpose.msra.mxu0 0
        %6300 = vmatprep.subr.bf16.mxu0 0
        %6301 = vmatpush1.bf16.xpose.msra.mxu0 0
        %6302 = vmatprep.subr.bf16.mxu0 0
        %6303 = vmatpush1.bf16.xpose.msra.mxu0 0
        %6304 = vmatprep.subr.bf16.mxu0 0
        %6305 = vmatpush1.bf16.xpose.msra.mxu0 0
        %6306 = vmatprep.mubr.bf16.mxu0 0
        %6307 = vmatmul.mubr.bf16.gmra.mrb[0].mxu0 %v6269
        %v6308 = vpop.f32.mrb[0].mxu0
        %v6309 = vadd.f32 0.0, %v6308
        %v6310 = vpop.f32.mrb[0].mxu0
        %v6311 = vpop.f32.mrb[0].mxu0
        %v6312 = vpop.f32.mrb[0].mxu0
        %6313 = vdwg.mxu0
        %6315 = vrot.lane.b32.xlu0 %v5356, 112
        %v6316 = vpop.permute.xlu0 %6315
        %6318 = vrot.lane.b32.xlu0 %v5364, 112
        %v6319 = vpop.permute.xlu0 %6318
        %v6321 = vsel %vm356, %v6316, 0
        %v6324 = vsel %vm356, %v6319, 0
        %6326 = vmatprep.subr.bf16.mxu0 0
        %6327 = vmatpush1.bf16.xpose.msra.mxu0 %v6324
        %6328 = vmatprep.subr.bf16.mxu0 0
        %6329 = vmatpush1.bf16.xpose.msra.mxu0 0
        %6330 = vmatprep.subr.bf16.mxu0 0
        %6331 = vmatpush1.bf16.xpose.msra.mxu0 0
        %6332 = vmatprep.subr.bf16.mxu0 0
        %6333 = vmatpush1.bf16.xpose.msra.mxu0 0
        %6334 = vmatprep.subr.bf16.mxu0 0
        %6335 = vmatpush1.bf16.xpose.msra.mxu0 0
        %6336 = vmatprep.subr.bf16.mxu0 0
        %6337 = vmatpush1.bf16.xpose.msra.mxu0 0
        %6338 = vmatprep.subr.bf16.mxu0 0
        %6339 = vmatpush1.bf16.xpose.msra.mxu0 0
        %6340 = vmatprep.subr.bf16.mxu0 0
        %6341 = vmatpush1.bf16.xpose.msra.mxu0 0
        %6342 = vmatprep.subr.bf16.mxu0 0
        %6343 = vmatpush1.bf16.xpose.msra.mxu0 0
        %6344 = vmatprep.subr.bf16.mxu0 0
        %6345 = vmatpush1.bf16.xpose.msra.mxu0 0
        %6346 = vmatprep.subr.bf16.mxu0 0
        %6347 = vmatpush1.bf16.xpose.msra.mxu0 0
        %6348 = vmatprep.subr.bf16.mxu0 0
        %6349 = vmatpush1.bf16.xpose.msra.mxu0 0
        %6350 = vmatprep.subr.bf16.mxu0 0
        %6351 = vmatpush1.bf16.xpose.msra.mxu0 0
        %6352 = vmatprep.subr.bf16.mxu0 0
        %6353 = vmatpush1.bf16.xpose.msra.mxu0 0
        %6354 = vmatprep.subr.bf16.mxu0 0
        %6355 = vmatpush1.bf16.xpose.msra.mxu0 0
        %6356 = vmatprep.subr.bf16.mxu0 0
        %6357 = vmatpush1.bf16.xpose.msra.mxu0 0
        %6358 = vmatprep.mubr.bf16.mxu0 0
        %6359 = vmatmul.mubr.bf16.gmra.mrb[0].mxu0 %v6321
        %v6360 = vpop.f32.mrb[0].mxu0
        %v6361 = vadd.f32 0.0, %v6360
        %v6362 = vpop.f32.mrb[0].mxu0
        %v6363 = vpop.f32.mrb[0].mxu0
        %v6364 = vpop.f32.mrb[0].mxu0
        %6365 = vdwg.mxu0
        %6367 = vrot.lane.b32.xlu0 %v5357, 112
        %v6368 = vpop.permute.xlu0 %6367
        %6370 = vrot.lane.b32.xlu0 %v5365, 112
        %v6371 = vpop.permute.xlu0 %6370
        %v6373 = vsel %vm356, %v6368, 0
        %v6376 = vsel %vm356, %v6371, 0
        %6378 = vmatprep.subr.bf16.mxu0 0
        %6379 = vmatpush1.bf16.xpose.msra.mxu0 %v6376
        %6380 = vmatprep.subr.bf16.mxu0 0
        %6381 = vmatpush1.bf16.xpose.msra.mxu0 0
        %6382 = vmatprep.subr.bf16.mxu0 0
        %6383 = vmatpush1.bf16.xpose.msra.mxu0 0
        %6384 = vmatprep.subr.bf16.mxu0 0
        %6385 = vmatpush1.bf16.xpose.msra.mxu0 0
        %6386 = vmatprep.subr.bf16.mxu0 0
        %6387 = vmatpush1.bf16.xpose.msra.mxu0 0
        %6388 = vmatprep.subr.bf16.mxu0 0
        %6389 = vmatpush1.bf16.xpose.msra.mxu0 0
        %6390 = vmatprep.subr.bf16.mxu0 0
        %6391 = vmatpush1.bf16.xpose.msra.mxu0 0
        %6392 = vmatprep.subr.bf16.mxu0 0
        %6393 = vmatpush1.bf16.xpose.msra.mxu0 0
        %6394 = vmatprep.subr.bf16.mxu0 0
        %6395 = vmatpush1.bf16.xpose.msra.mxu0 0
        %6396 = vmatprep.subr.bf16.mxu0 0
        %6397 = vmatpush1.bf16.xpose.msra.mxu0 0
        %6398 = vmatprep.subr.bf16.mxu0 0
        %6399 = vmatpush1.bf16.xpose.msra.mxu0 0
        %6400 = vmatprep.subr.bf16.mxu0 0
        %6401 = vmatpush1.bf16.xpose.msra.mxu0 0
        %6402 = vmatprep.subr.bf16.mxu0 0
        %6403 = vmatpush1.bf16.xpose.msra.mxu0 0
        %6404 = vmatprep.subr.bf16.mxu0 0
        %6405 = vmatpush1.bf16.xpose.msra.mxu0 0
        %6406 = vmatprep.subr.bf16.mxu0 0
        %6407 = vmatpush1.bf16.xpose.msra.mxu0 0
        %6408 = vmatprep.subr.bf16.mxu0 0
        %6409 = vmatpush1.bf16.xpose.msra.mxu0 0
        %6410 = vmatprep.mubr.bf16.mxu0 0
        %6411 = vmatmul.mubr.bf16.gmra.mrb[0].mxu0 %v6373
        %v6412 = vpop.f32.mrb[0].mxu0
        %v6413 = vadd.f32 0.0, %v6412
        %v6414 = vpop.f32.mrb[0].mxu0
        %v6415 = vpop.f32.mrb[0].mxu0
        %v6416 = vpop.f32.mrb[0].mxu0
        %6417 = vdwg.mxu0
        %6419 = vrot.lane.b32.xlu0 %v5358, 112
        %v6420 = vpop.permute.xlu0 %6419
        %6422 = vrot.lane.b32.xlu0 %v5366, 112
        %v6423 = vpop.permute.xlu0 %6422
        %v6425 = vsel %vm356, %v6420, 0
        %v6428 = vsel %vm356, %v6423, 0
        %6430 = vmatprep.subr.bf16.mxu0 0
        %6431 = vmatpush1.bf16.xpose.msra.mxu0 %v6428
        %6432 = vmatprep.subr.bf16.mxu0 0
        %6433 = vmatpush1.bf16.xpose.msra.mxu0 0
        %6434 = vmatprep.subr.bf16.mxu0 0
        %6435 = vmatpush1.bf16.xpose.msra.mxu0 0
        %6436 = vmatprep.subr.bf16.mxu0 0
        %6437 = vmatpush1.bf16.xpose.msra.mxu0 0
        %6438 = vmatprep.subr.bf16.mxu0 0
        %6439 = vmatpush1.bf16.xpose.msra.mxu0 0
        %6440 = vmatprep.subr.bf16.mxu0 0
        %6441 = vmatpush1.bf16.xpose.msra.mxu0 0
        %6442 = vmatprep.subr.bf16.mxu0 0
        %6443 = vmatpush1.bf16.xpose.msra.mxu0 0
        %6444 = vmatprep.subr.bf16.mxu0 0
        %6445 = vmatpush1.bf16.xpose.msra.mxu0 0
        %6446 = vmatprep.subr.bf16.mxu0 0
        %6447 = vmatpush1.bf16.xpose.msra.mxu0 0
        %6448 = vmatprep.subr.bf16.mxu0 0
        %6449 = vmatpush1.bf16.xpose.msra.mxu0 0
        %6450 = vmatprep.subr.bf16.mxu0 0
        %6451 = vmatpush1.bf16.xpose.msra.mxu0 0
        %6452 = vmatprep.subr.bf16.mxu0 0
        %6453 = vmatpush1.bf16.xpose.msra.mxu0 0
        %6454 = vmatprep.subr.bf16.mxu0 0
        %6455 = vmatpush1.bf16.xpose.msra.mxu0 0
        %6456 = vmatprep.subr.bf16.mxu0 0
        %6457 = vmatpush1.bf16.xpose.msra.mxu0 0
        %6458 = vmatprep.subr.bf16.mxu0 0
        %6459 = vmatpush1.bf16.xpose.msra.mxu0 0
        %6460 = vmatprep.subr.bf16.mxu0 0
        %6461 = vmatpush1.bf16.xpose.msra.mxu0 0
        %6462 = vmatprep.mubr.bf16.mxu0 0
        %6463 = vmatmul.mubr.bf16.gmra.mrb[0].mxu0 %v6425
        %v6464 = vpop.f32.mrb[0].mxu0
        %v6465 = vadd.f32 0.0, %v6464
        %v6466 = vpop.f32.mrb[0].mxu0
        %v6467 = vpop.f32.mrb[0].mxu0
        %v6468 = vpop.f32.mrb[0].mxu0
        %6469 = vdwg.mxu0
        %6471 = vrot.lane.b32.xlu0 %v5359, 112
        %v6472 = vpop.permute.xlu0 %6471
        %6474 = vrot.lane.b32.xlu0 %v5367, 112
        %v6475 = vpop.permute.xlu0 %6474
        %v6477 = vsel %vm356, %v6472, 0
        %v6480 = vsel %vm356, %v6475, 0
        %6482 = vmatprep.subr.bf16.mxu0 0
        %6483 = vmatpush1.bf16.xpose.msra.mxu0 %v6480
        %6484 = vmatprep.subr.bf16.mxu0 0
        %6485 = vmatpush1.bf16.xpose.msra.mxu0 0
        %6486 = vmatprep.subr.bf16.mxu0 0
        %6487 = vmatpush1.bf16.xpose.msra.mxu0 0
        %6488 = vmatprep.subr.bf16.mxu0 0
        %6489 = vmatpush1.bf16.xpose.msra.mxu0 0
        %6490 = vmatprep.subr.bf16.mxu0 0
        %6491 = vmatpush1.bf16.xpose.msra.mxu0 0
        %6492 = vmatprep.subr.bf16.mxu0 0
        %6493 = vmatpush1.bf16.xpose.msra.mxu0 0
        %6494 = vmatprep.subr.bf16.mxu0 0
        %6495 = vmatpush1.bf16.xpose.msra.mxu0 0
        %6496 = vmatprep.subr.bf16.mxu0 0
        %6497 = vmatpush1.bf16.xpose.msra.mxu0 0
        %6498 = vmatprep.subr.bf16.mxu0 0
        %6499 = vmatpush1.bf16.xpose.msra.mxu0 0
        %6500 = vmatprep.subr.bf16.mxu0 0
        %6501 = vmatpush1.bf16.xpose.msra.mxu0 0
        %6502 = vmatprep.subr.bf16.mxu0 0
        %6503 = vmatpush1.bf16.xpose.msra.mxu0 0
        %6504 = vmatprep.subr.bf16.mxu0 0
        %6505 = vmatpush1.bf16.xpose.msra.mxu0 0
        %6506 = vmatprep.subr.bf16.mxu0 0
        %6507 = vmatpush1.bf16.xpose.msra.mxu0 0
        %6508 = vmatprep.subr.bf16.mxu0 0
        %6509 = vmatpush1.bf16.xpose.msra.mxu0 0
        %6510 = vmatprep.subr.bf16.mxu0 0
        %6511 = vmatpush1.bf16.xpose.msra.mxu0 0
        %6512 = vmatprep.subr.bf16.mxu0 0
        %6513 = vmatpush1.bf16.xpose.msra.mxu0 0
        %6514 = vmatprep.mubr.bf16.mxu0 0
        %6515 = vmatmul.mubr.bf16.gmra.mrb[0].mxu0 %v6477
        %v6516 = vpop.f32.mrb[0].mxu0
        %v6517 = vadd.f32 0.0, %v6516
        %v6518 = vpop.f32.mrb[0].mxu0
        %v6519 = vpop.f32.mrb[0].mxu0
        %v6520 = vpop.f32.mrb[0].mxu0
        %6521 = vdwg.mxu0
        %6523 = vrot.lane.b32.xlu0 %v5360, 112
        %v6524 = vpop.permute.xlu0 %6523
        %6526 = vrot.lane.b32.xlu0 %v5368, 112
        %v6527 = vpop.permute.xlu0 %6526
        %v6529 = vsel %vm356, %v6524, 0
        %v6532 = vsel %vm356, %v6527, 0
        %6534 = vmatprep.subr.bf16.mxu0 0
        %6535 = vmatpush1.bf16.xpose.msra.mxu0 %v6532
        %6536 = vmatprep.subr.bf16.mxu0 0
        %6537 = vmatpush1.bf16.xpose.msra.mxu0 0
        %6538 = vmatprep.subr.bf16.mxu0 0
        %6539 = vmatpush1.bf16.xpose.msra.mxu0 0
        %6540 = vmatprep.subr.bf16.mxu0 0
        %6541 = vmatpush1.bf16.xpose.msra.mxu0 0
        %6542 = vmatprep.subr.bf16.mxu0 0
        %6543 = vmatpush1.bf16.xpose.msra.mxu0 0
        %6544 = vmatprep.subr.bf16.mxu0 0
        %6545 = vmatpush1.bf16.xpose.msra.mxu0 0
        %6546 = vmatprep.subr.bf16.mxu0 0
        %6547 = vmatpush1.bf16.xpose.msra.mxu0 0
        %6548 = vmatprep.subr.bf16.mxu0 0
        %6549 = vmatpush1.bf16.xpose.msra.mxu0 0
        %6550 = vmatprep.subr.bf16.mxu0 0
        %6551 = vmatpush1.bf16.xpose.msra.mxu0 0
        %6552 = vmatprep.subr.bf16.mxu0 0
        %6553 = vmatpush1.bf16.xpose.msra.mxu0 0
        %6554 = vmatprep.subr.bf16.mxu0 0
        %6555 = vmatpush1.bf16.xpose.msra.mxu0 0
        %6556 = vmatprep.subr.bf16.mxu0 0
        %6557 = vmatpush1.bf16.xpose.msra.mxu0 0
        %6558 = vmatprep.subr.bf16.mxu0 0
        %6559 = vmatpush1.bf16.xpose.msra.mxu0 0
        %6560 = vmatprep.subr.bf16.mxu0 0
        %6561 = vmatpush1.bf16.xpose.msra.mxu0 0
        %6562 = vmatprep.subr.bf16.mxu0 0
        %6563 = vmatpush1.bf16.xpose.msra.mxu0 0
        %6564 = vmatprep.subr.bf16.mxu0 0
        %6565 = vmatpush1.bf16.xpose.msra.mxu0 0
        %6566 = vmatprep.mubr.bf16.mxu0 0
        %6567 = vmatmul.mubr.bf16.gmra.mrb[0].mxu0 %v6529
        %v6568 = vpop.f32.mrb[0].mxu0
        %v6569 = vadd.f32 0.0, %v6568
        %v6570 = vpop.f32.mrb[0].mxu0
        %v6571 = vpop.f32.mrb[0].mxu0
        %v6572 = vpop.f32.mrb[0].mxu0
        %6573 = vdwg.mxu0
        %6575 = vrot.lane.b32.xlu0 %v5361, 112
        %v6576 = vpop.permute.xlu0 %6575
        %6578 = vrot.lane.b32.xlu0 %v5369, 112
        %v6579 = vpop.permute.xlu0 %6578
        %v6581 = vsel %vm356, %v6576, 0
        %v6584 = vsel %vm356, %v6579, 0
        %6586 = vmatprep.subr.bf16.mxu0 0
        %6587 = vmatpush1.bf16.xpose.msra.mxu0 %v6584
        %6588 = vmatprep.subr.bf16.mxu0 0
        %6589 = vmatpush1.bf16.xpose.msra.mxu0 0
        %6590 = vmatprep.subr.bf16.mxu0 0
        %6591 = vmatpush1.bf16.xpose.msra.mxu0 0
        %6592 = vmatprep.subr.bf16.mxu0 0
        %6593 = vmatpush1.bf16.xpose.msra.mxu0 0
        %6594 = vmatprep.subr.bf16.mxu0 0
        %6595 = vmatpush1.bf16.xpose.msra.mxu0 0
        %6596 = vmatprep.subr.bf16.mxu0 0
        %6597 = vmatpush1.bf16.xpose.msra.mxu0 0
        %6598 = vmatprep.subr.bf16.mxu0 0
        %6599 = vmatpush1.bf16.xpose.msra.mxu0 0
        %6600 = vmatprep.subr.bf16.mxu0 0
        %6601 = vmatpush1.bf16.xpose.msra.mxu0 0
        %6602 = vmatprep.subr.bf16.mxu0 0
        %6603 = vmatpush1.bf16.xpose.msra.mxu0 0
        %6604 = vmatprep.subr.bf16.mxu0 0
        %6605 = vmatpush1.bf16.xpose.msra.mxu0 0
        %6606 = vmatprep.subr.bf16.mxu0 0
        %6607 = vmatpush1.bf16.xpose.msra.mxu0 0
        %6608 = vmatprep.subr.bf16.mxu0 0
        %6609 = vmatpush1.bf16.xpose.msra.mxu0 0
        %6610 = vmatprep.subr.bf16.mxu0 0
        %6611 = vmatpush1.bf16.xpose.msra.mxu0 0
        %6612 = vmatprep.subr.bf16.mxu0 0
        %6613 = vmatpush1.bf16.xpose.msra.mxu0 0
        %6614 = vmatprep.subr.bf16.mxu0 0
        %6615 = vmatpush1.bf16.xpose.msra.mxu0 0
        %6616 = vmatprep.subr.bf16.mxu0 0
        %6617 = vmatpush1.bf16.xpose.msra.mxu0 0
        %6618 = vmatprep.mubr.bf16.mxu0 0
        %6619 = vmatmul.mubr.bf16.gmra.mrb[0].mxu0 %v6581
        %v6620 = vpop.f32.mrb[0].mxu0
        %v6621 = vadd.f32 0.0, %v6620
        %v6622 = vpop.f32.mrb[0].mxu0
        %v6623 = vpop.f32.mrb[0].mxu0
        %v6624 = vpop.f32.mrb[0].mxu0
        %6625 = vdwg.mxu0
        %v6626 = vsel %vm683, %v6257, -inf
        %6627 = vmax.xlane.f32.xlu0 %v6626
        %v6628 = vpop.xlane.xlu0 %6627
        %v6629 = vsel %vm683, %v6309, -inf
        %6630 = vmax.xlane.f32.xlu0 %v6629
        %v6631 = vpop.xlane.xlu0 %6630
        %v6632 = vsel %vm683, %v6361, -inf
        %6633 = vmax.xlane.f32.xlu0 %v6632
        %v6634 = vpop.xlane.xlu0 %6633
        %v6635 = vsel %vm683, %v6413, -inf
        %6636 = vmax.xlane.f32.xlu0 %v6635
        %v6637 = vpop.xlane.xlu0 %6636
        %v6638 = vsel %vm683, %v6465, -inf
        %6639 = vmax.xlane.f32.xlu0 %v6638
        %v6640 = vpop.xlane.xlu0 %6639
        %v6641 = vsel %vm683, %v6517, -inf
        %6642 = vmax.xlane.f32.xlu0 %v6641
        %v6643 = vpop.xlane.xlu0 %6642
        %v6644 = vsel %vm683, %v6569, -inf
        %6645 = vmax.xlane.f32.xlu0 %v6644
        %v6646 = vpop.xlane.xlu0 %6645
        %v6647 = vsel %vm683, %v6621, -inf
        %6648 = vmax.xlane.f32.xlu0 %v6647
        %v6649 = vpop.xlane.xlu0 %6648
        %v6650 = vsub.f32 %v6257, %v6628
        %v6651 = vsub.f32 %v6309, %v6631
        %v6652 = vsub.f32 %v6361, %v6634
        %v6653 = vsub.f32 %v6413, %v6637
        %v6654 = vsub.f32 %v6465, %v6640
        %v6655 = vsub.f32 %v6517, %v6643
        %v6656 = vsub.f32 %v6569, %v6646
        %v6657 = vsub.f32 %v6621, %v6649
        %v6658 = vmul.f32 %v6650, 1.442695
        %v6659 = vpow.pop %v6658
        %v6660 = vmul.f32 %v6651, 1.442695
        %v6661 = vpow.pop %v6660
        %v6662 = vmul.f32 %v6652, 1.442695
        %v6663 = vpow.pop %v6662
        %v6664 = vmul.f32 %v6653, 1.442695
        %v6665 = vpow.pop %v6664
        %v6666 = vmul.f32 %v6654, 1.442695
        %v6667 = vpow.pop %v6666
        %v6668 = vmul.f32 %v6655, 1.442695
        %v6669 = vpow.pop %v6668
        %v6670 = vmul.f32 %v6656, 1.442695
        %v6671 = vpow.pop %v6670
        %v6672 = vmul.f32 %v6657, 1.442695
        %v6673 = vpow.pop %v6672
        %v6674 = vsel %vm683, %v6659, 0.0
        %6675 = vadd.xlane.f32.xlu0 %v6674
        %v6676 = vpop.xlane.xlu0 %6675
        %v6677 = vsel %vm683, %v6661, 0.0
        %6678 = vadd.xlane.f32.xlu0 %v6677
        %v6679 = vpop.xlane.xlu0 %6678
        %v6680 = vsel %vm683, %v6663, 0.0
        %6681 = vadd.xlane.f32.xlu0 %v6680
        %v6682 = vpop.xlane.xlu0 %6681
        %v6683 = vsel %vm683, %v6665, 0.0
        %6684 = vadd.xlane.f32.xlu0 %v6683
        %v6685 = vpop.xlane.xlu0 %6684
        %v6686 = vsel %vm683, %v6667, 0.0
        %6687 = vadd.xlane.f32.xlu0 %v6686
        %v6688 = vpop.xlane.xlu0 %6687
        %v6689 = vsel %vm683, %v6669, 0.0
        %6690 = vadd.xlane.f32.xlu0 %v6689
        %v6691 = vpop.xlane.xlu0 %6690
        %v6692 = vsel %vm683, %v6671, 0.0
        %6693 = vadd.xlane.f32.xlu0 %v6692
        %v6694 = vpop.xlane.xlu0 %6693
        %v6695 = vsel %vm683, %v6673, 0.0
        %6696 = vadd.xlane.f32.xlu0 %v6695
        %v6697 = vpop.xlane.xlu0 %6696
        %v6698 = vrcp.pop %v6676
        %v6699 = vrcp.pop %v6679
        %v6700 = vrcp.pop %v6682
        %v6701 = vrcp.pop %v6685
        %v6702 = vrcp.pop %v6688
        %v6703 = vrcp.pop %v6691
        %v6704 = vrcp.pop %v6694
        %v6705 = vrcp.pop %v6697
        %v6706 = vmul.f32 %v6659, %v6698
        %v6707 = vmul.f32 %v6661, %v6699
        %v6708 = vmul.f32 %v6663, %v6700
        %v6709 = vmul.f32 %v6665, %v6701
        %v6710 = vmul.f32 %v6667, %v6702
        %v6711 = vmul.f32 %v6669, %v6703
        %v6712 = vmul.f32 %v6671, %v6704
        %v6713 = vmul.f32 %v6673, %v6705
        %v6714 = vpack.c.bf16 %v6706, %v6706
        %v6715 = vpack.c.bf16 %v6707, %v6707
        %v6716 = vpack.c.bf16 %v6708, %v6708
        %v6717 = vpack.c.bf16 %v6709, %v6709
        %v6718 = vpack.c.bf16 %v6710, %v6710
        %v6719 = vpack.c.bf16 %v6711, %v6711
        %v6720 = vpack.c.bf16 %v6712, %v6712
        %v6721 = vpack.c.bf16 %v6713, %v6713
        %6723 = vrot.lane.b32.xlu0 %v5834, 112
        %v6724 = vpop.permute.xlu0 %6723
        %v6726 = vsel %vm683, %v6714, 0
        %v6729 = vsel %vm1174, %v6724, 0
        %6731 = vmatprep.subr.bf16.mxu0 0
        %6732 = vmatpush1.bf16.msra.mxu0 %v6729
        %6733 = vmatprep.subr.bf16.mxu0 0
        %6734 = vmatpush1.bf16.msra.mxu0 0
        %6735 = vmatprep.subr.bf16.mxu0 0
        %6736 = vmatpush1.bf16.msra.mxu0 0
        %6737 = vmatprep.subr.bf16.mxu0 0
        %6738 = vmatpush1.bf16.msra.mxu0 0
        %6739 = vmatprep.subr.bf16.mxu0 0
        %6740 = vmatpush1.bf16.msra.mxu0 0
        %6741 = vmatprep.subr.bf16.mxu0 0
        %6742 = vmatpush1.bf16.msra.mxu0 0
        %6743 = vmatprep.subr.bf16.mxu0 0
        %6744 = vmatpush1.bf16.msra.mxu0 0
        %6745 = vmatprep.subr.bf16.mxu0 0
        %6746 = vmatpush1.bf16.msra.mxu0 0
        %6747 = vmatprep.subr.bf16.mxu0 0
        %6748 = vmatpush1.bf16.msra.mxu0 0
        %6749 = vmatprep.subr.bf16.mxu0 0
        %6750 = vmatpush1.bf16.msra.mxu0 0
        %6751 = vmatprep.subr.bf16.mxu0 0
        %6752 = vmatpush1.bf16.msra.mxu0 0
        %6753 = vmatprep.subr.bf16.mxu0 0
        %6754 = vmatpush1.bf16.msra.mxu0 0
        %6755 = vmatprep.subr.bf16.mxu0 0
        %6756 = vmatpush1.bf16.msra.mxu0 0
        %6757 = vmatprep.subr.bf16.mxu0 0
        %6758 = vmatpush1.bf16.msra.mxu0 0
        %6759 = vmatprep.subr.bf16.mxu0 0
        %6760 = vmatpush1.bf16.msra.mxu0 0
        %6761 = vmatprep.subr.bf16.mxu0 0
        %6762 = vmatpush1.bf16.msra.mxu0 0
        %6763 = vmatprep.mubr.bf16.mxu0 0
        %6764 = vmatmul.mubr.bf16.gmra.mrb[0].mxu0 %v6726
        %v6765 = vpop.f32.mrb[0].mxu0
        %v6766 = vadd.f32 0.0, %v6765
        %v6767 = vpop.f32.mrb[0].mxu0
        %v6768 = vpop.f32.mrb[0].mxu0
        %v6769 = vpop.f32.mrb[0].mxu0
        %6770 = vdwg.mxu0
        %6772 = vrot.lane.b32.xlu0 %v5835, 112
        %v6773 = vpop.permute.xlu0 %6772
        %v6775 = vsel %vm683, %v6715, 0
        %v6778 = vsel %vm1174, %v6773, 0
        %6780 = vmatprep.subr.bf16.mxu0 0
        %6781 = vmatpush1.bf16.msra.mxu0 %v6778
        %6782 = vmatprep.subr.bf16.mxu0 0
        %6783 = vmatpush1.bf16.msra.mxu0 0
        %6784 = vmatprep.subr.bf16.mxu0 0
        %6785 = vmatpush1.bf16.msra.mxu0 0
        %6786 = vmatprep.subr.bf16.mxu0 0
        %6787 = vmatpush1.bf16.msra.mxu0 0
        %6788 = vmatprep.subr.bf16.mxu0 0
        %6789 = vmatpush1.bf16.msra.mxu0 0
        %6790 = vmatprep.subr.bf16.mxu0 0
        %6791 = vmatpush1.bf16.msra.mxu0 0
        %6792 = vmatprep.subr.bf16.mxu0 0
        %6793 = vmatpush1.bf16.msra.mxu0 0
        %6794 = vmatprep.subr.bf16.mxu0 0
        %6795 = vmatpush1.bf16.msra.mxu0 0
        %6796 = vmatprep.subr.bf16.mxu0 0
        %6797 = vmatpush1.bf16.msra.mxu0 0
        %6798 = vmatprep.subr.bf16.mxu0 0
        %6799 = vmatpush1.bf16.msra.mxu0 0
        %6800 = vmatprep.subr.bf16.mxu0 0
        %6801 = vmatpush1.bf16.msra.mxu0 0
        %6802 = vmatprep.subr.bf16.mxu0 0
        %6803 = vmatpush1.bf16.msra.mxu0 0
        %6804 = vmatprep.subr.bf16.mxu0 0
        %6805 = vmatpush1.bf16.msra.mxu0 0
        %6806 = vmatprep.subr.bf16.mxu0 0
        %6807 = vmatpush1.bf16.msra.mxu0 0
        %6808 = vmatprep.subr.bf16.mxu0 0
        %6809 = vmatpush1.bf16.msra.mxu0 0
        %6810 = vmatprep.subr.bf16.mxu0 0
        %6811 = vmatpush1.bf16.msra.mxu0 0
        %6812 = vmatprep.mubr.bf16.mxu0 0
        %6813 = vmatmul.mubr.bf16.gmra.mrb[0].mxu0 %v6775
        %v6814 = vpop.f32.mrb[0].mxu0
        %v6815 = vadd.f32 0.0, %v6814
        %v6816 = vpop.f32.mrb[0].mxu0
        %v6817 = vpop.f32.mrb[0].mxu0
        %v6818 = vpop.f32.mrb[0].mxu0
        %6819 = vdwg.mxu0
        %6821 = vrot.lane.b32.xlu0 %v5836, 112
        %v6822 = vpop.permute.xlu0 %6821
        %v6824 = vsel %vm683, %v6716, 0
        %v6827 = vsel %vm1174, %v6822, 0
        %6829 = vmatprep.subr.bf16.mxu0 0
        %6830 = vmatpush1.bf16.msra.mxu0 %v6827
        %6831 = vmatprep.subr.bf16.mxu0 0
        %6832 = vmatpush1.bf16.msra.mxu0 0
        %6833 = vmatprep.subr.bf16.mxu0 0
        %6834 = vmatpush1.bf16.msra.mxu0 0
        %6835 = vmatprep.subr.bf16.mxu0 0
        %6836 = vmatpush1.bf16.msra.mxu0 0
        %6837 = vmatprep.subr.bf16.mxu0 0
        %6838 = vmatpush1.bf16.msra.mxu0 0
        %6839 = vmatprep.subr.bf16.mxu0 0
        %6840 = vmatpush1.bf16.msra.mxu0 0
        %6841 = vmatprep.subr.bf16.mxu0 0
        %6842 = vmatpush1.bf16.msra.mxu0 0
        %6843 = vmatprep.subr.bf16.mxu0 0
        %6844 = vmatpush1.bf16.msra.mxu0 0
        %6845 = vmatprep.subr.bf16.mxu0 0
        %6846 = vmatpush1.bf16.msra.mxu0 0
        %6847 = vmatprep.subr.bf16.mxu0 0
        %6848 = vmatpush1.bf16.msra.mxu0 0
        %6849 = vmatprep.subr.bf16.mxu0 0
        %6850 = vmatpush1.bf16.msra.mxu0 0
        %6851 = vmatprep.subr.bf16.mxu0 0
        %6852 = vmatpush1.bf16.msra.mxu0 0
        %6853 = vmatprep.subr.bf16.mxu0 0
        %6854 = vmatpush1.bf16.msra.mxu0 0
        %6855 = vmatprep.subr.bf16.mxu0 0
        %6856 = vmatpush1.bf16.msra.mxu0 0
        %6857 = vmatprep.subr.bf16.mxu0 0
        %6858 = vmatpush1.bf16.msra.mxu0 0
        %6859 = vmatprep.subr.bf16.mxu0 0
        %6860 = vmatpush1.bf16.msra.mxu0 0
        %6861 = vmatprep.mubr.bf16.mxu0 0
        %6862 = vmatmul.mubr.bf16.gmra.mrb[0].mxu0 %v6824
        %v6863 = vpop.f32.mrb[0].mxu0
        %v6864 = vadd.f32 0.0, %v6863
        %v6865 = vpop.f32.mrb[0].mxu0
        %v6866 = vpop.f32.mrb[0].mxu0
        %v6867 = vpop.f32.mrb[0].mxu0
        %6868 = vdwg.mxu0
        %6870 = vrot.lane.b32.xlu0 %v5837, 112
        %v6871 = vpop.permute.xlu0 %6870
        %v6873 = vsel %vm683, %v6717, 0
        %v6876 = vsel %vm1174, %v6871, 0
        %6878 = vmatprep.subr.bf16.mxu0 0
        %6879 = vmatpush1.bf16.msra.mxu0 %v6876
        %6880 = vmatprep.subr.bf16.mxu0 0
        %6881 = vmatpush1.bf16.msra.mxu0 0
        %6882 = vmatprep.subr.bf16.mxu0 0
        %6883 = vmatpush1.bf16.msra.mxu0 0
        %6884 = vmatprep.subr.bf16.mxu0 0
        %6885 = vmatpush1.bf16.msra.mxu0 0
        %6886 = vmatprep.subr.bf16.mxu0 0
        %6887 = vmatpush1.bf16.msra.mxu0 0
        %6888 = vmatprep.subr.bf16.mxu0 0
        %6889 = vmatpush1.bf16.msra.mxu0 0
        %6890 = vmatprep.subr.bf16.mxu0 0
        %6891 = vmatpush1.bf16.msra.mxu0 0
        %6892 = vmatprep.subr.bf16.mxu0 0
        %6893 = vmatpush1.bf16.msra.mxu0 0
        %6894 = vmatprep.subr.bf16.mxu0 0
        %6895 = vmatpush1.bf16.msra.mxu0 0
        %6896 = vmatprep.subr.bf16.mxu0 0
        %6897 = vmatpush1.bf16.msra.mxu0 0
        %6898 = vmatprep.subr.bf16.mxu0 0
        %6899 = vmatpush1.bf16.msra.mxu0 0
        %6900 = vmatprep.subr.bf16.mxu0 0
        %6901 = vmatpush1.bf16.msra.mxu0 0
        %6902 = vmatprep.subr.bf16.mxu0 0
        %6903 = vmatpush1.bf16.msra.mxu0 0
        %6904 = vmatprep.subr.bf16.mxu0 0
        %6905 = vmatpush1.bf16.msra.mxu0 0
        %6906 = vmatprep.subr.bf16.mxu0 0
        %6907 = vmatpush1.bf16.msra.mxu0 0
        %6908 = vmatprep.subr.bf16.mxu0 0
        %6909 = vmatpush1.bf16.msra.mxu0 0
        %6910 = vmatprep.mubr.bf16.mxu0 0
        %6911 = vmatmul.mubr.bf16.gmra.mrb[0].mxu0 %v6873
        %v6912 = vpop.f32.mrb[0].mxu0
        %v6913 = vadd.f32 0.0, %v6912
        %v6914 = vpop.f32.mrb[0].mxu0
        %v6915 = vpop.f32.mrb[0].mxu0
        %v6916 = vpop.f32.mrb[0].mxu0
        %6917 = vdwg.mxu0
        %6919 = vrot.lane.b32.xlu0 %v5838, 112
        %v6920 = vpop.permute.xlu0 %6919
        %v6922 = vsel %vm683, %v6718, 0
        %v6925 = vsel %vm1174, %v6920, 0
        %6927 = vmatprep.subr.bf16.mxu0 0
        %6928 = vmatpush1.bf16.msra.mxu0 %v6925
        %6929 = vmatprep.subr.bf16.mxu0 0
        %6930 = vmatpush1.bf16.msra.mxu0 0
        %6931 = vmatprep.subr.bf16.mxu0 0
        %6932 = vmatpush1.bf16.msra.mxu0 0
        %6933 = vmatprep.subr.bf16.mxu0 0
        %6934 = vmatpush1.bf16.msra.mxu0 0
        %6935 = vmatprep.subr.bf16.mxu0 0
        %6936 = vmatpush1.bf16.msra.mxu0 0
        %6937 = vmatprep.subr.bf16.mxu0 0
        %6938 = vmatpush1.bf16.msra.mxu0 0
        %6939 = vmatprep.subr.bf16.mxu0 0
        %6940 = vmatpush1.bf16.msra.mxu0 0
        %6941 = vmatprep.subr.bf16.mxu0 0
        %6942 = vmatpush1.bf16.msra.mxu0 0
        %6943 = vmatprep.subr.bf16.mxu0 0
        %6944 = vmatpush1.bf16.msra.mxu0 0
        %6945 = vmatprep.subr.bf16.mxu0 0
        %6946 = vmatpush1.bf16.msra.mxu0 0
        %6947 = vmatprep.subr.bf16.mxu0 0
        %6948 = vmatpush1.bf16.msra.mxu0 0
        %6949 = vmatprep.subr.bf16.mxu0 0
        %6950 = vmatpush1.bf16.msra.mxu0 0
        %6951 = vmatprep.subr.bf16.mxu0 0
        %6952 = vmatpush1.bf16.msra.mxu0 0
        %6953 = vmatprep.subr.bf16.mxu0 0
        %6954 = vmatpush1.bf16.msra.mxu0 0
        %6955 = vmatprep.subr.bf16.mxu0 0
        %6956 = vmatpush1.bf16.msra.mxu0 0
        %6957 = vmatprep.subr.bf16.mxu0 0
        %6958 = vmatpush1.bf16.msra.mxu0 0
        %6959 = vmatprep.mubr.bf16.mxu0 0
        %6960 = vmatmul.mubr.bf16.gmra.mrb[0].mxu0 %v6922
        %v6961 = vpop.f32.mrb[0].mxu0
        %v6962 = vadd.f32 0.0, %v6961
        %v6963 = vpop.f32.mrb[0].mxu0
        %v6964 = vpop.f32.mrb[0].mxu0
        %v6965 = vpop.f32.mrb[0].mxu0
        %6966 = vdwg.mxu0
        %6968 = vrot.lane.b32.xlu0 %v5839, 112
        %v6969 = vpop.permute.xlu0 %6968
        %v6971 = vsel %vm683, %v6719, 0
        %v6974 = vsel %vm1174, %v6969, 0
        %6976 = vmatprep.subr.bf16.mxu0 0
        %6977 = vmatpush1.bf16.msra.mxu0 %v6974
        %6978 = vmatprep.subr.bf16.mxu0 0
        %6979 = vmatpush1.bf16.msra.mxu0 0
        %6980 = vmatprep.subr.bf16.mxu0 0
        %6981 = vmatpush1.bf16.msra.mxu0 0
        %6982 = vmatprep.subr.bf16.mxu0 0
        %6983 = vmatpush1.bf16.msra.mxu0 0
        %6984 = vmatprep.subr.bf16.mxu0 0
        %6985 = vmatpush1.bf16.msra.mxu0 0
        %6986 = vmatprep.subr.bf16.mxu0 0
        %6987 = vmatpush1.bf16.msra.mxu0 0
        %6988 = vmatprep.subr.bf16.mxu0 0
        %6989 = vmatpush1.bf16.msra.mxu0 0
        %6990 = vmatprep.subr.bf16.mxu0 0
        %6991 = vmatpush1.bf16.msra.mxu0 0
        %6992 = vmatprep.subr.bf16.mxu0 0
        %6993 = vmatpush1.bf16.msra.mxu0 0
        %6994 = vmatprep.subr.bf16.mxu0 0
        %6995 = vmatpush1.bf16.msra.mxu0 0
        %6996 = vmatprep.subr.bf16.mxu0 0
        %6997 = vmatpush1.bf16.msra.mxu0 0
        %6998 = vmatprep.subr.bf16.mxu0 0
        %6999 = vmatpush1.bf16.msra.mxu0 0
        %7000 = vmatprep.subr.bf16.mxu0 0
        %7001 = vmatpush1.bf16.msra.mxu0 0
        %7002 = vmatprep.subr.bf16.mxu0 0
        %7003 = vmatpush1.bf16.msra.mxu0 0
        %7004 = vmatprep.subr.bf16.mxu0 0
        %7005 = vmatpush1.bf16.msra.mxu0 0
        %7006 = vmatprep.subr.bf16.mxu0 0
        %7007 = vmatpush1.bf16.msra.mxu0 0
        %7008 = vmatprep.mubr.bf16.mxu0 0
        %7009 = vmatmul.mubr.bf16.gmra.mrb[0].mxu0 %v6971
        %v7010 = vpop.f32.mrb[0].mxu0
        %v7011 = vadd.f32 0.0, %v7010
        %v7012 = vpop.f32.mrb[0].mxu0
        %v7013 = vpop.f32.mrb[0].mxu0
        %v7014 = vpop.f32.mrb[0].mxu0
        %7015 = vdwg.mxu0
        %7017 = vrot.lane.b32.xlu0 %v5840, 112
        %v7018 = vpop.permute.xlu0 %7017
        %v7020 = vsel %vm683, %v6720, 0
        %v7023 = vsel %vm1174, %v7018, 0
        %7025 = vmatprep.subr.bf16.mxu0 0
        %7026 = vmatpush1.bf16.msra.mxu0 %v7023
        %7027 = vmatprep.subr.bf16.mxu0 0
        %7028 = vmatpush1.bf16.msra.mxu0 0
        %7029 = vmatprep.subr.bf16.mxu0 0
        %7030 = vmatpush1.bf16.msra.mxu0 0
        %7031 = vmatprep.subr.bf16.mxu0 0
        %7032 = vmatpush1.bf16.msra.mxu0 0
        %7033 = vmatprep.subr.bf16.mxu0 0
        %7034 = vmatpush1.bf16.msra.mxu0 0
        %7035 = vmatprep.subr.bf16.mxu0 0
        %7036 = vmatpush1.bf16.msra.mxu0 0
        %7037 = vmatprep.subr.bf16.mxu0 0
        %7038 = vmatpush1.bf16.msra.mxu0 0
        %7039 = vmatprep.subr.bf16.mxu0 0
        %7040 = vmatpush1.bf16.msra.mxu0 0
        %7041 = vmatprep.subr.bf16.mxu0 0
        %7042 = vmatpush1.bf16.msra.mxu0 0
        %7043 = vmatprep.subr.bf16.mxu0 0
        %7044 = vmatpush1.bf16.msra.mxu0 0
        %7045 = vmatprep.subr.bf16.mxu0 0
        %7046 = vmatpush1.bf16.msra.mxu0 0
        %7047 = vmatprep.subr.bf16.mxu0 0
        %7048 = vmatpush1.bf16.msra.mxu0 0
        %7049 = vmatprep.subr.bf16.mxu0 0
        %7050 = vmatpush1.bf16.msra.mxu0 0
        %7051 = vmatprep.subr.bf16.mxu0 0
        %7052 = vmatpush1.bf16.msra.mxu0 0
        %7053 = vmatprep.subr.bf16.mxu0 0
        %7054 = vmatpush1.bf16.msra.mxu0 0
        %7055 = vmatprep.subr.bf16.mxu0 0
        %7056 = vmatpush1.bf16.msra.mxu0 0
        %7057 = vmatprep.mubr.bf16.mxu0 0
        %7058 = vmatmul.mubr.bf16.gmra.mrb[0].mxu0 %v7020
        %v7059 = vpop.f32.mrb[0].mxu0
        %v7060 = vadd.f32 0.0, %v7059
        %v7061 = vpop.f32.mrb[0].mxu0
        %v7062 = vpop.f32.mrb[0].mxu0
        %v7063 = vpop.f32.mrb[0].mxu0
        %7064 = vdwg.mxu0
        %7066 = vrot.lane.b32.xlu0 %v5841, 112
        %v7067 = vpop.permute.xlu0 %7066
        %v7069 = vsel %vm683, %v6721, 0
        %v7072 = vsel %vm1174, %v7067, 0
        %7074 = vmatprep.subr.bf16.mxu0 0
        %7075 = vmatpush1.bf16.msra.mxu0 %v7072
        %7076 = vmatprep.subr.bf16.mxu0 0
        %7077 = vmatpush1.bf16.msra.mxu0 0
        %7078 = vmatprep.subr.bf16.mxu0 0
        %7079 = vmatpush1.bf16.msra.mxu0 0
        %7080 = vmatprep.subr.bf16.mxu0 0
        %7081 = vmatpush1.bf16.msra.mxu0 0
        %7082 = vmatprep.subr.bf16.mxu0 0
        %7083 = vmatpush1.bf16.msra.mxu0 0
        %7084 = vmatprep.subr.bf16.mxu0 0
        %7085 = vmatpush1.bf16.msra.mxu0 0
        %7086 = vmatprep.subr.bf16.mxu0 0
        %7087 = vmatpush1.bf16.msra.mxu0 0
        %7088 = vmatprep.subr.bf16.mxu0 0
        %7089 = vmatpush1.bf16.msra.mxu0 0
        %7090 = vmatprep.subr.bf16.mxu0 0
        %7091 = vmatpush1.bf16.msra.mxu0 0
        %7092 = vmatprep.subr.bf16.mxu0 0
        %7093 = vmatpush1.bf16.msra.mxu0 0
        %7094 = vmatprep.subr.bf16.mxu0 0
        %7095 = vmatpush1.bf16.msra.mxu0 0
        %7096 = vmatprep.subr.bf16.mxu0 0
        %7097 = vmatpush1.bf16.msra.mxu0 0
        %7098 = vmatprep.subr.bf16.mxu0 0
        %7099 = vmatpush1.bf16.msra.mxu0 0
        %7100 = vmatprep.subr.bf16.mxu0 0
        %7101 = vmatpush1.bf16.msra.mxu0 0
        %7102 = vmatprep.subr.bf16.mxu0 0
        %7103 = vmatpush1.bf16.msra.mxu0 0
        %7104 = vmatprep.subr.bf16.mxu0 0
        %7105 = vmatpush1.bf16.msra.mxu0 0
        %7106 = vmatprep.mubr.bf16.mxu0 0
        %7107 = vmatmul.mubr.bf16.gmra.mrb[0].mxu0 %v7069
        %v7108 = vpop.f32.mrb[0].mxu0
        %v7109 = vadd.f32 0.0, %v7108
        %v7110 = vpop.f32.mrb[0].mxu0
        %v7111 = vpop.f32.mrb[0].mxu0
        %v7112 = vpop.f32.mrb[0].mxu0
        %7113 = vdwg.mxu0
        %7122 = vrot.lane.b32.xlu0 %v6766, 16
        %v7123 = vpop.permute.xlu0 %7122
        %7124 = vrot.lane.b32.xlu0 %v6815, 16
        %v7125 = vpop.permute.xlu0 %7124
        %7126 = vrot.lane.b32.xlu0 %v6864, 16
        %v7127 = vpop.permute.xlu0 %7126
        %7128 = vrot.lane.b32.xlu0 %v6913, 16
        %v7129 = vpop.permute.xlu0 %7128
        %7130 = vrot.lane.b32.xlu0 %v6962, 16
        %v7131 = vpop.permute.xlu0 %7130
        %7132 = vrot.lane.b32.xlu0 %v7011, 16
        %v7133 = vpop.permute.xlu0 %7132
        %7134 = vrot.lane.b32.xlu0 %v7060, 16
        %v7135 = vpop.permute.xlu0 %7134
        %7136 = vrot.lane.b32.xlu0 %v7109, 16
        %v7137 = vpop.permute.xlu0 %7136
        %v7146 = vsel %vm356, %v5883, %v7123
        %v7147 = vsel %vm356, %v5929, %v7125
        %v7148 = vsel %vm356, %v5975, %v7127
        %v7149 = vsel %vm356, %v6021, %v7129
        %v7150 = vsel %vm356, %v6067, %v7131
        %v7151 = vsel %vm356, %v6113, %v7133
        %v7152 = vsel %vm356, %v6159, %v7135
        %v7153 = vsel %vm356, %v6205, %v7137
        %v7154 = vcombine.low %v7146, %v7148
        %v7155 = vcombine.high %v7146, %v7148
        %v7157 = vunpack.c.l.s4 1983009808
        %v7158 = vunpack.c.0.s8 %v7157
        %v7159 = vlaneseq
        %v7160 = vshrl.u32 %v7159, 7
        %v7161 = vsub.s32 %v7158, %v7160
        %v7162 = vrot.slane %v7154, %v7161
        %v7164 = vunpack.c.l.s4 1983009808
        %v7165 = vunpack.c.0.s8 %v7164
        %v7166 = vlaneseq
        %v7167 = vshrl.u32 %v7166, 7
        %v7168 = vsub.s32 %v7165, %v7167
        %v7169 = vrot.slane %v7155, %v7168
        %v7170 = vcombine.low %v7147, %v7149
        %v7171 = vcombine.high %v7147, %v7149
        %v7173 = vunpack.c.l.s4 1983009808
        %v7174 = vunpack.c.0.s8 %v7173
        %v7175 = vlaneseq
        %v7176 = vshrl.u32 %v7175, 7
        %v7177 = vsub.s32 %v7174, %v7176
        %v7178 = vrot.slane %v7170, %v7177
        %v7180 = vunpack.c.l.s4 1983009808
        %v7181 = vunpack.c.0.s8 %v7180
        %v7182 = vlaneseq
        %v7183 = vshrl.u32 %v7182, 7
        %v7184 = vsub.s32 %v7181, %v7183
        %v7185 = vrot.slane %v7171, %v7184
        %v7186 = vcombine.low %v7150, %v7152
        %v7187 = vcombine.high %v7150, %v7152
        %v7189 = vunpack.c.l.s4 1983009808
        %v7190 = vunpack.c.0.s8 %v7189
        %v7191 = vlaneseq
        %v7192 = vshrl.u32 %v7191, 7
        %v7193 = vsub.s32 %v7190, %v7192
        %v7194 = vrot.slane %v7186, %v7193
        %v7196 = vunpack.c.l.s4 1983009808
        %v7197 = vunpack.c.0.s8 %v7196
        %v7198 = vlaneseq
        %v7199 = vshrl.u32 %v7198, 7
        %v7200 = vsub.s32 %v7197, %v7199
        %v7201 = vrot.slane %v7187, %v7200
        %v7202 = vcombine.low %v7151, %v7153
        %v7203 = vcombine.high %v7151, %v7153
        %v7205 = vunpack.c.l.s4 1983009808
        %v7206 = vunpack.c.0.s8 %v7205
        %v7207 = vlaneseq
        %v7208 = vshrl.u32 %v7207, 7
        %v7209 = vsub.s32 %v7206, %v7208
        %v7210 = vrot.slane %v7202, %v7209
        %v7212 = vunpack.c.l.s4 1983009808
        %v7213 = vunpack.c.0.s8 %v7212
        %v7214 = vlaneseq
        %v7215 = vshrl.u32 %v7214, 7
        %v7216 = vsub.s32 %v7213, %v7215
        %v7217 = vrot.slane %v7203, %v7216
        %v7218 = vcombine.low %v7162, %v7178
        %v7219 = vcombine.high %v7162, %v7178
        %v7221 = vunpack.c.l.s4 1934713408
        %v7222 = vunpack.c.0.s8 %v7221
        %v7223 = vlaneseq
        %v7224 = vshrl.u32 %v7223, 7
        %v7225 = vsub.s32 %v7222, %v7224
        %v7226 = vrot.slane %v7218, %v7225
        %v7228 = vunpack.c.l.s4 1934713408
        %v7229 = vunpack.c.0.s8 %v7228
        %v7230 = vlaneseq
        %v7231 = vshrl.u32 %v7230, 7
        %v7232 = vsub.s32 %v7229, %v7231
        %v7233 = vrot.slane %v7219, %v7232
        %v7234 = vcombine.low %v7169, %v7185
        %v7235 = vcombine.high %v7169, %v7185
        %v7237 = vunpack.c.l.s4 1934713408
        %v7238 = vunpack.c.0.s8 %v7237
        %v7239 = vlaneseq
        %v7240 = vshrl.u32 %v7239, 7
        %v7241 = vsub.s32 %v7238, %v7240
        %v7242 = vrot.slane %v7234, %v7241
        %v7244 = vunpack.c.l.s4 1934713408
        %v7245 = vunpack.c.0.s8 %v7244
        %v7246 = vlaneseq
        %v7247 = vshrl.u32 %v7246, 7
        %v7248 = vsub.s32 %v7245, %v7247
        %v7249 = vrot.slane %v7235, %v7248
        %v7250 = vcombine.low %v7194, %v7210
        %v7251 = vcombine.high %v7194, %v7210
        %v7253 = vunpack.c.l.s4 1934713408
        %v7254 = vunpack.c.0.s8 %v7253
        %v7255 = vlaneseq
        %v7256 = vshrl.u32 %v7255, 7
        %v7257 = vsub.s32 %v7254, %v7256
        %v7258 = vrot.slane %v7250, %v7257
        %v7260 = vunpack.c.l.s4 1934713408
        %v7261 = vunpack.c.0.s8 %v7260
        %v7262 = vlaneseq
        %v7263 = vshrl.u32 %v7262, 7
        %v7264 = vsub.s32 %v7261, %v7263
        %v7265 = vrot.slane %v7251, %v7264
        %v7266 = vcombine.low %v7201, %v7217
        %v7267 = vcombine.high %v7201, %v7217
        %v7269 = vunpack.c.l.s4 1934713408
        %v7270 = vunpack.c.0.s8 %v7269
        %v7271 = vlaneseq
        %v7272 = vshrl.u32 %v7271, 7
        %v7273 = vsub.s32 %v7270, %v7272
        %v7274 = vrot.slane %v7266, %v7273
        %v7276 = vunpack.c.l.s4 1934713408
        %v7277 = vunpack.c.0.s8 %v7276
        %v7278 = vlaneseq
        %v7279 = vshrl.u32 %v7278, 7
        %v7280 = vsub.s32 %v7277, %v7279
        %v7281 = vrot.slane %v7267, %v7280
        %v7282 = vcombine.low %v7226, %v7258
        %v7283 = vcombine.high %v7226, %v7258
        %v7284 = vcombine.low %v7233, %v7265
        %v7285 = vcombine.high %v7233, %v7265
        %v7286 = vcombine.low %v7242, %v7274
        %v7287 = vcombine.high %v7242, %v7274
        %v7288 = vcombine.low %v7249, %v7281
        %v7289 = vcombine.high %v7249, %v7281
        %v7290 = vadd.f32 %v4781, %v7282
        %v7291 = vadd.f32 %v4782, %v7283
        %v7292 = vadd.f32 %v4783, %v7284
        %v7293 = vadd.f32 %v4784, %v7285
        %v7294 = vadd.f32 %v4785, %v7286
        %v7295 = vadd.f32 %v4786, %v7287
        %v7296 = vadd.f32 %v4787, %v7288
        %v7297 = vadd.f32 %v4788, %v7289
        %v7298 = vsel %vm449, %v7290, 0.0
        %7299 = vadd.xlane.f32.xlu0 %v7298
        %v7300 = vpop.xlane.xlu0 %7299
        %v7301 = vsel %vm449, %v7291, 0.0
        %7302 = vadd.xlane.f32.xlu0 %v7301
        %v7303 = vpop.xlane.xlu0 %7302
        %v7304 = vsel %vm449, %v7292, 0.0
        %7305 = vadd.xlane.f32.xlu0 %v7304
        %v7306 = vpop.xlane.xlu0 %7305
        %v7307 = vsel %vm449, %v7293, 0.0
        %7308 = vadd.xlane.f32.xlu0 %v7307
        %v7309 = vpop.xlane.xlu0 %7308
        %v7310 = vsel %vm449, %v7294, 0.0
        %7311 = vadd.xlane.f32.xlu0 %v7310
        %v7312 = vpop.xlane.xlu0 %7311
        %v7313 = vsel %vm449, %v7295, 0.0
        %7314 = vadd.xlane.f32.xlu0 %v7313
        %v7315 = vpop.xlane.xlu0 %7314
        %v7316 = vsel %vm449, %v7296, 0.0
        %7317 = vadd.xlane.f32.xlu0 %v7316
        %v7318 = vpop.xlane.xlu0 %7317
        %v7319 = vsel %vm449, %v7297, 0.0
        %7320 = vadd.xlane.f32.xlu0 %v7319
        %v7321 = vpop.xlane.xlu0 %7320
        %v7322 = vmul.f32 %v7300, %v474
        %v7323 = vmul.f32 %v7303, %v474
        %v7324 = vmul.f32 %v7306, %v474
        %v7325 = vmul.f32 %v7309, %v474
        %v7326 = vmul.f32 %v7312, %v474
        %v7327 = vmul.f32 %v7315, %v474
        %v7328 = vmul.f32 %v7318, %v474
        %v7329 = vmul.f32 %v7321, %v474
        %v7330 = vsub.f32 %v7290, %v7322
        %v7331 = vsub.f32 %v7291, %v7323
        %v7332 = vsub.f32 %v7292, %v7324
        %v7333 = vsub.f32 %v7293, %v7325
        %v7334 = vsub.f32 %v7294, %v7326
        %v7335 = vsub.f32 %v7295, %v7327
        %v7336 = vsub.f32 %v7296, %v7328
        %v7337 = vsub.f32 %v7297, %v7329
        %v7338 = vmul.f32 %v7330, %v7330
        %v7339 = vmul.f32 %v7331, %v7331
        %v7340 = vmul.f32 %v7332, %v7332
        %v7341 = vmul.f32 %v7333, %v7333
        %v7342 = vmul.f32 %v7334, %v7334
        %v7343 = vmul.f32 %v7335, %v7335
        %v7344 = vmul.f32 %v7336, %v7336
        %v7345 = vmul.f32 %v7337, %v7337
        %v7346 = vsel %vm449, %v7338, 0.0
        %7347 = vadd.xlane.f32.xlu0 %v7346
        %v7348 = vpop.xlane.xlu0 %7347
        %v7349 = vsel %vm449, %v7339, 0.0
        %7350 = vadd.xlane.f32.xlu0 %v7349
        %v7351 = vpop.xlane.xlu0 %7350
        %v7352 = vsel %vm449, %v7340, 0.0
        %7353 = vadd.xlane.f32.xlu0 %v7352
        %v7354 = vpop.xlane.xlu0 %7353
        %v7355 = vsel %vm449, %v7341, 0.0
        %7356 = vadd.xlane.f32.xlu0 %v7355
        %v7357 = vpop.xlane.xlu0 %7356
        %v7358 = vsel %vm449, %v7342, 0.0
        %7359 = vadd.xlane.f32.xlu0 %v7358
        %v7360 = vpop.xlane.xlu0 %7359
        %v7361 = vsel %vm449, %v7343, 0.0
        %7362 = vadd.xlane.f32.xlu0 %v7361
        %v7363 = vpop.xlane.xlu0 %7362
        %v7364 = vsel %vm449, %v7344, 0.0
        %7365 = vadd.xlane.f32.xlu0 %v7364
        %v7366 = vpop.xlane.xlu0 %7365
        %v7367 = vsel %vm449, %v7345, 0.0
        %7368 = vadd.xlane.f32.xlu0 %v7367
        %v7369 = vpop.xlane.xlu0 %7368
        %v7370 = vmul.f32 %v7348, %v474
        %v7371 = vmul.f32 %v7351, %v474
        %v7372 = vmul.f32 %v7354, %v474
        %v7373 = vmul.f32 %v7357, %v474
        %v7374 = vmul.f32 %v7360, %v474
        %v7375 = vmul.f32 %v7363, %v474
        %v7376 = vmul.f32 %v7366, %v474
        %v7377 = vmul.f32 %v7369, %v474
        %v7378 = vadd.f32 %v7370, 1e-05
        %v7379 = vadd.f32 %v7371, 1e-05
        %v7380 = vadd.f32 %v7372, 1e-05
        %v7381 = vadd.f32 %v7373, 1e-05
        %v7382 = vadd.f32 %v7374, 1e-05
        %v7383 = vadd.f32 %v7375, 1e-05
        %v7384 = vadd.f32 %v7376, 1e-05
        %v7385 = vadd.f32 %v7377, 1e-05
        %v7386 = vrsqrt.pop %v7378
        %v7387 = vrsqrt.pop %v7379
        %v7388 = vrsqrt.pop %v7380
        %v7389 = vrsqrt.pop %v7381
        %v7390 = vrsqrt.pop %v7382
        %v7391 = vrsqrt.pop %v7383
        %v7392 = vrsqrt.pop %v7384
        %v7393 = vrsqrt.pop %v7385
        %v7394 = vmul.f32 %v7330, %v7386
        %v7395 = vmul.f32 %v7331, %v7387
        %v7396 = vmul.f32 %v7332, %v7388
        %v7397 = vmul.f32 %v7333, %v7389
        %v7398 = vmul.f32 %v7334, %v7390
        %v7399 = vmul.f32 %v7335, %v7391
        %v7400 = vmul.f32 %v7336, %v7392
        %v7401 = vmul.f32 %v7337, %v7393
        %v7402 = vlaneseq
        %v7403 = vshrl.u32 %v7402, 7
        %v7404 = vsub.s32 1, %v7403
        %v7405 = vrot.slane %v340, %v7404
        %v7406 = vmul.f32 %v7394, %v7405
        %v7407 = vmul.f32 %v7395, %v7405
        %v7408 = vmul.f32 %v7396, %v7405
        %v7409 = vmul.f32 %v7397, %v7405
        %v7410 = vmul.f32 %v7398, %v7405
        %v7411 = vmul.f32 %v7399, %v7405
        %v7412 = vmul.f32 %v7400, %v7405
        %v7413 = vmul.f32 %v7401, %v7405
        %v7414 = vlaneseq
        %v7415 = vshrl.u32 %v7414, 7
        %v7416 = vsub.s32 2, %v7415
        %v7417 = vrot.slane %v340, %v7416
        %v7418 = vadd.f32 %v7406, %v7417
        %v7419 = vadd.f32 %v7407, %v7417
        %v7420 = vadd.f32 %v7408, %v7417
        %v7421 = vadd.f32 %v7409, %v7417
        %v7422 = vadd.f32 %v7410, %v7417
        %v7423 = vadd.f32 %v7411, %v7417
        %v7424 = vadd.f32 %v7412, %v7417
        %v7425 = vadd.f32 %v7413, %v7417
        %v7426 = vpack.c.bf16 %v7419, %v7418
        %v7427 = vpack.c.bf16 %v7421, %v7420
        %v7428 = vpack.c.bf16 %v7423, %v7422
        %v7429 = vpack.c.bf16 %v7425, %v7424
        %v7430 = vlaneseq
        %v7431 = vshrl.u32 %v7430, 7
        %v7432 = vsub.s32 3, %v7431
        %v7433 = vrot.slane %v340, %v7432
        %v7438 = vunpack.c.l.b16 %v327
        %v7439 = vunpack.c.l.b16 %v328
        %v7440 = vunpack.c.l.b16 %v329
        %v7441 = vunpack.c.l.b16 %v330
        %v7442 = vpack.c.b16 %v7439, %v7438
        %v7443 = vpack.c.b16 %v7441, %v7440
        %v7447 = vsel %vm449, %v7426, 0
        %v7450 = vsel %vm449, %v7427, 0
        %v7453 = vsel %vm449, %v7428, 0
        %v7456 = vsel %vm449, %v7429, 0
        %7458 = vmatprep.subr.bf16.mxu0 0
        %7459 = vmatpush1.bf16.msra.mxu0 %v7442
        %7460 = vmatprep.subr.bf16.mxu0 0
        %7461 = vmatpush1.bf16.msra.mxu0 %v7443
        %7462 = vmatprep.subr.bf16.mxu0 0
        %7463 = vmatpush1.bf16.msra.mxu0 0
        %7464 = vmatprep.subr.bf16.mxu0 0
        %7465 = vmatpush1.bf16.msra.mxu0 0
        %7466 = vmatprep.subr.bf16.mxu0 0
        %7467 = vmatpush1.bf16.msra.mxu0 0
        %7468 = vmatprep.subr.bf16.mxu0 0
        %7469 = vmatpush1.bf16.msra.mxu0 0
        %7470 = vmatprep.subr.bf16.mxu0 0
        %7471 = vmatpush1.bf16.msra.mxu0 0
        %7472 = vmatprep.subr.bf16.mxu0 0
        %7473 = vmatpush1.bf16.msra.mxu0 0
        %7474 = vmatprep.subr.bf16.mxu0 0
        %7475 = vmatpush1.bf16.msra.mxu0 0
        %7476 = vmatprep.subr.bf16.mxu0 0
        %7477 = vmatpush1.bf16.msra.mxu0 0
        %7478 = vmatprep.subr.bf16.mxu0 0
        %7479 = vmatpush1.bf16.msra.mxu0 0
        %7480 = vmatprep.subr.bf16.mxu0 0
        %7481 = vmatpush1.bf16.msra.mxu0 0
        %7482 = vmatprep.subr.bf16.mxu0 0
        %7483 = vmatpush1.bf16.msra.mxu0 0
        %7484 = vmatprep.subr.bf16.mxu0 0
        %7485 = vmatpush1.bf16.msra.mxu0 0
        %7486 = vmatprep.subr.bf16.mxu0 0
        %7487 = vmatpush1.bf16.msra.mxu0 0
        %7488 = vmatprep.subr.bf16.mxu0 0
        %7489 = vmatpush1.bf16.msra.mxu0 0
        %7490 = vmatprep.mubr.bf16.mxu0 0
        %7491 = vmatmul.mubr.bf16.gmra.mrb[0].mxu0 %v7447
        %v7492 = vpop.f32.mrb[0].mxu0
        %v7493 = vadd.f32 %v7433, %v7492
        %v7494 = vpop.f32.mrb[0].mxu0
        %v7495 = vpop.f32.mrb[0].mxu0
        %v7496 = vadd.f32 %v7433, %v7495
        %v7497 = vpop.f32.mrb[0].mxu0
        %7498 = vmatprep.mubr.bf16.mxu0 0
        %7499 = vmatmul.mubr.bf16.gmra.mrb[0].mxu0 %v7450
        %v7500 = vpop.f32.mrb[0].mxu0
        %v7501 = vadd.f32 %v7433, %v7500
        %v7502 = vpop.f32.mrb[0].mxu0
        %v7503 = vpop.f32.mrb[0].mxu0
        %v7504 = vadd.f32 %v7433, %v7503
        %v7505 = vpop.f32.mrb[0].mxu0
        %7506 = vmatprep.mubr.bf16.mxu0 0
        %7507 = vmatmul.mubr.bf16.gmra.mrb[0].mxu0 %v7453
        %v7508 = vpop.f32.mrb[0].mxu0
        %v7509 = vadd.f32 %v7433, %v7508
        %v7510 = vpop.f32.mrb[0].mxu0
        %v7511 = vpop.f32.mrb[0].mxu0
        %v7512 = vadd.f32 %v7433, %v7511
        %v7513 = vpop.f32.mrb[0].mxu0
        %7514 = vmatprep.mubr.bf16.mxu0 0
        %7515 = vmatmul.mubr.bf16.gmra.mrb[0].mxu0 %v7456
        %v7516 = vpop.f32.mrb[0].mxu0
        %v7517 = vadd.f32 %v7433, %v7516
        %v7518 = vpop.f32.mrb[0].mxu0
        %v7519 = vpop.f32.mrb[0].mxu0
        %v7520 = vadd.f32 %v7433, %v7519
        %v7521 = vpop.f32.mrb[0].mxu0
        %7522 = vdwg.mxu0
        %v7523 = vmax.f32 %v7493, 0.0
        %v7524 = vmax.f32 %v7496, 0.0
        %v7525 = vmax.f32 %v7501, 0.0
        %v7526 = vmax.f32 %v7504, 0.0
        %v7527 = vmax.f32 %v7509, 0.0
        %v7528 = vmax.f32 %v7512, 0.0
        %v7529 = vmax.f32 %v7517, 0.0
        %v7530 = vmax.f32 %v7520, 0.0
        %v7531 = vpack.c.bf16 %v7524, %v7523
        %v7532 = vpack.c.bf16 %v7526, %v7525
        %v7533 = vpack.c.bf16 %v7528, %v7527
        %v7534 = vpack.c.bf16 %v7530, %v7529
        %v7535 = vlaneseq
        %v7536 = vshrl.u32 %v7535, 7
        %v7537 = vsub.s32 4, %v7536
        %v7538 = vrot.slane %v340, %v7537
        %v7543 = vunpack.c.l.b16 %v331
        %v7544 = vunpack.c.l.b16 %v332
        %v7545 = vunpack.c.l.b16 %v333
        %v7546 = vunpack.c.l.b16 %v334
        %v7547 = vpack.c.b16 %v7544, %v7543
        %v7548 = vpack.c.b16 %v7546, %v7545
        %v7552 = vsel %vm449, %v7531, 0
        %v7555 = vsel %vm449, %v7532, 0
        %v7558 = vsel %vm449, %v7533, 0
        %v7561 = vsel %vm449, %v7534, 0
        %7563 = vmatprep.subr.bf16.mxu0 0
        %7564 = vmatpush1.bf16.msra.mxu0 %v7547
        %7565 = vmatprep.subr.bf16.mxu0 0
        %7566 = vmatpush1.bf16.msra.mxu0 %v7548
        %7567 = vmatprep.subr.bf16.mxu0 0
        %7568 = vmatpush1.bf16.msra.mxu0 0
        %7569 = vmatprep.subr.bf16.mxu0 0
        %7570 = vmatpush1.bf16.msra.mxu0 0
        %7571 = vmatprep.subr.bf16.mxu0 0
        %7572 = vmatpush1.bf16.msra.mxu0 0
        %7573 = vmatprep.subr.bf16.mxu0 0
        %7574 = vmatpush1.bf16.msra.mxu0 0
        %7575 = vmatprep.subr.bf16.mxu0 0
        %7576 = vmatpush1.bf16.msra.mxu0 0
        %7577 = vmatprep.subr.bf16.mxu0 0
        %7578 = vmatpush1.bf16.msra.mxu0 0
        %7579 = vmatprep.subr.bf16.mxu0 0
        %7580 = vmatpush1.bf16.msra.mxu0 0
        %7581 = vmatprep.subr.bf16.mxu0 0
        %7582 = vmatpush1.bf16.msra.mxu0 0
        %7583 = vmatprep.subr.bf16.mxu0 0
        %7584 = vmatpush1.bf16.msra.mxu0 0
        %7585 = vmatprep.subr.bf16.mxu0 0
        %7586 = vmatpush1.bf16.msra.mxu0 0
        %7587 = vmatprep.subr.bf16.mxu0 0
        %7588 = vmatpush1.bf16.msra.mxu0 0
        %7589 = vmatprep.subr.bf16.mxu0 0
        %7590 = vmatpush1.bf16.msra.mxu0 0
        %7591 = vmatprep.subr.bf16.mxu0 0
        %7592 = vmatpush1.bf16.msra.mxu0 0
        %7593 = vmatprep.subr.bf16.mxu0 0
        %7594 = vmatpush1.bf16.msra.mxu0 0
        %7595 = vmatprep.mubr.bf16.mxu0 0
        %7596 = vmatmul.mubr.bf16.gmra.mrb[0].mxu0 %v7552
        %v7597 = vpop.f32.mrb[0].mxu0
        %v7598 = vadd.f32 %v7538, %v7597
        %v7599 = vpop.f32.mrb[0].mxu0
        %v7600 = vpop.f32.mrb[0].mxu0
        %v7601 = vadd.f32 %v7538, %v7600
        %v7602 = vpop.f32.mrb[0].mxu0
        %7603 = vmatprep.mubr.bf16.mxu0 0
        %7604 = vmatmul.mubr.bf16.gmra.mrb[0].mxu0 %v7555
        %v7605 = vpop.f32.mrb[0].mxu0
        %v7606 = vadd.f32 %v7538, %v7605
        %v7607 = vpop.f32.mrb[0].mxu0
        %v7608 = vpop.f32.mrb[0].mxu0
        %v7609 = vadd.f32 %v7538, %v7608
        %v7610 = vpop.f32.mrb[0].mxu0
        %7611 = vmatprep.mubr.bf16.mxu0 0
        %7612 = vmatmul.mubr.bf16.gmra.mrb[0].mxu0 %v7558
        %v7613 = vpop.f32.mrb[0].mxu0
        %v7614 = vadd.f32 %v7538, %v7613
        %v7615 = vpop.f32.mrb[0].mxu0
        %v7616 = vpop.f32.mrb[0].mxu0
        %v7617 = vadd.f32 %v7538, %v7616
        %v7618 = vpop.f32.mrb[0].mxu0
        %7619 = vmatprep.mubr.bf16.mxu0 0
        %7620 = vmatmul.mubr.bf16.gmra.mrb[0].mxu0 %v7561
        %v7621 = vpop.f32.mrb[0].mxu0
        %v7622 = vadd.f32 %v7538, %v7621
        %v7623 = vpop.f32.mrb[0].mxu0
        %v7624 = vpop.f32.mrb[0].mxu0
        %v7625 = vadd.f32 %v7538, %v7624
        %v7626 = vpop.f32.mrb[0].mxu0
        %7627 = vdwg.mxu0
        %v7628 = vadd.f32 %v7418, %v7598
        %v7629 = vadd.f32 %v7419, %v7601
        %v7630 = vadd.f32 %v7420, %v7606
        %v7631 = vadd.f32 %v7421, %v7609
        %v7632 = vadd.f32 %v7422, %v7614
        %v7633 = vadd.f32 %v7423, %v7617
        %v7634 = vadd.f32 %v7424, %v7622
        %v7635 = vadd.f32 %v7425, %v7625
        %v7636 = vpack.c.bf16 %v7629, %v7628
        %v7637 = vpack.c.bf16 %v7631, %v7630
        %v7638 = vpack.c.bf16 %v7633, %v7632
        %v7639 = vpack.c.bf16 %v7635, %v7634
        %v7644 = vunpack.c.l.b16 %v335
        %v7645 = vunpack.c.l.b16 %v336
        %v7646 = vunpack.c.l.b16 %v337
        %v7647 = vunpack.c.l.b16 %v338
        %v7648 = vpack.c.b16 %v7645, %v7644
        %v7649 = vpack.c.b16 %v7647, %v7646
        %v7653 = vsel %vm449, %v7636, 0
        %v7656 = vsel %vm449, %v7637, 0
        %v7659 = vsel %vm449, %v7638, 0
        %v7662 = vsel %vm449, %v7639, 0
        %7664 = vmatprep.subr.bf16.mxu0 0
        %7665 = vmatpush1.bf16.msra.mxu0 %v7648
        %7666 = vmatprep.subr.bf16.mxu0 0
        %7667 = vmatpush1.bf16.msra.mxu0 %v7649
        %7668 = vmatprep.subr.bf16.mxu0 0
        %7669 = vmatpush1.bf16.msra.mxu0 0
        %7670 = vmatprep.subr.bf16.mxu0 0
        %7671 = vmatpush1.bf16.msra.mxu0 0
        %7672 = vmatprep.subr.bf16.mxu0 0
        %7673 = vmatpush1.bf16.msra.mxu0 0
        %7674 = vmatprep.subr.bf16.mxu0 0
        %7675 = vmatpush1.bf16.msra.mxu0 0
        %7676 = vmatprep.subr.bf16.mxu0 0
        %7677 = vmatpush1.bf16.msra.mxu0 0
        %7678 = vmatprep.subr.bf16.mxu0 0
        %7679 = vmatpush1.bf16.msra.mxu0 0
        %7680 = vmatprep.subr.bf16.mxu0 0
        %7681 = vmatpush1.bf16.msra.mxu0 0
        %7682 = vmatprep.subr.bf16.mxu0 0
        %7683 = vmatpush1.bf16.msra.mxu0 0
        %7684 = vmatprep.subr.bf16.mxu0 0
        %7685 = vmatpush1.bf16.msra.mxu0 0
        %7686 = vmatprep.subr.bf16.mxu0 0
        %7687 = vmatpush1.bf16.msra.mxu0 0
        %7688 = vmatprep.subr.bf16.mxu0 0
        %7689 = vmatpush1.bf16.msra.mxu0 0
        %7690 = vmatprep.subr.bf16.mxu0 0
        %7691 = vmatpush1.bf16.msra.mxu0 0
        %7692 = vmatprep.subr.bf16.mxu0 0
        %7693 = vmatpush1.bf16.msra.mxu0 0
        %7694 = vmatprep.subr.bf16.mxu0 0
        %7695 = vmatpush1.bf16.msra.mxu0 0
        %7696 = vmatprep.mubr.bf16.mxu0 0
        %7697 = vmatmul.mubr.bf16.gmra.mrb[0].mxu0 %v7653
        %v7698 = vpop.f32.mrb[0].mxu0
        %v7699 = vadd.f32 0.0, %v7698
        %v7700 = vpop.f32.mrb[0].mxu0
        %v7701 = vpop.f32.mrb[0].mxu0
        %v7702 = vadd.f32 0.0, %v7701
        %v7703 = vpop.f32.mrb[0].mxu0
        %7704 = vmatprep.mubr.bf16.mxu0 0
        %7705 = vmatmul.mubr.bf16.gmra.mrb[0].mxu0 %v7656
        %v7706 = vpop.f32.mrb[0].mxu0
        %v7707 = vadd.f32 0.0, %v7706
        %v7708 = vpop.f32.mrb[0].mxu0
        %v7709 = vpop.f32.mrb[0].mxu0
        %v7710 = vadd.f32 0.0, %v7709
        %v7711 = vpop.f32.mrb[0].mxu0
        %7712 = vmatprep.mubr.bf16.mxu0 0
        %7713 = vmatmul.mubr.bf16.gmra.mrb[0].mxu0 %v7659
        %v7714 = vpop.f32.mrb[0].mxu0
        %v7715 = vadd.f32 0.0, %v7714
        %v7716 = vpop.f32.mrb[0].mxu0
        %v7717 = vpop.f32.mrb[0].mxu0
        %v7718 = vadd.f32 0.0, %v7717
        %v7719 = vpop.f32.mrb[0].mxu0
        %7720 = vmatprep.mubr.bf16.mxu0 0
        %7721 = vmatmul.mubr.bf16.gmra.mrb[0].mxu0 %v7662
        %v7722 = vpop.f32.mrb[0].mxu0
        %v7723 = vadd.f32 0.0, %v7722
        %v7724 = vpop.f32.mrb[0].mxu0
        %v7725 = vpop.f32.mrb[0].mxu0
        %v7726 = vadd.f32 0.0, %v7725
        %v7727 = vpop.f32.mrb[0].mxu0
        %7728 = vdwg.mxu0
        %v7729 = vlaneseq
        %v7730 = vshrl.u32 %v7729, 7
        %v7731 = vsub.s32 7, %v7730
        %v7732 = vrot.slane %v7699, %v7731
        %v7733 = vlaneseq
        %v7734 = vshrl.u32 %v7733, 7
        %v7735 = vsub.s32 7, %v7734
        %v7736 = vrot.slane %v7702, %v7735
        %v7737 = vlaneseq
        %v7738 = vshrl.u32 %v7737, 7
        %v7739 = vsub.s32 7, %v7738
        %v7740 = vrot.slane %v7707, %v7739
        %v7741 = vlaneseq
        %v7742 = vshrl.u32 %v7741, 7
        %v7743 = vsub.s32 7, %v7742
        %v7744 = vrot.slane %v7710, %v7743
        %v7745 = vlaneseq
        %v7746 = vshrl.u32 %v7745, 7
        %v7747 = vsub.s32 7, %v7746
        %v7748 = vrot.slane %v7715, %v7747
        %v7749 = vlaneseq
        %v7750 = vshrl.u32 %v7749, 7
        %v7751 = vsub.s32 7, %v7750
        %v7752 = vrot.slane %v7718, %v7751
        %v7753 = vlaneseq
        %v7754 = vshrl.u32 %v7753, 7
        %v7755 = vsub.s32 7, %v7754
        %v7756 = vrot.slane %v7723, %v7755
        %v7757 = vlaneseq
        %v7758 = vshrl.u32 %v7757, 7
        %v7759 = vsub.s32 7, %v7758
        %v7760 = vrot.slane %v7726, %v7759
        %v7761 = vmul.f32 %v7699, %v7732
        %v7762 = vmul.f32 %v7702, %v7736
        %v7763 = vmul.f32 %v7707, %v7740
        %v7764 = vmul.f32 %v7710, %v7744
        %v7765 = vmul.f32 %v7715, %v7748
        %v7766 = vmul.f32 %v7718, %v7752
        %v7767 = vmul.f32 %v7723, %v7756
        %v7768 = vmul.f32 %v7726, %v7760
        %v7769 = vsel %vm449, %v7761, 0.0
        %7770 = vadd.xlane.f32.xlu0 %v7769
        %v7771 = vpop.xlane.xlu0 %7770
        %v7772 = vsel %vm449, %v7762, 0.0
        %7773 = vadd.xlane.f32.xlu0 %v7772
        %v7774 = vpop.xlane.xlu0 %7773
        %v7775 = vsel %vm449, %v7763, 0.0
        %7776 = vadd.xlane.f32.xlu0 %v7775
        %v7777 = vpop.xlane.xlu0 %7776
        %v7778 = vsel %vm449, %v7764, 0.0
        %7779 = vadd.xlane.f32.xlu0 %v7778
        %v7780 = vpop.xlane.xlu0 %7779
        %v7781 = vsel %vm449, %v7765, 0.0
        %7782 = vadd.xlane.f32.xlu0 %v7781
        %v7783 = vpop.xlane.xlu0 %7782
        %v7784 = vsel %vm449, %v7766, 0.0
        %7785 = vadd.xlane.f32.xlu0 %v7784
        %v7786 = vpop.xlane.xlu0 %7785
        %v7787 = vsel %vm449, %v7767, 0.0
        %7788 = vadd.xlane.f32.xlu0 %v7787
        %v7789 = vpop.xlane.xlu0 %7788
        %v7790 = vsel %vm449, %v7768, 0.0
        %7791 = vadd.xlane.f32.xlu0 %v7790
        %v7792 = vpop.xlane.xlu0 %7791
        %v7801 = vlaneseq
        %v7802 = vand.u32 %v7801, 127
        %v7803 = vlaneseq
        %v7804 = vshrl.u32 %v7803, 7
        %v7805 = vsub.s32 %v7802, %v7804
        %v7806 = vrot.slane %v7771, %v7805
        %v7807 = vlaneseq
        %v7808 = vshrl.u32 %v7807, 7
        %v7809 = vsub.s32 %v7802, %v7808
        %v7810 = vrot.slane %v7774, %v7809
        %v7811 = vlaneseq
        %v7812 = vshrl.u32 %v7811, 7
        %v7813 = vsub.s32 %v7802, %v7812
        %v7814 = vrot.slane %v7777, %v7813
        %v7815 = vlaneseq
        %v7816 = vshrl.u32 %v7815, 7
        %v7817 = vsub.s32 %v7802, %v7816
        %v7818 = vrot.slane %v7780, %v7817
        %v7819 = vlaneseq
        %v7820 = vshrl.u32 %v7819, 7
        %v7821 = vsub.s32 %v7802, %v7820
        %v7822 = vrot.slane %v7783, %v7821
        %v7823 = vlaneseq
        %v7824 = vshrl.u32 %v7823, 7
        %v7825 = vsub.s32 %v7802, %v7824
        %v7826 = vrot.slane %v7786, %v7825
        %v7827 = vlaneseq
        %v7828 = vshrl.u32 %v7827, 7
        %v7829 = vsub.s32 %v7802, %v7828
        %v7830 = vrot.slane %v7789, %v7829
        %v7831 = vlaneseq
        %v7832 = vshrl.u32 %v7831, 7
        %v7833 = vsub.s32 %v7802, %v7832
        %v7834 = vrot.slane %v7792, %v7833
        %vm7835 = vcmask 1041409
        %v7836 = vsel %vm7835, %v7810, %v7806
        %vm7837 = vcmask 1042434
        %v7838 = vsel %vm7837, %v7814, %v7836
        %vm7839 = vcmask 1043459
        %v7840 = vsel %vm7839, %v7818, %v7838
        %vm7841 = vcmask 1044484
        %v7842 = vsel %vm7841, %v7822, %v7840
        %vm7843 = vcmask 1045509
        %v7844 = vsel %vm7843, %v7826, %v7842
        %vm7845 = vcmask 1046534
        %v7846 = vsel %vm7845, %v7830, %v7844
        %vm7847 = vcmask 1047559
        %v7848 = vsel %vm7847, %v7834, %v7846
        %v7850 = vsel %vm683, %v7848, -inf
        %7851 = vmax.xlane.f32.xlu0 %v7850
        %v7852 = vpop.xlane.xlu0 %7851
        %v7854 = vlaneseq
        %v7855 = vshrl.u32 %v7854, 7
        %v7856 = vsub.s32 0, %v7855
        %v7857 = vrot.slane %v7852, %v7856
        %v7858 = vlaneseq
        %v7859 = vshrl.u32 %v7858, 7
        %v7860 = vsub.s32 1, %v7859
        %v7861 = vrot.slane %v7852, %v7860
        %v7862 = vlaneseq
        %v7863 = vshrl.u32 %v7862, 7
        %v7864 = vsub.s32 2, %v7863
        %v7865 = vrot.slane %v7852, %v7864
        %v7866 = vlaneseq
        %v7867 = vshrl.u32 %v7866, 7
        %v7868 = vsub.s32 3, %v7867
        %v7869 = vrot.slane %v7852, %v7868
        %v7870 = vlaneseq
        %v7871 = vshrl.u32 %v7870, 7
        %v7872 = vsub.s32 4, %v7871
        %v7873 = vrot.slane %v7852, %v7872
        %v7874 = vlaneseq
        %v7875 = vshrl.u32 %v7874, 7
        %v7876 = vsub.s32 5, %v7875
        %v7877 = vrot.slane %v7852, %v7876
        %v7878 = vlaneseq
        %v7879 = vshrl.u32 %v7878, 7
        %v7880 = vsub.s32 6, %v7879
        %v7881 = vrot.slane %v7852, %v7880
        %v7882 = vlaneseq
        %v7883 = vshrl.u32 %v7882, 7
        %v7884 = vsub.s32 7, %v7883
        %v7885 = vrot.slane %v7852, %v7884
        %v7894 = vsub.f32 %v7771, %v7857
        %v7895 = vsub.f32 %v7774, %v7861
        %v7896 = vsub.f32 %v7777, %v7865
        %v7897 = vsub.f32 %v7780, %v7869
        %v7898 = vsub.f32 %v7783, %v7873
        %v7899 = vsub.f32 %v7786, %v7877
        %v7900 = vsub.f32 %v7789, %v7881
        %v7901 = vsub.f32 %v7792, %v7885
        %v7902 = vmul.f32 %v7894, 1.442695
        %v7903 = vpow.pop %v7902
        %v7904 = vmul.f32 %v7895, 1.442695
        %v7905 = vpow.pop %v7904
        %v7906 = vmul.f32 %v7896, 1.442695
        %v7907 = vpow.pop %v7906
        %v7908 = vmul.f32 %v7897, 1.442695
        %v7909 = vpow.pop %v7908
        %v7910 = vmul.f32 %v7898, 1.442695
        %v7911 = vpow.pop %v7910
        %v7912 = vmul.f32 %v7899, 1.442695
        %v7913 = vpow.pop %v7912
        %v7914 = vmul.f32 %v7900, 1.442695
        %v7915 = vpow.pop %v7914
        %v7916 = vmul.f32 %v7901, 1.442695
        %v7917 = vpow.pop %v7916
        %7926 = vset.pattern.permute.xlu0 0
        %7927 = vperm.xlu0 %7926, %v7903
        %v7928 = vpop.permute.xlu0 %7927
        %7929 = vset.pattern.permute.xlu0 0
        %7930 = vperm.xlu0 %7929, %v7905
        %v7931 = vpop.permute.xlu0 %7930
        %7932 = vset.pattern.permute.xlu0 0
        %7933 = vperm.xlu0 %7932, %v7907
        %v7934 = vpop.permute.xlu0 %7933
        %7935 = vset.pattern.permute.xlu0 0
        %7936 = vperm.xlu0 %7935, %v7909
        %v7937 = vpop.permute.xlu0 %7936
        %7938 = vset.pattern.permute.xlu0 0
        %7939 = vperm.xlu0 %7938, %v7911
        %v7940 = vpop.permute.xlu0 %7939
        %7941 = vset.pattern.permute.xlu0 0
        %7942 = vperm.xlu0 %7941, %v7913
        %v7943 = vpop.permute.xlu0 %7942
        %7944 = vset.pattern.permute.xlu0 0
        %7945 = vperm.xlu0 %7944, %v7915
        %v7946 = vpop.permute.xlu0 %7945
        %7947 = vset.pattern.permute.xlu0 0
        %7948 = vperm.xlu0 %7947, %v7917
        %v7949 = vpop.permute.xlu0 %7948
        %v7950 = vlaneseq
        %v7951 = vshrl.u32 %v7950, 7
        %v7952 = vsub.s32 %v7802, %v7951
        %v7953 = vrot.slane %v7928, %v7952
        %v7954 = vlaneseq
        %v7955 = vshrl.u32 %v7954, 7
        %v7956 = vsub.s32 %v7802, %v7955
        %v7957 = vrot.slane %v7931, %v7956
        %v7958 = vlaneseq
        %v7959 = vshrl.u32 %v7958, 7
        %v7960 = vsub.s32 %v7802, %v7959
        %v7961 = vrot.slane %v7934, %v7960
        %v7962 = vlaneseq
        %v7963 = vshrl.u32 %v7962, 7
        %v7964 = vsub.s32 %v7802, %v7963
        %v7965 = vrot.slane %v7937, %v7964
        %v7966 = vlaneseq
        %v7967 = vshrl.u32 %v7966, 7
        %v7968 = vsub.s32 %v7802, %v7967
        %v7969 = vrot.slane %v7940, %v7968
        %v7970 = vlaneseq
        %v7971 = vshrl.u32 %v7970, 7
        %v7972 = vsub.s32 %v7802, %v7971
        %v7973 = vrot.slane %v7943, %v7972
        %v7974 = vlaneseq
        %v7975 = vshrl.u32 %v7974, 7
        %v7976 = vsub.s32 %v7802, %v7975
        %v7977 = vrot.slane %v7946, %v7976
        %v7978 = vlaneseq
        %v7979 = vshrl.u32 %v7978, 7
        %v7980 = vsub.s32 %v7802, %v7979
        %v7981 = vrot.slane %v7949, %v7980
        %v7982 = vsel %vm7835, %v7957, %v7953
        %v7983 = vsel %vm7837, %v7961, %v7982
        %v7984 = vsel %vm7839, %v7965, %v7983
        %v7985 = vsel %vm7841, %v7969, %v7984
        %v7986 = vsel %vm7843, %v7973, %v7985
        %v7987 = vsel %vm7845, %v7977, %v7986
        %v7988 = vsel %vm7847, %v7981, %v7987
        %v7990 = vsel %vm683, %v7988, 0.0
        %7991 = vadd.xlane.f32.xlu0 %v7990
        %v7992 = vpop.xlane.xlu0 %7991
        %v7993 = vrcp.pop %v7992
        %v7995 = vlaneseq
        %v7996 = vshrl.u32 %v7995, 7
        %v7997 = vsub.s32 0, %v7996
        %v7998 = vrot.slane %v7993, %v7997
        %v7999 = vlaneseq
        %v8000 = vshrl.u32 %v7999, 7
        %v8001 = vsub.s32 1, %v8000
        %v8002 = vrot.slane %v7993, %v8001
        %v8003 = vlaneseq
        %v8004 = vshrl.u32 %v8003, 7
        %v8005 = vsub.s32 2, %v8004
        %v8006 = vrot.slane %v7993, %v8005
        %v8007 = vlaneseq
        %v8008 = vshrl.u32 %v8007, 7
        %v8009 = vsub.s32 3, %v8008
        %v8010 = vrot.slane %v7993, %v8009
        %v8011 = vlaneseq
        %v8012 = vshrl.u32 %v8011, 7
        %v8013 = vsub.s32 4, %v8012
        %v8014 = vrot.slane %v7993, %v8013
        %v8015 = vlaneseq
        %v8016 = vshrl.u32 %v8015, 7
        %v8017 = vsub.s32 5, %v8016
        %v8018 = vrot.slane %v7993, %v8017
        %v8019 = vlaneseq
        %v8020 = vshrl.u32 %v8019, 7
        %v8021 = vsub.s32 6, %v8020
        %v8022 = vrot.slane %v7993, %v8021
        %v8023 = vlaneseq
        %v8024 = vshrl.u32 %v8023, 7
        %v8025 = vsub.s32 7, %v8024
        %v8026 = vrot.slane %v7993, %v8025
        %v8035 = vmul.f32 %v7903, %v7998
        %v8036 = vmul.f32 %v7905, %v8002
        %v8037 = vmul.f32 %v7907, %v8006
        %v8038 = vmul.f32 %v7909, %v8010
        %v8039 = vmul.f32 %v7911, %v8014
        %v8040 = vmul.f32 %v7913, %v8018
        %v8041 = vmul.f32 %v7915, %v8022
        %v8042 = vmul.f32 %v7917, %v8026
        %8044 = vset.pattern.permute.xlu0 0
        %8045 = vperm.xlu0 %8044, %v8035
        %v8046 = vpop.permute.xlu0 %8045
        %8049 = vset.pattern.permute.xlu0 0
        %8050 = vperm.xlu0 %8049, %v8036
        %v8051 = vpop.permute.xlu0 %8050
        %8054 = vset.pattern.permute.xlu0 0
        %8055 = vperm.xlu0 %8054, %v8037
        %v8056 = vpop.permute.xlu0 %8055
        %8059 = vset.pattern.permute.xlu0 0
        %8060 = vperm.xlu0 %8059, %v8038
        %v8061 = vpop.permute.xlu0 %8060
        %8064 = vset.pattern.permute.xlu0 0
        %8065 = vperm.xlu0 %8064, %v8039
        %v8066 = vpop.permute.xlu0 %8065
        %8069 = vset.pattern.permute.xlu0 0
        %8070 = vperm.xlu0 %8069, %v8040
        %v8071 = vpop.permute.xlu0 %8070
        %8074 = vset.pattern.permute.xlu0 0
        %8075 = vperm.xlu0 %8074, %v8041
        %v8076 = vpop.permute.xlu0 %8075
        %8079 = vset.pattern.permute.xlu0 0
        %8080 = vperm.xlu0 %8079, %v8042
        %v8081 = vpop.permute.xlu0 %8080
        %v8083 = vmul.f32 %v8046, %v7628
        %v8084 = vmul.f32 %v8051, %v7629
        %v8085 = vmul.f32 %v8056, %v7630
        %v8086 = vmul.f32 %v8061, %v7631
        %v8087 = vmul.f32 %v8066, %v7632
        %v8088 = vmul.f32 %v8071, %v7633
        %v8089 = vmul.f32 %v8076, %v7634
        %v8090 = vmul.f32 %v8081, %v7635
        %v8091 = vsel %vm449, %v8083, 0.0
        %v8092 = vrot.slane %v8091, 4
        %v8093 = vadd.f32 %v8091, %v8092
        %v8094 = vrot.slane %v8093, 2
        %v8095 = vadd.f32 %v8093, %v8094
        %v8096 = vrot.slane %v8095, 1
        %v8097 = vadd.f32 %v8095, %v8096
        %v8098 = vsel %vm449, %v8084, 0.0
        %v8099 = vrot.slane %v8098, 4
        %v8100 = vadd.f32 %v8098, %v8099
        %v8101 = vrot.slane %v8100, 2
        %v8102 = vadd.f32 %v8100, %v8101
        %v8103 = vrot.slane %v8102, 1
        %v8104 = vadd.f32 %v8102, %v8103
        %v8105 = vsel %vm449, %v8085, 0.0
        %v8106 = vrot.slane %v8105, 4
        %v8107 = vadd.f32 %v8105, %v8106
        %v8108 = vrot.slane %v8107, 2
        %v8109 = vadd.f32 %v8107, %v8108
        %v8110 = vrot.slane %v8109, 1
        %v8111 = vadd.f32 %v8109, %v8110
        %v8112 = vsel %vm449, %v8086, 0.0
        %v8113 = vrot.slane %v8112, 4
        %v8114 = vadd.f32 %v8112, %v8113
        %v8115 = vrot.slane %v8114, 2
        %v8116 = vadd.f32 %v8114, %v8115
        %v8117 = vrot.slane %v8116, 1
        %v8118 = vadd.f32 %v8116, %v8117
        %v8119 = vsel %vm449, %v8087, 0.0
        %v8120 = vrot.slane %v8119, 4
        %v8121 = vadd.f32 %v8119, %v8120
        %v8122 = vrot.slane %v8121, 2
        %v8123 = vadd.f32 %v8121, %v8122
        %v8124 = vrot.slane %v8123, 1
        %v8125 = vadd.f32 %v8123, %v8124
        %v8126 = vsel %vm449, %v8088, 0.0
        %v8127 = vrot.slane %v8126, 4
        %v8128 = vadd.f32 %v8126, %v8127
        %v8129 = vrot.slane %v8128, 2
        %v8130 = vadd.f32 %v8128, %v8129
        %v8131 = vrot.slane %v8130, 1
        %v8132 = vadd.f32 %v8130, %v8131
        %v8133 = vsel %vm449, %v8089, 0.0
        %v8134 = vrot.slane %v8133, 4
        %v8135 = vadd.f32 %v8133, %v8134
        %v8136 = vrot.slane %v8135, 2
        %v8137 = vadd.f32 %v8135, %v8136
        %v8138 = vrot.slane %v8137, 1
        %v8139 = vadd.f32 %v8137, %v8138
        %v8140 = vsel %vm449, %v8090, 0.0
        %v8141 = vrot.slane %v8140, 4
        %v8142 = vadd.f32 %v8140, %v8141
        %v8143 = vrot.slane %v8142, 2
        %v8144 = vadd.f32 %v8142, %v8143
        %v8145 = vrot.slane %v8144, 1
        %v8146 = vadd.f32 %v8144, %v8145
        %v8147 = vpack.c.bf16 %v341, %v341
        %v8148 = vpack.c.bf16 %v8097, %v8097
        %v8149 = vpack.c.bf16 %v8104, %v8104
        %v8150 = vpack.c.bf16 %v8111, %v8111
        %v8151 = vpack.c.bf16 %v8118, %v8118
        %v8152 = vpack.c.bf16 %v8125, %v8125
        %v8153 = vpack.c.bf16 %v8132, %v8132
        %v8154 = vpack.c.bf16 %v8139, %v8139
        %v8155 = vpack.c.bf16 %v8146, %v8146
        %8156 = vset.pattern.permute.xlu0 0
        %8157 = vperm.xlu0 %8156, %v341
        %v8158 = vpop.permute.xlu0 %8157
        %v8160 = vshrl.u32 %v8147, 16
        %v8162 = vrot.slane %v8160, 2
        %v8171 = vunpack.c.l.b16 %v8148
        %v8172 = vunpack.c.l.b16 %v8149
        %v8173 = vunpack.c.l.b16 %v8150
        %v8174 = vunpack.c.l.b16 %v8151
        %v8175 = vunpack.c.l.b16 %v8152
        %v8176 = vunpack.c.l.b16 %v8153
        %v8177 = vunpack.c.l.b16 %v8154
        %v8178 = vunpack.c.l.b16 %v8155
        %v8179 = vsel %vm7835, %v8172, %v8171
        %v8180 = vsel %vm7837, %v8173, %v8179
        %v8181 = vsel %vm7839, %v8174, %v8180
        %v8182 = vsel %vm7841, %v8175, %v8181
        %v8183 = vsel %vm7843, %v8176, %v8182
        %v8184 = vsel %vm7845, %v8177, %v8183
        %v8185 = vsel %vm7847, %v8178, %v8184
        %v8186 = vpack.c.b16 %v8185, %v8185
        %v8187 = vrot.slane %v8158, 6
        %v8190 = vsel %vm449, %v8162, 0
        %v8193 = vsel %vm449, %v8186, 0
        %8195 = vmatprep.subr.bf16.mxu0 0
        %8196 = vmatpush1.bf16.xpose.msra.mxu0 %v8193
        %8197 = vmatprep.subr.bf16.mxu0 0
        %8198 = vmatpush1.bf16.xpose.msra.mxu0 0
        %8199 = vmatprep.subr.bf16.mxu0 0
        %8200 = vmatpush1.bf16.xpose.msra.mxu0 0
        %8201 = vmatprep.subr.bf16.mxu0 0
        %8202 = vmatpush1.bf16.xpose.msra.mxu0 0
        %8203 = vmatprep.subr.bf16.mxu0 0
        %8204 = vmatpush1.bf16.xpose.msra.mxu0 0
        %8205 = vmatprep.subr.bf16.mxu0 0
        %8206 = vmatpush1.bf16.xpose.msra.mxu0 0
        %8207 = vmatprep.subr.bf16.mxu0 0
        %8208 = vmatpush1.bf16.xpose.msra.mxu0 0
        %8209 = vmatprep.subr.bf16.mxu0 0
        %8210 = vmatpush1.bf16.xpose.msra.mxu0 0
        %8211 = vmatprep.subr.bf16.mxu0 0
        %8212 = vmatpush1.bf16.xpose.msra.mxu0 0
        %8213 = vmatprep.subr.bf16.mxu0 0
        %8214 = vmatpush1.bf16.xpose.msra.mxu0 0
        %8215 = vmatprep.subr.bf16.mxu0 0
        %8216 = vmatpush1.bf16.xpose.msra.mxu0 0
        %8217 = vmatprep.subr.bf16.mxu0 0
        %8218 = vmatpush1.bf16.xpose.msra.mxu0 0
        %8219 = vmatprep.subr.bf16.mxu0 0
        %8220 = vmatpush1.bf16.xpose.msra.mxu0 0
        %8221 = vmatprep.subr.bf16.mxu0 0
        %8222 = vmatpush1.bf16.xpose.msra.mxu0 0
        %8223 = vmatprep.subr.bf16.mxu0 0
        %8224 = vmatpush1.bf16.xpose.msra.mxu0 0
        %8225 = vmatprep.subr.bf16.mxu0 0
        %8226 = vmatpush1.bf16.xpose.msra.mxu0 0
        %8227 = vmatprep.mubr.bf16.mxu0 0
        %8228 = vmatmul.mubr.bf16.gmra.mrb[0].mxu0 %v8190
        %v8229 = vpop.f32.mrb[0].mxu0
        %v8230 = vadd.f32 %v8187, %v8229
        %v8231 = vpop.f32.mrb[0].mxu0
        %v8232 = vpop.f32.mrb[0].mxu0
        %v8233 = vpop.f32.mrb[0].mxu0
        %8234 = vdwg.mxu0
        %vm8235 = vcmask 57344
        %v8236 = vsel %vm8235, %v8230, 0.0
        %8237 = vadd.xlane.f32.xlu0 %v8236
        %v8238 = vpop.xlane.xlu0 %8237
        %v8239 = vrcp.pop 8.0
        %v8240 = vmul.f32 %v8238, %v8239
        %v8241 = vsub.f32 %v8230, %v8240
        %8242 = vst.msk [vmem:[%s299] sm:$0x1] %vm8235, %v8241
        %s8243 = sand.u32 %s142, 1
        %s8244 = scalar_lea.sflag [#allocation4], %s8243
        %s8245 = sand.u32 %s142, 1
        %s8246 = scalar_lea.vmem [#allocation11], %s8245
        // Predicated region
        $region61: #{tpu_custom_call.1} parent=39 // pred_check
          %p8247 = pneg %p152
        $region62: #{tpu_custom_call.1} parent=39 // pred_check_branch
          %8249 = sbr.rel (%p8247) target = $region64
        $region63: #{tpu_custom_call.1} parent=39 // pred_region
          %s8251 = ssub.s32 16, 16
          %8252 = vsyncadd %s8244, %s8251
          %s8253 = smul.addr %s24, 16
          %s8254 = scalar_lea.hbm %s5, %s8253
          %s8256 = sshll.u32 %s8246, 4
          %s8257 = int_to_ptr.vmem [resolvable:$true] %s8256
          %8259 = dma.vmem_to_hbm [thread:$0]  %s8257, 16, %s8254, %s8244
        $region64: #{tpu_custom_call.1} parent=39 // pred_fallthru
          _
      $region40: #{tpu_custom_call.1} parent=5 // pred_fallthru
        _
      %p8260 = scmp.le.s32.totalorder 2, %s19
      // Predicated region
      $region65: #{tpu_custom_call.1} parent=5 // pred_check
        %p8261 = pneg %p8260
      $region66: #{tpu_custom_call.1} parent=5 // pred_check_branch
        %8263 = sbr.rel (%p8261) target = $region68
      $region67: #{tpu_custom_call.1} parent=5 // pred_region
        %s8264 = ssub.s32 %s19, 2
        // Predicated region
        $region69: #{tpu_custom_call.1} parent=67 // pred_check
          %p8265 = pneg %p158
        $region70: #{tpu_custom_call.1} parent=67 // pred_check_branch
          %8267 = sbr.rel (%p8265) target = $region72
        $region71: #{tpu_custom_call.1} parent=67 // pred_region
          %s8268 = sand.u32 %s143, 1
          %s8269 = scalar_lea.sflag [#allocation4], %s8268
          %s8270 = sand.u32 %s143, 1
          %s8271 = scalar_lea.vmem [#allocation11], %s8270
          %8272 = dma.done %s8269, 16
        $region72: #{tpu_custom_call.1} parent=67 // pred_fallthru
          _
      $region68: #{tpu_custom_call.1} parent=5 // pred_fallthru
        _
    $region6: #{tpu_custom_call.1} parent=1 // loop_footer
      %s23 = sadd.s32 1, %s19
    $region7: #{tpu_custom_call.1} parent=1 // loop_footer_branch
      %18 = sbr.rel target = $region3
    $region8: #{tpu_custom_call.1} parent=1 // loop_exit
      _
    %8273 = vsyncpa [#allocation3], 1
    %s8274 = scalar_lea.sflag [#allocation3], 1
    %8275 = vsyncpa %s8274, 1
    %8276 = vsyncpa [#allocation6], 1
    %8277 = vsyncpa [#allocation9], 1
    %8278 = vsyncpa [#allocation4], 1
    %s8279 = scalar_lea.sflag [#allocation4], 1
    %8280 = vsyncpa %s8279, 1

</llo_original>
